<compile_context>
chip_gen: v6e
topology: v6e:2x2x1
jax: 0.10.0
libtpu: 0.0.40
codegen_flags: <defaults>
</compile_context>

<pallas_src>
import jax
import jax.numpy as jnp
from jax.experimental import pallas as pl
from jax.experimental.pallas import tpu as pltpu

D_MODEL = 128
D_FF = 128
N_HEADS = 8
HEAD_DIM = D_MODEL // N_HEADS
E_LAYERS = 3
LN_EPS = 1e-5  # torch.nn.LayerNorm default

_W_PER_LAYER = 12                              # wqkv,bqkv,wo,bo,w1,b1,w2,b2,g1,be1,g2,be2
_N_WEIGHTS = 2 + _W_PER_LAYER * E_LAYERS + 4   # emb(2) + layers + norm/proj(4) = 42


# ---------------------------------------------------------------------------
# In-kernel helpers
# ---------------------------------------------------------------------------
def _layer_norm(x, gamma, beta):
    # x: (M, D); gamma/beta: (1, D).  Biased variance (matches torch).
    mu = jnp.mean(x, axis=-1, keepdims=True)
    var = jnp.mean((x - mu) ** 2, axis=-1, keepdims=True)
    return (x - mu) * jax.lax.rsqrt(var + LN_EPS) * gamma + beta


def _mm(a, w_ref):
    # bf16 MXU operands, fp32 accumulation (weights are already bf16 in VMEM).
    return jnp.dot(a.astype(jnp.bfloat16), w_ref[...],
                   preferred_element_type=jnp.float32)


# ---------------------------------------------------------------------------
# Fused kernel: embedding + 3 encoder layers + final norm + projection
# ---------------------------------------------------------------------------
def fused_forward_kernel(x_ref, *refs):
    w = refs[:_N_WEIGHTS]
    dec_ref = refs[_N_WEIGHTS]
    attn_refs = refs[_N_WEIGHTS + 1:]

    B_blk, N, L = x_ref.shape
    M = B_blk * N
    scale = 1.0 / (HEAD_DIM ** 0.5)   # 0.25 -> exact power of two

    # --- inverted embedding: Linear(L -> d_model) per variate token ---
    emb_w, emb_b = w[0], w[1]
    h = _mm(x_ref[...].reshape(M, L), emb_w) + emb_b[...]        # (M, D) fp32

    # --- encoder layers (unrolled) ---
    for l in range(E_LAYERS):
        base = 2 + _W_PER_LAYER * l
        (wqkv, bqkv, wo, bo, w1, b1, w2, b2,
         g1, be1, g2, be2) = w[base:base + _W_PER_LAYER]

        # fused QKV projection: one (M,128) x (128,384) matmul
        qkv = _mm(h, wqkv) + bqkv[...]                            # (M, 3D) fp32
        # scale folded into Q (exact for power-of-two scale); single bf16 cast
        # of each of Q/K/V for all heads (instead of 3*H per-head casts).
        q = (qkv[:, :D_MODEL] * scale).astype(jnp.bfloat16).reshape(
            B_blk, N, D_MODEL)
        k = qkv[:, D_MODEL:2 * D_MODEL].astype(jnp.bfloat16).reshape(
            B_blk, N, D_MODEL)
        v = qkv[:, 2 * D_MODEL:].astype(jnp.bfloat16).reshape(
            B_blk, N, D_MODEL)

        head_out, head_attn = [], []
        for hh in range(N_HEADS):
            sl = slice(hh * HEAD_DIM, (hh + 1) * HEAD_DIM)
            # batched over the batch block (one einsum per head, not per batch)
            s = jnp.einsum('bqd,bkd->bqk', q[:, :, sl], k[:, :, sl],
                           preferred_element_type=jnp.float32)
            s = s - jnp.max(s, axis=-1, keepdims=True)
            p = jnp.exp(s)
            a = p * pl.reciprocal(jnp.sum(p, axis=-1, keepdims=True),
                                  approx=True)                    # softmax
            head_attn.append(a)
            head_out.append(jnp.einsum('bqk,bkd->bqd', a.astype(jnp.bfloat16),
                                       v[:, :, sl],
                                       preferred_element_type=jnp.float32))

        # lane-dense attention-map store: last dim H*N (>=64), one store/layer
        attn_refs[l][...] = jnp.concatenate(head_attn, axis=-1)

        attn_out = jnp.concatenate(head_out, axis=-1).reshape(M, D_MODEL)
        attn_out = _mm(attn_out, wo) + bo[...]

        # residual + norm1
        x1 = _layer_norm(h + attn_out, g1[...], be1[...])
        # pointwise-conv FFN (Conv1d k=1 == per-token Linear), relu
        y = jnp.maximum(_mm(x1, w1) + b1[...], 0.0)
        y = _mm(y, w2) + b2[...]
        # residual + norm2
        h = _layer_norm(x1 + y, g2[...], be2[...])

    # --- final encoder LayerNorm + projection Linear(d_model -> win_size) ---
    norm_g, norm_b, proj_w, proj_b = w[2 + _W_PER_LAYER * E_LAYERS:]
    hn = _layer_norm(h, norm_g[...], norm_b[...])
    dec = _mm(hn, proj_w) + proj_b[...]
    dec_ref[...] = dec.reshape(B_blk, N, dec_ref.shape[-1])


# ---------------------------------------------------------------------------
# pallas_call wrapper
# ---------------------------------------------------------------------------
def _const_spec(shape):
    nd = len(shape)
    return pl.BlockSpec(shape, lambda i, _nd=nd: (0,) * _nd)


def _pick_batch_block(B, N, target_rows=128):
    # Largest divisor of B keeping B_blk*N near 128 MXU rows.
    b = max(1, min(B, max(1, target_rows // max(N, 1))))
    while B % b:
        b -= 1
    return b


def scnor_transformer_forward(params, x_enc):
    # x_enc: [B, L, N] with L == win_size
    B, L, N = x_enc.shape
    win_size = params["proj_w"].shape[1]
    B_blk = _pick_batch_block(B, N)
    grid = (B // B_blk,)

    # DataEmbedding_Conversion permute: [B, L, N] -> [B, N, L] (x_mark=None).
    x_tok = jnp.transpose(x_enc, (0, 2, 1)).astype(jnp.float32)

    # Flatten weights; matmul weights cast to bf16 once (halves weight DMA),
    # biases / LayerNorm params stay fp32.
    bf = lambda a: a.astype(jnp.bfloat16)
    weights = [bf(params["emb_w"]), params["emb_b"]]
    for lp in params["layers"]:
        weights += [
            bf(lp["wqkv"]), lp["bqkv"], bf(lp["wo"]), lp["bo"],
            bf(lp["w1"]), lp["b1"], bf(lp["w2"]), lp["b2"],
            lp["g1"], lp["be1"], lp["g2"], lp["be2"],
        ]
    weights += [params["norm_g"], params["norm_b"],
                bf(params["proj_w"]), params["proj_b"]]
    assert len(weights) == _N_WEIGHTS

    in_specs = [pl.BlockSpec((B_blk, N, L), lambda i: (i, 0, 0))]
    in_specs += [_const_spec(w.shape) for w in weights]

    # NOTE: for very large N the (B, N, H*N) attention maps should be tiled
    # over query blocks (v7x 64 MiB VMEM); at these sizes one block is fine.
    out_shape = (jax.ShapeDtypeStruct((B, N, win_size), jnp.float32),) + tuple(
        jax.ShapeDtypeStruct((B, N, N_HEADS * N), jnp.float32)
        for _ in range(E_LAYERS))
    out_specs = (pl.BlockSpec((B_blk, N, win_size), lambda i: (i, 0, 0)),) + tuple(
        pl.BlockSpec((B_blk, N, N_HEADS * N), lambda i: (i, 0, 0))
        for _ in range(E_LAYERS))

    outs = pl.pallas_call(
        fused_forward_kernel,
        out_shape=out_shape,
        grid=grid,
        in_specs=in_specs,
        out_specs=out_specs,
        compiler_params=pltpu.CompilerParams(
            dimension_semantics=("parallel",)),   # batch blocks independent
    )(x_tok, *weights)

    proj = outs[0]                                        # (B, N, win_size)
    dec_out = jnp.transpose(proj, (0, 2, 1))[:, :, :N]    # (B, win_size, N)
    # lane-dense kernel layout (B, N, H*N) -> PyTorch layout (B, H, N, N)
    attns = [jnp.transpose(a.reshape(B, N, N_HEADS, N), (0, 2, 1, 3))
             for a in outs[1:]]
    others = {}
    # TODO(synk): dropout layers (p=0.1) are identity here (inference semantics).
    return dec_out, attns, others


# ---------------------------------------------------------------------------
# Parameter init (deterministic, torch-like uniform fan-in init)
# ---------------------------------------------------------------------------
def init_params(key, win_size):
    def dense(k, fan_in, fan_out):
        kw, kb = jax.random.split(k)
        lim = 1.0 / float(fan_in) ** 0.5
        w = jax.random.uniform(kw, (fan_in, fan_out), jnp.float32, -lim, lim)
        b = jax.random.uniform(kb, (1, fan_out), jnp.float32, -lim, lim)
        return w, b

    ks = jax.random.split(key, 2 + E_LAYERS)
    emb_w, emb_b = dense(ks[0], win_size, D_MODEL)

    layers = []
    for i in range(E_LAYERS):
        lk = jax.random.split(ks[1 + i], 6)
        wq, bq = dense(lk[0], D_MODEL, D_MODEL)
        wk, bk = dense(lk[1], D_MODEL, D_MODEL)
        wv, bv = dense(lk[2], D_MODEL, D_MODEL)
        wo, bo = dense(lk[3], D_MODEL, D_MODEL)
        w1, b1 = dense(lk[4], D_MODEL, D_FF)
        w2, b2 = dense(lk[5], D_FF, D_MODEL)
        layers.append(dict(
            wqkv=jnp.concatenate([wq, wk, wv], axis=1),   # (128, 384)
            bqkv=jnp.concatenate([bq, bk, bv], axis=1),   # (1, 384)
            wo=wo, bo=bo, w1=w1, b1=b1, w2=w2, b2=b2,
            g1=jnp.ones((1, D_MODEL), jnp.float32),
            be1=jnp.zeros((1, D_MODEL), jnp.float32),
            g2=jnp.ones((1, D_MODEL), jnp.float32),
            be2=jnp.zeros((1, D_MODEL), jnp.float32),
        ))

    proj_w, proj_b = dense(ks[-1], D_MODEL, win_size)
    return dict(emb_w=emb_w, emb_b=emb_b, layers=layers,
                norm_g=jnp.ones((1, D_MODEL), jnp.float32),
                norm_b=jnp.zeros((1, D_MODEL), jnp.float32),
                proj_w=proj_w, proj_b=proj_b)


if __name__ == "__main__":
    key = jax.random.PRNGKey(0)
    pkey, xkey = jax.random.split(key)

    B, L, N = 2, 16, 8          # window = L = 16, N = 8 variates
    win_size = L

    params = init_params(pkey, win_size)
    x_enc = jax.random.normal(xkey, (B, L, N), dtype=jnp.float32)

    fwd = jax.jit(scnor_transformer_forward)
    dec_out, attns, others = fwd(params, x_enc)
    jax.block_until_ready(dec_out)
    jax.block_until_ready(attns)

    assert dec_out.shape == (B, win_size, N)
    assert len(attns) == E_LAYERS and attns[0].shape == (B, N_HEADS, N, N)
    assert bool(jnp.all(jnp.isfinite(dec_out)))
    # attention rows should sum to ~1 (softmax), sanity check
    assert bool(jnp.all(jnp.abs(jnp.sum(attns[0], axis=-1) - 1.0) < 1e-2))
    print("KERNEL_OK")
</pallas_src>

<mosaic_0001>
module attributes {stable_mosaic.version = 11 : i64} {
  func.func @fused_forward_kernel(%arg0: i32, %arg1: memref<2x8x16xf32, #tpu.memory_space<vmem>>, %arg2: memref<16x128xbf16, #tpu.memory_space<vmem>>, %arg3: memref<1x128xf32, #tpu.memory_space<vmem>>, %arg4: memref<128x384xbf16, #tpu.memory_space<vmem>>, %arg5: memref<1x384xf32, #tpu.memory_space<vmem>>, %arg6: memref<128x128xbf16, #tpu.memory_space<vmem>>, %arg7: memref<1x128xf32, #tpu.memory_space<vmem>>, %arg8: memref<128x128xbf16, #tpu.memory_space<vmem>>, %arg9: memref<1x128xf32, #tpu.memory_space<vmem>>, %arg10: memref<128x128xbf16, #tpu.memory_space<vmem>>, %arg11: memref<1x128xf32, #tpu.memory_space<vmem>>, %arg12: memref<1x128xf32, #tpu.memory_space<vmem>>, %arg13: memref<1x128xf32, #tpu.memory_space<vmem>>, %arg14: memref<1x128xf32, #tpu.memory_space<vmem>>, %arg15: memref<1x128xf32, #tpu.memory_space<vmem>>, %arg16: memref<128x384xbf16, #tpu.memory_space<vmem>>, %arg17: memref<1x384xf32, #tpu.memory_space<vmem>>, %arg18: memref<128x128xbf16, #tpu.memory_space<vmem>>, %arg19: memref<1x128xf32, #tpu.memory_space<vmem>>, %arg20: memref<128x128xbf16, #tpu.memory_space<vmem>>, %arg21: memref<1x128xf32, #tpu.memory_space<vmem>>, %arg22: memref<128x128xbf16, #tpu.memory_space<vmem>>, %arg23: memref<1x128xf32, #tpu.memory_space<vmem>>, %arg24: memref<1x128xf32, #tpu.memory_space<vmem>>, %arg25: memref<1x128xf32, #tpu.memory_space<vmem>>, %arg26: memref<1x128xf32, #tpu.memory_space<vmem>>, %arg27: memref<1x128xf32, #tpu.memory_space<vmem>>, %arg28: memref<128x384xbf16, #tpu.memory_space<vmem>>, %arg29: memref<1x384xf32, #tpu.memory_space<vmem>>, %arg30: memref<128x128xbf16, #tpu.memory_space<vmem>>, %arg31: memref<1x128xf32, #tpu.memory_space<vmem>>, %arg32: memref<128x128xbf16, #tpu.memory_space<vmem>>, %arg33: memref<1x128xf32, #tpu.memory_space<vmem>>, %arg34: memref<128x128xbf16, #tpu.memory_space<vmem>>, %arg35: memref<1x128xf32, #tpu.memory_space<vmem>>, %arg36: memref<1x128xf32, #tpu.memory_space<vmem>>, %arg37: memref<1x128xf32, #tpu.memory_space<vmem>>, %arg38: memref<1x128xf32, #tpu.memory_space<vmem>>, %arg39: memref<1x128xf32, #tpu.memory_space<vmem>>, %arg40: memref<1x128xf32, #tpu.memory_space<vmem>>, %arg41: memref<1x128xf32, #tpu.memory_space<vmem>>, %arg42: memref<128x16xbf16, #tpu.memory_space<vmem>>, %arg43: memref<1x16xf32, #tpu.memory_space<vmem>>, %arg44: memref<2x8x16xf32, #tpu.memory_space<vmem>>, %arg45: memref<2x8x64xf32, #tpu.memory_space<vmem>>, %arg46: memref<2x8x64xf32, #tpu.memory_space<vmem>>, %arg47: memref<2x8x64xf32, #tpu.memory_space<vmem>>) attributes {dimension_semantics = [#tpu.dimension_semantics<parallel>], iteration_bounds = array<i64: 1>, scalar_prefetch = 0 : i64, scratch_operands = 0 : i64, tpu.core_type = #tpu.core_type<tc>, window_params = [{transform_indices = @transform_0, window_bounds = array<i64: 2, 8, 16>}, {pipeline_mode = #tpu.pipeline_mode<synchronous>, transform_indices = @transform_1, window_bounds = array<i64: 16, 128>}, {pipeline_mode = #tpu.pipeline_mode<synchronous>, transform_indices = @transform_2, window_bounds = array<i64: 1, 128>}, {pipeline_mode = #tpu.pipeline_mode<synchronous>, transform_indices = @transform_3, window_bounds = array<i64: 128, 384>}, {pipeline_mode = #tpu.pipeline_mode<synchronous>, transform_indices = @transform_4, window_bounds = array<i64: 1, 384>}, {pipeline_mode = #tpu.pipeline_mode<synchronous>, transform_indices = @transform_5, window_bounds = array<i64: 128, 128>}, {pipeline_mode = #tpu.pipeline_mode<synchronous>, transform_indices = @transform_6, window_bounds = array<i64: 1, 128>}, {pipeline_mode = #tpu.pipeline_mode<synchronous>, transform_indices = @transform_7, window_bounds = array<i64: 128, 128>}, {pipeline_mode = #tpu.pipeline_mode<synchronous>, transform_indices = @transform_8, window_bounds = array<i64: 1, 128>}, {pipeline_mode = #tpu.pipeline_mode<synchronous>, transform_indices = @transform_9, window_bounds = array<i64: 128, 128>}, {pipeline_mode = #tpu.pipeline_mode<synchronous>, transform_indices = @transform_10, window_bounds = array<i64: 1, 128>}, {pipeline_mode = #tpu.pipeline_mode<synchronous>, transform_indices = @transform_11, window_bounds = array<i64: 1, 128>}, {pipeline_mode = #tpu.pipeline_mode<synchronous>, transform_indices = @transform_12, window_bounds = array<i64: 1, 128>}, {pipeline_mode = #tpu.pipeline_mode<synchronous>, transform_indices = @transform_13, window_bounds = array<i64: 1, 128>}, {pipeline_mode = #tpu.pipeline_mode<synchronous>, transform_indices = @transform_14, window_bounds = array<i64: 1, 128>}, {pipeline_mode = #tpu.pipeline_mode<synchronous>, transform_indices = @transform_15, window_bounds = array<i64: 128, 384>}, {pipeline_mode = #tpu.pipeline_mode<synchronous>, transform_indices = @transform_16, window_bounds = array<i64: 1, 384>}, {pipeline_mode = #tpu.pipeline_mode<synchronous>, transform_indices = @transform_17, window_bounds = array<i64: 128, 128>}, {pipeline_mode = #tpu.pipeline_mode<synchronous>, transform_indices = @transform_18, window_bounds = array<i64: 1, 128>}, {pipeline_mode = #tpu.pipeline_mode<synchronous>, transform_indices = @transform_19, window_bounds = array<i64: 128, 128>}, {pipeline_mode = #tpu.pipeline_mode<synchronous>, transform_indices = @transform_20, window_bounds = array<i64: 1, 128>}, {pipeline_mode = #tpu.pipeline_mode<synchronous>, transform_indices = @transform_21, window_bounds = array<i64: 128, 128>}, {pipeline_mode = #tpu.pipeline_mode<synchronous>, transform_indices = @transform_22, window_bounds = array<i64: 1, 128>}, {pipeline_mode = #tpu.pipeline_mode<synchronous>, transform_indices = @transform_23, window_bounds = array<i64: 1, 128>}, {pipeline_mode = #tpu.pipeline_mode<synchronous>, transform_indices = @transform_24, window_bounds = array<i64: 1, 128>}, {pipeline_mode = #tpu.pipeline_mode<synchronous>, transform_indices = @transform_25, window_bounds = array<i64: 1, 128>}, {pipeline_mode = #tpu.pipeline_mode<synchronous>, transform_indices = @transform_26, window_bounds = array<i64: 1, 128>}, {pipeline_mode = #tpu.pipeline_mode<synchronous>, transform_indices = @transform_27, window_bounds = array<i64: 128, 384>}, {pipeline_mode = #tpu.pipeline_mode<synchronous>, transform_indices = @transform_28, window_bounds = array<i64: 1, 384>}, {pipeline_mode = #tpu.pipeline_mode<synchronous>, transform_indices = @transform_29, window_bounds = array<i64: 128, 128>}, {pipeline_mode = #tpu.pipeline_mode<synchronous>, transform_indices = @transform_30, window_bounds = array<i64: 1, 128>}, {pipeline_mode = #tpu.pipeline_mode<synchronous>, transform_indices = @transform_31, window_bounds = array<i64: 128, 128>}, {pipeline_mode = #tpu.pipeline_mode<synchronous>, transform_indices = @transform_32, window_bounds = array<i64: 1, 128>}, {pipeline_mode = #tpu.pipeline_mode<synchronous>, transform_indices = @transform_33, window_bounds = array<i64: 128, 128>}, {pipeline_mode = #tpu.pipeline_mode<synchronous>, transform_indices = @transform_34, window_bounds = array<i64: 1, 128>}, {pipeline_mode = #tpu.pipeline_mode<synchronous>, transform_indices = @transform_35, window_bounds = array<i64: 1, 128>}, {pipeline_mode = #tpu.pipeline_mode<synchronous>, transform_indices = @transform_36, window_bounds = array<i64: 1, 128>}, {pipeline_mode = #tpu.pipeline_mode<synchronous>, transform_indices = @transform_37, window_bounds = array<i64: 1, 128>}, {pipeline_mode = #tpu.pipeline_mode<synchronous>, transform_indices = @transform_38, window_bounds = array<i64: 1, 128>}, {pipeline_mode = #tpu.pipeline_mode<synchronous>, transform_indices = @transform_39, window_bounds = array<i64: 1, 128>}, {pipeline_mode = #tpu.pipeline_mode<synchronous>, transform_indices = @transform_40, window_bounds = array<i64: 1, 128>}, {pipeline_mode = #tpu.pipeline_mode<synchronous>, transform_indices = @transform_41, window_bounds = array<i64: 128, 16>}, {pipeline_mode = #tpu.pipeline_mode<synchronous>, transform_indices = @transform_42, window_bounds = array<i64: 1, 16>}, {transform_indices = @transform_43, window_bounds = array<i64: 2, 8, 16>}, {transform_indices = @transform_44, window_bounds = array<i64: 2, 8, 64>}, {transform_indices = @transform_45, window_bounds = array<i64: 2, 8, 64>}, {transform_indices = @transform_46, window_bounds = array<i64: 2, 8, 64>}]} {
    %c0 = arith.constant 0 : index
    %c0_0 = arith.constant 0 : index
    %c0_1 = arith.constant 0 : index
    %0 = vector.load %arg1[%c0, %c0_0, %c0_1] : memref<2x8x16xf32, #tpu.memory_space<vmem>>, vector<2x8x16xf32>
    %1 = vector.shape_cast %0 : vector<2x8x16xf32> to vector<16x16xf32>
    %2 = arith.truncf %1 : vector<16x16xf32> to vector<16x16xbf16>
    %c0_2 = arith.constant 0 : index
    %c0_3 = arith.constant 0 : index
    %3 = vector.load %arg2[%c0_2, %c0_3] : memref<16x128xbf16, #tpu.memory_space<vmem>>, vector<16x128xbf16>
    %cst = arith.constant dense<0.000000e+00> : vector<16x128xf32>
    %4 = tpu.matmul %2, %3, %cst {dimension_numbers = #tpu.dot_dimension_numbers<[1], [0], [0], [1], [0, 0, 1, 1], [], []>} : vector<16x16xbf16>, vector<16x128xbf16>, vector<16x128xf32> -> vector<16x128xf32>
    %c0_4 = arith.constant 0 : index
    %c0_5 = arith.constant 0 : index
    %5 = vector.load %arg3[%c0_4, %c0_5] : memref<1x128xf32, #tpu.memory_space<vmem>>, vector<1x128xf32>
    %6 = vector.broadcast %5 : vector<1x128xf32> to vector<16x128xf32>
    %7 = arith.addf %4, %6 : vector<16x128xf32>
    %8 = arith.truncf %7 : vector<16x128xf32> to vector<16x128xbf16>
    %c0_6 = arith.constant 0 : index
    %c0_7 = arith.constant 0 : index
    %9 = vector.load %arg4[%c0_6, %c0_7] : memref<128x384xbf16, #tpu.memory_space<vmem>>, vector<128x384xbf16>
    %cst_8 = arith.constant dense<0.000000e+00> : vector<16x384xf32>
    %10 = tpu.matmul %8, %9, %cst_8 {dimension_numbers = #tpu.dot_dimension_numbers<[1], [0], [0], [1], [0, 0, 1, 1], [], []>} : vector<16x128xbf16>, vector<128x384xbf16>, vector<16x384xf32> -> vector<16x384xf32>
    %c0_9 = arith.constant 0 : index
    %c0_10 = arith.constant 0 : index
    %11 = vector.load %arg5[%c0_9, %c0_10] : memref<1x384xf32, #tpu.memory_space<vmem>>, vector<1x384xf32>
    %12 = vector.broadcast %11 : vector<1x384xf32> to vector<16x384xf32>
    %13 = arith.addf %10, %12 : vector<16x384xf32>
    %14 = vector.extract_strided_slice %13 {offsets = [0, 0], sizes = [16, 128], strides = [1, 1]} : vector<16x384xf32> to vector<16x128xf32>
    %cst_11 = arith.constant 2.500000e-01 : f32
    %15 = vector.broadcast %cst_11 : f32 to vector<16x128xf32>
    %16 = arith.mulf %14, %15 : vector<16x128xf32>
    %17 = arith.truncf %16 : vector<16x128xf32> to vector<16x128xbf16>
    %18 = vector.shape_cast %17 : vector<16x128xbf16> to vector<2x8x128xbf16>
    %19 = vector.extract_strided_slice %13 {offsets = [0, 128], sizes = [16, 128], strides = [1, 1]} : vector<16x384xf32> to vector<16x128xf32>
    %20 = arith.truncf %19 : vector<16x128xf32> to vector<16x128xbf16>
    %21 = vector.shape_cast %20 : vector<16x128xbf16> to vector<2x8x128xbf16>
    %22 = vector.extract_strided_slice %13 {offsets = [0, 256], sizes = [16, 128], strides = [1, 1]} : vector<16x384xf32> to vector<16x128xf32>
    %23 = arith.truncf %22 : vector<16x128xf32> to vector<16x128xbf16>
    %24 = vector.shape_cast %23 : vector<16x128xbf16> to vector<2x8x128xbf16>
    %25 = vector.extract_strided_slice %18 {offsets = [0, 0, 0], sizes = [2, 8, 16], strides = [1, 1, 1]} : vector<2x8x128xbf16> to vector<2x8x16xbf16>
    %26 = vector.extract_strided_slice %21 {offsets = [0, 0, 0], sizes = [2, 8, 16], strides = [1, 1, 1]} : vector<2x8x128xbf16> to vector<2x8x16xbf16>
    "tpu.trace_start"() <{level = 10 : i32, message = "bqd,bkd->bqk"}> : () -> ()
    %cst_12 = arith.constant dense<0.000000e+00> : vector<2x8x8xf32>
    %27 = tpu.matmul %25, %26, %cst_12 {dimension_numbers = #tpu.dot_dimension_numbers<[2], [2], [1], [1], [0, 0, 0, 1, 1, 1], [0], [0]>} : vector<2x8x16xbf16>, vector<2x8x16xbf16>, vector<2x8x8xf32> -> vector<2x8x8xf32>
    "tpu.trace_stop"() : () -> ()
    %cst_13 = arith.constant dense<0xFF800000> : vector<2x8xf32>
    %28 = vector.multi_reduction <maximumf>, %27, %cst_13 [2] : vector<2x8x8xf32> to vector<2x8xf32>
    %29 = vector.shape_cast %28 : vector<2x8xf32> to vector<2x8x1xf32>
    %30 = vector.broadcast %29 : vector<2x8x1xf32> to vector<2x8x8xf32>
    %31 = arith.subf %27, %30 : vector<2x8x8xf32>
    %32 = math.exp %31 : vector<2x8x8xf32>
    %cst_14 = arith.constant dense<0.000000e+00> : vector<2x8xf32>
    %33 = vector.multi_reduction <add>, %32, %cst_14 [2] : vector<2x8x8xf32> to vector<2x8xf32>
    %34 = vector.shape_cast %33 : vector<2x8xf32> to vector<2x8x1xf32>
    %35 = tpu.reciprocal %34 {approx = true} : vector<2x8x1xf32> -> vector<2x8x1xf32>
    %36 = vector.broadcast %35 : vector<2x8x1xf32> to vector<2x8x8xf32>
    %37 = arith.mulf %32, %36 : vector<2x8x8xf32>
    %38 = arith.truncf %37 : vector<2x8x8xf32> to vector<2x8x8xbf16>
    %39 = vector.extract_strided_slice %24 {offsets = [0, 0, 0], sizes = [2, 8, 16], strides = [1, 1, 1]} : vector<2x8x128xbf16> to vector<2x8x16xbf16>
    "tpu.trace_start"() <{level = 10 : i32, message = "bqk,bkd->bqd"}> : () -> ()
    %cst_15 = arith.constant dense<0.000000e+00> : vector<2x8x16xf32>
    %40 = tpu.matmul %38, %39, %cst_15 {dimension_numbers = #tpu.dot_dimension_numbers<[2], [1], [1], [2], [0, 0, 0, 1, 1, 2], [0], [0]>} : vector<2x8x8xbf16>, vector<2x8x16xbf16>, vector<2x8x16xf32> -> vector<2x8x16xf32>
    "tpu.trace_stop"() : () -> ()
    %41 = vector.extract_strided_slice %18 {offsets = [0, 0, 16], sizes = [2, 8, 16], strides = [1, 1, 1]} : vector<2x8x128xbf16> to vector<2x8x16xbf16>
    %42 = vector.extract_strided_slice %21 {offsets = [0, 0, 16], sizes = [2, 8, 16], strides = [1, 1, 1]} : vector<2x8x128xbf16> to vector<2x8x16xbf16>
    "tpu.trace_start"() <{level = 10 : i32, message = "bqd,bkd->bqk"}> : () -> ()
    %cst_16 = arith.constant dense<0.000000e+00> : vector<2x8x8xf32>
    %43 = tpu.matmul %41, %42, %cst_16 {dimension_numbers = #tpu.dot_dimension_numbers<[2], [2], [1], [1], [0, 0, 0, 1, 1, 1], [0], [0]>} : vector<2x8x16xbf16>, vector<2x8x16xbf16>, vector<2x8x8xf32> -> vector<2x8x8xf32>
    "tpu.trace_stop"() : () -> ()
    %cst_17 = arith.constant dense<0xFF800000> : vector<2x8xf32>
    %44 = vector.multi_reduction <maximumf>, %43, %cst_17 [2] : vector<2x8x8xf32> to vector<2x8xf32>
    %45 = vector.shape_cast %44 : vector<2x8xf32> to vector<2x8x1xf32>
    %46 = vector.broadcast %45 : vector<2x8x1xf32> to vector<2x8x8xf32>
    %47 = arith.subf %43, %46 : vector<2x8x8xf32>
    %48 = math.exp %47 : vector<2x8x8xf32>
    %cst_18 = arith.constant dense<0.000000e+00> : vector<2x8xf32>
    %49 = vector.multi_reduction <add>, %48, %cst_18 [2] : vector<2x8x8xf32> to vector<2x8xf32>
    %50 = vector.shape_cast %49 : vector<2x8xf32> to vector<2x8x1xf32>
    %51 = tpu.reciprocal %50 {approx = true} : vector<2x8x1xf32> -> vector<2x8x1xf32>
    %52 = vector.broadcast %51 : vector<2x8x1xf32> to vector<2x8x8xf32>
    %53 = arith.mulf %48, %52 : vector<2x8x8xf32>
    %54 = arith.truncf %53 : vector<2x8x8xf32> to vector<2x8x8xbf16>
    %55 = vector.extract_strided_slice %24 {offsets = [0, 0, 16], sizes = [2, 8, 16], strides = [1, 1, 1]} : vector<2x8x128xbf16> to vector<2x8x16xbf16>
    "tpu.trace_start"() <{level = 10 : i32, message = "bqk,bkd->bqd"}> : () -> ()
    %cst_19 = arith.constant dense<0.000000e+00> : vector<2x8x16xf32>
    %56 = tpu.matmul %54, %55, %cst_19 {dimension_numbers = #tpu.dot_dimension_numbers<[2], [1], [1], [2], [0, 0, 0, 1, 1, 2], [0], [0]>} : vector<2x8x8xbf16>, vector<2x8x16xbf16>, vector<2x8x16xf32> -> vector<2x8x16xf32>
    "tpu.trace_stop"() : () -> ()
    %57 = vector.extract_strided_slice %18 {offsets = [0, 0, 32], sizes = [2, 8, 16], strides = [1, 1, 1]} : vector<2x8x128xbf16> to vector<2x8x16xbf16>
    %58 = vector.extract_strided_slice %21 {offsets = [0, 0, 32], sizes = [2, 8, 16], strides = [1, 1, 1]} : vector<2x8x128xbf16> to vector<2x8x16xbf16>
    "tpu.trace_start"() <{level = 10 : i32, message = "bqd,bkd->bqk"}> : () -> ()
    %cst_20 = arith.constant dense<0.000000e+00> : vector<2x8x8xf32>
    %59 = tpu.matmul %57, %58, %cst_20 {dimension_numbers = #tpu.dot_dimension_numbers<[2], [2], [1], [1], [0, 0, 0, 1, 1, 1], [0], [0]>} : vector<2x8x16xbf16>, vector<2x8x16xbf16>, vector<2x8x8xf32> -> vector<2x8x8xf32>
    "tpu.trace_stop"() : () -> ()
    %cst_21 = arith.constant dense<0xFF800000> : vector<2x8xf32>
    %60 = vector.multi_reduction <maximumf>, %59, %cst_21 [2] : vector<2x8x8xf32> to vector<2x8xf32>
    %61 = vector.shape_cast %60 : vector<2x8xf32> to vector<2x8x1xf32>
    %62 = vector.broadcast %61 : vector<2x8x1xf32> to vector<2x8x8xf32>
    %63 = arith.subf %59, %62 : vector<2x8x8xf32>
    %64 = math.exp %63 : vector<2x8x8xf32>
    %cst_22 = arith.constant dense<0.000000e+00> : vector<2x8xf32>
    %65 = vector.multi_reduction <add>, %64, %cst_22 [2] : vector<2x8x8xf32> to vector<2x8xf32>
    %66 = vector.shape_cast %65 : vector<2x8xf32> to vector<2x8x1xf32>
    %67 = tpu.reciprocal %66 {approx = true} : vector<2x8x1xf32> -> vector<2x8x1xf32>
    %68 = vector.broadcast %67 : vector<2x8x1xf32> to vector<2x8x8xf32>
    %69 = arith.mulf %64, %68 : vector<2x8x8xf32>
    %70 = arith.truncf %69 : vector<2x8x8xf32> to vector<2x8x8xbf16>
    %71 = vector.extract_strided_slice %24 {offsets = [0, 0, 32], sizes = [2, 8, 16], strides = [1, 1, 1]} : vector<2x8x128xbf16> to vector<2x8x16xbf16>
    "tpu.trace_start"() <{level = 10 : i32, message = "bqk,bkd->bqd"}> : () -> ()
    %cst_23 = arith.constant dense<0.000000e+00> : vector<2x8x16xf32>
    %72 = tpu.matmul %70, %71, %cst_23 {dimension_numbers = #tpu.dot_dimension_numbers<[2], [1], [1], [2], [0, 0, 0, 1, 1, 2], [0], [0]>} : vector<2x8x8xbf16>, vector<2x8x16xbf16>, vector<2x8x16xf32> -> vector<2x8x16xf32>
    "tpu.trace_stop"() : () -> ()
    %73 = vector.extract_strided_slice %18 {offsets = [0, 0, 48], sizes = [2, 8, 16], strides = [1, 1, 1]} : vector<2x8x128xbf16> to vector<2x8x16xbf16>
    %74 = vector.extract_strided_slice %21 {offsets = [0, 0, 48], sizes = [2, 8, 16], strides = [1, 1, 1]} : vector<2x8x128xbf16> to vector<2x8x16xbf16>
    "tpu.trace_start"() <{level = 10 : i32, message = "bqd,bkd->bqk"}> : () -> ()
    %cst_24 = arith.constant dense<0.000000e+00> : vector<2x8x8xf32>
    %75 = tpu.matmul %73, %74, %cst_24 {dimension_numbers = #tpu.dot_dimension_numbers<[2], [2], [1], [1], [0, 0, 0, 1, 1, 1], [0], [0]>} : vector<2x8x16xbf16>, vector<2x8x16xbf16>, vector<2x8x8xf32> -> vector<2x8x8xf32>
    "tpu.trace_stop"() : () -> ()
    %cst_25 = arith.constant dense<0xFF800000> : vector<2x8xf32>
    %76 = vector.multi_reduction <maximumf>, %75, %cst_25 [2] : vector<2x8x8xf32> to vector<2x8xf32>
    %77 = vector.shape_cast %76 : vector<2x8xf32> to vector<2x8x1xf32>
    %78 = vector.broadcast %77 : vector<2x8x1xf32> to vector<2x8x8xf32>
    %79 = arith.subf %75, %78 : vector<2x8x8xf32>
    %80 = math.exp %79 : vector<2x8x8xf32>
    %cst_26 = arith.constant dense<0.000000e+00> : vector<2x8xf32>
    %81 = vector.multi_reduction <add>, %80, %cst_26 [2] : vector<2x8x8xf32> to vector<2x8xf32>
    %82 = vector.shape_cast %81 : vector<2x8xf32> to vector<2x8x1xf32>
    %83 = tpu.reciprocal %82 {approx = true} : vector<2x8x1xf32> -> vector<2x8x1xf32>
    %84 = vector.broadcast %83 : vector<2x8x1xf32> to vector<2x8x8xf32>
    %85 = arith.mulf %80, %84 : vector<2x8x8xf32>
    %86 = arith.truncf %85 : vector<2x8x8xf32> to vector<2x8x8xbf16>
    %87 = vector.extract_strided_slice %24 {offsets = [0, 0, 48], sizes = [2, 8, 16], strides = [1, 1, 1]} : vector<2x8x128xbf16> to vector<2x8x16xbf16>
    "tpu.trace_start"() <{level = 10 : i32, message = "bqk,bkd->bqd"}> : () -> ()
    %cst_27 = arith.constant dense<0.000000e+00> : vector<2x8x16xf32>
    %88 = tpu.matmul %86, %87, %cst_27 {dimension_numbers = #tpu.dot_dimension_numbers<[2], [1], [1], [2], [0, 0, 0, 1, 1, 2], [0], [0]>} : vector<2x8x8xbf16>, vector<2x8x16xbf16>, vector<2x8x16xf32> -> vector<2x8x16xf32>
    "tpu.trace_stop"() : () -> ()
    %89 = vector.extract_strided_slice %18 {offsets = [0, 0, 64], sizes = [2, 8, 16], strides = [1, 1, 1]} : vector<2x8x128xbf16> to vector<2x8x16xbf16>
    %90 = vector.extract_strided_slice %21 {offsets = [0, 0, 64], sizes = [2, 8, 16], strides = [1, 1, 1]} : vector<2x8x128xbf16> to vector<2x8x16xbf16>
    "tpu.trace_start"() <{level = 10 : i32, message = "bqd,bkd->bqk"}> : () -> ()
    %cst_28 = arith.constant dense<0.000000e+00> : vector<2x8x8xf32>
    %91 = tpu.matmul %89, %90, %cst_28 {dimension_numbers = #tpu.dot_dimension_numbers<[2], [2], [1], [1], [0, 0, 0, 1, 1, 1], [0], [0]>} : vector<2x8x16xbf16>, vector<2x8x16xbf16>, vector<2x8x8xf32> -> vector<2x8x8xf32>
    "tpu.trace_stop"() : () -> ()
    %cst_29 = arith.constant dense<0xFF800000> : vector<2x8xf32>
    %92 = vector.multi_reduction <maximumf>, %91, %cst_29 [2] : vector<2x8x8xf32> to vector<2x8xf32>
    %93 = vector.shape_cast %92 : vector<2x8xf32> to vector<2x8x1xf32>
    %94 = vector.broadcast %93 : vector<2x8x1xf32> to vector<2x8x8xf32>
    %95 = arith.subf %91, %94 : vector<2x8x8xf32>
    %96 = math.exp %95 : vector<2x8x8xf32>
    %cst_30 = arith.constant dense<0.000000e+00> : vector<2x8xf32>
    %97 = vector.multi_reduction <add>, %96, %cst_30 [2] : vector<2x8x8xf32> to vector<2x8xf32>
    %98 = vector.shape_cast %97 : vector<2x8xf32> to vector<2x8x1xf32>
    %99 = tpu.reciprocal %98 {approx = true} : vector<2x8x1xf32> -> vector<2x8x1xf32>
    %100 = vector.broadcast %99 : vector<2x8x1xf32> to vector<2x8x8xf32>
    %101 = arith.mulf %96, %100 : vector<2x8x8xf32>
    %102 = arith.truncf %101 : vector<2x8x8xf32> to vector<2x8x8xbf16>
    %103 = vector.extract_strided_slice %24 {offsets = [0, 0, 64], sizes = [2, 8, 16], strides = [1, 1, 1]} : vector<2x8x128xbf16> to vector<2x8x16xbf16>
    "tpu.trace_start"() <{level = 10 : i32, message = "bqk,bkd->bqd"}> : () -> ()
    %cst_31 = arith.constant dense<0.000000e+00> : vector<2x8x16xf32>
    %104 = tpu.matmul %102, %103, %cst_31 {dimension_numbers = #tpu.dot_dimension_numbers<[2], [1], [1], [2], [0, 0, 0, 1, 1, 2], [0], [0]>} : vector<2x8x8xbf16>, vector<2x8x16xbf16>, vector<2x8x16xf32> -> vector<2x8x16xf32>
    "tpu.trace_stop"() : () -> ()
    %105 = vector.extract_strided_slice %18 {offsets = [0, 0, 80], sizes = [2, 8, 16], strides = [1, 1, 1]} : vector<2x8x128xbf16> to vector<2x8x16xbf16>
    %106 = vector.extract_strided_slice %21 {offsets = [0, 0, 80], sizes = [2, 8, 16], strides = [1, 1, 1]} : vector<2x8x128xbf16> to vector<2x8x16xbf16>
    "tpu.trace_start"() <{level = 10 : i32, message = "bqd,bkd->bqk"}> : () -> ()
    %cst_32 = arith.constant dense<0.000000e+00> : vector<2x8x8xf32>
    %107 = tpu.matmul %105, %106, %cst_32 {dimension_numbers = #tpu.dot_dimension_numbers<[2], [2], [1], [1], [0, 0, 0, 1, 1, 1], [0], [0]>} : vector<2x8x16xbf16>, vector<2x8x16xbf16>, vector<2x8x8xf32> -> vector<2x8x8xf32>
    "tpu.trace_stop"() : () -> ()
    %cst_33 = arith.constant dense<0xFF800000> : vector<2x8xf32>
    %108 = vector.multi_reduction <maximumf>, %107, %cst_33 [2] : vector<2x8x8xf32> to vector<2x8xf32>
    %109 = vector.shape_cast %108 : vector<2x8xf32> to vector<2x8x1xf32>
    %110 = vector.broadcast %109 : vector<2x8x1xf32> to vector<2x8x8xf32>
    %111 = arith.subf %107, %110 : vector<2x8x8xf32>
    %112 = math.exp %111 : vector<2x8x8xf32>
    %cst_34 = arith.constant dense<0.000000e+00> : vector<2x8xf32>
    %113 = vector.multi_reduction <add>, %112, %cst_34 [2] : vector<2x8x8xf32> to vector<2x8xf32>
    %114 = vector.shape_cast %113 : vector<2x8xf32> to vector<2x8x1xf32>
    %115 = tpu.reciprocal %114 {approx = true} : vector<2x8x1xf32> -> vector<2x8x1xf32>
    %116 = vector.broadcast %115 : vector<2x8x1xf32> to vector<2x8x8xf32>
    %117 = arith.mulf %112, %116 : vector<2x8x8xf32>
    %118 = arith.truncf %117 : vector<2x8x8xf32> to vector<2x8x8xbf16>
    %119 = vector.extract_strided_slice %24 {offsets = [0, 0, 80], sizes = [2, 8, 16], strides = [1, 1, 1]} : vector<2x8x128xbf16> to vector<2x8x16xbf16>
    "tpu.trace_start"() <{level = 10 : i32, message = "bqk,bkd->bqd"}> : () -> ()
    %cst_35 = arith.constant dense<0.000000e+00> : vector<2x8x16xf32>
    %120 = tpu.matmul %118, %119, %cst_35 {dimension_numbers = #tpu.dot_dimension_numbers<[2], [1], [1], [2], [0, 0, 0, 1, 1, 2], [0], [0]>} : vector<2x8x8xbf16>, vector<2x8x16xbf16>, vector<2x8x16xf32> -> vector<2x8x16xf32>
    "tpu.trace_stop"() : () -> ()
    %121 = vector.extract_strided_slice %18 {offsets = [0, 0, 96], sizes = [2, 8, 16], strides = [1, 1, 1]} : vector<2x8x128xbf16> to vector<2x8x16xbf16>
    %122 = vector.extract_strided_slice %21 {offsets = [0, 0, 96], sizes = [2, 8, 16], strides = [1, 1, 1]} : vector<2x8x128xbf16> to vector<2x8x16xbf16>
    "tpu.trace_start"() <{level = 10 : i32, message = "bqd,bkd->bqk"}> : () -> ()
    %cst_36 = arith.constant dense<0.000000e+00> : vector<2x8x8xf32>
    %123 = tpu.matmul %121, %122, %cst_36 {dimension_numbers = #tpu.dot_dimension_numbers<[2], [2], [1], [1], [0, 0, 0, 1, 1, 1], [0], [0]>} : vector<2x8x16xbf16>, vector<2x8x16xbf16>, vector<2x8x8xf32> -> vector<2x8x8xf32>
    "tpu.trace_stop"() : () -> ()
    %cst_37 = arith.constant dense<0xFF800000> : vector<2x8xf32>
    %124 = vector.multi_reduction <maximumf>, %123, %cst_37 [2] : vector<2x8x8xf32> to vector<2x8xf32>
    %125 = vector.shape_cast %124 : vector<2x8xf32> to vector<2x8x1xf32>
    %126 = vector.broadcast %125 : vector<2x8x1xf32> to vector<2x8x8xf32>
    %127 = arith.subf %123, %126 : vector<2x8x8xf32>
    %128 = math.exp %127 : vector<2x8x8xf32>
    %cst_38 = arith.constant dense<0.000000e+00> : vector<2x8xf32>
    %129 = vector.multi_reduction <add>, %128, %cst_38 [2] : vector<2x8x8xf32> to vector<2x8xf32>
    %130 = vector.shape_cast %129 : vector<2x8xf32> to vector<2x8x1xf32>
    %131 = tpu.reciprocal %130 {approx = true} : vector<2x8x1xf32> -> vector<2x8x1xf32>
    %132 = vector.broadcast %131 : vector<2x8x1xf32> to vector<2x8x8xf32>
    %133 = arith.mulf %128, %132 : vector<2x8x8xf32>
    %134 = arith.truncf %133 : vector<2x8x8xf32> to vector<2x8x8xbf16>
    %135 = vector.extract_strided_slice %24 {offsets = [0, 0, 96], sizes = [2, 8, 16], strides = [1, 1, 1]} : vector<2x8x128xbf16> to vector<2x8x16xbf16>
    "tpu.trace_start"() <{level = 10 : i32, message = "bqk,bkd->bqd"}> : () -> ()
    %cst_39 = arith.constant dense<0.000000e+00> : vector<2x8x16xf32>
    %136 = tpu.matmul %134, %135, %cst_39 {dimension_numbers = #tpu.dot_dimension_numbers<[2], [1], [1], [2], [0, 0, 0, 1, 1, 2], [0], [0]>} : vector<2x8x8xbf16>, vector<2x8x16xbf16>, vector<2x8x16xf32> -> vector<2x8x16xf32>
    "tpu.trace_stop"() : () -> ()
    %137 = vector.extract_strided_slice %18 {offsets = [0, 0, 112], sizes = [2, 8, 16], strides = [1, 1, 1]} : vector<2x8x128xbf16> to vector<2x8x16xbf16>
    %138 = vector.extract_strided_slice %21 {offsets = [0, 0, 112], sizes = [2, 8, 16], strides = [1, 1, 1]} : vector<2x8x128xbf16> to vector<2x8x16xbf16>
    "tpu.trace_start"() <{level = 10 : i32, message = "bqd,bkd->bqk"}> : () -> ()
    %cst_40 = arith.constant dense<0.000000e+00> : vector<2x8x8xf32>
    %139 = tpu.matmul %137, %138, %cst_40 {dimension_numbers = #tpu.dot_dimension_numbers<[2], [2], [1], [1], [0, 0, 0, 1, 1, 1], [0], [0]>} : vector<2x8x16xbf16>, vector<2x8x16xbf16>, vector<2x8x8xf32> -> vector<2x8x8xf32>
    "tpu.trace_stop"() : () -> ()
    %cst_41 = arith.constant dense<0xFF800000> : vector<2x8xf32>
    %140 = vector.multi_reduction <maximumf>, %139, %cst_41 [2] : vector<2x8x8xf32> to vector<2x8xf32>
    %141 = vector.shape_cast %140 : vector<2x8xf32> to vector<2x8x1xf32>
    %142 = vector.broadcast %141 : vector<2x8x1xf32> to vector<2x8x8xf32>
    %143 = arith.subf %139, %142 : vector<2x8x8xf32>
    %144 = math.exp %143 : vector<2x8x8xf32>
    %cst_42 = arith.constant dense<0.000000e+00> : vector<2x8xf32>
    %145 = vector.multi_reduction <add>, %144, %cst_42 [2] : vector<2x8x8xf32> to vector<2x8xf32>
    %146 = vector.shape_cast %145 : vector<2x8xf32> to vector<2x8x1xf32>
    %147 = tpu.reciprocal %146 {approx = true} : vector<2x8x1xf32> -> vector<2x8x1xf32>
    %148 = vector.broadcast %147 : vector<2x8x1xf32> to vector<2x8x8xf32>
    %149 = arith.mulf %144, %148 : vector<2x8x8xf32>
    %150 = arith.truncf %149 : vector<2x8x8xf32> to vector<2x8x8xbf16>
    %151 = vector.extract_strided_slice %24 {offsets = [0, 0, 112], sizes = [2, 8, 16], strides = [1, 1, 1]} : vector<2x8x128xbf16> to vector<2x8x16xbf16>
    "tpu.trace_start"() <{level = 10 : i32, message = "bqk,bkd->bqd"}> : () -> ()
    %cst_43 = arith.constant dense<0.000000e+00> : vector<2x8x16xf32>
    %152 = tpu.matmul %150, %151, %cst_43 {dimension_numbers = #tpu.dot_dimension_numbers<[2], [1], [1], [2], [0, 0, 0, 1, 1, 2], [0], [0]>} : vector<2x8x8xbf16>, vector<2x8x16xbf16>, vector<2x8x16xf32> -> vector<2x8x16xf32>
    "tpu.trace_stop"() : () -> ()
    %153 = tpu.concatenate %37, %53, %69, %85, %101, %117, %133, %149 in 2 : vector<2x8x8xf32>, vector<2x8x8xf32>, vector<2x8x8xf32>, vector<2x8x8xf32>, vector<2x8x8xf32>, vector<2x8x8xf32>, vector<2x8x8xf32>, vector<2x8x8xf32> -> vector<2x8x64xf32>
    %c0_44 = arith.constant 0 : index
    %c0_45 = arith.constant 0 : index
    %c0_46 = arith.constant 0 : index
    %154 = vector.load %arg45[%c0_44, %c0_45, %c0_46] : memref<2x8x64xf32, #tpu.memory_space<vmem>>, vector<2x8x64xf32>
    tpu.vector_store %arg45[%c0_44, %c0_45, %c0_46], %153 {strides = array<i32>} : memref<2x8x64xf32, #tpu.memory_space<vmem>>, vector<2x8x64xf32>,
    %155 = tpu.concatenate %40, %56, %72, %88, %104, %120, %136, %152 in 2 : vector<2x8x16xf32>, vector<2x8x16xf32>, vector<2x8x16xf32>, vector<2x8x16xf32>, vector<2x8x16xf32>, vector<2x8x16xf32>, vector<2x8x16xf32>, vector<2x8x16xf32> -> vector<2x8x128xf32>
    %156 = vector.shape_cast %155 : vector<2x8x128xf32> to vector<16x128xf32>
    %157 = arith.truncf %156 : vector<16x128xf32> to vector<16x128xbf16>
    %c0_47 = arith.constant 0 : index
    %c0_48 = arith.constant 0 : index
    %158 = vector.load %arg6[%c0_47, %c0_48] : memref<128x128xbf16, #tpu.memory_space<vmem>>, vector<128x128xbf16>
    %cst_49 = arith.constant dense<0.000000e+00> : vector<16x128xf32>
    %159 = tpu.matmul %157, %158, %cst_49 {dimension_numbers = #tpu.dot_dimension_numbers<[1], [0], [0], [1], [0, 0, 1, 1], [], []>} : vector<16x128xbf16>, vector<128x128xbf16>, vector<16x128xf32> -> vector<16x128xf32>
    %c0_50 = arith.constant 0 : index
    %c0_51 = arith.constant 0 : index
    %160 = vector.load %arg7[%c0_50, %c0_51] : memref<1x128xf32, #tpu.memory_space<vmem>>, vector<1x128xf32>
    %161 = vector.broadcast %160 : vector<1x128xf32> to vector<16x128xf32>
    %162 = arith.addf %159, %161 : vector<16x128xf32>
    %163 = arith.addf %7, %162 : vector<16x128xf32>
    %c0_52 = arith.constant 0 : index
    %c0_53 = arith.constant 0 : index
    %164 = vector.load %arg12[%c0_52, %c0_53] : memref<1x128xf32, #tpu.memory_space<vmem>>, vector<1x128xf32>
    %c0_54 = arith.constant 0 : index
    %c0_55 = arith.constant 0 : index
    %165 = vector.load %arg13[%c0_54, %c0_55] : memref<1x128xf32, #tpu.memory_space<vmem>>, vector<1x128xf32>
    %cst_56 = arith.constant dense<0.000000e+00> : vector<16xf32>
    %166 = vector.multi_reduction <add>, %163, %cst_56 [1] : vector<16x128xf32> to vector<16xf32>
    %167 = vector.shape_cast %166 : vector<16xf32> to vector<16x1xf32>
    %cst_57 = arith.constant 1.280000e+02 : f32
    %168 = vector.broadcast %cst_57 : f32 to vector<16x1xf32>
    %169 = arith.divf %167, %168 : vector<16x1xf32>
    %170 = vector.broadcast %169 : vector<16x1xf32> to vector<16x128xf32>
    %171 = arith.subf %163, %170 : vector<16x128xf32>
    %172 = arith.mulf %171, %171 : vector<16x128xf32>
    %cst_58 = arith.constant dense<0.000000e+00> : vector<16xf32>
    %173 = vector.multi_reduction <add>, %172, %cst_58 [1] : vector<16x128xf32> to vector<16xf32>
    %174 = vector.shape_cast %173 : vector<16xf32> to vector<16x1xf32>
    %cst_59 = arith.constant 1.280000e+02 : f32
    %175 = vector.broadcast %cst_59 : f32 to vector<16x1xf32>
    %176 = arith.divf %174, %175 : vector<16x1xf32>
    %177 = vector.broadcast %169 : vector<16x1xf32> to vector<16x128xf32>
    %178 = arith.subf %163, %177 : vector<16x128xf32>
    %cst_60 = arith.constant 9.99999974E-6 : f32
    %179 = vector.broadcast %cst_60 : f32 to vector<16x1xf32>
    %180 = arith.addf %176, %179 : vector<16x1xf32>
    %181 = math.rsqrt %180 : vector<16x1xf32>
    %182 = vector.broadcast %181 : vector<16x1xf32> to vector<16x128xf32>
    %183 = arith.mulf %178, %182 : vector<16x128xf32>
    %184 = vector.broadcast %164 : vector<1x128xf32> to vector<16x128xf32>
    %185 = arith.mulf %183, %184 : vector<16x128xf32>
    %186 = vector.broadcast %165 : vector<1x128xf32> to vector<16x128xf32>
    %187 = arith.addf %185, %186 : vector<16x128xf32>
    %188 = arith.truncf %187 : vector<16x128xf32> to vector<16x128xbf16>
    %c0_61 = arith.constant 0 : index
    %c0_62 = arith.constant 0 : index
    %189 = vector.load %arg8[%c0_61, %c0_62] : memref<128x128xbf16, #tpu.memory_space<vmem>>, vector<128x128xbf16>
    %cst_63 = arith.constant dense<0.000000e+00> : vector<16x128xf32>
    %190 = tpu.matmul %188, %189, %cst_63 {dimension_numbers = #tpu.dot_dimension_numbers<[1], [0], [0], [1], [0, 0, 1, 1], [], []>} : vector<16x128xbf16>, vector<128x128xbf16>, vector<16x128xf32> -> vector<16x128xf32>
    %c0_64 = arith.constant 0 : index
    %c0_65 = arith.constant 0 : index
    %191 = vector.load %arg9[%c0_64, %c0_65] : memref<1x128xf32, #tpu.memory_space<vmem>>, vector<1x128xf32>
    %192 = vector.broadcast %191 : vector<1x128xf32> to vector<16x128xf32>
    %193 = arith.addf %190, %192 : vector<16x128xf32>
    %cst_66 = arith.constant 0.000000e+00 : f32
    %194 = vector.broadcast %cst_66 : f32 to vector<16x128xf32>
    %195 = arith.maximumf %193, %194 : vector<16x128xf32>
    %196 = arith.truncf %195 : vector<16x128xf32> to vector<16x128xbf16>
    %c0_67 = arith.constant 0 : index
    %c0_68 = arith.constant 0 : index
    %197 = vector.load %arg10[%c0_67, %c0_68] : memref<128x128xbf16, #tpu.memory_space<vmem>>, vector<128x128xbf16>
    %cst_69 = arith.constant dense<0.000000e+00> : vector<16x128xf32>
    %198 = tpu.matmul %196, %197, %cst_69 {dimension_numbers = #tpu.dot_dimension_numbers<[1], [0], [0], [1], [0, 0, 1, 1], [], []>} : vector<16x128xbf16>, vector<128x128xbf16>, vector<16x128xf32> -> vector<16x128xf32>
    %c0_70 = arith.constant 0 : index
    %c0_71 = arith.constant 0 : index
    %199 = vector.load %arg11[%c0_70, %c0_71] : memref<1x128xf32, #tpu.memory_space<vmem>>, vector<1x128xf32>
    %200 = vector.broadcast %199 : vector<1x128xf32> to vector<16x128xf32>
    %201 = arith.addf %198, %200 : vector<16x128xf32>
    %202 = arith.addf %187, %201 : vector<16x128xf32>
    %c0_72 = arith.constant 0 : index
    %c0_73 = arith.constant 0 : index
    %203 = vector.load %arg14[%c0_72, %c0_73] : memref<1x128xf32, #tpu.memory_space<vmem>>, vector<1x128xf32>
    %c0_74 = arith.constant 0 : index
    %c0_75 = arith.constant 0 : index
    %204 = vector.load %arg15[%c0_74, %c0_75] : memref<1x128xf32, #tpu.memory_space<vmem>>, vector<1x128xf32>
    %cst_76 = arith.constant dense<0.000000e+00> : vector<16xf32>
    %205 = vector.multi_reduction <add>, %202, %cst_76 [1] : vector<16x128xf32> to vector<16xf32>
    %206 = vector.shape_cast %205 : vector<16xf32> to vector<16x1xf32>
    %cst_77 = arith.constant 1.280000e+02 : f32
    %207 = vector.broadcast %cst_77 : f32 to vector<16x1xf32>
    %208 = arith.divf %206, %207 : vector<16x1xf32>
    %209 = vector.broadcast %208 : vector<16x1xf32> to vector<16x128xf32>
    %210 = arith.subf %202, %209 : vector<16x128xf32>
    %211 = arith.mulf %210, %210 : vector<16x128xf32>
    %cst_78 = arith.constant dense<0.000000e+00> : vector<16xf32>
    %212 = vector.multi_reduction <add>, %211, %cst_78 [1] : vector<16x128xf32> to vector<16xf32>
    %213 = vector.shape_cast %212 : vector<16xf32> to vector<16x1xf32>
    %cst_79 = arith.constant 1.280000e+02 : f32
    %214 = vector.broadcast %cst_79 : f32 to vector<16x1xf32>
    %215 = arith.divf %213, %214 : vector<16x1xf32>
    %216 = vector.broadcast %208 : vector<16x1xf32> to vector<16x128xf32>
    %217 = arith.subf %202, %216 : vector<16x128xf32>
    %cst_80 = arith.constant 9.99999974E-6 : f32
    %218 = vector.broadcast %cst_80 : f32 to vector<16x1xf32>
    %219 = arith.addf %215, %218 : vector<16x1xf32>
    %220 = math.rsqrt %219 : vector<16x1xf32>
    %221 = vector.broadcast %220 : vector<16x1xf32> to vector<16x128xf32>
    %222 = arith.mulf %217, %221 : vector<16x128xf32>
    %223 = vector.broadcast %203 : vector<1x128xf32> to vector<16x128xf32>
    %224 = arith.mulf %222, %223 : vector<16x128xf32>
    %225 = vector.broadcast %204 : vector<1x128xf32> to vector<16x128xf32>
    %226 = arith.addf %224, %225 : vector<16x128xf32>
    %227 = arith.truncf %226 : vector<16x128xf32> to vector<16x128xbf16>
    %c0_81 = arith.constant 0 : index
    %c0_82 = arith.constant 0 : index
    %228 = vector.load %arg16[%c0_81, %c0_82] : memref<128x384xbf16, #tpu.memory_space<vmem>>, vector<128x384xbf16>
    %cst_83 = arith.constant dense<0.000000e+00> : vector<16x384xf32>
    %229 = tpu.matmul %227, %228, %cst_83 {dimension_numbers = #tpu.dot_dimension_numbers<[1], [0], [0], [1], [0, 0, 1, 1], [], []>} : vector<16x128xbf16>, vector<128x384xbf16>, vector<16x384xf32> -> vector<16x384xf32>
    %c0_84 = arith.constant 0 : index
    %c0_85 = arith.constant 0 : index
    %230 = vector.load %arg17[%c0_84, %c0_85] : memref<1x384xf32, #tpu.memory_space<vmem>>, vector<1x384xf32>
    %231 = vector.broadcast %230 : vector<1x384xf32> to vector<16x384xf32>
    %232 = arith.addf %229, %231 : vector<16x384xf32>
    %233 = vector.extract_strided_slice %232 {offsets = [0, 0], sizes = [16, 128], strides = [1, 1]} : vector<16x384xf32> to vector<16x128xf32>
    %cst_86 = arith.constant 2.500000e-01 : f32
    %234 = vector.broadcast %cst_86 : f32 to vector<16x128xf32>
    %235 = arith.mulf %233, %234 : vector<16x128xf32>
    %236 = arith.truncf %235 : vector<16x128xf32> to vector<16x128xbf16>
    %237 = vector.shape_cast %236 : vector<16x128xbf16> to vector<2x8x128xbf16>
    %238 = vector.extract_strided_slice %232 {offsets = [0, 128], sizes = [16, 128], strides = [1, 1]} : vector<16x384xf32> to vector<16x128xf32>
    %239 = arith.truncf %238 : vector<16x128xf32> to vector<16x128xbf16>
    %240 = vector.shape_cast %239 : vector<16x128xbf16> to vector<2x8x128xbf16>
    %241 = vector.extract_strided_slice %232 {offsets = [0, 256], sizes = [16, 128], strides = [1, 1]} : vector<16x384xf32> to vector<16x128xf32>
    %242 = arith.truncf %241 : vector<16x128xf32> to vector<16x128xbf16>
    %243 = vector.shape_cast %242 : vector<16x128xbf16> to vector<2x8x128xbf16>
    %244 = vector.extract_strided_slice %237 {offsets = [0, 0, 0], sizes = [2, 8, 16], strides = [1, 1, 1]} : vector<2x8x128xbf16> to vector<2x8x16xbf16>
    %245 = vector.extract_strided_slice %240 {offsets = [0, 0, 0], sizes = [2, 8, 16], strides = [1, 1, 1]} : vector<2x8x128xbf16> to vector<2x8x16xbf16>
    "tpu.trace_start"() <{level = 10 : i32, message = "bqd,bkd->bqk"}> : () -> ()
    %cst_87 = arith.constant dense<0.000000e+00> : vector<2x8x8xf32>
    %246 = tpu.matmul %244, %245, %cst_87 {dimension_numbers = #tpu.dot_dimension_numbers<[2], [2], [1], [1], [0, 0, 0, 1, 1, 1], [0], [0]>} : vector<2x8x16xbf16>, vector<2x8x16xbf16>, vector<2x8x8xf32> -> vector<2x8x8xf32>
    "tpu.trace_stop"() : () -> ()
    %cst_88 = arith.constant dense<0xFF800000> : vector<2x8xf32>
    %247 = vector.multi_reduction <maximumf>, %246, %cst_88 [2] : vector<2x8x8xf32> to vector<2x8xf32>
    %248 = vector.shape_cast %247 : vector<2x8xf32> to vector<2x8x1xf32>
    %249 = vector.broadcast %248 : vector<2x8x1xf32> to vector<2x8x8xf32>
    %250 = arith.subf %246, %249 : vector<2x8x8xf32>
    %251 = math.exp %250 : vector<2x8x8xf32>
    %cst_89 = arith.constant dense<0.000000e+00> : vector<2x8xf32>
    %252 = vector.multi_reduction <add>, %251, %cst_89 [2] : vector<2x8x8xf32> to vector<2x8xf32>
    %253 = vector.shape_cast %252 : vector<2x8xf32> to vector<2x8x1xf32>
    %254 = tpu.reciprocal %253 {approx = true} : vector<2x8x1xf32> -> vector<2x8x1xf32>
    %255 = vector.broadcast %254 : vector<2x8x1xf32> to vector<2x8x8xf32>
    %256 = arith.mulf %251, %255 : vector<2x8x8xf32>
    %257 = arith.truncf %256 : vector<2x8x8xf32> to vector<2x8x8xbf16>
    %258 = vector.extract_strided_slice %243 {offsets = [0, 0, 0], sizes = [2, 8, 16], strides = [1, 1, 1]} : vector<2x8x128xbf16> to vector<2x8x16xbf16>
    "tpu.trace_start"() <{level = 10 : i32, message = "bqk,bkd->bqd"}> : () -> ()
    %cst_90 = arith.constant dense<0.000000e+00> : vector<2x8x16xf32>
    %259 = tpu.matmul %257, %258, %cst_90 {dimension_numbers = #tpu.dot_dimension_numbers<[2], [1], [1], [2], [0, 0, 0, 1, 1, 2], [0], [0]>} : vector<2x8x8xbf16>, vector<2x8x16xbf16>, vector<2x8x16xf32> -> vector<2x8x16xf32>
    "tpu.trace_stop"() : () -> ()
    %260 = vector.extract_strided_slice %237 {offsets = [0, 0, 16], sizes = [2, 8, 16], strides = [1, 1, 1]} : vector<2x8x128xbf16> to vector<2x8x16xbf16>
    %261 = vector.extract_strided_slice %240 {offsets = [0, 0, 16], sizes = [2, 8, 16], strides = [1, 1, 1]} : vector<2x8x128xbf16> to vector<2x8x16xbf16>
    "tpu.trace_start"() <{level = 10 : i32, message = "bqd,bkd->bqk"}> : () -> ()
    %cst_91 = arith.constant dense<0.000000e+00> : vector<2x8x8xf32>
    %262 = tpu.matmul %260, %261, %cst_91 {dimension_numbers = #tpu.dot_dimension_numbers<[2], [2], [1], [1], [0, 0, 0, 1, 1, 1], [0], [0]>} : vector<2x8x16xbf16>, vector<2x8x16xbf16>, vector<2x8x8xf32> -> vector<2x8x8xf32>
    "tpu.trace_stop"() : () -> ()
    %cst_92 = arith.constant dense<0xFF800000> : vector<2x8xf32>
    %263 = vector.multi_reduction <maximumf>, %262, %cst_92 [2] : vector<2x8x8xf32> to vector<2x8xf32>
    %264 = vector.shape_cast %263 : vector<2x8xf32> to vector<2x8x1xf32>
    %265 = vector.broadcast %264 : vector<2x8x1xf32> to vector<2x8x8xf32>
    %266 = arith.subf %262, %265 : vector<2x8x8xf32>
    %267 = math.exp %266 : vector<2x8x8xf32>
    %cst_93 = arith.constant dense<0.000000e+00> : vector<2x8xf32>
    %268 = vector.multi_reduction <add>, %267, %cst_93 [2] : vector<2x8x8xf32> to vector<2x8xf32>
    %269 = vector.shape_cast %268 : vector<2x8xf32> to vector<2x8x1xf32>
    %270 = tpu.reciprocal %269 {approx = true} : vector<2x8x1xf32> -> vector<2x8x1xf32>
    %271 = vector.broadcast %270 : vector<2x8x1xf32> to vector<2x8x8xf32>
    %272 = arith.mulf %267, %271 : vector<2x8x8xf32>
    %273 = arith.truncf %272 : vector<2x8x8xf32> to vector<2x8x8xbf16>
    %274 = vector.extract_strided_slice %243 {offsets = [0, 0, 16], sizes = [2, 8, 16], strides = [1, 1, 1]} : vector<2x8x128xbf16> to vector<2x8x16xbf16>
    "tpu.trace_start"() <{level = 10 : i32, message = "bqk,bkd->bqd"}> : () -> ()
    %cst_94 = arith.constant dense<0.000000e+00> : vector<2x8x16xf32>
    %275 = tpu.matmul %273, %274, %cst_94 {dimension_numbers = #tpu.dot_dimension_numbers<[2], [1], [1], [2], [0, 0, 0, 1, 1, 2], [0], [0]>} : vector<2x8x8xbf16>, vector<2x8x16xbf16>, vector<2x8x16xf32> -> vector<2x8x16xf32>
    "tpu.trace_stop"() : () -> ()
    %276 = vector.extract_strided_slice %237 {offsets = [0, 0, 32], sizes = [2, 8, 16], strides = [1, 1, 1]} : vector<2x8x128xbf16> to vector<2x8x16xbf16>
    %277 = vector.extract_strided_slice %240 {offsets = [0, 0, 32], sizes = [2, 8, 16], strides = [1, 1, 1]} : vector<2x8x128xbf16> to vector<2x8x16xbf16>
    "tpu.trace_start"() <{level = 10 : i32, message = "bqd,bkd->bqk"}> : () -> ()
    %cst_95 = arith.constant dense<0.000000e+00> : vector<2x8x8xf32>
    %278 = tpu.matmul %276, %277, %cst_95 {dimension_numbers = #tpu.dot_dimension_numbers<[2], [2], [1], [1], [0, 0, 0, 1, 1, 1], [0], [0]>} : vector<2x8x16xbf16>, vector<2x8x16xbf16>, vector<2x8x8xf32> -> vector<2x8x8xf32>
    "tpu.trace_stop"() : () -> ()
    %cst_96 = arith.constant dense<0xFF800000> : vector<2x8xf32>
    %279 = vector.multi_reduction <maximumf>, %278, %cst_96 [2] : vector<2x8x8xf32> to vector<2x8xf32>
    %280 = vector.shape_cast %279 : vector<2x8xf32> to vector<2x8x1xf32>
    %281 = vector.broadcast %280 : vector<2x8x1xf32> to vector<2x8x8xf32>
    %282 = arith.subf %278, %281 : vector<2x8x8xf32>
    %283 = math.exp %282 : vector<2x8x8xf32>
    %cst_97 = arith.constant dense<0.000000e+00> : vector<2x8xf32>
    %284 = vector.multi_reduction <add>, %283, %cst_97 [2] : vector<2x8x8xf32> to vector<2x8xf32>
    %285 = vector.shape_cast %284 : vector<2x8xf32> to vector<2x8x1xf32>
    %286 = tpu.reciprocal %285 {approx = true} : vector<2x8x1xf32> -> vector<2x8x1xf32>
    %287 = vector.broadcast %286 : vector<2x8x1xf32> to vector<2x8x8xf32>
    %288 = arith.mulf %283, %287 : vector<2x8x8xf32>
    %289 = arith.truncf %288 : vector<2x8x8xf32> to vector<2x8x8xbf16>
    %290 = vector.extract_strided_slice %243 {offsets = [0, 0, 32], sizes = [2, 8, 16], strides = [1, 1, 1]} : vector<2x8x128xbf16> to vector<2x8x16xbf16>
    "tpu.trace_start"() <{level = 10 : i32, message = "bqk,bkd->bqd"}> : () -> ()
    %cst_98 = arith.constant dense<0.000000e+00> : vector<2x8x16xf32>
    %291 = tpu.matmul %289, %290, %cst_98 {dimension_numbers = #tpu.dot_dimension_numbers<[2], [1], [1], [2], [0, 0, 0, 1, 1, 2], [0], [0]>} : vector<2x8x8xbf16>, vector<2x8x16xbf16>, vector<2x8x16xf32> -> vector<2x8x16xf32>
    "tpu.trace_stop"() : () -> ()
    %292 = vector.extract_strided_slice %237 {offsets = [0, 0, 48], sizes = [2, 8, 16], strides = [1, 1, 1]} : vector<2x8x128xbf16> to vector<2x8x16xbf16>
    %293 = vector.extract_strided_slice %240 {offsets = [0, 0, 48], sizes = [2, 8, 16], strides = [1, 1, 1]} : vector<2x8x128xbf16> to vector<2x8x16xbf16>
    "tpu.trace_start"() <{level = 10 : i32, message = "bqd,bkd->bqk"}> : () -> ()
    %cst_99 = arith.constant dense<0.000000e+00> : vector<2x8x8xf32>
    %294 = tpu.matmul %292, %293, %cst_99 {dimension_numbers = #tpu.dot_dimension_numbers<[2], [2], [1], [1], [0, 0, 0, 1, 1, 1], [0], [0]>} : vector<2x8x16xbf16>, vector<2x8x16xbf16>, vector<2x8x8xf32> -> vector<2x8x8xf32>
    "tpu.trace_stop"() : () -> ()
    %cst_100 = arith.constant dense<0xFF800000> : vector<2x8xf32>
    %295 = vector.multi_reduction <maximumf>, %294, %cst_100 [2] : vector<2x8x8xf32> to vector<2x8xf32>
    %296 = vector.shape_cast %295 : vector<2x8xf32> to vector<2x8x1xf32>
    %297 = vector.broadcast %296 : vector<2x8x1xf32> to vector<2x8x8xf32>
    %298 = arith.subf %294, %297 : vector<2x8x8xf32>
    %299 = math.exp %298 : vector<2x8x8xf32>
    %cst_101 = arith.constant dense<0.000000e+00> : vector<2x8xf32>
    %300 = vector.multi_reduction <add>, %299, %cst_101 [2] : vector<2x8x8xf32> to vector<2x8xf32>
    %301 = vector.shape_cast %300 : vector<2x8xf32> to vector<2x8x1xf32>
    %302 = tpu.reciprocal %301 {approx = true} : vector<2x8x1xf32> -> vector<2x8x1xf32>
    %303 = vector.broadcast %302 : vector<2x8x1xf32> to vector<2x8x8xf32>
    %304 = arith.mulf %299, %303 : vector<2x8x8xf32>
    %305 = arith.truncf %304 : vector<2x8x8xf32> to vector<2x8x8xbf16>
    %306 = vector.extract_strided_slice %243 {offsets = [0, 0, 48], sizes = [2, 8, 16], strides = [1, 1, 1]} : vector<2x8x128xbf16> to vector<2x8x16xbf16>
    "tpu.trace_start"() <{level = 10 : i32, message = "bqk,bkd->bqd"}> : () -> ()
    %cst_102 = arith.constant dense<0.000000e+00> : vector<2x8x16xf32>
    %307 = tpu.matmul %305, %306, %cst_102 {dimension_numbers = #tpu.dot_dimension_numbers<[2], [1], [1], [2], [0, 0, 0, 1, 1, 2], [0], [0]>} : vector<2x8x8xbf16>, vector<2x8x16xbf16>, vector<2x8x16xf32> -> vector<2x8x16xf32>
    "tpu.trace_stop"() : () -> ()
    %308 = vector.extract_strided_slice %237 {offsets = [0, 0, 64], sizes = [2, 8, 16], strides = [1, 1, 1]} : vector<2x8x128xbf16> to vector<2x8x16xbf16>
    %309 = vector.extract_strided_slice %240 {offsets = [0, 0, 64], sizes = [2, 8, 16], strides = [1, 1, 1]} : vector<2x8x128xbf16> to vector<2x8x16xbf16>
    "tpu.trace_start"() <{level = 10 : i32, message = "bqd,bkd->bqk"}> : () -> ()
    %cst_103 = arith.constant dense<0.000000e+00> : vector<2x8x8xf32>
    %310 = tpu.matmul %308, %309, %cst_103 {dimension_numbers = #tpu.dot_dimension_numbers<[2], [2], [1], [1], [0, 0, 0, 1, 1, 1], [0], [0]>} : vector<2x8x16xbf16>, vector<2x8x16xbf16>, vector<2x8x8xf32> -> vector<2x8x8xf32>
    "tpu.trace_stop"() : () -> ()
    %cst_104 = arith.constant dense<0xFF800000> : vector<2x8xf32>
    %311 = vector.multi_reduction <maximumf>, %310, %cst_104 [2] : vector<2x8x8xf32> to vector<2x8xf32>
    %312 = vector.shape_cast %311 : vector<2x8xf32> to vector<2x8x1xf32>
    %313 = vector.broadcast %312 : vector<2x8x1xf32> to vector<2x8x8xf32>
    %314 = arith.subf %310, %313 : vector<2x8x8xf32>
    %315 = math.exp %314 : vector<2x8x8xf32>
    %cst_105 = arith.constant dense<0.000000e+00> : vector<2x8xf32>
    %316 = vector.multi_reduction <add>, %315, %cst_105 [2] : vector<2x8x8xf32> to vector<2x8xf32>
    %317 = vector.shape_cast %316 : vector<2x8xf32> to vector<2x8x1xf32>
    %318 = tpu.reciprocal %317 {approx = true} : vector<2x8x1xf32> -> vector<2x8x1xf32>
    %319 = vector.broadcast %318 : vector<2x8x1xf32> to vector<2x8x8xf32>
    %320 = arith.mulf %315, %319 : vector<2x8x8xf32>
    %321 = arith.truncf %320 : vector<2x8x8xf32> to vector<2x8x8xbf16>
    %322 = vector.extract_strided_slice %243 {offsets = [0, 0, 64], sizes = [2, 8, 16], strides = [1, 1, 1]} : vector<2x8x128xbf16> to vector<2x8x16xbf16>
    "tpu.trace_start"() <{level = 10 : i32, message = "bqk,bkd->bqd"}> : () -> ()
    %cst_106 = arith.constant dense<0.000000e+00> : vector<2x8x16xf32>
    %323 = tpu.matmul %321, %322, %cst_106 {dimension_numbers = #tpu.dot_dimension_numbers<[2], [1], [1], [2], [0, 0, 0, 1, 1, 2], [0], [0]>} : vector<2x8x8xbf16>, vector<2x8x16xbf16>, vector<2x8x16xf32> -> vector<2x8x16xf32>
    "tpu.trace_stop"() : () -> ()
    %324 = vector.extract_strided_slice %237 {offsets = [0, 0, 80], sizes = [2, 8, 16], strides = [1, 1, 1]} : vector<2x8x128xbf16> to vector<2x8x16xbf16>
    %325 = vector.extract_strided_slice %240 {offsets = [0, 0, 80], sizes = [2, 8, 16], strides = [1, 1, 1]} : vector<2x8x128xbf16> to vector<2x8x16xbf16>
    "tpu.trace_start"() <{level = 10 : i32, message = "bqd,bkd->bqk"}> : () -> ()
    %cst_107 = arith.constant dense<0.000000e+00> : vector<2x8x8xf32>
    %326 = tpu.matmul %324, %325, %cst_107 {dimension_numbers = #tpu.dot_dimension_numbers<[2], [2], [1], [1], [0, 0, 0, 1, 1, 1], [0], [0]>} : vector<2x8x16xbf16>, vector<2x8x16xbf16>, vector<2x8x8xf32> -> vector<2x8x8xf32>
    "tpu.trace_stop"() : () -> ()
    %cst_108 = arith.constant dense<0xFF800000> : vector<2x8xf32>
    %327 = vector.multi_reduction <maximumf>, %326, %cst_108 [2] : vector<2x8x8xf32> to vector<2x8xf32>
    %328 = vector.shape_cast %327 : vector<2x8xf32> to vector<2x8x1xf32>
    %329 = vector.broadcast %328 : vector<2x8x1xf32> to vector<2x8x8xf32>
    %330 = arith.subf %326, %329 : vector<2x8x8xf32>
    %331 = math.exp %330 : vector<2x8x8xf32>
    %cst_109 = arith.constant dense<0.000000e+00> : vector<2x8xf32>
    %332 = vector.multi_reduction <add>, %331, %cst_109 [2] : vector<2x8x8xf32> to vector<2x8xf32>
    %333 = vector.shape_cast %332 : vector<2x8xf32> to vector<2x8x1xf32>
    %334 = tpu.reciprocal %333 {approx = true} : vector<2x8x1xf32> -> vector<2x8x1xf32>
    %335 = vector.broadcast %334 : vector<2x8x1xf32> to vector<2x8x8xf32>
    %336 = arith.mulf %331, %335 : vector<2x8x8xf32>
    %337 = arith.truncf %336 : vector<2x8x8xf32> to vector<2x8x8xbf16>
    %338 = vector.extract_strided_slice %243 {offsets = [0, 0, 80], sizes = [2, 8, 16], strides = [1, 1, 1]} : vector<2x8x128xbf16> to vector<2x8x16xbf16>
    "tpu.trace_start"() <{level = 10 : i32, message = "bqk,bkd->bqd"}> : () -> ()
    %cst_110 = arith.constant dense<0.000000e+00> : vector<2x8x16xf32>
    %339 = tpu.matmul %337, %338, %cst_110 {dimension_numbers = #tpu.dot_dimension_numbers<[2], [1], [1], [2], [0, 0, 0, 1, 1, 2], [0], [0]>} : vector<2x8x8xbf16>, vector<2x8x16xbf16>, vector<2x8x16xf32> -> vector<2x8x16xf32>
    "tpu.trace_stop"() : () -> ()
    %340 = vector.extract_strided_slice %237 {offsets = [0, 0, 96], sizes = [2, 8, 16], strides = [1, 1, 1]} : vector<2x8x128xbf16> to vector<2x8x16xbf16>
    %341 = vector.extract_strided_slice %240 {offsets = [0, 0, 96], sizes = [2, 8, 16], strides = [1, 1, 1]} : vector<2x8x128xbf16> to vector<2x8x16xbf16>
    "tpu.trace_start"() <{level = 10 : i32, message = "bqd,bkd->bqk"}> : () -> ()
    %cst_111 = arith.constant dense<0.000000e+00> : vector<2x8x8xf32>
    %342 = tpu.matmul %340, %341, %cst_111 {dimension_numbers = #tpu.dot_dimension_numbers<[2], [2], [1], [1], [0, 0, 0, 1, 1, 1], [0], [0]>} : vector<2x8x16xbf16>, vector<2x8x16xbf16>, vector<2x8x8xf32> -> vector<2x8x8xf32>
    "tpu.trace_stop"() : () -> ()
    %cst_112 = arith.constant dense<0xFF800000> : vector<2x8xf32>
    %343 = vector.multi_reduction <maximumf>, %342, %cst_112 [2] : vector<2x8x8xf32> to vector<2x8xf32>
    %344 = vector.shape_cast %343 : vector<2x8xf32> to vector<2x8x1xf32>
    %345 = vector.broadcast %344 : vector<2x8x1xf32> to vector<2x8x8xf32>
    %346 = arith.subf %342, %345 : vector<2x8x8xf32>
    %347 = math.exp %346 : vector<2x8x8xf32>
    %cst_113 = arith.constant dense<0.000000e+00> : vector<2x8xf32>
    %348 = vector.multi_reduction <add>, %347, %cst_113 [2] : vector<2x8x8xf32> to vector<2x8xf32>
    %349 = vector.shape_cast %348 : vector<2x8xf32> to vector<2x8x1xf32>
    %350 = tpu.reciprocal %349 {approx = true} : vector<2x8x1xf32> -> vector<2x8x1xf32>
    %351 = vector.broadcast %350 : vector<2x8x1xf32> to vector<2x8x8xf32>
    %352 = arith.mulf %347, %351 : vector<2x8x8xf32>
    %353 = arith.truncf %352 : vector<2x8x8xf32> to vector<2x8x8xbf16>
    %354 = vector.extract_strided_slice %243 {offsets = [0, 0, 96], sizes = [2, 8, 16], strides = [1, 1, 1]} : vector<2x8x128xbf16> to vector<2x8x16xbf16>
    "tpu.trace_start"() <{level = 10 : i32, message = "bqk,bkd->bqd"}> : () -> ()
    %cst_114 = arith.constant dense<0.000000e+00> : vector<2x8x16xf32>
    %355 = tpu.matmul %353, %354, %cst_114 {dimension_numbers = #tpu.dot_dimension_numbers<[2], [1], [1], [2], [0, 0, 0, 1, 1, 2], [0], [0]>} : vector<2x8x8xbf16>, vector<2x8x16xbf16>, vector<2x8x16xf32> -> vector<2x8x16xf32>
    "tpu.trace_stop"() : () -> ()
    %356 = vector.extract_strided_slice %237 {offsets = [0, 0, 112], sizes = [2, 8, 16], strides = [1, 1, 1]} : vector<2x8x128xbf16> to vector<2x8x16xbf16>
    %357 = vector.extract_strided_slice %240 {offsets = [0, 0, 112], sizes = [2, 8, 16], strides = [1, 1, 1]} : vector<2x8x128xbf16> to vector<2x8x16xbf16>
    "tpu.trace_start"() <{level = 10 : i32, message = "bqd,bkd->bqk"}> : () -> ()
    %cst_115 = arith.constant dense<0.000000e+00> : vector<2x8x8xf32>
    %358 = tpu.matmul %356, %357, %cst_115 {dimension_numbers = #tpu.dot_dimension_numbers<[2], [2], [1], [1], [0, 0, 0, 1, 1, 1], [0], [0]>} : vector<2x8x16xbf16>, vector<2x8x16xbf16>, vector<2x8x8xf32> -> vector<2x8x8xf32>
    "tpu.trace_stop"() : () -> ()
    %cst_116 = arith.constant dense<0xFF800000> : vector<2x8xf32>
    %359 = vector.multi_reduction <maximumf>, %358, %cst_116 [2] : vector<2x8x8xf32> to vector<2x8xf32>
    %360 = vector.shape_cast %359 : vector<2x8xf32> to vector<2x8x1xf32>
    %361 = vector.broadcast %360 : vector<2x8x1xf32> to vector<2x8x8xf32>
    %362 = arith.subf %358, %361 : vector<2x8x8xf32>
    %363 = math.exp %362 : vector<2x8x8xf32>
    %cst_117 = arith.constant dense<0.000000e+00> : vector<2x8xf32>
    %364 = vector.multi_reduction <add>, %363, %cst_117 [2] : vector<2x8x8xf32> to vector<2x8xf32>
    %365 = vector.shape_cast %364 : vector<2x8xf32> to vector<2x8x1xf32>
    %366 = tpu.reciprocal %365 {approx = true} : vector<2x8x1xf32> -> vector<2x8x1xf32>
    %367 = vector.broadcast %366 : vector<2x8x1xf32> to vector<2x8x8xf32>
    %368 = arith.mulf %363, %367 : vector<2x8x8xf32>
    %369 = arith.truncf %368 : vector<2x8x8xf32> to vector<2x8x8xbf16>
    %370 = vector.extract_strided_slice %243 {offsets = [0, 0, 112], sizes = [2, 8, 16], strides = [1, 1, 1]} : vector<2x8x128xbf16> to vector<2x8x16xbf16>
    "tpu.trace_start"() <{level = 10 : i32, message = "bqk,bkd->bqd"}> : () -> ()
    %cst_118 = arith.constant dense<0.000000e+00> : vector<2x8x16xf32>
    %371 = tpu.matmul %369, %370, %cst_118 {dimension_numbers = #tpu.dot_dimension_numbers<[2], [1], [1], [2], [0, 0, 0, 1, 1, 2], [0], [0]>} : vector<2x8x8xbf16>, vector<2x8x16xbf16>, vector<2x8x16xf32> -> vector<2x8x16xf32>
    "tpu.trace_stop"() : () -> ()
    %372 = tpu.concatenate %256, %272, %288, %304, %320, %336, %352, %368 in 2 : vector<2x8x8xf32>, vector<2x8x8xf32>, vector<2x8x8xf32>, vector<2x8x8xf32>, vector<2x8x8xf32>, vector<2x8x8xf32>, vector<2x8x8xf32>, vector<2x8x8xf32> -> vector<2x8x64xf32>
    %c0_119 = arith.constant 0 : index
    %c0_120 = arith.constant 0 : index
    %c0_121 = arith.constant 0 : index
    %373 = vector.load %arg46[%c0_119, %c0_120, %c0_121] : memref<2x8x64xf32, #tpu.memory_space<vmem>>, vector<2x8x64xf32>
    tpu.vector_store %arg46[%c0_119, %c0_120, %c0_121], %372 {strides = array<i32>} : memref<2x8x64xf32, #tpu.memory_space<vmem>>, vector<2x8x64xf32>,
    %374 = tpu.concatenate %259, %275, %291, %307, %323, %339, %355, %371 in 2 : vector<2x8x16xf32>, vector<2x8x16xf32>, vector<2x8x16xf32>, vector<2x8x16xf32>, vector<2x8x16xf32>, vector<2x8x16xf32>, vector<2x8x16xf32>, vector<2x8x16xf32> -> vector<2x8x128xf32>
    %375 = vector.shape_cast %374 : vector<2x8x128xf32> to vector<16x128xf32>
    %376 = arith.truncf %375 : vector<16x128xf32> to vector<16x128xbf16>
    %c0_122 = arith.constant 0 : index
    %c0_123 = arith.constant 0 : index
    %377 = vector.load %arg18[%c0_122, %c0_123] : memref<128x128xbf16, #tpu.memory_space<vmem>>, vector<128x128xbf16>
    %cst_124 = arith.constant dense<0.000000e+00> : vector<16x128xf32>
    %378 = tpu.matmul %376, %377, %cst_124 {dimension_numbers = #tpu.dot_dimension_numbers<[1], [0], [0], [1], [0, 0, 1, 1], [], []>} : vector<16x128xbf16>, vector<128x128xbf16>, vector<16x128xf32> -> vector<16x128xf32>
    %c0_125 = arith.constant 0 : index
    %c0_126 = arith.constant 0 : index
    %379 = vector.load %arg19[%c0_125, %c0_126] : memref<1x128xf32, #tpu.memory_space<vmem>>, vector<1x128xf32>
    %380 = vector.broadcast %379 : vector<1x128xf32> to vector<16x128xf32>
    %381 = arith.addf %378, %380 : vector<16x128xf32>
    %382 = arith.addf %226, %381 : vector<16x128xf32>
    %c0_127 = arith.constant 0 : index
    %c0_128 = arith.constant 0 : index
    %383 = vector.load %arg24[%c0_127, %c0_128] : memref<1x128xf32, #tpu.memory_space<vmem>>, vector<1x128xf32>
    %c0_129 = arith.constant 0 : index
    %c0_130 = arith.constant 0 : index
    %384 = vector.load %arg25[%c0_129, %c0_130] : memref<1x128xf32, #tpu.memory_space<vmem>>, vector<1x128xf32>
    %cst_131 = arith.constant dense<0.000000e+00> : vector<16xf32>
    %385 = vector.multi_reduction <add>, %382, %cst_131 [1] : vector<16x128xf32> to vector<16xf32>
    %386 = vector.shape_cast %385 : vector<16xf32> to vector<16x1xf32>
    %cst_132 = arith.constant 1.280000e+02 : f32
    %387 = vector.broadcast %cst_132 : f32 to vector<16x1xf32>
    %388 = arith.divf %386, %387 : vector<16x1xf32>
    %389 = vector.broadcast %388 : vector<16x1xf32> to vector<16x128xf32>
    %390 = arith.subf %382, %389 : vector<16x128xf32>
    %391 = arith.mulf %390, %390 : vector<16x128xf32>
    %cst_133 = arith.constant dense<0.000000e+00> : vector<16xf32>
    %392 = vector.multi_reduction <add>, %391, %cst_133 [1] : vector<16x128xf32> to vector<16xf32>
    %393 = vector.shape_cast %392 : vector<16xf32> to vector<16x1xf32>
    %cst_134 = arith.constant 1.280000e+02 : f32
    %394 = vector.broadcast %cst_134 : f32 to vector<16x1xf32>
    %395 = arith.divf %393, %394 : vector<16x1xf32>
    %396 = vector.broadcast %388 : vector<16x1xf32> to vector<16x128xf32>
    %397 = arith.subf %382, %396 : vector<16x128xf32>
    %cst_135 = arith.constant 9.99999974E-6 : f32
    %398 = vector.broadcast %cst_135 : f32 to vector<16x1xf32>
    %399 = arith.addf %395, %398 : vector<16x1xf32>
    %400 = math.rsqrt %399 : vector<16x1xf32>
    %401 = vector.broadcast %400 : vector<16x1xf32> to vector<16x128xf32>
    %402 = arith.mulf %397, %401 : vector<16x128xf32>
    %403 = vector.broadcast %383 : vector<1x128xf32> to vector<16x128xf32>
    %404 = arith.mulf %402, %403 : vector<16x128xf32>
    %405 = vector.broadcast %384 : vector<1x128xf32> to vector<16x128xf32>
    %406 = arith.addf %404, %405 : vector<16x128xf32>
    %407 = arith.truncf %406 : vector<16x128xf32> to vector<16x128xbf16>
    %c0_136 = arith.constant 0 : index
    %c0_137 = arith.constant 0 : index
    %408 = vector.load %arg20[%c0_136, %c0_137] : memref<128x128xbf16, #tpu.memory_space<vmem>>, vector<128x128xbf16>
    %cst_138 = arith.constant dense<0.000000e+00> : vector<16x128xf32>
    %409 = tpu.matmul %407, %408, %cst_138 {dimension_numbers = #tpu.dot_dimension_numbers<[1], [0], [0], [1], [0, 0, 1, 1], [], []>} : vector<16x128xbf16>, vector<128x128xbf16>, vector<16x128xf32> -> vector<16x128xf32>
    %c0_139 = arith.constant 0 : index
    %c0_140 = arith.constant 0 : index
    %410 = vector.load %arg21[%c0_139, %c0_140] : memref<1x128xf32, #tpu.memory_space<vmem>>, vector<1x128xf32>
    %411 = vector.broadcast %410 : vector<1x128xf32> to vector<16x128xf32>
    %412 = arith.addf %409, %411 : vector<16x128xf32>
    %cst_141 = arith.constant 0.000000e+00 : f32
    %413 = vector.broadcast %cst_141 : f32 to vector<16x128xf32>
    %414 = arith.maximumf %412, %413 : vector<16x128xf32>
    %415 = arith.truncf %414 : vector<16x128xf32> to vector<16x128xbf16>
    %c0_142 = arith.constant 0 : index
    %c0_143 = arith.constant 0 : index
    %416 = vector.load %arg22[%c0_142, %c0_143] : memref<128x128xbf16, #tpu.memory_space<vmem>>, vector<128x128xbf16>
    %cst_144 = arith.constant dense<0.000000e+00> : vector<16x128xf32>
    %417 = tpu.matmul %415, %416, %cst_144 {dimension_numbers = #tpu.dot_dimension_numbers<[1], [0], [0], [1], [0, 0, 1, 1], [], []>} : vector<16x128xbf16>, vector<128x128xbf16>, vector<16x128xf32> -> vector<16x128xf32>
    %c0_145 = arith.constant 0 : index
    %c0_146 = arith.constant 0 : index
    %418 = vector.load %arg23[%c0_145, %c0_146] : memref<1x128xf32, #tpu.memory_space<vmem>>, vector<1x128xf32>
    %419 = vector.broadcast %418 : vector<1x128xf32> to vector<16x128xf32>
    %420 = arith.addf %417, %419 : vector<16x128xf32>
    %421 = arith.addf %406, %420 : vector<16x128xf32>
    %c0_147 = arith.constant 0 : index
    %c0_148 = arith.constant 0 : index
    %422 = vector.load %arg26[%c0_147, %c0_148] : memref<1x128xf32, #tpu.memory_space<vmem>>, vector<1x128xf32>
    %c0_149 = arith.constant 0 : index
    %c0_150 = arith.constant 0 : index
    %423 = vector.load %arg27[%c0_149, %c0_150] : memref<1x128xf32, #tpu.memory_space<vmem>>, vector<1x128xf32>
    %cst_151 = arith.constant dense<0.000000e+00> : vector<16xf32>
    %424 = vector.multi_reduction <add>, %421, %cst_151 [1] : vector<16x128xf32> to vector<16xf32>
    %425 = vector.shape_cast %424 : vector<16xf32> to vector<16x1xf32>
    %cst_152 = arith.constant 1.280000e+02 : f32
    %426 = vector.broadcast %cst_152 : f32 to vector<16x1xf32>
    %427 = arith.divf %425, %426 : vector<16x1xf32>
    %428 = vector.broadcast %427 : vector<16x1xf32> to vector<16x128xf32>
    %429 = arith.subf %421, %428 : vector<16x128xf32>
    %430 = arith.mulf %429, %429 : vector<16x128xf32>
    %cst_153 = arith.constant dense<0.000000e+00> : vector<16xf32>
    %431 = vector.multi_reduction <add>, %430, %cst_153 [1] : vector<16x128xf32> to vector<16xf32>
    %432 = vector.shape_cast %431 : vector<16xf32> to vector<16x1xf32>
    %cst_154 = arith.constant 1.280000e+02 : f32
    %433 = vector.broadcast %cst_154 : f32 to vector<16x1xf32>
    %434 = arith.divf %432, %433 : vector<16x1xf32>
    %435 = vector.broadcast %427 : vector<16x1xf32> to vector<16x128xf32>
    %436 = arith.subf %421, %435 : vector<16x128xf32>
    %cst_155 = arith.constant 9.99999974E-6 : f32
    %437 = vector.broadcast %cst_155 : f32 to vector<16x1xf32>
    %438 = arith.addf %434, %437 : vector<16x1xf32>
    %439 = math.rsqrt %438 : vector<16x1xf32>
    %440 = vector.broadcast %439 : vector<16x1xf32> to vector<16x128xf32>
    %441 = arith.mulf %436, %440 : vector<16x128xf32>
    %442 = vector.broadcast %422 : vector<1x128xf32> to vector<16x128xf32>
    %443 = arith.mulf %441, %442 : vector<16x128xf32>
    %444 = vector.broadcast %423 : vector<1x128xf32> to vector<16x128xf32>
    %445 = arith.addf %443, %444 : vector<16x128xf32>
    %446 = arith.truncf %445 : vector<16x128xf32> to vector<16x128xbf16>
    %c0_156 = arith.constant 0 : index
    %c0_157 = arith.constant 0 : index
    %447 = vector.load %arg28[%c0_156, %c0_157] : memref<128x384xbf16, #tpu.memory_space<vmem>>, vector<128x384xbf16>
    %cst_158 = arith.constant dense<0.000000e+00> : vector<16x384xf32>
    %448 = tpu.matmul %446, %447, %cst_158 {dimension_numbers = #tpu.dot_dimension_numbers<[1], [0], [0], [1], [0, 0, 1, 1], [], []>} : vector<16x128xbf16>, vector<128x384xbf16>, vector<16x384xf32> -> vector<16x384xf32>
    %c0_159 = arith.constant 0 : index
    %c0_160 = arith.constant 0 : index
    %449 = vector.load %arg29[%c0_159, %c0_160] : memref<1x384xf32, #tpu.memory_space<vmem>>, vector<1x384xf32>
    %450 = vector.broadcast %449 : vector<1x384xf32> to vector<16x384xf32>
    %451 = arith.addf %448, %450 : vector<16x384xf32>
    %452 = vector.extract_strided_slice %451 {offsets = [0, 0], sizes = [16, 128], strides = [1, 1]} : vector<16x384xf32> to vector<16x128xf32>
    %cst_161 = arith.constant 2.500000e-01 : f32
    %453 = vector.broadcast %cst_161 : f32 to vector<16x128xf32>
    %454 = arith.mulf %452, %453 : vector<16x128xf32>
    %455 = arith.truncf %454 : vector<16x128xf32> to vector<16x128xbf16>
    %456 = vector.shape_cast %455 : vector<16x128xbf16> to vector<2x8x128xbf16>
    %457 = vector.extract_strided_slice %451 {offsets = [0, 128], sizes = [16, 128], strides = [1, 1]} : vector<16x384xf32> to vector<16x128xf32>
    %458 = arith.truncf %457 : vector<16x128xf32> to vector<16x128xbf16>
    %459 = vector.shape_cast %458 : vector<16x128xbf16> to vector<2x8x128xbf16>
    %460 = vector.extract_strided_slice %451 {offsets = [0, 256], sizes = [16, 128], strides = [1, 1]} : vector<16x384xf32> to vector<16x128xf32>
    %461 = arith.truncf %460 : vector<16x128xf32> to vector<16x128xbf16>
    %462 = vector.shape_cast %461 : vector<16x128xbf16> to vector<2x8x128xbf16>
    %463 = vector.extract_strided_slice %456 {offsets = [0, 0, 0], sizes = [2, 8, 16], strides = [1, 1, 1]} : vector<2x8x128xbf16> to vector<2x8x16xbf16>
    %464 = vector.extract_strided_slice %459 {offsets = [0, 0, 0], sizes = [2, 8, 16], strides = [1, 1, 1]} : vector<2x8x128xbf16> to vector<2x8x16xbf16>
    "tpu.trace_start"() <{level = 10 : i32, message = "bqd,bkd->bqk"}> : () -> ()
    %cst_162 = arith.constant dense<0.000000e+00> : vector<2x8x8xf32>
    %465 = tpu.matmul %463, %464, %cst_162 {dimension_numbers = #tpu.dot_dimension_numbers<[2], [2], [1], [1], [0, 0, 0, 1, 1, 1], [0], [0]>} : vector<2x8x16xbf16>, vector<2x8x16xbf16>, vector<2x8x8xf32> -> vector<2x8x8xf32>
    "tpu.trace_stop"() : () -> ()
    %cst_163 = arith.constant dense<0xFF800000> : vector<2x8xf32>
    %466 = vector.multi_reduction <maximumf>, %465, %cst_163 [2] : vector<2x8x8xf32> to vector<2x8xf32>
    %467 = vector.shape_cast %466 : vector<2x8xf32> to vector<2x8x1xf32>
    %468 = vector.broadcast %467 : vector<2x8x1xf32> to vector<2x8x8xf32>
    %469 = arith.subf %465, %468 : vector<2x8x8xf32>
    %470 = math.exp %469 : vector<2x8x8xf32>
    %cst_164 = arith.constant dense<0.000000e+00> : vector<2x8xf32>
    %471 = vector.multi_reduction <add>, %470, %cst_164 [2] : vector<2x8x8xf32> to vector<2x8xf32>
    %472 = vector.shape_cast %471 : vector<2x8xf32> to vector<2x8x1xf32>
    %473 = tpu.reciprocal %472 {approx = true} : vector<2x8x1xf32> -> vector<2x8x1xf32>
    %474 = vector.broadcast %473 : vector<2x8x1xf32> to vector<2x8x8xf32>
    %475 = arith.mulf %470, %474 : vector<2x8x8xf32>
    %476 = arith.truncf %475 : vector<2x8x8xf32> to vector<2x8x8xbf16>
    %477 = vector.extract_strided_slice %462 {offsets = [0, 0, 0], sizes = [2, 8, 16], strides = [1, 1, 1]} : vector<2x8x128xbf16> to vector<2x8x16xbf16>
    "tpu.trace_start"() <{level = 10 : i32, message = "bqk,bkd->bqd"}> : () -> ()
    %cst_165 = arith.constant dense<0.000000e+00> : vector<2x8x16xf32>
    %478 = tpu.matmul %476, %477, %cst_165 {dimension_numbers = #tpu.dot_dimension_numbers<[2], [1], [1], [2], [0, 0, 0, 1, 1, 2], [0], [0]>} : vector<2x8x8xbf16>, vector<2x8x16xbf16>, vector<2x8x16xf32> -> vector<2x8x16xf32>
    "tpu.trace_stop"() : () -> ()
    %479 = vector.extract_strided_slice %456 {offsets = [0, 0, 16], sizes = [2, 8, 16], strides = [1, 1, 1]} : vector<2x8x128xbf16> to vector<2x8x16xbf16>
    %480 = vector.extract_strided_slice %459 {offsets = [0, 0, 16], sizes = [2, 8, 16], strides = [1, 1, 1]} : vector<2x8x128xbf16> to vector<2x8x16xbf16>
    "tpu.trace_start"() <{level = 10 : i32, message = "bqd,bkd->bqk"}> : () -> ()
    %cst_166 = arith.constant dense<0.000000e+00> : vector<2x8x8xf32>
    %481 = tpu.matmul %479, %480, %cst_166 {dimension_numbers = #tpu.dot_dimension_numbers<[2], [2], [1], [1], [0, 0, 0, 1, 1, 1], [0], [0]>} : vector<2x8x16xbf16>, vector<2x8x16xbf16>, vector<2x8x8xf32> -> vector<2x8x8xf32>
    "tpu.trace_stop"() : () -> ()
    %cst_167 = arith.constant dense<0xFF800000> : vector<2x8xf32>
    %482 = vector.multi_reduction <maximumf>, %481, %cst_167 [2] : vector<2x8x8xf32> to vector<2x8xf32>
    %483 = vector.shape_cast %482 : vector<2x8xf32> to vector<2x8x1xf32>
    %484 = vector.broadcast %483 : vector<2x8x1xf32> to vector<2x8x8xf32>
    %485 = arith.subf %481, %484 : vector<2x8x8xf32>
    %486 = math.exp %485 : vector<2x8x8xf32>
    %cst_168 = arith.constant dense<0.000000e+00> : vector<2x8xf32>
    %487 = vector.multi_reduction <add>, %486, %cst_168 [2] : vector<2x8x8xf32> to vector<2x8xf32>
    %488 = vector.shape_cast %487 : vector<2x8xf32> to vector<2x8x1xf32>
    %489 = tpu.reciprocal %488 {approx = true} : vector<2x8x1xf32> -> vector<2x8x1xf32>
    %490 = vector.broadcast %489 : vector<2x8x1xf32> to vector<2x8x8xf32>
    %491 = arith.mulf %486, %490 : vector<2x8x8xf32>
    %492 = arith.truncf %491 : vector<2x8x8xf32> to vector<2x8x8xbf16>
    %493 = vector.extract_strided_slice %462 {offsets = [0, 0, 16], sizes = [2, 8, 16], strides = [1, 1, 1]} : vector<2x8x128xbf16> to vector<2x8x16xbf16>
    "tpu.trace_start"() <{level = 10 : i32, message = "bqk,bkd->bqd"}> : () -> ()
    %cst_169 = arith.constant dense<0.000000e+00> : vector<2x8x16xf32>
    %494 = tpu.matmul %492, %493, %cst_169 {dimension_numbers = #tpu.dot_dimension_numbers<[2], [1], [1], [2], [0, 0, 0, 1, 1, 2], [0], [0]>} : vector<2x8x8xbf16>, vector<2x8x16xbf16>, vector<2x8x16xf32> -> vector<2x8x16xf32>
    "tpu.trace_stop"() : () -> ()
    %495 = vector.extract_strided_slice %456 {offsets = [0, 0, 32], sizes = [2, 8, 16], strides = [1, 1, 1]} : vector<2x8x128xbf16> to vector<2x8x16xbf16>
    %496 = vector.extract_strided_slice %459 {offsets = [0, 0, 32], sizes = [2, 8, 16], strides = [1, 1, 1]} : vector<2x8x128xbf16> to vector<2x8x16xbf16>
    "tpu.trace_start"() <{level = 10 : i32, message = "bqd,bkd->bqk"}> : () -> ()
    %cst_170 = arith.constant dense<0.000000e+00> : vector<2x8x8xf32>
    %497 = tpu.matmul %495, %496, %cst_170 {dimension_numbers = #tpu.dot_dimension_numbers<[2], [2], [1], [1], [0, 0, 0, 1, 1, 1], [0], [0]>} : vector<2x8x16xbf16>, vector<2x8x16xbf16>, vector<2x8x8xf32> -> vector<2x8x8xf32>
    "tpu.trace_stop"() : () -> ()
    %cst_171 = arith.constant dense<0xFF800000> : vector<2x8xf32>
    %498 = vector.multi_reduction <maximumf>, %497, %cst_171 [2] : vector<2x8x8xf32> to vector<2x8xf32>
    %499 = vector.shape_cast %498 : vector<2x8xf32> to vector<2x8x1xf32>
    %500 = vector.broadcast %499 : vector<2x8x1xf32> to vector<2x8x8xf32>
    %501 = arith.subf %497, %500 : vector<2x8x8xf32>
    %502 = math.exp %501 : vector<2x8x8xf32>
    %cst_172 = arith.constant dense<0.000000e+00> : vector<2x8xf32>
    %503 = vector.multi_reduction <add>, %502, %cst_172 [2] : vector<2x8x8xf32> to vector<2x8xf32>
    %504 = vector.shape_cast %503 : vector<2x8xf32> to vector<2x8x1xf32>
    %505 = tpu.reciprocal %504 {approx = true} : vector<2x8x1xf32> -> vector<2x8x1xf32>
    %506 = vector.broadcast %505 : vector<2x8x1xf32> to vector<2x8x8xf32>
    %507 = arith.mulf %502, %506 : vector<2x8x8xf32>
    %508 = arith.truncf %507 : vector<2x8x8xf32> to vector<2x8x8xbf16>
    %509 = vector.extract_strided_slice %462 {offsets = [0, 0, 32], sizes = [2, 8, 16], strides = [1, 1, 1]} : vector<2x8x128xbf16> to vector<2x8x16xbf16>
    "tpu.trace_start"() <{level = 10 : i32, message = "bqk,bkd->bqd"}> : () -> ()
    %cst_173 = arith.constant dense<0.000000e+00> : vector<2x8x16xf32>
    %510 = tpu.matmul %508, %509, %cst_173 {dimension_numbers = #tpu.dot_dimension_numbers<[2], [1], [1], [2], [0, 0, 0, 1, 1, 2], [0], [0]>} : vector<2x8x8xbf16>, vector<2x8x16xbf16>, vector<2x8x16xf32> -> vector<2x8x16xf32>
    "tpu.trace_stop"() : () -> ()
    %511 = vector.extract_strided_slice %456 {offsets = [0, 0, 48], sizes = [2, 8, 16], strides = [1, 1, 1]} : vector<2x8x128xbf16> to vector<2x8x16xbf16>
    %512 = vector.extract_strided_slice %459 {offsets = [0, 0, 48], sizes = [2, 8, 16], strides = [1, 1, 1]} : vector<2x8x128xbf16> to vector<2x8x16xbf16>
    "tpu.trace_start"() <{level = 10 : i32, message = "bqd,bkd->bqk"}> : () -> ()
    %cst_174 = arith.constant dense<0.000000e+00> : vector<2x8x8xf32>
    %513 = tpu.matmul %511, %512, %cst_174 {dimension_numbers = #tpu.dot_dimension_numbers<[2], [2], [1], [1], [0, 0, 0, 1, 1, 1], [0], [0]>} : vector<2x8x16xbf16>, vector<2x8x16xbf16>, vector<2x8x8xf32> -> vector<2x8x8xf32>
    "tpu.trace_stop"() : () -> ()
    %cst_175 = arith.constant dense<0xFF800000> : vector<2x8xf32>
    %514 = vector.multi_reduction <maximumf>, %513, %cst_175 [2] : vector<2x8x8xf32> to vector<2x8xf32>
    %515 = vector.shape_cast %514 : vector<2x8xf32> to vector<2x8x1xf32>
    %516 = vector.broadcast %515 : vector<2x8x1xf32> to vector<2x8x8xf32>
    %517 = arith.subf %513, %516 : vector<2x8x8xf32>
    %518 = math.exp %517 : vector<2x8x8xf32>
    %cst_176 = arith.constant dense<0.000000e+00> : vector<2x8xf32>
    %519 = vector.multi_reduction <add>, %518, %cst_176 [2] : vector<2x8x8xf32> to vector<2x8xf32>
    %520 = vector.shape_cast %519 : vector<2x8xf32> to vector<2x8x1xf32>
    %521 = tpu.reciprocal %520 {approx = true} : vector<2x8x1xf32> -> vector<2x8x1xf32>
    %522 = vector.broadcast %521 : vector<2x8x1xf32> to vector<2x8x8xf32>
    %523 = arith.mulf %518, %522 : vector<2x8x8xf32>
    %524 = arith.truncf %523 : vector<2x8x8xf32> to vector<2x8x8xbf16>
    %525 = vector.extract_strided_slice %462 {offsets = [0, 0, 48], sizes = [2, 8, 16], strides = [1, 1, 1]} : vector<2x8x128xbf16> to vector<2x8x16xbf16>
    "tpu.trace_start"() <{level = 10 : i32, message = "bqk,bkd->bqd"}> : () -> ()
    %cst_177 = arith.constant dense<0.000000e+00> : vector<2x8x16xf32>
    %526 = tpu.matmul %524, %525, %cst_177 {dimension_numbers = #tpu.dot_dimension_numbers<[2], [1], [1], [2], [0, 0, 0, 1, 1, 2], [0], [0]>} : vector<2x8x8xbf16>, vector<2x8x16xbf16>, vector<2x8x16xf32> -> vector<2x8x16xf32>
    "tpu.trace_stop"() : () -> ()
    %527 = vector.extract_strided_slice %456 {offsets = [0, 0, 64], sizes = [2, 8, 16], strides = [1, 1, 1]} : vector<2x8x128xbf16> to vector<2x8x16xbf16>
    %528 = vector.extract_strided_slice %459 {offsets = [0, 0, 64], sizes = [2, 8, 16], strides = [1, 1, 1]} : vector<2x8x128xbf16> to vector<2x8x16xbf16>
    "tpu.trace_start"() <{level = 10 : i32, message = "bqd,bkd->bqk"}> : () -> ()
    %cst_178 = arith.constant dense<0.000000e+00> : vector<2x8x8xf32>
    %529 = tpu.matmul %527, %528, %cst_178 {dimension_numbers = #tpu.dot_dimension_numbers<[2], [2], [1], [1], [0, 0, 0, 1, 1, 1], [0], [0]>} : vector<2x8x16xbf16>, vector<2x8x16xbf16>, vector<2x8x8xf32> -> vector<2x8x8xf32>
    "tpu.trace_stop"() : () -> ()
    %cst_179 = arith.constant dense<0xFF800000> : vector<2x8xf32>
    %530 = vector.multi_reduction <maximumf>, %529, %cst_179 [2] : vector<2x8x8xf32> to vector<2x8xf32>
    %531 = vector.shape_cast %530 : vector<2x8xf32> to vector<2x8x1xf32>
    %532 = vector.broadcast %531 : vector<2x8x1xf32> to vector<2x8x8xf32>
    %533 = arith.subf %529, %532 : vector<2x8x8xf32>
    %534 = math.exp %533 : vector<2x8x8xf32>
    %cst_180 = arith.constant dense<0.000000e+00> : vector<2x8xf32>
    %535 = vector.multi_reduction <add>, %534, %cst_180 [2] : vector<2x8x8xf32> to vector<2x8xf32>
    %536 = vector.shape_cast %535 : vector<2x8xf32> to vector<2x8x1xf32>
    %537 = tpu.reciprocal %536 {approx = true} : vector<2x8x1xf32> -> vector<2x8x1xf32>
    %538 = vector.broadcast %537 : vector<2x8x1xf32> to vector<2x8x8xf32>
    %539 = arith.mulf %534, %538 : vector<2x8x8xf32>
    %540 = arith.truncf %539 : vector<2x8x8xf32> to vector<2x8x8xbf16>
    %541 = vector.extract_strided_slice %462 {offsets = [0, 0, 64], sizes = [2, 8, 16], strides = [1, 1, 1]} : vector<2x8x128xbf16> to vector<2x8x16xbf16>
    "tpu.trace_start"() <{level = 10 : i32, message = "bqk,bkd->bqd"}> : () -> ()
    %cst_181 = arith.constant dense<0.000000e+00> : vector<2x8x16xf32>
    %542 = tpu.matmul %540, %541, %cst_181 {dimension_numbers = #tpu.dot_dimension_numbers<[2], [1], [1], [2], [0, 0, 0, 1, 1, 2], [0], [0]>} : vector<2x8x8xbf16>, vector<2x8x16xbf16>, vector<2x8x16xf32> -> vector<2x8x16xf32>
    "tpu.trace_stop"() : () -> ()
    %543 = vector.extract_strided_slice %456 {offsets = [0, 0, 80], sizes = [2, 8, 16], strides = [1, 1, 1]} : vector<2x8x128xbf16> to vector<2x8x16xbf16>
    %544 = vector.extract_strided_slice %459 {offsets = [0, 0, 80], sizes = [2, 8, 16], strides = [1, 1, 1]} : vector<2x8x128xbf16> to vector<2x8x16xbf16>
    "tpu.trace_start"() <{level = 10 : i32, message = "bqd,bkd->bqk"}> : () -> ()
    %cst_182 = arith.constant dense<0.000000e+00> : vector<2x8x8xf32>
    %545 = tpu.matmul %543, %544, %cst_182 {dimension_numbers = #tpu.dot_dimension_numbers<[2], [2], [1], [1], [0, 0, 0, 1, 1, 1], [0], [0]>} : vector<2x8x16xbf16>, vector<2x8x16xbf16>, vector<2x8x8xf32> -> vector<2x8x8xf32>
    "tpu.trace_stop"() : () -> ()
    %cst_183 = arith.constant dense<0xFF800000> : vector<2x8xf32>
    %546 = vector.multi_reduction <maximumf>, %545, %cst_183 [2] : vector<2x8x8xf32> to vector<2x8xf32>
    %547 = vector.shape_cast %546 : vector<2x8xf32> to vector<2x8x1xf32>
    %548 = vector.broadcast %547 : vector<2x8x1xf32> to vector<2x8x8xf32>
    %549 = arith.subf %545, %548 : vector<2x8x8xf32>
    %550 = math.exp %549 : vector<2x8x8xf32>
    %cst_184 = arith.constant dense<0.000000e+00> : vector<2x8xf32>
    %551 = vector.multi_reduction <add>, %550, %cst_184 [2] : vector<2x8x8xf32> to vector<2x8xf32>
    %552 = vector.shape_cast %551 : vector<2x8xf32> to vector<2x8x1xf32>
    %553 = tpu.reciprocal %552 {approx = true} : vector<2x8x1xf32> -> vector<2x8x1xf32>
    %554 = vector.broadcast %553 : vector<2x8x1xf32> to vector<2x8x8xf32>
    %555 = arith.mulf %550, %554 : vector<2x8x8xf32>
    %556 = arith.truncf %555 : vector<2x8x8xf32> to vector<2x8x8xbf16>
    %557 = vector.extract_strided_slice %462 {offsets = [0, 0, 80], sizes = [2, 8, 16], strides = [1, 1, 1]} : vector<2x8x128xbf16> to vector<2x8x16xbf16>
    "tpu.trace_start"() <{level = 10 : i32, message = "bqk,bkd->bqd"}> : () -> ()
    %cst_185 = arith.constant dense<0.000000e+00> : vector<2x8x16xf32>
    %558 = tpu.matmul %556, %557, %cst_185 {dimension_numbers = #tpu.dot_dimension_numbers<[2], [1], [1], [2], [0, 0, 0, 1, 1, 2], [0], [0]>} : vector<2x8x8xbf16>, vector<2x8x16xbf16>, vector<2x8x16xf32> -> vector<2x8x16xf32>
    "tpu.trace_stop"() : () -> ()
    %559 = vector.extract_strided_slice %456 {offsets = [0, 0, 96], sizes = [2, 8, 16], strides = [1, 1, 1]} : vector<2x8x128xbf16> to vector<2x8x16xbf16>
    %560 = vector.extract_strided_slice %459 {offsets = [0, 0, 96], sizes = [2, 8, 16], strides = [1, 1, 1]} : vector<2x8x128xbf16> to vector<2x8x16xbf16>
    "tpu.trace_start"() <{level = 10 : i32, message = "bqd,bkd->bqk"}> : () -> ()
    %cst_186 = arith.constant dense<0.000000e+00> : vector<2x8x8xf32>
    %561 = tpu.matmul %559, %560, %cst_186 {dimension_numbers = #tpu.dot_dimension_numbers<[2], [2], [1], [1], [0, 0, 0, 1, 1, 1], [0], [0]>} : vector<2x8x16xbf16>, vector<2x8x16xbf16>, vector<2x8x8xf32> -> vector<2x8x8xf32>
    "tpu.trace_stop"() : () -> ()
    %cst_187 = arith.constant dense<0xFF800000> : vector<2x8xf32>
    %562 = vector.multi_reduction <maximumf>, %561, %cst_187 [2] : vector<2x8x8xf32> to vector<2x8xf32>
    %563 = vector.shape_cast %562 : vector<2x8xf32> to vector<2x8x1xf32>
    %564 = vector.broadcast %563 : vector<2x8x1xf32> to vector<2x8x8xf32>
    %565 = arith.subf %561, %564 : vector<2x8x8xf32>
    %566 = math.exp %565 : vector<2x8x8xf32>
    %cst_188 = arith.constant dense<0.000000e+00> : vector<2x8xf32>
    %567 = vector.multi_reduction <add>, %566, %cst_188 [2] : vector<2x8x8xf32> to vector<2x8xf32>
    %568 = vector.shape_cast %567 : vector<2x8xf32> to vector<2x8x1xf32>
    %569 = tpu.reciprocal %568 {approx = true} : vector<2x8x1xf32> -> vector<2x8x1xf32>
    %570 = vector.broadcast %569 : vector<2x8x1xf32> to vector<2x8x8xf32>
    %571 = arith.mulf %566, %570 : vector<2x8x8xf32>
    %572 = arith.truncf %571 : vector<2x8x8xf32> to vector<2x8x8xbf16>
    %573 = vector.extract_strided_slice %462 {offsets = [0, 0, 96], sizes = [2, 8, 16], strides = [1, 1, 1]} : vector<2x8x128xbf16> to vector<2x8x16xbf16>
    "tpu.trace_start"() <{level = 10 : i32, message = "bqk,bkd->bqd"}> : () -> ()
    %cst_189 = arith.constant dense<0.000000e+00> : vector<2x8x16xf32>
    %574 = tpu.matmul %572, %573, %cst_189 {dimension_numbers = #tpu.dot_dimension_numbers<[2], [1], [1], [2], [0, 0, 0, 1, 1, 2], [0], [0]>} : vector<2x8x8xbf16>, vector<2x8x16xbf16>, vector<2x8x16xf32> -> vector<2x8x16xf32>
    "tpu.trace_stop"() : () -> ()
    %575 = vector.extract_strided_slice %456 {offsets = [0, 0, 112], sizes = [2, 8, 16], strides = [1, 1, 1]} : vector<2x8x128xbf16> to vector<2x8x16xbf16>
    %576 = vector.extract_strided_slice %459 {offsets = [0, 0, 112], sizes = [2, 8, 16], strides = [1, 1, 1]} : vector<2x8x128xbf16> to vector<2x8x16xbf16>
    "tpu.trace_start"() <{level = 10 : i32, message = "bqd,bkd->bqk"}> : () -> ()
    %cst_190 = arith.constant dense<0.000000e+00> : vector<2x8x8xf32>
    %577 = tpu.matmul %575, %576, %cst_190 {dimension_numbers = #tpu.dot_dimension_numbers<[2], [2], [1], [1], [0, 0, 0, 1, 1, 1], [0], [0]>} : vector<2x8x16xbf16>, vector<2x8x16xbf16>, vector<2x8x8xf32> -> vector<2x8x8xf32>
    "tpu.trace_stop"() : () -> ()
    %cst_191 = arith.constant dense<0xFF800000> : vector<2x8xf32>
    %578 = vector.multi_reduction <maximumf>, %577, %cst_191 [2] : vector<2x8x8xf32> to vector<2x8xf32>
    %579 = vector.shape_cast %578 : vector<2x8xf32> to vector<2x8x1xf32>
    %580 = vector.broadcast %579 : vector<2x8x1xf32> to vector<2x8x8xf32>
    %581 = arith.subf %577, %580 : vector<2x8x8xf32>
    %582 = math.exp %581 : vector<2x8x8xf32>
    %cst_192 = arith.constant dense<0.000000e+00> : vector<2x8xf32>
    %583 = vector.multi_reduction <add>, %582, %cst_192 [2] : vector<2x8x8xf32> to vector<2x8xf32>
    %584 = vector.shape_cast %583 : vector<2x8xf32> to vector<2x8x1xf32>
    %585 = tpu.reciprocal %584 {approx = true} : vector<2x8x1xf32> -> vector<2x8x1xf32>
    %586 = vector.broadcast %585 : vector<2x8x1xf32> to vector<2x8x8xf32>
    %587 = arith.mulf %582, %586 : vector<2x8x8xf32>
    %588 = arith.truncf %587 : vector<2x8x8xf32> to vector<2x8x8xbf16>
    %589 = vector.extract_strided_slice %462 {offsets = [0, 0, 112], sizes = [2, 8, 16], strides = [1, 1, 1]} : vector<2x8x128xbf16> to vector<2x8x16xbf16>
    "tpu.trace_start"() <{level = 10 : i32, message = "bqk,bkd->bqd"}> : () -> ()
    %cst_193 = arith.constant dense<0.000000e+00> : vector<2x8x16xf32>
    %590 = tpu.matmul %588, %589, %cst_193 {dimension_numbers = #tpu.dot_dimension_numbers<[2], [1], [1], [2], [0, 0, 0, 1, 1, 2], [0], [0]>} : vector<2x8x8xbf16>, vector<2x8x16xbf16>, vector<2x8x16xf32> -> vector<2x8x16xf32>
    "tpu.trace_stop"() : () -> ()
    %591 = tpu.concatenate %475, %491, %507, %523, %539, %555, %571, %587 in 2 : vector<2x8x8xf32>, vector<2x8x8xf32>, vector<2x8x8xf32>, vector<2x8x8xf32>, vector<2x8x8xf32>, vector<2x8x8xf32>, vector<2x8x8xf32>, vector<2x8x8xf32> -> vector<2x8x64xf32>
    %c0_194 = arith.constant 0 : index
    %c0_195 = arith.constant 0 : index
    %c0_196 = arith.constant 0 : index
    %592 = vector.load %arg47[%c0_194, %c0_195, %c0_196] : memref<2x8x64xf32, #tpu.memory_space<vmem>>, vector<2x8x64xf32>
    tpu.vector_store %arg47[%c0_194, %c0_195, %c0_196], %591 {strides = array<i32>} : memref<2x8x64xf32, #tpu.memory_space<vmem>>, vector<2x8x64xf32>,
    %593 = tpu.concatenate %478, %494, %510, %526, %542, %558, %574, %590 in 2 : vector<2x8x16xf32>, vector<2x8x16xf32>, vector<2x8x16xf32>, vector<2x8x16xf32>, vector<2x8x16xf32>, vector<2x8x16xf32>, vector<2x8x16xf32>, vector<2x8x16xf32> -> vector<2x8x128xf32>
    %594 = vector.shape_cast %593 : vector<2x8x128xf32> to vector<16x128xf32>
    %595 = arith.truncf %594 : vector<16x128xf32> to vector<16x128xbf16>
    %c0_197 = arith.constant 0 : index
    %c0_198 = arith.constant 0 : index
    %596 = vector.load %arg30[%c0_197, %c0_198] : memref<128x128xbf16, #tpu.memory_space<vmem>>, vector<128x128xbf16>
    %cst_199 = arith.constant dense<0.000000e+00> : vector<16x128xf32>
    %597 = tpu.matmul %595, %596, %cst_199 {dimension_numbers = #tpu.dot_dimension_numbers<[1], [0], [0], [1], [0, 0, 1, 1], [], []>} : vector<16x128xbf16>, vector<128x128xbf16>, vector<16x128xf32> -> vector<16x128xf32>
    %c0_200 = arith.constant 0 : index
    %c0_201 = arith.constant 0 : index
    %598 = vector.load %arg31[%c0_200, %c0_201] : memref<1x128xf32, #tpu.memory_space<vmem>>, vector<1x128xf32>
    %599 = vector.broadcast %598 : vector<1x128xf32> to vector<16x128xf32>
    %600 = arith.addf %597, %599 : vector<16x128xf32>
    %601 = arith.addf %445, %600 : vector<16x128xf32>
    %c0_202 = arith.constant 0 : index
    %c0_203 = arith.constant 0 : index
    %602 = vector.load %arg36[%c0_202, %c0_203] : memref<1x128xf32, #tpu.memory_space<vmem>>, vector<1x128xf32>
    %c0_204 = arith.constant 0 : index
    %c0_205 = arith.constant 0 : index
    %603 = vector.load %arg37[%c0_204, %c0_205] : memref<1x128xf32, #tpu.memory_space<vmem>>, vector<1x128xf32>
    %cst_206 = arith.constant dense<0.000000e+00> : vector<16xf32>
    %604 = vector.multi_reduction <add>, %601, %cst_206 [1] : vector<16x128xf32> to vector<16xf32>
    %605 = vector.shape_cast %604 : vector<16xf32> to vector<16x1xf32>
    %cst_207 = arith.constant 1.280000e+02 : f32
    %606 = vector.broadcast %cst_207 : f32 to vector<16x1xf32>
    %607 = arith.divf %605, %606 : vector<16x1xf32>
    %608 = vector.broadcast %607 : vector<16x1xf32> to vector<16x128xf32>
    %609 = arith.subf %601, %608 : vector<16x128xf32>
    %610 = arith.mulf %609, %609 : vector<16x128xf32>
    %cst_208 = arith.constant dense<0.000000e+00> : vector<16xf32>
    %611 = vector.multi_reduction <add>, %610, %cst_208 [1] : vector<16x128xf32> to vector<16xf32>
    %612 = vector.shape_cast %611 : vector<16xf32> to vector<16x1xf32>
    %cst_209 = arith.constant 1.280000e+02 : f32
    %613 = vector.broadcast %cst_209 : f32 to vector<16x1xf32>
    %614 = arith.divf %612, %613 : vector<16x1xf32>
    %615 = vector.broadcast %607 : vector<16x1xf32> to vector<16x128xf32>
    %616 = arith.subf %601, %615 : vector<16x128xf32>
    %cst_210 = arith.constant 9.99999974E-6 : f32
    %617 = vector.broadcast %cst_210 : f32 to vector<16x1xf32>
    %618 = arith.addf %614, %617 : vector<16x1xf32>
    %619 = math.rsqrt %618 : vector<16x1xf32>
    %620 = vector.broadcast %619 : vector<16x1xf32> to vector<16x128xf32>
    %621 = arith.mulf %616, %620 : vector<16x128xf32>
    %622 = vector.broadcast %602 : vector<1x128xf32> to vector<16x128xf32>
    %623 = arith.mulf %621, %622 : vector<16x128xf32>
    %624 = vector.broadcast %603 : vector<1x128xf32> to vector<16x128xf32>
    %625 = arith.addf %623, %624 : vector<16x128xf32>
    %626 = arith.truncf %625 : vector<16x128xf32> to vector<16x128xbf16>
    %c0_211 = arith.constant 0 : index
    %c0_212 = arith.constant 0 : index
    %627 = vector.load %arg32[%c0_211, %c0_212] : memref<128x128xbf16, #tpu.memory_space<vmem>>, vector<128x128xbf16>
    %cst_213 = arith.constant dense<0.000000e+00> : vector<16x128xf32>
    %628 = tpu.matmul %626, %627, %cst_213 {dimension_numbers = #tpu.dot_dimension_numbers<[1], [0], [0], [1], [0, 0, 1, 1], [], []>} : vector<16x128xbf16>, vector<128x128xbf16>, vector<16x128xf32> -> vector<16x128xf32>
    %c0_214 = arith.constant 0 : index
    %c0_215 = arith.constant 0 : index
    %629 = vector.load %arg33[%c0_214, %c0_215] : memref<1x128xf32, #tpu.memory_space<vmem>>, vector<1x128xf32>
    %630 = vector.broadcast %629 : vector<1x128xf32> to vector<16x128xf32>
    %631 = arith.addf %628, %630 : vector<16x128xf32>
    %cst_216 = arith.constant 0.000000e+00 : f32
    %632 = vector.broadcast %cst_216 : f32 to vector<16x128xf32>
    %633 = arith.maximumf %631, %632 : vector<16x128xf32>
    %634 = arith.truncf %633 : vector<16x128xf32> to vector<16x128xbf16>
    %c0_217 = arith.constant 0 : index
    %c0_218 = arith.constant 0 : index
    %635 = vector.load %arg34[%c0_217, %c0_218] : memref<128x128xbf16, #tpu.memory_space<vmem>>, vector<128x128xbf16>
    %cst_219 = arith.constant dense<0.000000e+00> : vector<16x128xf32>
    %636 = tpu.matmul %634, %635, %cst_219 {dimension_numbers = #tpu.dot_dimension_numbers<[1], [0], [0], [1], [0, 0, 1, 1], [], []>} : vector<16x128xbf16>, vector<128x128xbf16>, vector<16x128xf32> -> vector<16x128xf32>
    %c0_220 = arith.constant 0 : index
    %c0_221 = arith.constant 0 : index
    %637 = vector.load %arg35[%c0_220, %c0_221] : memref<1x128xf32, #tpu.memory_space<vmem>>, vector<1x128xf32>
    %638 = vector.broadcast %637 : vector<1x128xf32> to vector<16x128xf32>
    %639 = arith.addf %636, %638 : vector<16x128xf32>
    %640 = arith.addf %625, %639 : vector<16x128xf32>
    %c0_222 = arith.constant 0 : index
    %c0_223 = arith.constant 0 : index
    %641 = vector.load %arg38[%c0_222, %c0_223] : memref<1x128xf32, #tpu.memory_space<vmem>>, vector<1x128xf32>
    %c0_224 = arith.constant 0 : index
    %c0_225 = arith.constant 0 : index
    %642 = vector.load %arg39[%c0_224, %c0_225] : memref<1x128xf32, #tpu.memory_space<vmem>>, vector<1x128xf32>
    %cst_226 = arith.constant dense<0.000000e+00> : vector<16xf32>
    %643 = vector.multi_reduction <add>, %640, %cst_226 [1] : vector<16x128xf32> to vector<16xf32>
    %644 = vector.shape_cast %643 : vector<16xf32> to vector<16x1xf32>
    %cst_227 = arith.constant 1.280000e+02 : f32
    %645 = vector.broadcast %cst_227 : f32 to vector<16x1xf32>
    %646 = arith.divf %644, %645 : vector<16x1xf32>
    %647 = vector.broadcast %646 : vector<16x1xf32> to vector<16x128xf32>
    %648 = arith.subf %640, %647 : vector<16x128xf32>
    %649 = arith.mulf %648, %648 : vector<16x128xf32>
    %cst_228 = arith.constant dense<0.000000e+00> : vector<16xf32>
    %650 = vector.multi_reduction <add>, %649, %cst_228 [1] : vector<16x128xf32> to vector<16xf32>
    %651 = vector.shape_cast %650 : vector<16xf32> to vector<16x1xf32>
    %cst_229 = arith.constant 1.280000e+02 : f32
    %652 = vector.broadcast %cst_229 : f32 to vector<16x1xf32>
    %653 = arith.divf %651, %652 : vector<16x1xf32>
    %654 = vector.broadcast %646 : vector<16x1xf32> to vector<16x128xf32>
    %655 = arith.subf %640, %654 : vector<16x128xf32>
    %cst_230 = arith.constant 9.99999974E-6 : f32
    %656 = vector.broadcast %cst_230 : f32 to vector<16x1xf32>
    %657 = arith.addf %653, %656 : vector<16x1xf32>
    %658 = math.rsqrt %657 : vector<16x1xf32>
    %659 = vector.broadcast %658 : vector<16x1xf32> to vector<16x128xf32>
    %660 = arith.mulf %655, %659 : vector<16x128xf32>
    %661 = vector.broadcast %641 : vector<1x128xf32> to vector<16x128xf32>
    %662 = arith.mulf %660, %661 : vector<16x128xf32>
    %663 = vector.broadcast %642 : vector<1x128xf32> to vector<16x128xf32>
    %664 = arith.addf %662, %663 : vector<16x128xf32>
    %c0_231 = arith.constant 0 : index
    %c0_232 = arith.constant 0 : index
    %665 = vector.load %arg40[%c0_231, %c0_232] : memref<1x128xf32, #tpu.memory_space<vmem>>, vector<1x128xf32>
    %c0_233 = arith.constant 0 : index
    %c0_234 = arith.constant 0 : index
    %666 = vector.load %arg41[%c0_233, %c0_234] : memref<1x128xf32, #tpu.memory_space<vmem>>, vector<1x128xf32>
    %cst_235 = arith.constant dense<0.000000e+00> : vector<16xf32>
    %667 = vector.multi_reduction <add>, %664, %cst_235 [1] : vector<16x128xf32> to vector<16xf32>
    %668 = vector.shape_cast %667 : vector<16xf32> to vector<16x1xf32>
    %cst_236 = arith.constant 1.280000e+02 : f32
    %669 = vector.broadcast %cst_236 : f32 to vector<16x1xf32>
    %670 = arith.divf %668, %669 : vector<16x1xf32>
    %671 = vector.broadcast %670 : vector<16x1xf32> to vector<16x128xf32>
    %672 = arith.subf %664, %671 : vector<16x128xf32>
    %673 = arith.mulf %672, %672 : vector<16x128xf32>
    %cst_237 = arith.constant dense<0.000000e+00> : vector<16xf32>
    %674 = vector.multi_reduction <add>, %673, %cst_237 [1] : vector<16x128xf32> to vector<16xf32>
    %675 = vector.shape_cast %674 : vector<16xf32> to vector<16x1xf32>
    %cst_238 = arith.constant 1.280000e+02 : f32
    %676 = vector.broadcast %cst_238 : f32 to vector<16x1xf32>
    %677 = arith.divf %675, %676 : vector<16x1xf32>
    %678 = vector.broadcast %670 : vector<16x1xf32> to vector<16x128xf32>
    %679 = arith.subf %664, %678 : vector<16x128xf32>
    %cst_239 = arith.constant 9.99999974E-6 : f32
    %680 = vector.broadcast %cst_239 : f32 to vector<16x1xf32>
    %681 = arith.addf %677, %680 : vector<16x1xf32>
    %682 = math.rsqrt %681 : vector<16x1xf32>
    %683 = vector.broadcast %682 : vector<16x1xf32> to vector<16x128xf32>
    %684 = arith.mulf %679, %683 : vector<16x128xf32>
    %685 = vector.broadcast %665 : vector<1x128xf32> to vector<16x128xf32>
    %686 = arith.mulf %684, %685 : vector<16x128xf32>
    %687 = vector.broadcast %666 : vector<1x128xf32> to vector<16x128xf32>
    %688 = arith.addf %686, %687 : vector<16x128xf32>
    %689 = arith.truncf %688 : vector<16x128xf32> to vector<16x128xbf16>
    %c0_240 = arith.constant 0 : index
    %c0_241 = arith.constant 0 : index
    %690 = vector.load %arg42[%c0_240, %c0_241] : memref<128x16xbf16, #tpu.memory_space<vmem>>, vector<128x16xbf16>
    %cst_242 = arith.constant dense<0.000000e+00> : vector<16x16xf32>
    %691 = tpu.matmul %689, %690, %cst_242 {dimension_numbers = #tpu.dot_dimension_numbers<[1], [0], [0], [1], [0, 0, 1, 1], [], []>} : vector<16x128xbf16>, vector<128x16xbf16>, vector<16x16xf32> -> vector<16x16xf32>
    %c0_243 = arith.constant 0 : index
    %c0_244 = arith.constant 0 : index
    %692 = vector.load %arg43[%c0_243, %c0_244] : memref<1x16xf32, #tpu.memory_space<vmem>>, vector<1x16xf32>
    %693 = vector.broadcast %692 : vector<1x16xf32> to vector<16x16xf32>
    %694 = arith.addf %691, %693 : vector<16x16xf32>
    %695 = vector.shape_cast %694 : vector<16x16xf32> to vector<2x8x16xf32>
    %c0_245 = arith.constant 0 : index
    %c0_246 = arith.constant 0 : index
    %c0_247 = arith.constant 0 : index
    %696 = vector.load %arg44[%c0_245, %c0_246, %c0_247] : memref<2x8x16xf32, #tpu.memory_space<vmem>>, vector<2x8x16xf32>
    tpu.vector_store %arg44[%c0_245, %c0_246, %c0_247], %695 {strides = array<i32>} : memref<2x8x16xf32, #tpu.memory_space<vmem>>, vector<2x8x16xf32>,
    return
  }
  func.func @transform_0(%arg0: i32) -> (i32, i32, i32) {
    %c0_i32 = arith.constant 0 : i32
    %c0_i32_0 = arith.constant 0 : i32
    %c0_i32_1 = arith.constant 0 : i32
    return %arg0, %c0_i32, %c0_i32_0 : i32, i32, i32
  }
  func.func @transform_1(%arg0: i32) -> (i32, i32) {
    %c0_i32 = arith.constant 0 : i32
    %c0_i32_0 = arith.constant 0 : i32
    %c0_i32_1 = arith.constant 0 : i32
    return %c0_i32, %c0_i32_0 : i32, i32
  }
  func.func @transform_2(%arg0: i32) -> (i32, i32) {
    %c0_i32 = arith.constant 0 : i32
    %c0_i32_0 = arith.constant 0 : i32
    %c0_i32_1 = arith.constant 0 : i32
    return %c0_i32, %c0_i32_0 : i32, i32
  }
  func.func @transform_3(%arg0: i32) -> (i32, i32) {
    %c0_i32 = arith.constant 0 : i32
    %c0_i32_0 = arith.constant 0 : i32
    %c0_i32_1 = arith.constant 0 : i32
    return %c0_i32, %c0_i32_0 : i32, i32
  }
  func.func @transform_4(%arg0: i32) -> (i32, i32) {
    %c0_i32 = arith.constant 0 : i32
    %c0_i32_0 = arith.constant 0 : i32
    %c0_i32_1 = arith.constant 0 : i32
    return %c0_i32, %c0_i32_0 : i32, i32
  }
  func.func @transform_5(%arg0: i32) -> (i32, i32) {
    %c0_i32 = arith.constant 0 : i32
    %c0_i32_0 = arith.constant 0 : i32
    %c0_i32_1 = arith.constant 0 : i32
    return %c0_i32, %c0_i32_0 : i32, i32
  }
  func.func @transform_6(%arg0: i32) -> (i32, i32) {
    %c0_i32 = arith.constant 0 : i32
    %c0_i32_0 = arith.constant 0 : i32
    %c0_i32_1 = arith.constant 0 : i32
    return %c0_i32, %c0_i32_0 : i32, i32
  }
  func.func @transform_7(%arg0: i32) -> (i32, i32) {
    %c0_i32 = arith.constant 0 : i32
    %c0_i32_0 = arith.constant 0 : i32
    %c0_i32_1 = arith.constant 0 : i32
    return %c0_i32, %c0_i32_0 : i32, i32
  }
  func.func @transform_8(%arg0: i32) -> (i32, i32) {
    %c0_i32 = arith.constant 0 : i32
    %c0_i32_0 = arith.constant 0 : i32
    %c0_i32_1 = arith.constant 0 : i32
    return %c0_i32, %c0_i32_0 : i32, i32
  }
  func.func @transform_9(%arg0: i32) -> (i32, i32) {
    %c0_i32 = arith.constant 0 : i32
    %c0_i32_0 = arith.constant 0 : i32
    %c0_i32_1 = arith.constant 0 : i32
    return %c0_i32, %c0_i32_0 : i32, i32
  }
  func.func @transform_10(%arg0: i32) -> (i32, i32) {
    %c0_i32 = arith.constant 0 : i32
    %c0_i32_0 = arith.constant 0 : i32
    %c0_i32_1 = arith.constant 0 : i32
    return %c0_i32, %c0_i32_0 : i32, i32
  }
  func.func @transform_11(%arg0: i32) -> (i32, i32) {
    %c0_i32 = arith.constant 0 : i32
    %c0_i32_0 = arith.constant 0 : i32
    %c0_i32_1 = arith.constant 0 : i32
    return %c0_i32, %c0_i32_0 : i32, i32
  }
  func.func @transform_12(%arg0: i32) -> (i32, i32) {
    %c0_i32 = arith.constant 0 : i32
    %c0_i32_0 = arith.constant 0 : i32
    %c0_i32_1 = arith.constant 0 : i32
    return %c0_i32, %c0_i32_0 : i32, i32
  }
  func.func @transform_13(%arg0: i32) -> (i32, i32) {
    %c0_i32 = arith.constant 0 : i32
    %c0_i32_0 = arith.constant 0 : i32
    %c0_i32_1 = arith.constant 0 : i32
    return %c0_i32, %c0_i32_0 : i32, i32
  }
  func.func @transform_14(%arg0: i32) -> (i32, i32) {
    %c0_i32 = arith.constant 0 : i32
    %c0_i32_0 = arith.constant 0 : i32
    %c0_i32_1 = arith.constant 0 : i32
    return %c0_i32, %c0_i32_0 : i32, i32
  }
  func.func @transform_15(%arg0: i32) -> (i32, i32) {
    %c0_i32 = arith.constant 0 : i32
    %c0_i32_0 = arith.constant 0 : i32
    %c0_i32_1 = arith.constant 0 : i32
    return %c0_i32, %c0_i32_0 : i32, i32
  }
  func.func @transform_16(%arg0: i32) -> (i32, i32) {
    %c0_i32 = arith.constant 0 : i32
    %c0_i32_0 = arith.constant 0 : i32
    %c0_i32_1 = arith.constant 0 : i32
    return %c0_i32, %c0_i32_0 : i32, i32
  }
  func.func @transform_17(%arg0: i32) -> (i32, i32) {
    %c0_i32 = arith.constant 0 : i32
    %c0_i32_0 = arith.constant 0 : i32
    %c0_i32_1 = arith.constant 0 : i32
    return %c0_i32, %c0_i32_0 : i32, i32
  }
  func.func @transform_18(%arg0: i32) -> (i32, i32) {
    %c0_i32 = arith.constant 0 : i32
    %c0_i32_0 = arith.constant 0 : i32
    %c0_i32_1 = arith.constant 0 : i32
    return %c0_i32, %c0_i32_0 : i32, i32
  }
  func.func @transform_19(%arg0: i32) -> (i32, i32) {
    %c0_i32 = arith.constant 0 : i32
    %c0_i32_0 = arith.constant 0 : i32
    %c0_i32_1 = arith.constant 0 : i32
    return %c0_i32, %c0_i32_0 : i32, i32
  }
  func.func @transform_20(%arg0: i32) -> (i32, i32) {
    %c0_i32 = arith.constant 0 : i32
    %c0_i32_0 = arith.constant 0 : i32
    %c0_i32_1 = arith.constant 0 : i32
    return %c0_i32, %c0_i32_0 : i32, i32
  }
  func.func @transform_21(%arg0: i32) -> (i32, i32) {
    %c0_i32 = arith.constant 0 : i32
    %c0_i32_0 = arith.constant 0 : i32
    %c0_i32_1 = arith.constant 0 : i32
    return %c0_i32, %c0_i32_0 : i32, i32
  }
  func.func @transform_22(%arg0: i32) -> (i32, i32) {
    %c0_i32 = arith.constant 0 : i32
    %c0_i32_0 = arith.constant 0 : i32
    %c0_i32_1 = arith.constant 0 : i32
    return %c0_i32, %c0_i32_0 : i32, i32
  }
  func.func @transform_23(%arg0: i32) -> (i32, i32) {
    %c0_i32 = arith.constant 0 : i32
    %c0_i32_0 = arith.constant 0 : i32
    %c0_i32_1 = arith.constant 0 : i32
    return %c0_i32, %c0_i32_0 : i32, i32
  }
  func.func @transform_24(%arg0: i32) -> (i32, i32) {
    %c0_i32 = arith.constant 0 : i32
    %c0_i32_0 = arith.constant 0 : i32
    %c0_i32_1 = arith.constant 0 : i32
    return %c0_i32, %c0_i32_0 : i32, i32
  }
  func.func @transform_25(%arg0: i32) -> (i32, i32) {
    %c0_i32 = arith.constant 0 : i32
    %c0_i32_0 = arith.constant 0 : i32
    %c0_i32_1 = arith.constant 0 : i32
    return %c0_i32, %c0_i32_0 : i32, i32
  }
  func.func @transform_26(%arg0: i32) -> (i32, i32) {
    %c0_i32 = arith.constant 0 : i32
    %c0_i32_0 = arith.constant 0 : i32
    %c0_i32_1 = arith.constant 0 : i32
    return %c0_i32, %c0_i32_0 : i32, i32
  }
  func.func @transform_27(%arg0: i32) -> (i32, i32) {
    %c0_i32 = arith.constant 0 : i32
    %c0_i32_0 = arith.constant 0 : i32
    %c0_i32_1 = arith.constant 0 : i32
    return %c0_i32, %c0_i32_0 : i32, i32
  }
  func.func @transform_28(%arg0: i32) -> (i32, i32) {
    %c0_i32 = arith.constant 0 : i32
    %c0_i32_0 = arith.constant 0 : i32
    %c0_i32_1 = arith.constant 0 : i32
    return %c0_i32, %c0_i32_0 : i32, i32
  }
  func.func @transform_29(%arg0: i32) -> (i32, i32) {
    %c0_i32 = arith.constant 0 : i32
    %c0_i32_0 = arith.constant 0 : i32
    %c0_i32_1 = arith.constant 0 : i32
    return %c0_i32, %c0_i32_0 : i32, i32
  }
  func.func @transform_30(%arg0: i32) -> (i32, i32) {
    %c0_i32 = arith.constant 0 : i32
    %c0_i32_0 = arith.constant 0 : i32
    %c0_i32_1 = arith.constant 0 : i32
    return %c0_i32, %c0_i32_0 : i32, i32
  }
  func.func @transform_31(%arg0: i32) -> (i32, i32) {
    %c0_i32 = arith.constant 0 : i32
    %c0_i32_0 = arith.constant 0 : i32
    %c0_i32_1 = arith.constant 0 : i32
    return %c0_i32, %c0_i32_0 : i32, i32
  }
  func.func @transform_32(%arg0: i32) -> (i32, i32) {
    %c0_i32 = arith.constant 0 : i32
    %c0_i32_0 = arith.constant 0 : i32
    %c0_i32_1 = arith.constant 0 : i32
    return %c0_i32, %c0_i32_0 : i32, i32
  }
  func.func @transform_33(%arg0: i32) -> (i32, i32) {
    %c0_i32 = arith.constant 0 : i32
    %c0_i32_0 = arith.constant 0 : i32
    %c0_i32_1 = arith.constant 0 : i32
    return %c0_i32, %c0_i32_0 : i32, i32
  }
  func.func @transform_34(%arg0: i32) -> (i32, i32) {
    %c0_i32 = arith.constant 0 : i32
    %c0_i32_0 = arith.constant 0 : i32
    %c0_i32_1 = arith.constant 0 : i32
    return %c0_i32, %c0_i32_0 : i32, i32
  }
  func.func @transform_35(%arg0: i32) -> (i32, i32) {
    %c0_i32 = arith.constant 0 : i32
    %c0_i32_0 = arith.constant 0 : i32
    %c0_i32_1 = arith.constant 0 : i32
    return %c0_i32, %c0_i32_0 : i32, i32
  }
  func.func @transform_36(%arg0: i32) -> (i32, i32) {
    %c0_i32 = arith.constant 0 : i32
    %c0_i32_0 = arith.constant 0 : i32
    %c0_i32_1 = arith.constant 0 : i32
    return %c0_i32, %c0_i32_0 : i32, i32
  }
  func.func @transform_37(%arg0: i32) -> (i32, i32) {
    %c0_i32 = arith.constant 0 : i32
    %c0_i32_0 = arith.constant 0 : i32
    %c0_i32_1 = arith.constant 0 : i32
    return %c0_i32, %c0_i32_0 : i32, i32
  }
  func.func @transform_38(%arg0: i32) -> (i32, i32) {
    %c0_i32 = arith.constant 0 : i32
    %c0_i32_0 = arith.constant 0 : i32
    %c0_i32_1 = arith.constant 0 : i32
    return %c0_i32, %c0_i32_0 : i32, i32
  }
  func.func @transform_39(%arg0: i32) -> (i32, i32) {
    %c0_i32 = arith.constant 0 : i32
    %c0_i32_0 = arith.constant 0 : i32
    %c0_i32_1 = arith.constant 0 : i32
    return %c0_i32, %c0_i32_0 : i32, i32
  }
  func.func @transform_40(%arg0: i32) -> (i32, i32) {
    %c0_i32 = arith.constant 0 : i32
    %c0_i32_0 = arith.constant 0 : i32
    %c0_i32_1 = arith.constant 0 : i32
    return %c0_i32, %c0_i32_0 : i32, i32
  }
  func.func @transform_41(%arg0: i32) -> (i32, i32) {
    %c0_i32 = arith.constant 0 : i32
    %c0_i32_0 = arith.constant 0 : i32
    %c0_i32_1 = arith.constant 0 : i32
    return %c0_i32, %c0_i32_0 : i32, i32
  }
  func.func @transform_42(%arg0: i32) -> (i32, i32) {
    %c0_i32 = arith.constant 0 : i32
    %c0_i32_0 = arith.constant 0 : i32
    %c0_i32_1 = arith.constant 0 : i32
    return %c0_i32, %c0_i32_0 : i32, i32
  }
  func.func @transform_43(%arg0: i32) -> (i32, i32, i32) {
    %c0_i32 = arith.constant 0 : i32
    %c0_i32_0 = arith.constant 0 : i32
    %c0_i32_1 = arith.constant 0 : i32
    return %arg0, %c0_i32, %c0_i32_0 : i32, i32, i32
  }
  func.func @transform_44(%arg0: i32) -> (i32, i32, i32) {
    %c0_i32 = arith.constant 0 : i32
    %c0_i32_0 = arith.constant 0 : i32
    %c0_i32_1 = arith.constant 0 : i32
    return %arg0, %c0_i32, %c0_i32_0 : i32, i32, i32
  }
  func.func @transform_45(%arg0: i32) -> (i32, i32, i32) {
    %c0_i32 = arith.constant 0 : i32
    %c0_i32_0 = arith.constant 0 : i32
    %c0_i32_1 = arith.constant 0 : i32
    return %arg0, %c0_i32, %c0_i32_0 : i32, i32, i32
  }
  func.func @transform_46(%arg0: i32) -> (i32, i32, i32) {
    %c0_i32 = arith.constant 0 : i32
    %c0_i32_0 = arith.constant 0 : i32
    %c0_i32_1 = arith.constant 0 : i32
    return %arg0, %c0_i32, %c0_i32_0 : i32, i32, i32
  }
}

</mosaic_0001>

<llo_original>
// kernel: scnor_transformer_forward.1
$region0: #{scnor_transformer_forward.1}
  #allocation0 [shape = 'u32[]', space=smem, size = 0x4, offset = 0x4, fixed_abs, tag = 'smem constant byte address 0x4 - core index']
  #allocation1 [shape = 'u32[144,128]{1,0:T(1,128)}', space=vmem, size = 0x12000, scoped, tag = 'internal scratch']
  %s0 = inlined_call_operand.smem [shape: u32[47], index: -1, kind: input, shape index: {}]
  %s1 = sld [smem:[%s0]]
  %s2 = scalar_lea.smem %s0, 1
  %s3 = sld [smem:[%s2]]
  %s4 = scalar_lea.smem %s0, 2
  %s5 = sld [smem:[%s4]]
  %s6 = scalar_lea.smem %s0, 3
  %s7 = sld [smem:[%s6]]
  %s8 = scalar_lea.smem %s0, 4
  %s9 = sld [smem:[%s8]]
  %s10 = scalar_lea.smem %s0, 5
  %s11 = sld [smem:[%s10]]
  %s12 = scalar_lea.smem %s0, 6
  %s13 = sld [smem:[%s12]]
  %s14 = scalar_lea.smem %s0, 7
  %s15 = sld [smem:[%s14]]
  %s16 = scalar_lea.smem %s0, 8
  %s17 = sld [smem:[%s16]]
  %s18 = scalar_lea.smem %s0, 9
  %s19 = sld [smem:[%s18]]
  %s20 = scalar_lea.smem %s0, 10
  %s21 = sld [smem:[%s20]]
  %s22 = scalar_lea.smem %s0, 11
  %s23 = sld [smem:[%s22]]
  %s24 = scalar_lea.smem %s0, 12
  %s25 = sld [smem:[%s24]]
  %s26 = scalar_lea.smem %s0, 13
  %s27 = sld [smem:[%s26]]
  %s28 = scalar_lea.smem %s0, 14
  %s29 = sld [smem:[%s28]]
  %s30 = scalar_lea.smem %s0, 15
  %s31 = sld [smem:[%s30]]
  %s32 = scalar_lea.smem %s0, 16
  %s33 = sld [smem:[%s32]]
  %s34 = scalar_lea.smem %s0, 17
  %s35 = sld [smem:[%s34]]
  %s36 = scalar_lea.smem %s0, 18
  %s37 = sld [smem:[%s36]]
  %s38 = scalar_lea.smem %s0, 19
  %s39 = sld [smem:[%s38]]
  %s40 = scalar_lea.smem %s0, 20
  %s41 = sld [smem:[%s40]]
  %s42 = scalar_lea.smem %s0, 21
  %s43 = sld [smem:[%s42]]
  %s44 = scalar_lea.smem %s0, 22
  %s45 = sld [smem:[%s44]]
  %s46 = scalar_lea.smem %s0, 23
  %s47 = sld [smem:[%s46]]
  %s48 = scalar_lea.smem %s0, 24
  %s49 = sld [smem:[%s48]]
  %s50 = scalar_lea.smem %s0, 25
  %s51 = sld [smem:[%s50]]
  %s52 = scalar_lea.smem %s0, 26
  %s53 = sld [smem:[%s52]]
  %s54 = scalar_lea.smem %s0, 27
  %s55 = sld [smem:[%s54]]
  %s56 = scalar_lea.smem %s0, 28
  %s57 = sld [smem:[%s56]]
  %s58 = scalar_lea.smem %s0, 29
  %s59 = sld [smem:[%s58]]
  %s60 = scalar_lea.smem %s0, 30
  %s61 = sld [smem:[%s60]]
  %s62 = scalar_lea.smem %s0, 31
  %s63 = sld [smem:[%s62]]
  %s64 = scalar_lea.smem %s0, 32
  %s65 = sld [smem:[%s64]]
  %s66 = scalar_lea.smem %s0, 33
  %s67 = sld [smem:[%s66]]
  %s68 = scalar_lea.smem %s0, 34
  %s69 = sld [smem:[%s68]]
  %s70 = scalar_lea.smem %s0, 35
  %s71 = sld [smem:[%s70]]
  %s72 = scalar_lea.smem %s0, 36
  %s73 = sld [smem:[%s72]]
  %s74 = scalar_lea.smem %s0, 37
  %s75 = sld [smem:[%s74]]
  %s76 = scalar_lea.smem %s0, 38
  %s77 = sld [smem:[%s76]]
  %s78 = scalar_lea.smem %s0, 39
  %s79 = sld [smem:[%s78]]
  %s80 = scalar_lea.smem %s0, 40
  %s81 = sld [smem:[%s80]]
  %s82 = scalar_lea.smem %s0, 41
  %s83 = sld [smem:[%s82]]
  %s84 = scalar_lea.smem %s0, 42
  %s85 = sld [smem:[%s84]]
  %s86 = scalar_lea.smem %s0, 43
  %s87 = sld [smem:[%s86]]
  %s88 = scalar_lea.smem %s0, 44
  %s89 = sld [smem:[%s88]]
  %s90 = scalar_lea.smem %s0, 45
  %s91 = sld [smem:[%s90]]
  %s92 = scalar_lea.smem %s0, 46
  %s93 = sld [smem:[%s92]]
  %94 = xla_tuple %s87, %s89, %s91, %s93
  %s95 = sld [smem:[#allocation0]]
  $region206: #{scnor_transformer_forward.1} parent=0
    _
  %s97 = ssub.s32 1, %s95
  %s98 = scalar_select 0, %s97, %s95
  $region1: #{scnor_transformer_forward.1} parent=0
    #allocation2 [shape = 'u8[8192]{0}', space=vmem, size = 0x2000, scoped, tag = 'output window, operand 0, single buffered']
    #allocation3 [shape = 's32[1]{0}', space=sflag, size = 0x4, scoped, tag = 'scoped memory for scnor_transformer_forward.1']
    %99 = vsyncpa [#allocation3], 0
    // Predicated region
    $region2: #{scnor_transformer_forward.1} parent=1 // pred_check
      _
    $region3: #{scnor_transformer_forward.1} parent=1 // pred_check_branch
      %101 = sbr.rel (0) target = $region5
    $region4: #{scnor_transformer_forward.1} parent=1 // pred_region
      _
    $region5: #{scnor_transformer_forward.1} parent=1 // pred_fallthru
      _
    // Predicated region
    $region6: #{scnor_transformer_forward.1} parent=1 // pred_check
      _
    $region7: #{scnor_transformer_forward.1} parent=1 // pred_check_branch
      %103 = sbr.rel (0) target = $region9
    $region8: #{scnor_transformer_forward.1} parent=1 // pred_region
      _
    $region9: #{scnor_transformer_forward.1} parent=1 // pred_fallthru
      _
    // Predicated region
    $region10: #{scnor_transformer_forward.1} parent=1 // pred_check
      _
    $region11: #{scnor_transformer_forward.1} parent=1 // pred_check_branch
      %105 = sbr.rel (0) target = $region13
    $region12: #{scnor_transformer_forward.1} parent=1 // pred_region
      _
    $region13: #{scnor_transformer_forward.1} parent=1 // pred_fallthru
      _
    // Predicated region
    $region14: #{scnor_transformer_forward.1} parent=1 // pred_check
      _
    $region15: #{scnor_transformer_forward.1} parent=1 // pred_check_branch
      %107 = sbr.rel (0) target = $region17
    $region16: #{scnor_transformer_forward.1} parent=1 // pred_region
      _
    $region17: #{scnor_transformer_forward.1} parent=1 // pred_fallthru
      _
    // Predicated region
    $region18: #{scnor_transformer_forward.1} parent=1 // pred_check
      _
    $region19: #{scnor_transformer_forward.1} parent=1 // pred_check_branch
      %109 = sbr.rel (0) target = $region21
    $region20: #{scnor_transformer_forward.1} parent=1 // pred_region
      _
    $region21: #{scnor_transformer_forward.1} parent=1 // pred_fallthru
      _
    // Predicated region
    $region22: #{scnor_transformer_forward.1} parent=1 // pred_check
      _
    $region23: #{scnor_transformer_forward.1} parent=1 // pred_check_branch
      %111 = sbr.rel (0) target = $region25
    $region24: #{scnor_transformer_forward.1} parent=1 // pred_region
      _
    $region25: #{scnor_transformer_forward.1} parent=1 // pred_fallthru
      _
    // Predicated region
    $region26: #{scnor_transformer_forward.1} parent=1 // pred_check
      _
    $region27: #{scnor_transformer_forward.1} parent=1 // pred_check_branch
      %113 = sbr.rel (0) target = $region29
    $region28: #{scnor_transformer_forward.1} parent=1 // pred_region
      _
    $region29: #{scnor_transformer_forward.1} parent=1 // pred_fallthru
      _
    // Predicated region
    $region30: #{scnor_transformer_forward.1} parent=1 // pred_check
      _
    $region31: #{scnor_transformer_forward.1} parent=1 // pred_check_branch
      %115 = sbr.rel (0) target = $region33
    $region32: #{scnor_transformer_forward.1} parent=1 // pred_region
      _
    $region33: #{scnor_transformer_forward.1} parent=1 // pred_fallthru
      _
    // Predicated region
    $region34: #{scnor_transformer_forward.1} parent=1 // pred_check
      _
    $region35: #{scnor_transformer_forward.1} parent=1 // pred_check_branch
      %117 = sbr.rel (0) target = $region37
    $region36: #{scnor_transformer_forward.1} parent=1 // pred_region
      _
    $region37: #{scnor_transformer_forward.1} parent=1 // pred_fallthru
      _
    // Predicated region
    $region38: #{scnor_transformer_forward.1} parent=1 // pred_check
      _
    $region39: #{scnor_transformer_forward.1} parent=1 // pred_check_branch
      %119 = sbr.rel (0) target = $region41
    $region40: #{scnor_transformer_forward.1} parent=1 // pred_region
      _
    $region41: #{scnor_transformer_forward.1} parent=1 // pred_fallthru
      _
    // Predicated region
    $region42: #{scnor_transformer_forward.1} parent=1 // pred_check
      _
    $region43: #{scnor_transformer_forward.1} parent=1 // pred_check_branch
      %121 = sbr.rel (0) target = $region45
    $region44: #{scnor_transformer_forward.1} parent=1 // pred_region
      _
    $region45: #{scnor_transformer_forward.1} parent=1 // pred_fallthru
      _
    // Predicated region
    $region46: #{scnor_transformer_forward.1} parent=1 // pred_check
      _
    $region47: #{scnor_transformer_forward.1} parent=1 // pred_check_branch
      %123 = sbr.rel (0) target = $region49
    $region48: #{scnor_transformer_forward.1} parent=1 // pred_region
      _
    $region49: #{scnor_transformer_forward.1} parent=1 // pred_fallthru
      _
    // Predicated region
    $region50: #{scnor_transformer_forward.1} parent=1 // pred_check
      _
    $region51: #{scnor_transformer_forward.1} parent=1 // pred_check_branch
      %125 = sbr.rel (0) target = $region53
    $region52: #{scnor_transformer_forward.1} parent=1 // pred_region
      _
    $region53: #{scnor_transformer_forward.1} parent=1 // pred_fallthru
      _
    // Predicated region
    $region54: #{scnor_transformer_forward.1} parent=1 // pred_check
      _
    $region55: #{scnor_transformer_forward.1} parent=1 // pred_check_branch
      %127 = sbr.rel (0) target = $region57
    $region56: #{scnor_transformer_forward.1} parent=1 // pred_region
      _
    $region57: #{scnor_transformer_forward.1} parent=1 // pred_fallthru
      _
    // Predicated region
    $region58: #{scnor_transformer_forward.1} parent=1 // pred_check
      _
    $region59: #{scnor_transformer_forward.1} parent=1 // pred_check_branch
      %129 = sbr.rel (0) target = $region61
    $region60: #{scnor_transformer_forward.1} parent=1 // pred_region
      _
    $region61: #{scnor_transformer_forward.1} parent=1 // pred_fallthru
      _
    // Predicated region
    $region62: #{scnor_transformer_forward.1} parent=1 // pred_check
      _
    $region63: #{scnor_transformer_forward.1} parent=1 // pred_check_branch
      %131 = sbr.rel (0) target = $region65
    $region64: #{scnor_transformer_forward.1} parent=1 // pred_region
      _
    $region65: #{scnor_transformer_forward.1} parent=1 // pred_fallthru
      _
    // Predicated region
    $region66: #{scnor_transformer_forward.1} parent=1 // pred_check
      _
    $region67: #{scnor_transformer_forward.1} parent=1 // pred_check_branch
      %133 = sbr.rel (0) target = $region69
    $region68: #{scnor_transformer_forward.1} parent=1 // pred_region
      _
    $region69: #{scnor_transformer_forward.1} parent=1 // pred_fallthru
      _
    // Predicated region
    $region70: #{scnor_transformer_forward.1} parent=1 // pred_check
      _
    $region71: #{scnor_transformer_forward.1} parent=1 // pred_check_branch
      %135 = sbr.rel (0) target = $region73
    $region72: #{scnor_transformer_forward.1} parent=1 // pred_region
      _
    $region73: #{scnor_transformer_forward.1} parent=1 // pred_fallthru
      _
    // Predicated region
    $region74: #{scnor_transformer_forward.1} parent=1 // pred_check
      _
    $region75: #{scnor_transformer_forward.1} parent=1 // pred_check_branch
      %137 = sbr.rel (0) target = $region77
    $region76: #{scnor_transformer_forward.1} parent=1 // pred_region
      _
    $region77: #{scnor_transformer_forward.1} parent=1 // pred_fallthru
      _
    // Predicated region
    $region78: #{scnor_transformer_forward.1} parent=1 // pred_check
      _
    $region79: #{scnor_transformer_forward.1} parent=1 // pred_check_branch
      %139 = sbr.rel (0) target = $region81
    $region80: #{scnor_transformer_forward.1} parent=1 // pred_region
      _
    $region81: #{scnor_transformer_forward.1} parent=1 // pred_fallthru
      _
    // Predicated region
    $region82: #{scnor_transformer_forward.1} parent=1 // pred_check
      _
    $region83: #{scnor_transformer_forward.1} parent=1 // pred_check_branch
      %141 = sbr.rel (0) target = $region85
    $region84: #{scnor_transformer_forward.1} parent=1 // pred_region
      _
    $region85: #{scnor_transformer_forward.1} parent=1 // pred_fallthru
      _
    // Predicated region
    $region86: #{scnor_transformer_forward.1} parent=1 // pred_check
      _
    $region87: #{scnor_transformer_forward.1} parent=1 // pred_check_branch
      %143 = sbr.rel (0) target = $region89
    $region88: #{scnor_transformer_forward.1} parent=1 // pred_region
      _
    $region89: #{scnor_transformer_forward.1} parent=1 // pred_fallthru
      _
    // Predicated region
    $region90: #{scnor_transformer_forward.1} parent=1 // pred_check
      _
    $region91: #{scnor_transformer_forward.1} parent=1 // pred_check_branch
      %145 = sbr.rel (0) target = $region93
    $region92: #{scnor_transformer_forward.1} parent=1 // pred_region
      _
    $region93: #{scnor_transformer_forward.1} parent=1 // pred_fallthru
      _
    // Predicated region
    $region94: #{scnor_transformer_forward.1} parent=1 // pred_check
      _
    $region95: #{scnor_transformer_forward.1} parent=1 // pred_check_branch
      %147 = sbr.rel (0) target = $region97
    $region96: #{scnor_transformer_forward.1} parent=1 // pred_region
      _
    $region97: #{scnor_transformer_forward.1} parent=1 // pred_fallthru
      _
    // Predicated region
    $region98: #{scnor_transformer_forward.1} parent=1 // pred_check
      _
    $region99: #{scnor_transformer_forward.1} parent=1 // pred_check_branch
      %149 = sbr.rel (0) target = $region101
    $region100: #{scnor_transformer_forward.1} parent=1 // pred_region
      _
    $region101: #{scnor_transformer_forward.1} parent=1 // pred_fallthru
      _
    // Predicated region
    $region102: #{scnor_transformer_forward.1} parent=1 // pred_check
      _
    $region103: #{scnor_transformer_forward.1} parent=1 // pred_check_branch
      %151 = sbr.rel (0) target = $region105
    $region104: #{scnor_transformer_forward.1} parent=1 // pred_region
      _
    $region105: #{scnor_transformer_forward.1} parent=1 // pred_fallthru
      _
    // Predicated region
    $region106: #{scnor_transformer_forward.1} parent=1 // pred_check
      _
    $region107: #{scnor_transformer_forward.1} parent=1 // pred_check_branch
      %153 = sbr.rel (0) target = $region109
    $region108: #{scnor_transformer_forward.1} parent=1 // pred_region
      _
    $region109: #{scnor_transformer_forward.1} parent=1 // pred_fallthru
      _
    // Predicated region
    $region110: #{scnor_transformer_forward.1} parent=1 // pred_check
      _
    $region111: #{scnor_transformer_forward.1} parent=1 // pred_check_branch
      %155 = sbr.rel (0) target = $region113
    $region112: #{scnor_transformer_forward.1} parent=1 // pred_region
      _
    $region113: #{scnor_transformer_forward.1} parent=1 // pred_fallthru
      _
    // Predicated region
    $region114: #{scnor_transformer_forward.1} parent=1 // pred_check
      _
    $region115: #{scnor_transformer_forward.1} parent=1 // pred_check_branch
      %157 = sbr.rel (0) target = $region117
    $region116: #{scnor_transformer_forward.1} parent=1 // pred_region
      _
    $region117: #{scnor_transformer_forward.1} parent=1 // pred_fallthru
      _
    // Predicated region
    $region118: #{scnor_transformer_forward.1} parent=1 // pred_check
      _
    $region119: #{scnor_transformer_forward.1} parent=1 // pred_check_branch
      %159 = sbr.rel (0) target = $region121
    $region120: #{scnor_transformer_forward.1} parent=1 // pred_region
      _
    $region121: #{scnor_transformer_forward.1} parent=1 // pred_fallthru
      _
    // Predicated region
    $region122: #{scnor_transformer_forward.1} parent=1 // pred_check
      _
    $region123: #{scnor_transformer_forward.1} parent=1 // pred_check_branch
      %161 = sbr.rel (0) target = $region125
    $region124: #{scnor_transformer_forward.1} parent=1 // pred_region
      _
    $region125: #{scnor_transformer_forward.1} parent=1 // pred_fallthru
      _
    // Predicated region
    $region126: #{scnor_transformer_forward.1} parent=1 // pred_check
      _
    $region127: #{scnor_transformer_forward.1} parent=1 // pred_check_branch
      %163 = sbr.rel (0) target = $region129
    $region128: #{scnor_transformer_forward.1} parent=1 // pred_region
      _
    $region129: #{scnor_transformer_forward.1} parent=1 // pred_fallthru
      _
    // Predicated region
    $region130: #{scnor_transformer_forward.1} parent=1 // pred_check
      _
    $region131: #{scnor_transformer_forward.1} parent=1 // pred_check_branch
      %165 = sbr.rel (0) target = $region133
    $region132: #{scnor_transformer_forward.1} parent=1 // pred_region
      _
    $region133: #{scnor_transformer_forward.1} parent=1 // pred_fallthru
      _
    // Predicated region
    $region134: #{scnor_transformer_forward.1} parent=1 // pred_check
      _
    $region135: #{scnor_transformer_forward.1} parent=1 // pred_check_branch
      %167 = sbr.rel (0) target = $region137
    $region136: #{scnor_transformer_forward.1} parent=1 // pred_region
      _
    $region137: #{scnor_transformer_forward.1} parent=1 // pred_fallthru
      _
    // Predicated region
    $region138: #{scnor_transformer_forward.1} parent=1 // pred_check
      _
    $region139: #{scnor_transformer_forward.1} parent=1 // pred_check_branch
      %169 = sbr.rel (0) target = $region141
    $region140: #{scnor_transformer_forward.1} parent=1 // pred_region
      _
    $region141: #{scnor_transformer_forward.1} parent=1 // pred_fallthru
      _
    // Predicated region
    $region142: #{scnor_transformer_forward.1} parent=1 // pred_check
      _
    $region143: #{scnor_transformer_forward.1} parent=1 // pred_check_branch
      %171 = sbr.rel (0) target = $region145
    $region144: #{scnor_transformer_forward.1} parent=1 // pred_region
      _
    $region145: #{scnor_transformer_forward.1} parent=1 // pred_fallthru
      _
    // Predicated region
    $region146: #{scnor_transformer_forward.1} parent=1 // pred_check
      _
    $region147: #{scnor_transformer_forward.1} parent=1 // pred_check_branch
      %173 = sbr.rel (0) target = $region149
    $region148: #{scnor_transformer_forward.1} parent=1 // pred_region
      _
    $region149: #{scnor_transformer_forward.1} parent=1 // pred_fallthru
      _
    // Predicated region
    $region150: #{scnor_transformer_forward.1} parent=1 // pred_check
      _
    $region151: #{scnor_transformer_forward.1} parent=1 // pred_check_branch
      %175 = sbr.rel (0) target = $region153
    $region152: #{scnor_transformer_forward.1} parent=1 // pred_region
      _
    $region153: #{scnor_transformer_forward.1} parent=1 // pred_fallthru
      _
    // Predicated region
    $region154: #{scnor_transformer_forward.1} parent=1 // pred_check
      _
    $region155: #{scnor_transformer_forward.1} parent=1 // pred_check_branch
      %177 = sbr.rel (0) target = $region157
    $region156: #{scnor_transformer_forward.1} parent=1 // pred_region
      _
    $region157: #{scnor_transformer_forward.1} parent=1 // pred_fallthru
      _
    // Predicated region
    $region158: #{scnor_transformer_forward.1} parent=1 // pred_check
      _
    $region159: #{scnor_transformer_forward.1} parent=1 // pred_check_branch
      %179 = sbr.rel (0) target = $region161
    $region160: #{scnor_transformer_forward.1} parent=1 // pred_region
      _
    $region161: #{scnor_transformer_forward.1} parent=1 // pred_fallthru
      _
    // Predicated region
    $region162: #{scnor_transformer_forward.1} parent=1 // pred_check
      _
    $region163: #{scnor_transformer_forward.1} parent=1 // pred_check_branch
      %181 = sbr.rel (0) target = $region165
    $region164: #{scnor_transformer_forward.1} parent=1 // pred_region
      _
    $region165: #{scnor_transformer_forward.1} parent=1 // pred_fallthru
      _
    // Predicated region
    $region166: #{scnor_transformer_forward.1} parent=1 // pred_check
      _
    $region167: #{scnor_transformer_forward.1} parent=1 // pred_check_branch
      %183 = sbr.rel (0) target = $region169
    $region168: #{scnor_transformer_forward.1} parent=1 // pred_region
      _
    $region169: #{scnor_transformer_forward.1} parent=1 // pred_fallthru
      _
    // Predicated region
    $region170: #{scnor_transformer_forward.1} parent=1 // pred_check
      _
    $region171: #{scnor_transformer_forward.1} parent=1 // pred_check_branch
      %185 = sbr.rel (0) target = $region173
    $region172: #{scnor_transformer_forward.1} parent=1 // pred_region
      _
    $region173: #{scnor_transformer_forward.1} parent=1 // pred_fallthru
      _
    %v187 = vld [vmem:[%s1] sm:$0xff]
    %v188 = vld [vmem:[%s1 + $0x8] sm:$0xff]
    %v189 = vpack.c.bf16 %v188, %v187
    %v190 = vld [vmem:[%s3] sm:$0xf]
    %v191 = vld [vmem:[%s3 + $0x4] sm:$0xf]
    %v192 = vld [vmem:[%s5] sm:$0x1]
    %v194 = vlaneseq
    %v195 = vshrl.u32 %v194, 7
    %v196 = vsub.s32 0, %v195
    %v197 = vrot.slane %v192, %v196
    %v201 = vunpack.c.l.b16 %v190
    %v202 = vunpack.c.l.b16 %v191
    %v203 = vpack.c.b16 %v202, %v201
    %vm205 = vcmask 130048
    %v207 = vsel %vm205, %v189, 0
    %209 = vmatprep.subr.bf16.mxu0 0
    %210 = vmatpush1.bf16.msra.mxu0 0
    %211 = vmatprep.subr.bf16.mxu0 0
    %212 = vmatpush1.bf16.msra.mxu0 0
    %213 = vmatprep.subr.bf16.mxu0 0
    %214 = vmatpush1.bf16.msra.mxu0 0
    %215 = vmatprep.subr.bf16.mxu0 0
    %216 = vmatpush1.bf16.msra.mxu0 0
    %217 = vmatprep.subr.bf16.mxu0 0
    %218 = vmatpush1.bf16.msra.mxu0 0
    %219 = vmatprep.subr.bf16.mxu0 0
    %220 = vmatpush1.bf16.msra.mxu0 0
    %221 = vmatprep.subr.bf16.mxu0 0
    %222 = vmatpush1.bf16.msra.mxu0 0
    %223 = vmatprep.subr.bf16.mxu0 0
    %224 = vmatpush1.bf16.msra.mxu0 %v203
    %225 = vmatprep.subr.bf16.mxu0 0
    %226 = vmatpush2.bf16.msra.mxu0 0
    %227 = vmatprep.subr.bf16.mxu0 0
    %228 = vmatpush2.bf16.msra.mxu0 0
    %229 = vmatprep.subr.bf16.mxu0 0
    %230 = vmatpush2.bf16.msra.mxu0 0
    %231 = vmatprep.subr.bf16.mxu0 0
    %232 = vmatpush2.bf16.msra.mxu0 0
    %233 = vmatprep.subr.bf16.mxu0 0
    %234 = vmatpush2.bf16.msra.mxu0 0
    %235 = vmatprep.subr.bf16.mxu0 0
    %236 = vmatpush2.bf16.msra.mxu0 0
    %237 = vmatprep.subr.bf16.mxu0 0
    %238 = vmatpush2.bf16.msra.mxu0 0
    %239 = vmatprep.subr.bf16.mxu0 0
    %240 = vmatpush2.bf16.msra.mxu0 0
    %241 = vmatprep.mubr.bf16.mxu0 0
    %242 = vmatmul.mubr.bf16.gmra.mxu0 %v207
    %v243 = vpop.f32.mrf.mxu0
    %v244 = vadd.f32 %v197, %v243
    %v245 = vpop.f32.mrf.mxu0
    %v246 = vpop.f32.mrf.mxu0
    %v247 = vadd.f32 %v197, %v246
    %v248 = vpop.f32.mrf.mxu0
    %249 = vdwg.mxu0
    %v250 = vpack.c.bf16 %v247, %v244
    %v251 = vld [vmem:[%s7] sm:$0xff]
    %v252 = vld [vmem:[%s7 + $0x8] sm:$0xf]
    %v253 = vld [vmem:[%s7 + $0xc] sm:$0xff]
    %v254 = vld [vmem:[%s7 + $0x14] sm:$0xf]
    %v255 = vld [vmem:[%s7 + $0x18] sm:$0xff]
    %v256 = vld [vmem:[%s7 + $0x20] sm:$0xf]
    %v257 = vld [vmem:[%s7 + $0x24] sm:$0xff]
    %v258 = vld [vmem:[%s7 + $0x2c] sm:$0xf]
    %v259 = vld [vmem:[%s7 + $0x30] sm:$0xff]
    %v260 = vld [vmem:[%s7 + $0x38] sm:$0xf]
    %v261 = vld [vmem:[%s7 + $0x3c] sm:$0xff]
    %v262 = vld [vmem:[%s7 + $0x44] sm:$0xf]
    %v263 = vld [vmem:[%s7 + $0x48] sm:$0xff]
    %v264 = vld [vmem:[%s7 + $0x50] sm:$0xf]
    %v265 = vld [vmem:[%s7 + $0x54] sm:$0xff]
    %v266 = vld [vmem:[%s7 + $0x5c] sm:$0xf]
    %v267 = vld [vmem:[%s7 + $0x60] sm:$0xff]
    %v268 = vld [vmem:[%s7 + $0x68] sm:$0xf]
    %v269 = vld [vmem:[%s7 + $0x6c] sm:$0xff]
    %v270 = vld [vmem:[%s7 + $0x74] sm:$0xf]
    %v271 = vld [vmem:[%s7 + $0x78] sm:$0xff]
    %v272 = vld [vmem:[%s7 + $0x80] sm:$0xf]
    %v273 = vld [vmem:[%s7 + $0x84] sm:$0xff]
    %v274 = vld [vmem:[%s7 + $0x8c] sm:$0xf]
    %v275 = vld [vmem:[%s7 + $0x90] sm:$0xff]
    %v276 = vld [vmem:[%s7 + $0x98] sm:$0xf]
    %v277 = vld [vmem:[%s7 + $0x9c] sm:$0xff]
    %v278 = vld [vmem:[%s7 + $0xa4] sm:$0xf]
    %v279 = vld [vmem:[%s7 + $0xa8] sm:$0xff]
    %v280 = vld [vmem:[%s7 + $0xb0] sm:$0xf]
    %v281 = vld [vmem:[%s7 + $0xb4] sm:$0xff]
    %v282 = vld [vmem:[%s7 + $0xbc] sm:$0xf]
    %v283 = vld [vmem:[%s9] sm:$0x7]
    %v285 = vlaneseq
    %v286 = vshrl.u32 %v285, 7
    %v287 = vsub.s32 0, %v286
    %v288 = vrot.slane %v283, %v287
    %v289 = vlaneseq
    %v290 = vshrl.u32 %v289, 7
    %v291 = vsub.s32 1, %v290
    %v292 = vrot.slane %v283, %v291
    %v293 = vlaneseq
    %v294 = vshrl.u32 %v293, 7
    %v295 = vsub.s32 2, %v294
    %v296 = vrot.slane %v283, %v295
    %v332 = vunpack.c.l.b16 %v251
    %v333 = vunpack.c.h.b16 %v251
    %v334 = vunpack.c.l.b16 %v252
    %v335 = vunpack.c.l.b16 %v253
    %v336 = vunpack.c.h.b16 %v253
    %v337 = vunpack.c.l.b16 %v254
    %v338 = vunpack.c.l.b16 %v255
    %v339 = vunpack.c.h.b16 %v255
    %v340 = vunpack.c.l.b16 %v256
    %v341 = vunpack.c.l.b16 %v257
    %v342 = vunpack.c.h.b16 %v257
    %v343 = vunpack.c.l.b16 %v258
    %v344 = vunpack.c.l.b16 %v259
    %v345 = vunpack.c.h.b16 %v259
    %v346 = vunpack.c.l.b16 %v260
    %v347 = vunpack.c.l.b16 %v261
    %v348 = vunpack.c.h.b16 %v261
    %v349 = vunpack.c.l.b16 %v262
    %v350 = vunpack.c.l.b16 %v263
    %v351 = vunpack.c.h.b16 %v263
    %v352 = vunpack.c.l.b16 %v264
    %v353 = vunpack.c.l.b16 %v265
    %v354 = vunpack.c.h.b16 %v265
    %v355 = vunpack.c.l.b16 %v266
    %v356 = vunpack.c.l.b16 %v267
    %v357 = vunpack.c.h.b16 %v267
    %v358 = vunpack.c.l.b16 %v268
    %v359 = vunpack.c.l.b16 %v269
    %v360 = vunpack.c.h.b16 %v269
    %v361 = vunpack.c.l.b16 %v270
    %v362 = vunpack.c.l.b16 %v271
    %v363 = vunpack.c.h.b16 %v271
    %v364 = vunpack.c.l.b16 %v272
    %v365 = vunpack.c.l.b16 %v273
    %v366 = vunpack.c.h.b16 %v273
    %v367 = vunpack.c.l.b16 %v274
    %v368 = vunpack.c.l.b16 %v275
    %v369 = vunpack.c.h.b16 %v275
    %v370 = vunpack.c.l.b16 %v276
    %v371 = vunpack.c.l.b16 %v277
    %v372 = vunpack.c.h.b16 %v277
    %v373 = vunpack.c.l.b16 %v278
    %v374 = vunpack.c.l.b16 %v279
    %v375 = vunpack.c.h.b16 %v279
    %v376 = vunpack.c.l.b16 %v280
    %v377 = vunpack.c.l.b16 %v281
    %v378 = vunpack.c.h.b16 %v281
    %v379 = vunpack.c.l.b16 %v282
    %v380 = vpack.c.b16 %v335, %v332
    %v381 = vpack.c.b16 %v336, %v333
    %v382 = vpack.c.b16 %v337, %v334
    %v383 = vpack.c.b16 %v341, %v338
    %v384 = vpack.c.b16 %v342, %v339
    %v385 = vpack.c.b16 %v343, %v340
    %v386 = vpack.c.b16 %v347, %v344
    %v387 = vpack.c.b16 %v348, %v345
    %v388 = vpack.c.b16 %v349, %v346
    %v389 = vpack.c.b16 %v353, %v350
    %v390 = vpack.c.b16 %v354, %v351
    %v391 = vpack.c.b16 %v355, %v352
    %v392 = vpack.c.b16 %v359, %v356
    %v393 = vpack.c.b16 %v360, %v357
    %v394 = vpack.c.b16 %v361, %v358
    %v395 = vpack.c.b16 %v365, %v362
    %v396 = vpack.c.b16 %v366, %v363
    %v397 = vpack.c.b16 %v367, %v364
    %v398 = vpack.c.b16 %v371, %v368
    %v399 = vpack.c.b16 %v372, %v369
    %v400 = vpack.c.b16 %v373, %v370
    %v401 = vpack.c.b16 %v377, %v374
    %v402 = vpack.c.b16 %v378, %v375
    %v403 = vpack.c.b16 %v379, %v376
    %428 = vmatprep.subr.bf16.mxu0 %v402
    %429 = vmatpush1.bf16.msra.mxu0 %v401
    %430 = vmatprep.subr.bf16.mxu0 %v399
    %431 = vmatpush1.bf16.msra.mxu0 %v398
    %432 = vmatprep.subr.bf16.mxu0 %v396
    %433 = vmatpush1.bf16.msra.mxu0 %v395
    %434 = vmatprep.subr.bf16.mxu0 %v393
    %435 = vmatpush1.bf16.msra.mxu0 %v392
    %436 = vmatprep.subr.bf16.mxu0 %v390
    %437 = vmatpush1.bf16.msra.mxu0 %v389
    %438 = vmatprep.subr.bf16.mxu0 %v387
    %439 = vmatpush1.bf16.msra.mxu0 %v386
    %440 = vmatprep.subr.bf16.mxu0 %v384
    %441 = vmatpush1.bf16.msra.mxu0 %v383
    %442 = vmatprep.subr.bf16.mxu0 %v381
    %443 = vmatpush1.bf16.msra.mxu0 %v380
    %444 = vmatprep.subr.bf16.mxu0 0
    %445 = vmatpush2.bf16.msra.mxu0 0
    %446 = vmatprep.subr.bf16.mxu0 0
    %447 = vmatpush2.bf16.msra.mxu0 0
    %448 = vmatprep.subr.bf16.mxu0 0
    %449 = vmatpush2.bf16.msra.mxu0 0
    %450 = vmatprep.subr.bf16.mxu0 0
    %451 = vmatpush2.bf16.msra.mxu0 0
    %452 = vmatprep.subr.bf16.mxu0 0
    %453 = vmatpush2.bf16.msra.mxu0 0
    %454 = vmatprep.subr.bf16.mxu0 0
    %455 = vmatpush2.bf16.msra.mxu0 0
    %456 = vmatprep.subr.bf16.mxu0 0
    %457 = vmatpush2.bf16.msra.mxu0 0
    %458 = vmatprep.subr.bf16.mxu0 0
    %459 = vmatpush2.bf16.msra.mxu0 0
    %460 = vmatprep.mubr.bf16.mxu0 0
    %461 = vmatmul.mubr.bf16.gmra.mxu0 %v250
    %v462 = vpop.f32.mrf.mxu0
    %v463 = vadd.f32 %v288, %v462
    %v464 = vpop.f32.mrf.mxu0
    %v465 = vadd.f32 %v292, %v464
    %v466 = vpop.f32.mrf.mxu0
    %v467 = vadd.f32 %v288, %v466
    %v468 = vpop.f32.mrf.mxu0
    %v469 = vadd.f32 %v292, %v468
    %470 = vdwg.mxu0
    %471 = vmatprep.subr.bf16.mxu0 0
    %472 = vmatpush1.bf16.msra.mxu0 %v403
    %473 = vmatprep.subr.bf16.mxu0 0
    %474 = vmatpush1.bf16.msra.mxu0 %v400
    %475 = vmatprep.subr.bf16.mxu0 0
    %476 = vmatpush1.bf16.msra.mxu0 %v397
    %477 = vmatprep.subr.bf16.mxu0 0
    %478 = vmatpush1.bf16.msra.mxu0 %v394
    %479 = vmatprep.subr.bf16.mxu0 0
    %480 = vmatpush1.bf16.msra.mxu0 %v391
    %481 = vmatprep.subr.bf16.mxu0 0
    %482 = vmatpush1.bf16.msra.mxu0 %v388
    %483 = vmatprep.subr.bf16.mxu0 0
    %484 = vmatpush1.bf16.msra.mxu0 %v385
    %485 = vmatprep.subr.bf16.mxu0 0
    %486 = vmatpush1.bf16.msra.mxu0 %v382
    %487 = vmatprep.subr.bf16.mxu0 0
    %488 = vmatpush2.bf16.msra.mxu0 0
    %489 = vmatprep.subr.bf16.mxu0 0
    %490 = vmatpush2.bf16.msra.mxu0 0
    %491 = vmatprep.subr.bf16.mxu0 0
    %492 = vmatpush2.bf16.msra.mxu0 0
    %493 = vmatprep.subr.bf16.mxu0 0
    %494 = vmatpush2.bf16.msra.mxu0 0
    %495 = vmatprep.subr.bf16.mxu0 0
    %496 = vmatpush2.bf16.msra.mxu0 0
    %497 = vmatprep.subr.bf16.mxu0 0
    %498 = vmatpush2.bf16.msra.mxu0 0
    %499 = vmatprep.subr.bf16.mxu0 0
    %500 = vmatpush2.bf16.msra.mxu0 0
    %501 = vmatprep.subr.bf16.mxu0 0
    %502 = vmatpush2.bf16.msra.mxu0 0
    %503 = vmatprep.mubr.bf16.mxu0 0
    %504 = vmatmul.mubr.bf16.gmra.mxu0 %v250
    %v505 = vpop.f32.mrf.mxu0
    %v506 = vadd.f32 %v296, %v505
    %v507 = vpop.f32.mrf.mxu0
    %v508 = vpop.f32.mrf.mxu0
    %v509 = vadd.f32 %v296, %v508
    %v510 = vpop.f32.mrf.mxu0
    %511 = vdwg.mxu0
    %v512 = vmul.f32 %v463, 0.25
    %v513 = vmul.f32 %v467, 0.25
    %v514 = vpack.c.bf16 %v513, %v512
    %v516 = vunpack.c.l.b16 %v514
    %v517 = vunpack.c.h.b16 %v514
    %v518 = vpack.c.b16 %v516, %v516
    %v519 = vpack.c.b16 %v517, %v517
    %v520 = vpack.c.bf16 %v469, %v465
    %v522 = vunpack.c.l.b16 %v520
    %v523 = vunpack.c.h.b16 %v520
    %v524 = vpack.c.b16 %v522, %v522
    %v525 = vpack.c.b16 %v523, %v523
    %v526 = vpack.c.bf16 %v509, %v506
    %v528 = vunpack.c.l.b16 %v526
    %v529 = vunpack.c.h.b16 %v526
    %v530 = vpack.c.b16 %v528, %v528
    %v531 = vpack.c.b16 %v529, %v529
    %v533 = vsel %vm205, %v518, 0
    %v536 = vsel %vm205, %v524, 0
    %538 = vmatprep.subr.bf16.mxu0 0
    %539 = vmatpush1.bf16.xpose.msra.mxu0 0
    %540 = vmatprep.subr.bf16.mxu0 0
    %541 = vmatpush1.bf16.xpose.msra.mxu0 0
    %542 = vmatprep.subr.bf16.mxu0 0
    %543 = vmatpush1.bf16.xpose.msra.mxu0 0
    %544 = vmatprep.subr.bf16.mxu0 0
    %545 = vmatpush1.bf16.xpose.msra.mxu0 0
    %546 = vmatprep.subr.bf16.mxu0 0
    %547 = vmatpush1.bf16.xpose.msra.mxu0 0
    %548 = vmatprep.subr.bf16.mxu0 0
    %549 = vmatpush1.bf16.xpose.msra.mxu0 0
    %550 = vmatprep.subr.bf16.mxu0 0
    %551 = vmatpush1.bf16.xpose.msra.mxu0 0
    %552 = vmatprep.subr.bf16.mxu0 0
    %553 = vmatpush1.bf16.xpose.msra.mxu0 %v536
    %554 = vmatprep.subr.bf16.mxu0 0
    %555 = vmatpush2.bf16.xpose.msra.mxu0 0
    %556 = vmatprep.subr.bf16.mxu0 0
    %557 = vmatpush2.bf16.xpose.msra.mxu0 0
    %558 = vmatprep.subr.bf16.mxu0 0
    %559 = vmatpush2.bf16.xpose.msra.mxu0 0
    %560 = vmatprep.subr.bf16.mxu0 0
    %561 = vmatpush2.bf16.xpose.msra.mxu0 0
    %562 = vmatprep.subr.bf16.mxu0 0
    %563 = vmatpush2.bf16.xpose.msra.mxu0 0
    %564 = vmatprep.subr.bf16.mxu0 0
    %565 = vmatpush2.bf16.xpose.msra.mxu0 0
    %566 = vmatprep.subr.bf16.mxu0 0
    %567 = vmatpush2.bf16.xpose.msra.mxu0 0
    %568 = vmatprep.subr.bf16.mxu0 0
    %569 = vmatpush2.bf16.xpose.msra.mxu0 0
    %570 = vmatprep.mubr.bf16.mxu0 0
    %571 = vmatmul.mubr.bf16.gmra.mxu0 %v533
    %v572 = vpop.f32.mrf.mxu0
    %v573 = vadd.f32 0.0, %v572
    %v574 = vpop.f32.mrf.mxu0
    %v575 = vpop.f32.mrf.mxu0
    %v576 = vpop.f32.mrf.mxu0
    %577 = vdwg.mxu0
    %v579 = vsel %vm205, %v519, 0
    %v582 = vsel %vm205, %v525, 0
    %584 = vmatprep.subr.bf16.mxu0 0
    %585 = vmatpush1.bf16.xpose.msra.mxu0 0
    %586 = vmatprep.subr.bf16.mxu0 0
    %587 = vmatpush1.bf16.xpose.msra.mxu0 0
    %588 = vmatprep.subr.bf16.mxu0 0
    %589 = vmatpush1.bf16.xpose.msra.mxu0 0
    %590 = vmatprep.subr.bf16.mxu0 0
    %591 = vmatpush1.bf16.xpose.msra.mxu0 0
    %592 = vmatprep.subr.bf16.mxu0 0
    %593 = vmatpush1.bf16.xpose.msra.mxu0 0
    %594 = vmatprep.subr.bf16.mxu0 0
    %595 = vmatpush1.bf16.xpose.msra.mxu0 0
    %596 = vmatprep.subr.bf16.mxu0 0
    %597 = vmatpush1.bf16.xpose.msra.mxu0 0
    %598 = vmatprep.subr.bf16.mxu0 0
    %599 = vmatpush1.bf16.xpose.msra.mxu0 %v582
    %600 = vmatprep.subr.bf16.mxu0 0
    %601 = vmatpush2.bf16.xpose.msra.mxu0 0
    %602 = vmatprep.subr.bf16.mxu0 0
    %603 = vmatpush2.bf16.xpose.msra.mxu0 0
    %604 = vmatprep.subr.bf16.mxu0 0
    %605 = vmatpush2.bf16.xpose.msra.mxu0 0
    %606 = vmatprep.subr.bf16.mxu0 0
    %607 = vmatpush2.bf16.xpose.msra.mxu0 0
    %608 = vmatprep.subr.bf16.mxu0 0
    %609 = vmatpush2.bf16.xpose.msra.mxu0 0
    %610 = vmatprep.subr.bf16.mxu0 0
    %611 = vmatpush2.bf16.xpose.msra.mxu0 0
    %612 = vmatprep.subr.bf16.mxu0 0
    %613 = vmatpush2.bf16.xpose.msra.mxu0 0
    %614 = vmatprep.subr.bf16.mxu0 0
    %615 = vmatpush2.bf16.xpose.msra.mxu0 0
    %616 = vmatprep.mubr.bf16.mxu0 0
    %617 = vmatmul.mubr.bf16.gmra.mxu0 %v579
    %v618 = vpop.f32.mrf.mxu0
    %v619 = vadd.f32 0.0, %v618
    %v620 = vpop.f32.mrf.mxu0
    %v621 = vpop.f32.mrf.mxu0
    %v622 = vpop.f32.mrf.mxu0
    %623 = vdwg.mxu0
    %vm624 = vcmask 64512
    %v625 = vsel %vm624, %v573, -inf
    %626 = vmax.xlane.f32.xlu0 %v625
    %v627 = vpop.xlane.xlu0 %626
    %v628 = vsel %vm624, %v619, -inf
    %629 = vmax.xlane.f32.xlu0 %v628
    %v630 = vpop.xlane.xlu0 %629
    %v631 = vsub.f32 %v573, %v627
    %v632 = vsub.f32 %v619, %v630
    %v633 = vmul.f32 %v631, 1.442695
    %v634 = vpow.pop %v633
    %v635 = vmul.f32 %v632, 1.442695
    %v636 = vpow.pop %v635
    %v637 = vsel %vm624, %v634, 0.0
    %638 = vadd.xlane.f32.xlu0 %v637
    %v639 = vpop.xlane.xlu0 %638
    %v640 = vsel %vm624, %v636, 0.0
    %641 = vadd.xlane.f32.xlu0 %v640
    %v642 = vpop.xlane.xlu0 %641
    %v643 = vrcp.pop %v639
    %v644 = vrcp.pop %v642
    %v645 = vmul.f32 %v634, %v643
    %v646 = vmul.f32 %v636, %v644
    %v647 = vpack.c.bf16 %v645, %v645
    %v648 = vpack.c.bf16 %v646, %v646
    %v650 = vsel %vm624, %v647, 0
    %vm652 = vcmask 1043456
    %v654 = vsel %vm652, %v530, 0
    %656 = vmatprep.subr.bf16.mxu0 0
    %657 = vmatpush1.bf16.msra.mxu0 0
    %658 = vmatprep.subr.bf16.mxu0 0
    %659 = vmatpush1.bf16.msra.mxu0 0
    %660 = vmatprep.subr.bf16.mxu0 0
    %661 = vmatpush1.bf16.msra.mxu0 0
    %662 = vmatprep.subr.bf16.mxu0 0
    %663 = vmatpush1.bf16.msra.mxu0 0
    %664 = vmatprep.subr.bf16.mxu0 0
    %665 = vmatpush1.bf16.msra.mxu0 0
    %666 = vmatprep.subr.bf16.mxu0 0
    %667 = vmatpush1.bf16.msra.mxu0 0
    %668 = vmatprep.subr.bf16.mxu0 0
    %669 = vmatpush1.bf16.msra.mxu0 0
    %670 = vmatprep.subr.bf16.mxu0 0
    %671 = vmatpush1.bf16.msra.mxu0 %v654
    %672 = vmatprep.subr.bf16.mxu0 0
    %673 = vmatpush2.bf16.msra.mxu0 0
    %674 = vmatprep.subr.bf16.mxu0 0
    %675 = vmatpush2.bf16.msra.mxu0 0
    %676 = vmatprep.subr.bf16.mxu0 0
    %677 = vmatpush2.bf16.msra.mxu0 0
    %678 = vmatprep.subr.bf16.mxu0 0
    %679 = vmatpush2.bf16.msra.mxu0 0
    %680 = vmatprep.subr.bf16.mxu0 0
    %681 = vmatpush2.bf16.msra.mxu0 0
    %682 = vmatprep.subr.bf16.mxu0 0
    %683 = vmatpush2.bf16.msra.mxu0 0
    %684 = vmatprep.subr.bf16.mxu0 0
    %685 = vmatpush2.bf16.msra.mxu0 0
    %686 = vmatprep.subr.bf16.mxu0 0
    %687 = vmatpush2.bf16.msra.mxu0 0
    %688 = vmatprep.mubr.bf16.mxu0 0
    %689 = vmatmul.mubr.bf16.gmra.mxu0 %v650
    %v690 = vpop.f32.mrf.mxu0
    %v691 = vadd.f32 0.0, %v690
    %v692 = vpop.f32.mrf.mxu0
    %v693 = vpop.f32.mrf.mxu0
    %v694 = vpop.f32.mrf.mxu0
    %695 = vdwg.mxu0
    %v697 = vsel %vm624, %v648, 0
    %v700 = vsel %vm652, %v531, 0
    %702 = vmatprep.subr.bf16.mxu0 0
    %703 = vmatpush1.bf16.msra.mxu0 0
    %704 = vmatprep.subr.bf16.mxu0 0
    %705 = vmatpush1.bf16.msra.mxu0 0
    %706 = vmatprep.subr.bf16.mxu0 0
    %707 = vmatpush1.bf16.msra.mxu0 0
    %708 = vmatprep.subr.bf16.mxu0 0
    %709 = vmatpush1.bf16.msra.mxu0 0
    %710 = vmatprep.subr.bf16.mxu0 0
    %711 = vmatpush1.bf16.msra.mxu0 0
    %712 = vmatprep.subr.bf16.mxu0 0
    %713 = vmatpush1.bf16.msra.mxu0 0
    %714 = vmatprep.subr.bf16.mxu0 0
    %715 = vmatpush1.bf16.msra.mxu0 0
    %716 = vmatprep.subr.bf16.mxu0 0
    %717 = vmatpush1.bf16.msra.mxu0 %v700
    %718 = vmatprep.subr.bf16.mxu0 0
    %719 = vmatpush2.bf16.msra.mxu0 0
    %720 = vmatprep.subr.bf16.mxu0 0
    %721 = vmatpush2.bf16.msra.mxu0 0
    %722 = vmatprep.subr.bf16.mxu0 0
    %723 = vmatpush2.bf16.msra.mxu0 0
    %724 = vmatprep.subr.bf16.mxu0 0
    %725 = vmatpush2.bf16.msra.mxu0 0
    %726 = vmatprep.subr.bf16.mxu0 0
    %727 = vmatpush2.bf16.msra.mxu0 0
    %728 = vmatprep.subr.bf16.mxu0 0
    %729 = vmatpush2.bf16.msra.mxu0 0
    %730 = vmatprep.subr.bf16.mxu0 0
    %731 = vmatpush2.bf16.msra.mxu0 0
    %732 = vmatprep.subr.bf16.mxu0 0
    %733 = vmatpush2.bf16.msra.mxu0 0
    %734 = vmatprep.mubr.bf16.mxu0 0
    %735 = vmatmul.mubr.bf16.gmra.mxu0 %v697
    %v736 = vpop.f32.mrf.mxu0
    %v737 = vadd.f32 0.0, %v736
    %v738 = vpop.f32.mrf.mxu0
    %v739 = vpop.f32.mrf.mxu0
    %v740 = vpop.f32.mrf.mxu0
    %741 = vdwg.mxu0
    %742 = vrot.lane.b32.xlu0 %v518, 112
    %v743 = vpop.permute.xlu0 %742
    %744 = vrot.lane.b32.xlu0 %v524, 112
    %v745 = vpop.permute.xlu0 %744
    %v747 = vsel %vm205, %v743, 0
    %v750 = vsel %vm205, %v745, 0
    %752 = vmatprep.subr.bf16.mxu0 0
    %753 = vmatpush1.bf16.xpose.msra.mxu0 0
    %754 = vmatprep.subr.bf16.mxu0 0
    %755 = vmatpush1.bf16.xpose.msra.mxu0 0
    %756 = vmatprep.subr.bf16.mxu0 0
    %757 = vmatpush1.bf16.xpose.msra.mxu0 0
    %758 = vmatprep.subr.bf16.mxu0 0
    %759 = vmatpush1.bf16.xpose.msra.mxu0 0
    %760 = vmatprep.subr.bf16.mxu0 0
    %761 = vmatpush1.bf16.xpose.msra.mxu0 0
    %762 = vmatprep.subr.bf16.mxu0 0
    %763 = vmatpush1.bf16.xpose.msra.mxu0 0
    %764 = vmatprep.subr.bf16.mxu0 0
    %765 = vmatpush1.bf16.xpose.msra.mxu0 0
    %766 = vmatprep.subr.bf16.mxu0 0
    %767 = vmatpush1.bf16.xpose.msra.mxu0 %v750
    %768 = vmatprep.subr.bf16.mxu0 0
    %769 = vmatpush2.bf16.xpose.msra.mxu0 0
    %770 = vmatprep.subr.bf16.mxu0 0
    %771 = vmatpush2.bf16.xpose.msra.mxu0 0
    %772 = vmatprep.subr.bf16.mxu0 0
    %773 = vmatpush2.bf16.xpose.msra.mxu0 0
    %774 = vmatprep.subr.bf16.mxu0 0
    %775 = vmatpush2.bf16.xpose.msra.mxu0 0
    %776 = vmatprep.subr.bf16.mxu0 0
    %777 = vmatpush2.bf16.xpose.msra.mxu0 0
    %778 = vmatprep.subr.bf16.mxu0 0
    %779 = vmatpush2.bf16.xpose.msra.mxu0 0
    %780 = vmatprep.subr.bf16.mxu0 0
    %781 = vmatpush2.bf16.xpose.msra.mxu0 0
    %782 = vmatprep.subr.bf16.mxu0 0
    %783 = vmatpush2.bf16.xpose.msra.mxu0 0
    %784 = vmatprep.mubr.bf16.mxu0 0
    %785 = vmatmul.mubr.bf16.gmra.mxu0 %v747
    %v786 = vpop.f32.mrf.mxu0
    %v787 = vadd.f32 0.0, %v786
    %v788 = vpop.f32.mrf.mxu0
    %v789 = vpop.f32.mrf.mxu0
    %v790 = vpop.f32.mrf.mxu0
    %791 = vdwg.mxu0
    %792 = vrot.lane.b32.xlu0 %v519, 112
    %v793 = vpop.permute.xlu0 %792
    %794 = vrot.lane.b32.xlu0 %v525, 112
    %v795 = vpop.permute.xlu0 %794
    %v797 = vsel %vm205, %v793, 0
    %v800 = vsel %vm205, %v795, 0
    %802 = vmatprep.subr.bf16.mxu0 0
    %803 = vmatpush1.bf16.xpose.msra.mxu0 0
    %804 = vmatprep.subr.bf16.mxu0 0
    %805 = vmatpush1.bf16.xpose.msra.mxu0 0
    %806 = vmatprep.subr.bf16.mxu0 0
    %807 = vmatpush1.bf16.xpose.msra.mxu0 0
    %808 = vmatprep.subr.bf16.mxu0 0
    %809 = vmatpush1.bf16.xpose.msra.mxu0 0
    %810 = vmatprep.subr.bf16.mxu0 0
    %811 = vmatpush1.bf16.xpose.msra.mxu0 0
    %812 = vmatprep.subr.bf16.mxu0 0
    %813 = vmatpush1.bf16.xpose.msra.mxu0 0
    %814 = vmatprep.subr.bf16.mxu0 0
    %815 = vmatpush1.bf16.xpose.msra.mxu0 0
    %816 = vmatprep.subr.bf16.mxu0 0
    %817 = vmatpush1.bf16.xpose.msra.mxu0 %v800
    %818 = vmatprep.subr.bf16.mxu0 0
    %819 = vmatpush2.bf16.xpose.msra.mxu0 0
    %820 = vmatprep.subr.bf16.mxu0 0
    %821 = vmatpush2.bf16.xpose.msra.mxu0 0
    %822 = vmatprep.subr.bf16.mxu0 0
    %823 = vmatpush2.bf16.xpose.msra.mxu0 0
    %824 = vmatprep.subr.bf16.mxu0 0
    %825 = vmatpush2.bf16.xpose.msra.mxu0 0
    %826 = vmatprep.subr.bf16.mxu0 0
    %827 = vmatpush2.bf16.xpose.msra.mxu0 0
    %828 = vmatprep.subr.bf16.mxu0 0
    %829 = vmatpush2.bf16.xpose.msra.mxu0 0
    %830 = vmatprep.subr.bf16.mxu0 0
    %831 = vmatpush2.bf16.xpose.msra.mxu0 0
    %832 = vmatprep.subr.bf16.mxu0 0
    %833 = vmatpush2.bf16.xpose.msra.mxu0 0
    %834 = vmatprep.mubr.bf16.mxu0 0
    %835 = vmatmul.mubr.bf16.gmra.mxu0 %v797
    %v836 = vpop.f32.mrf.mxu0
    %v837 = vadd.f32 0.0, %v836
    %v838 = vpop.f32.mrf.mxu0
    %v839 = vpop.f32.mrf.mxu0
    %v840 = vpop.f32.mrf.mxu0
    %841 = vdwg.mxu0
    %v842 = vsel %vm624, %v787, -inf
    %843 = vmax.xlane.f32.xlu0 %v842
    %v844 = vpop.xlane.xlu0 %843
    %v845 = vsel %vm624, %v837, -inf
    %846 = vmax.xlane.f32.xlu0 %v845
    %v847 = vpop.xlane.xlu0 %846
    %v848 = vsub.f32 %v787, %v844
    %v849 = vsub.f32 %v837, %v847
    %v850 = vmul.f32 %v848, 1.442695
    %v851 = vpow.pop %v850
    %v852 = vmul.f32 %v849, 1.442695
    %v853 = vpow.pop %v852
    %v854 = vsel %vm624, %v851, 0.0
    %855 = vadd.xlane.f32.xlu0 %v854
    %v856 = vpop.xlane.xlu0 %855
    %v857 = vsel %vm624, %v853, 0.0
    %858 = vadd.xlane.f32.xlu0 %v857
    %v859 = vpop.xlane.xlu0 %858
    %v860 = vrcp.pop %v856
    %v861 = vrcp.pop %v859
    %v862 = vmul.f32 %v851, %v860
    %v863 = vmul.f32 %v853, %v861
    %v864 = vpack.c.bf16 %v862, %v862
    %v865 = vpack.c.bf16 %v863, %v863
    %866 = vrot.lane.b32.xlu0 %v530, 112
    %v867 = vpop.permute.xlu0 %866
    %v869 = vsel %vm624, %v864, 0
    %v872 = vsel %vm652, %v867, 0
    %874 = vmatprep.subr.bf16.mxu0 0
    %875 = vmatpush1.bf16.msra.mxu0 0
    %876 = vmatprep.subr.bf16.mxu0 0
    %877 = vmatpush1.bf16.msra.mxu0 0
    %878 = vmatprep.subr.bf16.mxu0 0
    %879 = vmatpush1.bf16.msra.mxu0 0
    %880 = vmatprep.subr.bf16.mxu0 0
    %881 = vmatpush1.bf16.msra.mxu0 0
    %882 = vmatprep.subr.bf16.mxu0 0
    %883 = vmatpush1.bf16.msra.mxu0 0
    %884 = vmatprep.subr.bf16.mxu0 0
    %885 = vmatpush1.bf16.msra.mxu0 0
    %886 = vmatprep.subr.bf16.mxu0 0
    %887 = vmatpush1.bf16.msra.mxu0 0
    %888 = vmatprep.subr.bf16.mxu0 0
    %889 = vmatpush1.bf16.msra.mxu0 %v872
    %890 = vmatprep.subr.bf16.mxu0 0
    %891 = vmatpush2.bf16.msra.mxu0 0
    %892 = vmatprep.subr.bf16.mxu0 0
    %893 = vmatpush2.bf16.msra.mxu0 0
    %894 = vmatprep.subr.bf16.mxu0 0
    %895 = vmatpush2.bf16.msra.mxu0 0
    %896 = vmatprep.subr.bf16.mxu0 0
    %897 = vmatpush2.bf16.msra.mxu0 0
    %898 = vmatprep.subr.bf16.mxu0 0
    %899 = vmatpush2.bf16.msra.mxu0 0
    %900 = vmatprep.subr.bf16.mxu0 0
    %901 = vmatpush2.bf16.msra.mxu0 0
    %902 = vmatprep.subr.bf16.mxu0 0
    %903 = vmatpush2.bf16.msra.mxu0 0
    %904 = vmatprep.subr.bf16.mxu0 0
    %905 = vmatpush2.bf16.msra.mxu0 0
    %906 = vmatprep.mubr.bf16.mxu0 0
    %907 = vmatmul.mubr.bf16.gmra.mxu0 %v869
    %v908 = vpop.f32.mrf.mxu0
    %v909 = vadd.f32 0.0, %v908
    %v910 = vpop.f32.mrf.mxu0
    %v911 = vpop.f32.mrf.mxu0
    %v912 = vpop.f32.mrf.mxu0
    %913 = vdwg.mxu0
    %914 = vrot.lane.b32.xlu0 %v531, 112
    %v915 = vpop.permute.xlu0 %914
    %v917 = vsel %vm624, %v865, 0
    %v920 = vsel %vm652, %v915, 0
    %922 = vmatprep.subr.bf16.mxu0 0
    %923 = vmatpush1.bf16.msra.mxu0 0
    %924 = vmatprep.subr.bf16.mxu0 0
    %925 = vmatpush1.bf16.msra.mxu0 0
    %926 = vmatprep.subr.bf16.mxu0 0
    %927 = vmatpush1.bf16.msra.mxu0 0
    %928 = vmatprep.subr.bf16.mxu0 0
    %929 = vmatpush1.bf16.msra.mxu0 0
    %930 = vmatprep.subr.bf16.mxu0 0
    %931 = vmatpush1.bf16.msra.mxu0 0
    %932 = vmatprep.subr.bf16.mxu0 0
    %933 = vmatpush1.bf16.msra.mxu0 0
    %934 = vmatprep.subr.bf16.mxu0 0
    %935 = vmatpush1.bf16.msra.mxu0 0
    %936 = vmatprep.subr.bf16.mxu0 0
    %937 = vmatpush1.bf16.msra.mxu0 %v920
    %938 = vmatprep.subr.bf16.mxu0 0
    %939 = vmatpush2.bf16.msra.mxu0 0
    %940 = vmatprep.subr.bf16.mxu0 0
    %941 = vmatpush2.bf16.msra.mxu0 0
    %942 = vmatprep.subr.bf16.mxu0 0
    %943 = vmatpush2.bf16.msra.mxu0 0
    %944 = vmatprep.subr.bf16.mxu0 0
    %945 = vmatpush2.bf16.msra.mxu0 0
    %946 = vmatprep.subr.bf16.mxu0 0
    %947 = vmatpush2.bf16.msra.mxu0 0
    %948 = vmatprep.subr.bf16.mxu0 0
    %949 = vmatpush2.bf16.msra.mxu0 0
    %950 = vmatprep.subr.bf16.mxu0 0
    %951 = vmatpush2.bf16.msra.mxu0 0
    %952 = vmatprep.subr.bf16.mxu0 0
    %953 = vmatpush2.bf16.msra.mxu0 0
    %954 = vmatprep.mubr.bf16.mxu0 0
    %955 = vmatmul.mubr.bf16.gmra.mxu0 %v917
    %v956 = vpop.f32.mrf.mxu0
    %v957 = vadd.f32 0.0, %v956
    %v958 = vpop.f32.mrf.mxu0
    %v959 = vpop.f32.mrf.mxu0
    %v960 = vpop.f32.mrf.mxu0
    %961 = vdwg.mxu0
    %962 = vrot.lane.b32.xlu0 %v518, 96
    %v963 = vpop.permute.xlu0 %962
    %964 = vrot.lane.b32.xlu0 %v524, 96
    %v965 = vpop.permute.xlu0 %964
    %v967 = vsel %vm205, %v963, 0
    %v970 = vsel %vm205, %v965, 0
    %972 = vmatprep.subr.bf16.mxu0 0
    %973 = vmatpush1.bf16.xpose.msra.mxu0 0
    %974 = vmatprep.subr.bf16.mxu0 0
    %975 = vmatpush1.bf16.xpose.msra.mxu0 0
    %976 = vmatprep.subr.bf16.mxu0 0
    %977 = vmatpush1.bf16.xpose.msra.mxu0 0
    %978 = vmatprep.subr.bf16.mxu0 0
    %979 = vmatpush1.bf16.xpose.msra.mxu0 0
    %980 = vmatprep.subr.bf16.mxu0 0
    %981 = vmatpush1.bf16.xpose.msra.mxu0 0
    %982 = vmatprep.subr.bf16.mxu0 0
    %983 = vmatpush1.bf16.xpose.msra.mxu0 0
    %984 = vmatprep.subr.bf16.mxu0 0
    %985 = vmatpush1.bf16.xpose.msra.mxu0 0
    %986 = vmatprep.subr.bf16.mxu0 0
    %987 = vmatpush1.bf16.xpose.msra.mxu0 %v970
    %988 = vmatprep.subr.bf16.mxu0 0
    %989 = vmatpush2.bf16.xpose.msra.mxu0 0
    %990 = vmatprep.subr.bf16.mxu0 0
    %991 = vmatpush2.bf16.xpose.msra.mxu0 0
    %992 = vmatprep.subr.bf16.mxu0 0
    %993 = vmatpush2.bf16.xpose.msra.mxu0 0
    %994 = vmatprep.subr.bf16.mxu0 0
    %995 = vmatpush2.bf16.xpose.msra.mxu0 0
    %996 = vmatprep.subr.bf16.mxu0 0
    %997 = vmatpush2.bf16.xpose.msra.mxu0 0
    %998 = vmatprep.subr.bf16.mxu0 0
    %999 = vmatpush2.bf16.xpose.msra.mxu0 0
    %1000 = vmatprep.subr.bf16.mxu0 0
    %1001 = vmatpush2.bf16.xpose.msra.mxu0 0
    %1002 = vmatprep.subr.bf16.mxu0 0
    %1003 = vmatpush2.bf16.xpose.msra.mxu0 0
    %1004 = vmatprep.mubr.bf16.mxu0 0
    %1005 = vmatmul.mubr.bf16.gmra.mxu0 %v967
    %v1006 = vpop.f32.mrf.mxu0
    %v1007 = vadd.f32 0.0, %v1006
    %v1008 = vpop.f32.mrf.mxu0
    %v1009 = vpop.f32.mrf.mxu0
    %v1010 = vpop.f32.mrf.mxu0
    %1011 = vdwg.mxu0
    %1012 = vrot.lane.b32.xlu0 %v519, 96
    %v1013 = vpop.permute.xlu0 %1012
    %1014 = vrot.lane.b32.xlu0 %v525, 96
    %v1015 = vpop.permute.xlu0 %1014
    %v1017 = vsel %vm205, %v1013, 0
    %v1020 = vsel %vm205, %v1015, 0
    %1022 = vmatprep.subr.bf16.mxu0 0
    %1023 = vmatpush1.bf16.xpose.msra.mxu0 0
    %1024 = vmatprep.subr.bf16.mxu0 0
    %1025 = vmatpush1.bf16.xpose.msra.mxu0 0
    %1026 = vmatprep.subr.bf16.mxu0 0
    %1027 = vmatpush1.bf16.xpose.msra.mxu0 0
    %1028 = vmatprep.subr.bf16.mxu0 0
    %1029 = vmatpush1.bf16.xpose.msra.mxu0 0
    %1030 = vmatprep.subr.bf16.mxu0 0
    %1031 = vmatpush1.bf16.xpose.msra.mxu0 0
    %1032 = vmatprep.subr.bf16.mxu0 0
    %1033 = vmatpush1.bf16.xpose.msra.mxu0 0
    %1034 = vmatprep.subr.bf16.mxu0 0
    %1035 = vmatpush1.bf16.xpose.msra.mxu0 0
    %1036 = vmatprep.subr.bf16.mxu0 0
    %1037 = vmatpush1.bf16.xpose.msra.mxu0 %v1020
    %1038 = vmatprep.subr.bf16.mxu0 0
    %1039 = vmatpush2.bf16.xpose.msra.mxu0 0
    %1040 = vmatprep.subr.bf16.mxu0 0
    %1041 = vmatpush2.bf16.xpose.msra.mxu0 0
    %1042 = vmatprep.subr.bf16.mxu0 0
    %1043 = vmatpush2.bf16.xpose.msra.mxu0 0
    %1044 = vmatprep.subr.bf16.mxu0 0
    %1045 = vmatpush2.bf16.xpose.msra.mxu0 0
    %1046 = vmatprep.subr.bf16.mxu0 0
    %1047 = vmatpush2.bf16.xpose.msra.mxu0 0
    %1048 = vmatprep.subr.bf16.mxu0 0
    %1049 = vmatpush2.bf16.xpose.msra.mxu0 0
    %1050 = vmatprep.subr.bf16.mxu0 0
    %1051 = vmatpush2.bf16.xpose.msra.mxu0 0
    %1052 = vmatprep.subr.bf16.mxu0 0
    %1053 = vmatpush2.bf16.xpose.msra.mxu0 0
    %1054 = vmatprep.mubr.bf16.mxu0 0
    %1055 = vmatmul.mubr.bf16.gmra.mxu0 %v1017
    %v1056 = vpop.f32.mrf.mxu0
    %v1057 = vadd.f32 0.0, %v1056
    %v1058 = vpop.f32.mrf.mxu0
    %v1059 = vpop.f32.mrf.mxu0
    %v1060 = vpop.f32.mrf.mxu0
    %1061 = vdwg.mxu0
    %v1062 = vsel %vm624, %v1007, -inf
    %1063 = vmax.xlane.f32.xlu0 %v1062
    %v1064 = vpop.xlane.xlu0 %1063
    %v1065 = vsel %vm624, %v1057, -inf
    %1066 = vmax.xlane.f32.xlu0 %v1065
    %v1067 = vpop.xlane.xlu0 %1066
    %v1068 = vsub.f32 %v1007, %v1064
    %v1069 = vsub.f32 %v1057, %v1067
    %v1070 = vmul.f32 %v1068, 1.442695
    %v1071 = vpow.pop %v1070
    %v1072 = vmul.f32 %v1069, 1.442695
    %v1073 = vpow.pop %v1072
    %v1074 = vsel %vm624, %v1071, 0.0
    %1075 = vadd.xlane.f32.xlu0 %v1074
    %v1076 = vpop.xlane.xlu0 %1075
    %v1077 = vsel %vm624, %v1073, 0.0
    %1078 = vadd.xlane.f32.xlu0 %v1077
    %v1079 = vpop.xlane.xlu0 %1078
    %v1080 = vrcp.pop %v1076
    %v1081 = vrcp.pop %v1079
    %v1082 = vmul.f32 %v1071, %v1080
    %v1083 = vmul.f32 %v1073, %v1081
    %v1084 = vpack.c.bf16 %v1082, %v1082
    %v1085 = vpack.c.bf16 %v1083, %v1083
    %1086 = vrot.lane.b32.xlu0 %v530, 96
    %v1087 = vpop.permute.xlu0 %1086
    %v1089 = vsel %vm624, %v1084, 0
    %v1092 = vsel %vm652, %v1087, 0
    %1094 = vmatprep.subr.bf16.mxu0 0
    %1095 = vmatpush1.bf16.msra.mxu0 0
    %1096 = vmatprep.subr.bf16.mxu0 0
    %1097 = vmatpush1.bf16.msra.mxu0 0
    %1098 = vmatprep.subr.bf16.mxu0 0
    %1099 = vmatpush1.bf16.msra.mxu0 0
    %1100 = vmatprep.subr.bf16.mxu0 0
    %1101 = vmatpush1.bf16.msra.mxu0 0
    %1102 = vmatprep.subr.bf16.mxu0 0
    %1103 = vmatpush1.bf16.msra.mxu0 0
    %1104 = vmatprep.subr.bf16.mxu0 0
    %1105 = vmatpush1.bf16.msra.mxu0 0
    %1106 = vmatprep.subr.bf16.mxu0 0
    %1107 = vmatpush1.bf16.msra.mxu0 0
    %1108 = vmatprep.subr.bf16.mxu0 0
    %1109 = vmatpush1.bf16.msra.mxu0 %v1092
    %1110 = vmatprep.subr.bf16.mxu0 0
    %1111 = vmatpush2.bf16.msra.mxu0 0
    %1112 = vmatprep.subr.bf16.mxu0 0
    %1113 = vmatpush2.bf16.msra.mxu0 0
    %1114 = vmatprep.subr.bf16.mxu0 0
    %1115 = vmatpush2.bf16.msra.mxu0 0
    %1116 = vmatprep.subr.bf16.mxu0 0
    %1117 = vmatpush2.bf16.msra.mxu0 0
    %1118 = vmatprep.subr.bf16.mxu0 0
    %1119 = vmatpush2.bf16.msra.mxu0 0
    %1120 = vmatprep.subr.bf16.mxu0 0
    %1121 = vmatpush2.bf16.msra.mxu0 0
    %1122 = vmatprep.subr.bf16.mxu0 0
    %1123 = vmatpush2.bf16.msra.mxu0 0
    %1124 = vmatprep.subr.bf16.mxu0 0
    %1125 = vmatpush2.bf16.msra.mxu0 0
    %1126 = vmatprep.mubr.bf16.mxu0 0
    %1127 = vmatmul.mubr.bf16.gmra.mxu0 %v1089
    %v1128 = vpop.f32.mrf.mxu0
    %v1129 = vadd.f32 0.0, %v1128
    %v1130 = vpop.f32.mrf.mxu0
    %v1131 = vpop.f32.mrf.mxu0
    %v1132 = vpop.f32.mrf.mxu0
    %1133 = vdwg.mxu0
    %1134 = vrot.lane.b32.xlu0 %v531, 96
    %v1135 = vpop.permute.xlu0 %1134
    %v1137 = vsel %vm624, %v1085, 0
    %v1140 = vsel %vm652, %v1135, 0
    %1142 = vmatprep.subr.bf16.mxu0 0
    %1143 = vmatpush1.bf16.msra.mxu0 0
    %1144 = vmatprep.subr.bf16.mxu0 0
    %1145 = vmatpush1.bf16.msra.mxu0 0
    %1146 = vmatprep.subr.bf16.mxu0 0
    %1147 = vmatpush1.bf16.msra.mxu0 0
    %1148 = vmatprep.subr.bf16.mxu0 0
    %1149 = vmatpush1.bf16.msra.mxu0 0
    %1150 = vmatprep.subr.bf16.mxu0 0
    %1151 = vmatpush1.bf16.msra.mxu0 0
    %1152 = vmatprep.subr.bf16.mxu0 0
    %1153 = vmatpush1.bf16.msra.mxu0 0
    %1154 = vmatprep.subr.bf16.mxu0 0
    %1155 = vmatpush1.bf16.msra.mxu0 0
    %1156 = vmatprep.subr.bf16.mxu0 0
    %1157 = vmatpush1.bf16.msra.mxu0 %v1140
    %1158 = vmatprep.subr.bf16.mxu0 0
    %1159 = vmatpush2.bf16.msra.mxu0 0
    %1160 = vmatprep.subr.bf16.mxu0 0
    %1161 = vmatpush2.bf16.msra.mxu0 0
    %1162 = vmatprep.subr.bf16.mxu0 0
    %1163 = vmatpush2.bf16.msra.mxu0 0
    %1164 = vmatprep.subr.bf16.mxu0 0
    %1165 = vmatpush2.bf16.msra.mxu0 0
    %1166 = vmatprep.subr.bf16.mxu0 0
    %1167 = vmatpush2.bf16.msra.mxu0 0
    %1168 = vmatprep.subr.bf16.mxu0 0
    %1169 = vmatpush2.bf16.msra.mxu0 0
    %1170 = vmatprep.subr.bf16.mxu0 0
    %1171 = vmatpush2.bf16.msra.mxu0 0
    %1172 = vmatprep.subr.bf16.mxu0 0
    %1173 = vmatpush2.bf16.msra.mxu0 0
    %1174 = vmatprep.mubr.bf16.mxu0 0
    %1175 = vmatmul.mubr.bf16.gmra.mxu0 %v1137
    %v1176 = vpop.f32.mrf.mxu0
    %v1177 = vadd.f32 0.0, %v1176
    %v1178 = vpop.f32.mrf.mxu0
    %v1179 = vpop.f32.mrf.mxu0
    %v1180 = vpop.f32.mrf.mxu0
    %1181 = vdwg.mxu0
    %1182 = vrot.lane.b32.xlu0 %v518, 80
    %v1183 = vpop.permute.xlu0 %1182
    %1184 = vrot.lane.b32.xlu0 %v524, 80
    %v1185 = vpop.permute.xlu0 %1184
    %v1187 = vsel %vm205, %v1183, 0
    %v1190 = vsel %vm205, %v1185, 0
    %1192 = vmatprep.subr.bf16.mxu0 0
    %1193 = vmatpush1.bf16.xpose.msra.mxu0 0
    %1194 = vmatprep.subr.bf16.mxu0 0
    %1195 = vmatpush1.bf16.xpose.msra.mxu0 0
    %1196 = vmatprep.subr.bf16.mxu0 0
    %1197 = vmatpush1.bf16.xpose.msra.mxu0 0
    %1198 = vmatprep.subr.bf16.mxu0 0
    %1199 = vmatpush1.bf16.xpose.msra.mxu0 0
    %1200 = vmatprep.subr.bf16.mxu0 0
    %1201 = vmatpush1.bf16.xpose.msra.mxu0 0
    %1202 = vmatprep.subr.bf16.mxu0 0
    %1203 = vmatpush1.bf16.xpose.msra.mxu0 0
    %1204 = vmatprep.subr.bf16.mxu0 0
    %1205 = vmatpush1.bf16.xpose.msra.mxu0 0
    %1206 = vmatprep.subr.bf16.mxu0 0
    %1207 = vmatpush1.bf16.xpose.msra.mxu0 %v1190
    %1208 = vmatprep.subr.bf16.mxu0 0
    %1209 = vmatpush2.bf16.xpose.msra.mxu0 0
    %1210 = vmatprep.subr.bf16.mxu0 0
    %1211 = vmatpush2.bf16.xpose.msra.mxu0 0
    %1212 = vmatprep.subr.bf16.mxu0 0
    %1213 = vmatpush2.bf16.xpose.msra.mxu0 0
    %1214 = vmatprep.subr.bf16.mxu0 0
    %1215 = vmatpush2.bf16.xpose.msra.mxu0 0
    %1216 = vmatprep.subr.bf16.mxu0 0
    %1217 = vmatpush2.bf16.xpose.msra.mxu0 0
    %1218 = vmatprep.subr.bf16.mxu0 0
    %1219 = vmatpush2.bf16.xpose.msra.mxu0 0
    %1220 = vmatprep.subr.bf16.mxu0 0
    %1221 = vmatpush2.bf16.xpose.msra.mxu0 0
    %1222 = vmatprep.subr.bf16.mxu0 0
    %1223 = vmatpush2.bf16.xpose.msra.mxu0 0
    %1224 = vmatprep.mubr.bf16.mxu0 0
    %1225 = vmatmul.mubr.bf16.gmra.mxu0 %v1187
    %v1226 = vpop.f32.mrf.mxu0
    %v1227 = vadd.f32 0.0, %v1226
    %v1228 = vpop.f32.mrf.mxu0
    %v1229 = vpop.f32.mrf.mxu0
    %v1230 = vpop.f32.mrf.mxu0
    %1231 = vdwg.mxu0
    %1232 = vrot.lane.b32.xlu0 %v519, 80
    %v1233 = vpop.permute.xlu0 %1232
    %1234 = vrot.lane.b32.xlu0 %v525, 80
    %v1235 = vpop.permute.xlu0 %1234
    %v1237 = vsel %vm205, %v1233, 0
    %v1240 = vsel %vm205, %v1235, 0
    %1242 = vmatprep.subr.bf16.mxu0 0
    %1243 = vmatpush1.bf16.xpose.msra.mxu0 0
    %1244 = vmatprep.subr.bf16.mxu0 0
    %1245 = vmatpush1.bf16.xpose.msra.mxu0 0
    %1246 = vmatprep.subr.bf16.mxu0 0
    %1247 = vmatpush1.bf16.xpose.msra.mxu0 0
    %1248 = vmatprep.subr.bf16.mxu0 0
    %1249 = vmatpush1.bf16.xpose.msra.mxu0 0
    %1250 = vmatprep.subr.bf16.mxu0 0
    %1251 = vmatpush1.bf16.xpose.msra.mxu0 0
    %1252 = vmatprep.subr.bf16.mxu0 0
    %1253 = vmatpush1.bf16.xpose.msra.mxu0 0
    %1254 = vmatprep.subr.bf16.mxu0 0
    %1255 = vmatpush1.bf16.xpose.msra.mxu0 0
    %1256 = vmatprep.subr.bf16.mxu0 0
    %1257 = vmatpush1.bf16.xpose.msra.mxu0 %v1240
    %1258 = vmatprep.subr.bf16.mxu0 0
    %1259 = vmatpush2.bf16.xpose.msra.mxu0 0
    %1260 = vmatprep.subr.bf16.mxu0 0
    %1261 = vmatpush2.bf16.xpose.msra.mxu0 0
    %1262 = vmatprep.subr.bf16.mxu0 0
    %1263 = vmatpush2.bf16.xpose.msra.mxu0 0
    %1264 = vmatprep.subr.bf16.mxu0 0
    %1265 = vmatpush2.bf16.xpose.msra.mxu0 0
    %1266 = vmatprep.subr.bf16.mxu0 0
    %1267 = vmatpush2.bf16.xpose.msra.mxu0 0
    %1268 = vmatprep.subr.bf16.mxu0 0
    %1269 = vmatpush2.bf16.xpose.msra.mxu0 0
    %1270 = vmatprep.subr.bf16.mxu0 0
    %1271 = vmatpush2.bf16.xpose.msra.mxu0 0
    %1272 = vmatprep.subr.bf16.mxu0 0
    %1273 = vmatpush2.bf16.xpose.msra.mxu0 0
    %1274 = vmatprep.mubr.bf16.mxu0 0
    %1275 = vmatmul.mubr.bf16.gmra.mxu0 %v1237
    %v1276 = vpop.f32.mrf.mxu0
    %v1277 = vadd.f32 0.0, %v1276
    %v1278 = vpop.f32.mrf.mxu0
    %v1279 = vpop.f32.mrf.mxu0
    %v1280 = vpop.f32.mrf.mxu0
    %1281 = vdwg.mxu0
    %v1282 = vsel %vm624, %v1227, -inf
    %1283 = vmax.xlane.f32.xlu0 %v1282
    %v1284 = vpop.xlane.xlu0 %1283
    %v1285 = vsel %vm624, %v1277, -inf
    %1286 = vmax.xlane.f32.xlu0 %v1285
    %v1287 = vpop.xlane.xlu0 %1286
    %v1288 = vsub.f32 %v1227, %v1284
    %v1289 = vsub.f32 %v1277, %v1287
    %v1290 = vmul.f32 %v1288, 1.442695
    %v1291 = vpow.pop %v1290
    %v1292 = vmul.f32 %v1289, 1.442695
    %v1293 = vpow.pop %v1292
    %v1294 = vsel %vm624, %v1291, 0.0
    %1295 = vadd.xlane.f32.xlu0 %v1294
    %v1296 = vpop.xlane.xlu0 %1295
    %v1297 = vsel %vm624, %v1293, 0.0
    %1298 = vadd.xlane.f32.xlu0 %v1297
    %v1299 = vpop.xlane.xlu0 %1298
    %v1300 = vrcp.pop %v1296
    %v1301 = vrcp.pop %v1299
    %v1302 = vmul.f32 %v1291, %v1300
    %v1303 = vmul.f32 %v1293, %v1301
    %v1304 = vpack.c.bf16 %v1302, %v1302
    %v1305 = vpack.c.bf16 %v1303, %v1303
    %1306 = vrot.lane.b32.xlu0 %v530, 80
    %v1307 = vpop.permute.xlu0 %1306
    %v1309 = vsel %vm624, %v1304, 0
    %v1312 = vsel %vm652, %v1307, 0
    %1314 = vmatprep.subr.bf16.mxu0 0
    %1315 = vmatpush1.bf16.msra.mxu0 0
    %1316 = vmatprep.subr.bf16.mxu0 0
    %1317 = vmatpush1.bf16.msra.mxu0 0
    %1318 = vmatprep.subr.bf16.mxu0 0
    %1319 = vmatpush1.bf16.msra.mxu0 0
    %1320 = vmatprep.subr.bf16.mxu0 0
    %1321 = vmatpush1.bf16.msra.mxu0 0
    %1322 = vmatprep.subr.bf16.mxu0 0
    %1323 = vmatpush1.bf16.msra.mxu0 0
    %1324 = vmatprep.subr.bf16.mxu0 0
    %1325 = vmatpush1.bf16.msra.mxu0 0
    %1326 = vmatprep.subr.bf16.mxu0 0
    %1327 = vmatpush1.bf16.msra.mxu0 0
    %1328 = vmatprep.subr.bf16.mxu0 0
    %1329 = vmatpush1.bf16.msra.mxu0 %v1312
    %1330 = vmatprep.subr.bf16.mxu0 0
    %1331 = vmatpush2.bf16.msra.mxu0 0
    %1332 = vmatprep.subr.bf16.mxu0 0
    %1333 = vmatpush2.bf16.msra.mxu0 0
    %1334 = vmatprep.subr.bf16.mxu0 0
    %1335 = vmatpush2.bf16.msra.mxu0 0
    %1336 = vmatprep.subr.bf16.mxu0 0
    %1337 = vmatpush2.bf16.msra.mxu0 0
    %1338 = vmatprep.subr.bf16.mxu0 0
    %1339 = vmatpush2.bf16.msra.mxu0 0
    %1340 = vmatprep.subr.bf16.mxu0 0
    %1341 = vmatpush2.bf16.msra.mxu0 0
    %1342 = vmatprep.subr.bf16.mxu0 0
    %1343 = vmatpush2.bf16.msra.mxu0 0
    %1344 = vmatprep.subr.bf16.mxu0 0
    %1345 = vmatpush2.bf16.msra.mxu0 0
    %1346 = vmatprep.mubr.bf16.mxu0 0
    %1347 = vmatmul.mubr.bf16.gmra.mxu0 %v1309
    %v1348 = vpop.f32.mrf.mxu0
    %v1349 = vadd.f32 0.0, %v1348
    %v1350 = vpop.f32.mrf.mxu0
    %v1351 = vpop.f32.mrf.mxu0
    %v1352 = vpop.f32.mrf.mxu0
    %1353 = vdwg.mxu0
    %1354 = vrot.lane.b32.xlu0 %v531, 80
    %v1355 = vpop.permute.xlu0 %1354
    %v1357 = vsel %vm624, %v1305, 0
    %v1360 = vsel %vm652, %v1355, 0
    %1362 = vmatprep.subr.bf16.mxu0 0
    %1363 = vmatpush1.bf16.msra.mxu0 0
    %1364 = vmatprep.subr.bf16.mxu0 0
    %1365 = vmatpush1.bf16.msra.mxu0 0
    %1366 = vmatprep.subr.bf16.mxu0 0
    %1367 = vmatpush1.bf16.msra.mxu0 0
    %1368 = vmatprep.subr.bf16.mxu0 0
    %1369 = vmatpush1.bf16.msra.mxu0 0
    %1370 = vmatprep.subr.bf16.mxu0 0
    %1371 = vmatpush1.bf16.msra.mxu0 0
    %1372 = vmatprep.subr.bf16.mxu0 0
    %1373 = vmatpush1.bf16.msra.mxu0 0
    %1374 = vmatprep.subr.bf16.mxu0 0
    %1375 = vmatpush1.bf16.msra.mxu0 0
    %1376 = vmatprep.subr.bf16.mxu0 0
    %1377 = vmatpush1.bf16.msra.mxu0 %v1360
    %1378 = vmatprep.subr.bf16.mxu0 0
    %1379 = vmatpush2.bf16.msra.mxu0 0
    %1380 = vmatprep.subr.bf16.mxu0 0
    %1381 = vmatpush2.bf16.msra.mxu0 0
    %1382 = vmatprep.subr.bf16.mxu0 0
    %1383 = vmatpush2.bf16.msra.mxu0 0
    %1384 = vmatprep.subr.bf16.mxu0 0
    %1385 = vmatpush2.bf16.msra.mxu0 0
    %1386 = vmatprep.subr.bf16.mxu0 0
    %1387 = vmatpush2.bf16.msra.mxu0 0
    %1388 = vmatprep.subr.bf16.mxu0 0
    %1389 = vmatpush2.bf16.msra.mxu0 0
    %1390 = vmatprep.subr.bf16.mxu0 0
    %1391 = vmatpush2.bf16.msra.mxu0 0
    %1392 = vmatprep.subr.bf16.mxu0 0
    %1393 = vmatpush2.bf16.msra.mxu0 0
    %1394 = vmatprep.mubr.bf16.mxu0 0
    %1395 = vmatmul.mubr.bf16.gmra.mxu0 %v1357
    %v1396 = vpop.f32.mrf.mxu0
    %v1397 = vadd.f32 0.0, %v1396
    %v1398 = vpop.f32.mrf.mxu0
    %v1399 = vpop.f32.mrf.mxu0
    %v1400 = vpop.f32.mrf.mxu0
    %1401 = vdwg.mxu0
    %1402 = vrot.lane.b32.xlu0 %v518, 64
    %v1403 = vpop.permute.xlu0 %1402
    %1404 = vrot.lane.b32.xlu0 %v524, 64
    %v1405 = vpop.permute.xlu0 %1404
    %v1407 = vsel %vm205, %v1403, 0
    %v1410 = vsel %vm205, %v1405, 0
    %1412 = vmatprep.subr.bf16.mxu0 0
    %1413 = vmatpush1.bf16.xpose.msra.mxu0 0
    %1414 = vmatprep.subr.bf16.mxu0 0
    %1415 = vmatpush1.bf16.xpose.msra.mxu0 0
    %1416 = vmatprep.subr.bf16.mxu0 0
    %1417 = vmatpush1.bf16.xpose.msra.mxu0 0
    %1418 = vmatprep.subr.bf16.mxu0 0
    %1419 = vmatpush1.bf16.xpose.msra.mxu0 0
    %1420 = vmatprep.subr.bf16.mxu0 0
    %1421 = vmatpush1.bf16.xpose.msra.mxu0 0
    %1422 = vmatprep.subr.bf16.mxu0 0
    %1423 = vmatpush1.bf16.xpose.msra.mxu0 0
    %1424 = vmatprep.subr.bf16.mxu0 0
    %1425 = vmatpush1.bf16.xpose.msra.mxu0 0
    %1426 = vmatprep.subr.bf16.mxu0 0
    %1427 = vmatpush1.bf16.xpose.msra.mxu0 %v1410
    %1428 = vmatprep.subr.bf16.mxu0 0
    %1429 = vmatpush2.bf16.xpose.msra.mxu0 0
    %1430 = vmatprep.subr.bf16.mxu0 0
    %1431 = vmatpush2.bf16.xpose.msra.mxu0 0
    %1432 = vmatprep.subr.bf16.mxu0 0
    %1433 = vmatpush2.bf16.xpose.msra.mxu0 0
    %1434 = vmatprep.subr.bf16.mxu0 0
    %1435 = vmatpush2.bf16.xpose.msra.mxu0 0
    %1436 = vmatprep.subr.bf16.mxu0 0
    %1437 = vmatpush2.bf16.xpose.msra.mxu0 0
    %1438 = vmatprep.subr.bf16.mxu0 0
    %1439 = vmatpush2.bf16.xpose.msra.mxu0 0
    %1440 = vmatprep.subr.bf16.mxu0 0
    %1441 = vmatpush2.bf16.xpose.msra.mxu0 0
    %1442 = vmatprep.subr.bf16.mxu0 0
    %1443 = vmatpush2.bf16.xpose.msra.mxu0 0
    %1444 = vmatprep.mubr.bf16.mxu0 0
    %1445 = vmatmul.mubr.bf16.gmra.mxu0 %v1407
    %v1446 = vpop.f32.mrf.mxu0
    %v1447 = vadd.f32 0.0, %v1446
    %v1448 = vpop.f32.mrf.mxu0
    %v1449 = vpop.f32.mrf.mxu0
    %v1450 = vpop.f32.mrf.mxu0
    %1451 = vdwg.mxu0
    %1452 = vrot.lane.b32.xlu0 %v519, 64
    %v1453 = vpop.permute.xlu0 %1452
    %1454 = vrot.lane.b32.xlu0 %v525, 64
    %v1455 = vpop.permute.xlu0 %1454
    %v1457 = vsel %vm205, %v1453, 0
    %v1460 = vsel %vm205, %v1455, 0
    %1462 = vmatprep.subr.bf16.mxu0 0
    %1463 = vmatpush1.bf16.xpose.msra.mxu0 0
    %1464 = vmatprep.subr.bf16.mxu0 0
    %1465 = vmatpush1.bf16.xpose.msra.mxu0 0
    %1466 = vmatprep.subr.bf16.mxu0 0
    %1467 = vmatpush1.bf16.xpose.msra.mxu0 0
    %1468 = vmatprep.subr.bf16.mxu0 0
    %1469 = vmatpush1.bf16.xpose.msra.mxu0 0
    %1470 = vmatprep.subr.bf16.mxu0 0
    %1471 = vmatpush1.bf16.xpose.msra.mxu0 0
    %1472 = vmatprep.subr.bf16.mxu0 0
    %1473 = vmatpush1.bf16.xpose.msra.mxu0 0
    %1474 = vmatprep.subr.bf16.mxu0 0
    %1475 = vmatpush1.bf16.xpose.msra.mxu0 0
    %1476 = vmatprep.subr.bf16.mxu0 0
    %1477 = vmatpush1.bf16.xpose.msra.mxu0 %v1460
    %1478 = vmatprep.subr.bf16.mxu0 0
    %1479 = vmatpush2.bf16.xpose.msra.mxu0 0
    %1480 = vmatprep.subr.bf16.mxu0 0
    %1481 = vmatpush2.bf16.xpose.msra.mxu0 0
    %1482 = vmatprep.subr.bf16.mxu0 0
    %1483 = vmatpush2.bf16.xpose.msra.mxu0 0
    %1484 = vmatprep.subr.bf16.mxu0 0
    %1485 = vmatpush2.bf16.xpose.msra.mxu0 0
    %1486 = vmatprep.subr.bf16.mxu0 0
    %1487 = vmatpush2.bf16.xpose.msra.mxu0 0
    %1488 = vmatprep.subr.bf16.mxu0 0
    %1489 = vmatpush2.bf16.xpose.msra.mxu0 0
    %1490 = vmatprep.subr.bf16.mxu0 0
    %1491 = vmatpush2.bf16.xpose.msra.mxu0 0
    %1492 = vmatprep.subr.bf16.mxu0 0
    %1493 = vmatpush2.bf16.xpose.msra.mxu0 0
    %1494 = vmatprep.mubr.bf16.mxu0 0
    %1495 = vmatmul.mubr.bf16.gmra.mxu0 %v1457
    %v1496 = vpop.f32.mrf.mxu0
    %v1497 = vadd.f32 0.0, %v1496
    %v1498 = vpop.f32.mrf.mxu0
    %v1499 = vpop.f32.mrf.mxu0
    %v1500 = vpop.f32.mrf.mxu0
    %1501 = vdwg.mxu0
    %v1502 = vsel %vm624, %v1447, -inf
    %1503 = vmax.xlane.f32.xlu0 %v1502
    %v1504 = vpop.xlane.xlu0 %1503
    %v1505 = vsel %vm624, %v1497, -inf
    %1506 = vmax.xlane.f32.xlu0 %v1505
    %v1507 = vpop.xlane.xlu0 %1506
    %v1508 = vsub.f32 %v1447, %v1504
    %v1509 = vsub.f32 %v1497, %v1507
    %v1510 = vmul.f32 %v1508, 1.442695
    %v1511 = vpow.pop %v1510
    %v1512 = vmul.f32 %v1509, 1.442695
    %v1513 = vpow.pop %v1512
    %v1514 = vsel %vm624, %v1511, 0.0
    %1515 = vadd.xlane.f32.xlu0 %v1514
    %v1516 = vpop.xlane.xlu0 %1515
    %v1517 = vsel %vm624, %v1513, 0.0
    %1518 = vadd.xlane.f32.xlu0 %v1517
    %v1519 = vpop.xlane.xlu0 %1518
    %v1520 = vrcp.pop %v1516
    %v1521 = vrcp.pop %v1519
    %v1522 = vmul.f32 %v1511, %v1520
    %v1523 = vmul.f32 %v1513, %v1521
    %v1524 = vpack.c.bf16 %v1522, %v1522
    %v1525 = vpack.c.bf16 %v1523, %v1523
    %1526 = vrot.lane.b32.xlu0 %v530, 64
    %v1527 = vpop.permute.xlu0 %1526
    %v1529 = vsel %vm624, %v1524, 0
    %v1532 = vsel %vm652, %v1527, 0
    %1534 = vmatprep.subr.bf16.mxu0 0
    %1535 = vmatpush1.bf16.msra.mxu0 0
    %1536 = vmatprep.subr.bf16.mxu0 0
    %1537 = vmatpush1.bf16.msra.mxu0 0
    %1538 = vmatprep.subr.bf16.mxu0 0
    %1539 = vmatpush1.bf16.msra.mxu0 0
    %1540 = vmatprep.subr.bf16.mxu0 0
    %1541 = vmatpush1.bf16.msra.mxu0 0
    %1542 = vmatprep.subr.bf16.mxu0 0
    %1543 = vmatpush1.bf16.msra.mxu0 0
    %1544 = vmatprep.subr.bf16.mxu0 0
    %1545 = vmatpush1.bf16.msra.mxu0 0
    %1546 = vmatprep.subr.bf16.mxu0 0
    %1547 = vmatpush1.bf16.msra.mxu0 0
    %1548 = vmatprep.subr.bf16.mxu0 0
    %1549 = vmatpush1.bf16.msra.mxu0 %v1532
    %1550 = vmatprep.subr.bf16.mxu0 0
    %1551 = vmatpush2.bf16.msra.mxu0 0
    %1552 = vmatprep.subr.bf16.mxu0 0
    %1553 = vmatpush2.bf16.msra.mxu0 0
    %1554 = vmatprep.subr.bf16.mxu0 0
    %1555 = vmatpush2.bf16.msra.mxu0 0
    %1556 = vmatprep.subr.bf16.mxu0 0
    %1557 = vmatpush2.bf16.msra.mxu0 0
    %1558 = vmatprep.subr.bf16.mxu0 0
    %1559 = vmatpush2.bf16.msra.mxu0 0
    %1560 = vmatprep.subr.bf16.mxu0 0
    %1561 = vmatpush2.bf16.msra.mxu0 0
    %1562 = vmatprep.subr.bf16.mxu0 0
    %1563 = vmatpush2.bf16.msra.mxu0 0
    %1564 = vmatprep.subr.bf16.mxu0 0
    %1565 = vmatpush2.bf16.msra.mxu0 0
    %1566 = vmatprep.mubr.bf16.mxu0 0
    %1567 = vmatmul.mubr.bf16.gmra.mxu0 %v1529
    %v1568 = vpop.f32.mrf.mxu0
    %v1569 = vadd.f32 0.0, %v1568
    %v1570 = vpop.f32.mrf.mxu0
    %v1571 = vpop.f32.mrf.mxu0
    %v1572 = vpop.f32.mrf.mxu0
    %1573 = vdwg.mxu0
    %1574 = vrot.lane.b32.xlu0 %v531, 64
    %v1575 = vpop.permute.xlu0 %1574
    %v1577 = vsel %vm624, %v1525, 0
    %v1580 = vsel %vm652, %v1575, 0
    %1582 = vmatprep.subr.bf16.mxu0 0
    %1583 = vmatpush1.bf16.msra.mxu0 0
    %1584 = vmatprep.subr.bf16.mxu0 0
    %1585 = vmatpush1.bf16.msra.mxu0 0
    %1586 = vmatprep.subr.bf16.mxu0 0
    %1587 = vmatpush1.bf16.msra.mxu0 0
    %1588 = vmatprep.subr.bf16.mxu0 0
    %1589 = vmatpush1.bf16.msra.mxu0 0
    %1590 = vmatprep.subr.bf16.mxu0 0
    %1591 = vmatpush1.bf16.msra.mxu0 0
    %1592 = vmatprep.subr.bf16.mxu0 0
    %1593 = vmatpush1.bf16.msra.mxu0 0
    %1594 = vmatprep.subr.bf16.mxu0 0
    %1595 = vmatpush1.bf16.msra.mxu0 0
    %1596 = vmatprep.subr.bf16.mxu0 0
    %1597 = vmatpush1.bf16.msra.mxu0 %v1580
    %1598 = vmatprep.subr.bf16.mxu0 0
    %1599 = vmatpush2.bf16.msra.mxu0 0
    %1600 = vmatprep.subr.bf16.mxu0 0
    %1601 = vmatpush2.bf16.msra.mxu0 0
    %1602 = vmatprep.subr.bf16.mxu0 0
    %1603 = vmatpush2.bf16.msra.mxu0 0
    %1604 = vmatprep.subr.bf16.mxu0 0
    %1605 = vmatpush2.bf16.msra.mxu0 0
    %1606 = vmatprep.subr.bf16.mxu0 0
    %1607 = vmatpush2.bf16.msra.mxu0 0
    %1608 = vmatprep.subr.bf16.mxu0 0
    %1609 = vmatpush2.bf16.msra.mxu0 0
    %1610 = vmatprep.subr.bf16.mxu0 0
    %1611 = vmatpush2.bf16.msra.mxu0 0
    %1612 = vmatprep.subr.bf16.mxu0 0
    %1613 = vmatpush2.bf16.msra.mxu0 0
    %1614 = vmatprep.mubr.bf16.mxu0 0
    %1615 = vmatmul.mubr.bf16.gmra.mxu0 %v1577
    %v1616 = vpop.f32.mrf.mxu0
    %v1617 = vadd.f32 0.0, %v1616
    %v1618 = vpop.f32.mrf.mxu0
    %v1619 = vpop.f32.mrf.mxu0
    %v1620 = vpop.f32.mrf.mxu0
    %1621 = vdwg.mxu0
    %1622 = vrot.lane.b32.xlu0 %v518, 48
    %v1623 = vpop.permute.xlu0 %1622
    %1624 = vrot.lane.b32.xlu0 %v524, 48
    %v1625 = vpop.permute.xlu0 %1624
    %v1627 = vsel %vm205, %v1623, 0
    %v1630 = vsel %vm205, %v1625, 0
    %1632 = vmatprep.subr.bf16.mxu0 0
    %1633 = vmatpush1.bf16.xpose.msra.mxu0 0
    %1634 = vmatprep.subr.bf16.mxu0 0
    %1635 = vmatpush1.bf16.xpose.msra.mxu0 0
    %1636 = vmatprep.subr.bf16.mxu0 0
    %1637 = vmatpush1.bf16.xpose.msra.mxu0 0
    %1638 = vmatprep.subr.bf16.mxu0 0
    %1639 = vmatpush1.bf16.xpose.msra.mxu0 0
    %1640 = vmatprep.subr.bf16.mxu0 0
    %1641 = vmatpush1.bf16.xpose.msra.mxu0 0
    %1642 = vmatprep.subr.bf16.mxu0 0
    %1643 = vmatpush1.bf16.xpose.msra.mxu0 0
    %1644 = vmatprep.subr.bf16.mxu0 0
    %1645 = vmatpush1.bf16.xpose.msra.mxu0 0
    %1646 = vmatprep.subr.bf16.mxu0 0
    %1647 = vmatpush1.bf16.xpose.msra.mxu0 %v1630
    %1648 = vmatprep.subr.bf16.mxu0 0
    %1649 = vmatpush2.bf16.xpose.msra.mxu0 0
    %1650 = vmatprep.subr.bf16.mxu0 0
    %1651 = vmatpush2.bf16.xpose.msra.mxu0 0
    %1652 = vmatprep.subr.bf16.mxu0 0
    %1653 = vmatpush2.bf16.xpose.msra.mxu0 0
    %1654 = vmatprep.subr.bf16.mxu0 0
    %1655 = vmatpush2.bf16.xpose.msra.mxu0 0
    %1656 = vmatprep.subr.bf16.mxu0 0
    %1657 = vmatpush2.bf16.xpose.msra.mxu0 0
    %1658 = vmatprep.subr.bf16.mxu0 0
    %1659 = vmatpush2.bf16.xpose.msra.mxu0 0
    %1660 = vmatprep.subr.bf16.mxu0 0
    %1661 = vmatpush2.bf16.xpose.msra.mxu0 0
    %1662 = vmatprep.subr.bf16.mxu0 0
    %1663 = vmatpush2.bf16.xpose.msra.mxu0 0
    %1664 = vmatprep.mubr.bf16.mxu0 0
    %1665 = vmatmul.mubr.bf16.gmra.mxu0 %v1627
    %v1666 = vpop.f32.mrf.mxu0
    %v1667 = vadd.f32 0.0, %v1666
    %v1668 = vpop.f32.mrf.mxu0
    %v1669 = vpop.f32.mrf.mxu0
    %v1670 = vpop.f32.mrf.mxu0
    %1671 = vdwg.mxu0
    %1672 = vrot.lane.b32.xlu0 %v519, 48
    %v1673 = vpop.permute.xlu0 %1672
    %1674 = vrot.lane.b32.xlu0 %v525, 48
    %v1675 = vpop.permute.xlu0 %1674
    %v1677 = vsel %vm205, %v1673, 0
    %v1680 = vsel %vm205, %v1675, 0
    %1682 = vmatprep.subr.bf16.mxu0 0
    %1683 = vmatpush1.bf16.xpose.msra.mxu0 0
    %1684 = vmatprep.subr.bf16.mxu0 0
    %1685 = vmatpush1.bf16.xpose.msra.mxu0 0
    %1686 = vmatprep.subr.bf16.mxu0 0
    %1687 = vmatpush1.bf16.xpose.msra.mxu0 0
    %1688 = vmatprep.subr.bf16.mxu0 0
    %1689 = vmatpush1.bf16.xpose.msra.mxu0 0
    %1690 = vmatprep.subr.bf16.mxu0 0
    %1691 = vmatpush1.bf16.xpose.msra.mxu0 0
    %1692 = vmatprep.subr.bf16.mxu0 0
    %1693 = vmatpush1.bf16.xpose.msra.mxu0 0
    %1694 = vmatprep.subr.bf16.mxu0 0
    %1695 = vmatpush1.bf16.xpose.msra.mxu0 0
    %1696 = vmatprep.subr.bf16.mxu0 0
    %1697 = vmatpush1.bf16.xpose.msra.mxu0 %v1680
    %1698 = vmatprep.subr.bf16.mxu0 0
    %1699 = vmatpush2.bf16.xpose.msra.mxu0 0
    %1700 = vmatprep.subr.bf16.mxu0 0
    %1701 = vmatpush2.bf16.xpose.msra.mxu0 0
    %1702 = vmatprep.subr.bf16.mxu0 0
    %1703 = vmatpush2.bf16.xpose.msra.mxu0 0
    %1704 = vmatprep.subr.bf16.mxu0 0
    %1705 = vmatpush2.bf16.xpose.msra.mxu0 0
    %1706 = vmatprep.subr.bf16.mxu0 0
    %1707 = vmatpush2.bf16.xpose.msra.mxu0 0
    %1708 = vmatprep.subr.bf16.mxu0 0
    %1709 = vmatpush2.bf16.xpose.msra.mxu0 0
    %1710 = vmatprep.subr.bf16.mxu0 0
    %1711 = vmatpush2.bf16.xpose.msra.mxu0 0
    %1712 = vmatprep.subr.bf16.mxu0 0
    %1713 = vmatpush2.bf16.xpose.msra.mxu0 0
    %1714 = vmatprep.mubr.bf16.mxu0 0
    %1715 = vmatmul.mubr.bf16.gmra.mxu0 %v1677
    %v1716 = vpop.f32.mrf.mxu0
    %v1717 = vadd.f32 0.0, %v1716
    %v1718 = vpop.f32.mrf.mxu0
    %v1719 = vpop.f32.mrf.mxu0
    %v1720 = vpop.f32.mrf.mxu0
    %1721 = vdwg.mxu0
    %v1722 = vsel %vm624, %v1667, -inf
    %1723 = vmax.xlane.f32.xlu0 %v1722
    %v1724 = vpop.xlane.xlu0 %1723
    %v1725 = vsel %vm624, %v1717, -inf
    %1726 = vmax.xlane.f32.xlu0 %v1725
    %v1727 = vpop.xlane.xlu0 %1726
    %v1728 = vsub.f32 %v1667, %v1724
    %v1729 = vsub.f32 %v1717, %v1727
    %v1730 = vmul.f32 %v1728, 1.442695
    %v1731 = vpow.pop %v1730
    %v1732 = vmul.f32 %v1729, 1.442695
    %v1733 = vpow.pop %v1732
    %v1734 = vsel %vm624, %v1731, 0.0
    %1735 = vadd.xlane.f32.xlu0 %v1734
    %v1736 = vpop.xlane.xlu0 %1735
    %v1737 = vsel %vm624, %v1733, 0.0
    %1738 = vadd.xlane.f32.xlu0 %v1737
    %v1739 = vpop.xlane.xlu0 %1738
    %v1740 = vrcp.pop %v1736
    %v1741 = vrcp.pop %v1739
    %v1742 = vmul.f32 %v1731, %v1740
    %v1743 = vmul.f32 %v1733, %v1741
    %v1744 = vpack.c.bf16 %v1742, %v1742
    %v1745 = vpack.c.bf16 %v1743, %v1743
    %1746 = vrot.lane.b32.xlu0 %v530, 48
    %v1747 = vpop.permute.xlu0 %1746
    %v1749 = vsel %vm624, %v1744, 0
    %v1752 = vsel %vm652, %v1747, 0
    %1754 = vmatprep.subr.bf16.mxu0 0
    %1755 = vmatpush1.bf16.msra.mxu0 0
    %1756 = vmatprep.subr.bf16.mxu0 0
    %1757 = vmatpush1.bf16.msra.mxu0 0
    %1758 = vmatprep.subr.bf16.mxu0 0
    %1759 = vmatpush1.bf16.msra.mxu0 0
    %1760 = vmatprep.subr.bf16.mxu0 0
    %1761 = vmatpush1.bf16.msra.mxu0 0
    %1762 = vmatprep.subr.bf16.mxu0 0
    %1763 = vmatpush1.bf16.msra.mxu0 0
    %1764 = vmatprep.subr.bf16.mxu0 0
    %1765 = vmatpush1.bf16.msra.mxu0 0
    %1766 = vmatprep.subr.bf16.mxu0 0
    %1767 = vmatpush1.bf16.msra.mxu0 0
    %1768 = vmatprep.subr.bf16.mxu0 0
    %1769 = vmatpush1.bf16.msra.mxu0 %v1752
    %1770 = vmatprep.subr.bf16.mxu0 0
    %1771 = vmatpush2.bf16.msra.mxu0 0
    %1772 = vmatprep.subr.bf16.mxu0 0
    %1773 = vmatpush2.bf16.msra.mxu0 0
    %1774 = vmatprep.subr.bf16.mxu0 0
    %1775 = vmatpush2.bf16.msra.mxu0 0
    %1776 = vmatprep.subr.bf16.mxu0 0
    %1777 = vmatpush2.bf16.msra.mxu0 0
    %1778 = vmatprep.subr.bf16.mxu0 0
    %1779 = vmatpush2.bf16.msra.mxu0 0
    %1780 = vmatprep.subr.bf16.mxu0 0
    %1781 = vmatpush2.bf16.msra.mxu0 0
    %1782 = vmatprep.subr.bf16.mxu0 0
    %1783 = vmatpush2.bf16.msra.mxu0 0
    %1784 = vmatprep.subr.bf16.mxu0 0
    %1785 = vmatpush2.bf16.msra.mxu0 0
    %1786 = vmatprep.mubr.bf16.mxu0 0
    %1787 = vmatmul.mubr.bf16.gmra.mxu0 %v1749
    %v1788 = vpop.f32.mrf.mxu0
    %v1789 = vadd.f32 0.0, %v1788
    %v1790 = vpop.f32.mrf.mxu0
    %v1791 = vpop.f32.mrf.mxu0
    %v1792 = vpop.f32.mrf.mxu0
    %1793 = vdwg.mxu0
    %1794 = vrot.lane.b32.xlu0 %v531, 48
    %v1795 = vpop.permute.xlu0 %1794
    %v1797 = vsel %vm624, %v1745, 0
    %v1800 = vsel %vm652, %v1795, 0
    %1802 = vmatprep.subr.bf16.mxu0 0
    %1803 = vmatpush1.bf16.msra.mxu0 0
    %1804 = vmatprep.subr.bf16.mxu0 0
    %1805 = vmatpush1.bf16.msra.mxu0 0
    %1806 = vmatprep.subr.bf16.mxu0 0
    %1807 = vmatpush1.bf16.msra.mxu0 0
    %1808 = vmatprep.subr.bf16.mxu0 0
    %1809 = vmatpush1.bf16.msra.mxu0 0
    %1810 = vmatprep.subr.bf16.mxu0 0
    %1811 = vmatpush1.bf16.msra.mxu0 0
    %1812 = vmatprep.subr.bf16.mxu0 0
    %1813 = vmatpush1.bf16.msra.mxu0 0
    %1814 = vmatprep.subr.bf16.mxu0 0
    %1815 = vmatpush1.bf16.msra.mxu0 0
    %1816 = vmatprep.subr.bf16.mxu0 0
    %1817 = vmatpush1.bf16.msra.mxu0 %v1800
    %1818 = vmatprep.subr.bf16.mxu0 0
    %1819 = vmatpush2.bf16.msra.mxu0 0
    %1820 = vmatprep.subr.bf16.mxu0 0
    %1821 = vmatpush2.bf16.msra.mxu0 0
    %1822 = vmatprep.subr.bf16.mxu0 0
    %1823 = vmatpush2.bf16.msra.mxu0 0
    %1824 = vmatprep.subr.bf16.mxu0 0
    %1825 = vmatpush2.bf16.msra.mxu0 0
    %1826 = vmatprep.subr.bf16.mxu0 0
    %1827 = vmatpush2.bf16.msra.mxu0 0
    %1828 = vmatprep.subr.bf16.mxu0 0
    %1829 = vmatpush2.bf16.msra.mxu0 0
    %1830 = vmatprep.subr.bf16.mxu0 0
    %1831 = vmatpush2.bf16.msra.mxu0 0
    %1832 = vmatprep.subr.bf16.mxu0 0
    %1833 = vmatpush2.bf16.msra.mxu0 0
    %1834 = vmatprep.mubr.bf16.mxu0 0
    %1835 = vmatmul.mubr.bf16.gmra.mxu0 %v1797
    %v1836 = vpop.f32.mrf.mxu0
    %v1837 = vadd.f32 0.0, %v1836
    %v1838 = vpop.f32.mrf.mxu0
    %v1839 = vpop.f32.mrf.mxu0
    %v1840 = vpop.f32.mrf.mxu0
    %1841 = vdwg.mxu0
    %1842 = vrot.lane.b32.xlu0 %v518, 32
    %v1843 = vpop.permute.xlu0 %1842
    %1844 = vrot.lane.b32.xlu0 %v524, 32
    %v1845 = vpop.permute.xlu0 %1844
    %v1847 = vsel %vm205, %v1843, 0
    %v1850 = vsel %vm205, %v1845, 0
    %1852 = vmatprep.subr.bf16.mxu0 0
    %1853 = vmatpush1.bf16.xpose.msra.mxu0 0
    %1854 = vmatprep.subr.bf16.mxu0 0
    %1855 = vmatpush1.bf16.xpose.msra.mxu0 0
    %1856 = vmatprep.subr.bf16.mxu0 0
    %1857 = vmatpush1.bf16.xpose.msra.mxu0 0
    %1858 = vmatprep.subr.bf16.mxu0 0
    %1859 = vmatpush1.bf16.xpose.msra.mxu0 0
    %1860 = vmatprep.subr.bf16.mxu0 0
    %1861 = vmatpush1.bf16.xpose.msra.mxu0 0
    %1862 = vmatprep.subr.bf16.mxu0 0
    %1863 = vmatpush1.bf16.xpose.msra.mxu0 0
    %1864 = vmatprep.subr.bf16.mxu0 0
    %1865 = vmatpush1.bf16.xpose.msra.mxu0 0
    %1866 = vmatprep.subr.bf16.mxu0 0
    %1867 = vmatpush1.bf16.xpose.msra.mxu0 %v1850
    %1868 = vmatprep.subr.bf16.mxu0 0
    %1869 = vmatpush2.bf16.xpose.msra.mxu0 0
    %1870 = vmatprep.subr.bf16.mxu0 0
    %1871 = vmatpush2.bf16.xpose.msra.mxu0 0
    %1872 = vmatprep.subr.bf16.mxu0 0
    %1873 = vmatpush2.bf16.xpose.msra.mxu0 0
    %1874 = vmatprep.subr.bf16.mxu0 0
    %1875 = vmatpush2.bf16.xpose.msra.mxu0 0
    %1876 = vmatprep.subr.bf16.mxu0 0
    %1877 = vmatpush2.bf16.xpose.msra.mxu0 0
    %1878 = vmatprep.subr.bf16.mxu0 0
    %1879 = vmatpush2.bf16.xpose.msra.mxu0 0
    %1880 = vmatprep.subr.bf16.mxu0 0
    %1881 = vmatpush2.bf16.xpose.msra.mxu0 0
    %1882 = vmatprep.subr.bf16.mxu0 0
    %1883 = vmatpush2.bf16.xpose.msra.mxu0 0
    %1884 = vmatprep.mubr.bf16.mxu0 0
    %1885 = vmatmul.mubr.bf16.gmra.mxu0 %v1847
    %v1886 = vpop.f32.mrf.mxu0
    %v1887 = vadd.f32 0.0, %v1886
    %v1888 = vpop.f32.mrf.mxu0
    %v1889 = vpop.f32.mrf.mxu0
    %v1890 = vpop.f32.mrf.mxu0
    %1891 = vdwg.mxu0
    %1892 = vrot.lane.b32.xlu0 %v519, 32
    %v1893 = vpop.permute.xlu0 %1892
    %1894 = vrot.lane.b32.xlu0 %v525, 32
    %v1895 = vpop.permute.xlu0 %1894
    %v1897 = vsel %vm205, %v1893, 0
    %v1900 = vsel %vm205, %v1895, 0
    %1902 = vmatprep.subr.bf16.mxu0 0
    %1903 = vmatpush1.bf16.xpose.msra.mxu0 0
    %1904 = vmatprep.subr.bf16.mxu0 0
    %1905 = vmatpush1.bf16.xpose.msra.mxu0 0
    %1906 = vmatprep.subr.bf16.mxu0 0
    %1907 = vmatpush1.bf16.xpose.msra.mxu0 0
    %1908 = vmatprep.subr.bf16.mxu0 0
    %1909 = vmatpush1.bf16.xpose.msra.mxu0 0
    %1910 = vmatprep.subr.bf16.mxu0 0
    %1911 = vmatpush1.bf16.xpose.msra.mxu0 0
    %1912 = vmatprep.subr.bf16.mxu0 0
    %1913 = vmatpush1.bf16.xpose.msra.mxu0 0
    %1914 = vmatprep.subr.bf16.mxu0 0
    %1915 = vmatpush1.bf16.xpose.msra.mxu0 0
    %1916 = vmatprep.subr.bf16.mxu0 0
    %1917 = vmatpush1.bf16.xpose.msra.mxu0 %v1900
    %1918 = vmatprep.subr.bf16.mxu0 0
    %1919 = vmatpush2.bf16.xpose.msra.mxu0 0
    %1920 = vmatprep.subr.bf16.mxu0 0
    %1921 = vmatpush2.bf16.xpose.msra.mxu0 0
    %1922 = vmatprep.subr.bf16.mxu0 0
    %1923 = vmatpush2.bf16.xpose.msra.mxu0 0
    %1924 = vmatprep.subr.bf16.mxu0 0
    %1925 = vmatpush2.bf16.xpose.msra.mxu0 0
    %1926 = vmatprep.subr.bf16.mxu0 0
    %1927 = vmatpush2.bf16.xpose.msra.mxu0 0
    %1928 = vmatprep.subr.bf16.mxu0 0
    %1929 = vmatpush2.bf16.xpose.msra.mxu0 0
    %1930 = vmatprep.subr.bf16.mxu0 0
    %1931 = vmatpush2.bf16.xpose.msra.mxu0 0
    %1932 = vmatprep.subr.bf16.mxu0 0
    %1933 = vmatpush2.bf16.xpose.msra.mxu0 0
    %1934 = vmatprep.mubr.bf16.mxu0 0
    %1935 = vmatmul.mubr.bf16.gmra.mxu0 %v1897
    %v1936 = vpop.f32.mrf.mxu0
    %v1937 = vadd.f32 0.0, %v1936
    %v1938 = vpop.f32.mrf.mxu0
    %v1939 = vpop.f32.mrf.mxu0
    %v1940 = vpop.f32.mrf.mxu0
    %1941 = vdwg.mxu0
    %v1942 = vsel %vm624, %v1887, -inf
    %1943 = vmax.xlane.f32.xlu0 %v1942
    %v1944 = vpop.xlane.xlu0 %1943
    %v1945 = vsel %vm624, %v1937, -inf
    %1946 = vmax.xlane.f32.xlu0 %v1945
    %v1947 = vpop.xlane.xlu0 %1946
    %v1948 = vsub.f32 %v1887, %v1944
    %v1949 = vsub.f32 %v1937, %v1947
    %v1950 = vmul.f32 %v1948, 1.442695
    %v1951 = vpow.pop %v1950
    %v1952 = vmul.f32 %v1949, 1.442695
    %v1953 = vpow.pop %v1952
    %v1954 = vsel %vm624, %v1951, 0.0
    %1955 = vadd.xlane.f32.xlu0 %v1954
    %v1956 = vpop.xlane.xlu0 %1955
    %v1957 = vsel %vm624, %v1953, 0.0
    %1958 = vadd.xlane.f32.xlu0 %v1957
    %v1959 = vpop.xlane.xlu0 %1958
    %v1960 = vrcp.pop %v1956
    %v1961 = vrcp.pop %v1959
    %v1962 = vmul.f32 %v1951, %v1960
    %v1963 = vmul.f32 %v1953, %v1961
    %v1964 = vpack.c.bf16 %v1962, %v1962
    %v1965 = vpack.c.bf16 %v1963, %v1963
    %1966 = vrot.lane.b32.xlu0 %v530, 32
    %v1967 = vpop.permute.xlu0 %1966
    %v1969 = vsel %vm624, %v1964, 0
    %v1972 = vsel %vm652, %v1967, 0
    %1974 = vmatprep.subr.bf16.mxu0 0
    %1975 = vmatpush1.bf16.msra.mxu0 0
    %1976 = vmatprep.subr.bf16.mxu0 0
    %1977 = vmatpush1.bf16.msra.mxu0 0
    %1978 = vmatprep.subr.bf16.mxu0 0
    %1979 = vmatpush1.bf16.msra.mxu0 0
    %1980 = vmatprep.subr.bf16.mxu0 0
    %1981 = vmatpush1.bf16.msra.mxu0 0
    %1982 = vmatprep.subr.bf16.mxu0 0
    %1983 = vmatpush1.bf16.msra.mxu0 0
    %1984 = vmatprep.subr.bf16.mxu0 0
    %1985 = vmatpush1.bf16.msra.mxu0 0
    %1986 = vmatprep.subr.bf16.mxu0 0
    %1987 = vmatpush1.bf16.msra.mxu0 0
    %1988 = vmatprep.subr.bf16.mxu0 0
    %1989 = vmatpush1.bf16.msra.mxu0 %v1972
    %1990 = vmatprep.subr.bf16.mxu0 0
    %1991 = vmatpush2.bf16.msra.mxu0 0
    %1992 = vmatprep.subr.bf16.mxu0 0
    %1993 = vmatpush2.bf16.msra.mxu0 0
    %1994 = vmatprep.subr.bf16.mxu0 0
    %1995 = vmatpush2.bf16.msra.mxu0 0
    %1996 = vmatprep.subr.bf16.mxu0 0
    %1997 = vmatpush2.bf16.msra.mxu0 0
    %1998 = vmatprep.subr.bf16.mxu0 0
    %1999 = vmatpush2.bf16.msra.mxu0 0
    %2000 = vmatprep.subr.bf16.mxu0 0
    %2001 = vmatpush2.bf16.msra.mxu0 0
    %2002 = vmatprep.subr.bf16.mxu0 0
    %2003 = vmatpush2.bf16.msra.mxu0 0
    %2004 = vmatprep.subr.bf16.mxu0 0
    %2005 = vmatpush2.bf16.msra.mxu0 0
    %2006 = vmatprep.mubr.bf16.mxu0 0
    %2007 = vmatmul.mubr.bf16.gmra.mxu0 %v1969
    %v2008 = vpop.f32.mrf.mxu0
    %v2009 = vadd.f32 0.0, %v2008
    %v2010 = vpop.f32.mrf.mxu0
    %v2011 = vpop.f32.mrf.mxu0
    %v2012 = vpop.f32.mrf.mxu0
    %2013 = vdwg.mxu0
    %2014 = vrot.lane.b32.xlu0 %v531, 32
    %v2015 = vpop.permute.xlu0 %2014
    %v2017 = vsel %vm624, %v1965, 0
    %v2020 = vsel %vm652, %v2015, 0
    %2022 = vmatprep.subr.bf16.mxu0 0
    %2023 = vmatpush1.bf16.msra.mxu0 0
    %2024 = vmatprep.subr.bf16.mxu0 0
    %2025 = vmatpush1.bf16.msra.mxu0 0
    %2026 = vmatprep.subr.bf16.mxu0 0
    %2027 = vmatpush1.bf16.msra.mxu0 0
    %2028 = vmatprep.subr.bf16.mxu0 0
    %2029 = vmatpush1.bf16.msra.mxu0 0
    %2030 = vmatprep.subr.bf16.mxu0 0
    %2031 = vmatpush1.bf16.msra.mxu0 0
    %2032 = vmatprep.subr.bf16.mxu0 0
    %2033 = vmatpush1.bf16.msra.mxu0 0
    %2034 = vmatprep.subr.bf16.mxu0 0
    %2035 = vmatpush1.bf16.msra.mxu0 0
    %2036 = vmatprep.subr.bf16.mxu0 0
    %2037 = vmatpush1.bf16.msra.mxu0 %v2020
    %2038 = vmatprep.subr.bf16.mxu0 0
    %2039 = vmatpush2.bf16.msra.mxu0 0
    %2040 = vmatprep.subr.bf16.mxu0 0
    %2041 = vmatpush2.bf16.msra.mxu0 0
    %2042 = vmatprep.subr.bf16.mxu0 0
    %2043 = vmatpush2.bf16.msra.mxu0 0
    %2044 = vmatprep.subr.bf16.mxu0 0
    %2045 = vmatpush2.bf16.msra.mxu0 0
    %2046 = vmatprep.subr.bf16.mxu0 0
    %2047 = vmatpush2.bf16.msra.mxu0 0
    %2048 = vmatprep.subr.bf16.mxu0 0
    %2049 = vmatpush2.bf16.msra.mxu0 0
    %2050 = vmatprep.subr.bf16.mxu0 0
    %2051 = vmatpush2.bf16.msra.mxu0 0
    %2052 = vmatprep.subr.bf16.mxu0 0
    %2053 = vmatpush2.bf16.msra.mxu0 0
    %2054 = vmatprep.mubr.bf16.mxu0 0
    %2055 = vmatmul.mubr.bf16.gmra.mxu0 %v2017
    %v2056 = vpop.f32.mrf.mxu0
    %v2057 = vadd.f32 0.0, %v2056
    %v2058 = vpop.f32.mrf.mxu0
    %v2059 = vpop.f32.mrf.mxu0
    %v2060 = vpop.f32.mrf.mxu0
    %2061 = vdwg.mxu0
    %2062 = vrot.lane.b32.xlu0 %v518, 16
    %v2063 = vpop.permute.xlu0 %2062
    %2064 = vrot.lane.b32.xlu0 %v524, 16
    %v2065 = vpop.permute.xlu0 %2064
    %v2067 = vsel %vm205, %v2063, 0
    %v2070 = vsel %vm205, %v2065, 0
    %2072 = vmatprep.subr.bf16.mxu0 0
    %2073 = vmatpush1.bf16.xpose.msra.mxu0 0
    %2074 = vmatprep.subr.bf16.mxu0 0
    %2075 = vmatpush1.bf16.xpose.msra.mxu0 0
    %2076 = vmatprep.subr.bf16.mxu0 0
    %2077 = vmatpush1.bf16.xpose.msra.mxu0 0
    %2078 = vmatprep.subr.bf16.mxu0 0
    %2079 = vmatpush1.bf16.xpose.msra.mxu0 0
    %2080 = vmatprep.subr.bf16.mxu0 0
    %2081 = vmatpush1.bf16.xpose.msra.mxu0 0
    %2082 = vmatprep.subr.bf16.mxu0 0
    %2083 = vmatpush1.bf16.xpose.msra.mxu0 0
    %2084 = vmatprep.subr.bf16.mxu0 0
    %2085 = vmatpush1.bf16.xpose.msra.mxu0 0
    %2086 = vmatprep.subr.bf16.mxu0 0
    %2087 = vmatpush1.bf16.xpose.msra.mxu0 %v2070
    %2088 = vmatprep.subr.bf16.mxu0 0
    %2089 = vmatpush2.bf16.xpose.msra.mxu0 0
    %2090 = vmatprep.subr.bf16.mxu0 0
    %2091 = vmatpush2.bf16.xpose.msra.mxu0 0
    %2092 = vmatprep.subr.bf16.mxu0 0
    %2093 = vmatpush2.bf16.xpose.msra.mxu0 0
    %2094 = vmatprep.subr.bf16.mxu0 0
    %2095 = vmatpush2.bf16.xpose.msra.mxu0 0
    %2096 = vmatprep.subr.bf16.mxu0 0
    %2097 = vmatpush2.bf16.xpose.msra.mxu0 0
    %2098 = vmatprep.subr.bf16.mxu0 0
    %2099 = vmatpush2.bf16.xpose.msra.mxu0 0
    %2100 = vmatprep.subr.bf16.mxu0 0
    %2101 = vmatpush2.bf16.xpose.msra.mxu0 0
    %2102 = vmatprep.subr.bf16.mxu0 0
    %2103 = vmatpush2.bf16.xpose.msra.mxu0 0
    %2104 = vmatprep.mubr.bf16.mxu0 0
    %2105 = vmatmul.mubr.bf16.gmra.mxu0 %v2067
    %v2106 = vpop.f32.mrf.mxu0
    %v2107 = vadd.f32 0.0, %v2106
    %v2108 = vpop.f32.mrf.mxu0
    %v2109 = vpop.f32.mrf.mxu0
    %v2110 = vpop.f32.mrf.mxu0
    %2111 = vdwg.mxu0
    %2112 = vrot.lane.b32.xlu0 %v519, 16
    %v2113 = vpop.permute.xlu0 %2112
    %2114 = vrot.lane.b32.xlu0 %v525, 16
    %v2115 = vpop.permute.xlu0 %2114
    %v2117 = vsel %vm205, %v2113, 0
    %v2120 = vsel %vm205, %v2115, 0
    %2122 = vmatprep.subr.bf16.mxu0 0
    %2123 = vmatpush1.bf16.xpose.msra.mxu0 0
    %2124 = vmatprep.subr.bf16.mxu0 0
    %2125 = vmatpush1.bf16.xpose.msra.mxu0 0
    %2126 = vmatprep.subr.bf16.mxu0 0
    %2127 = vmatpush1.bf16.xpose.msra.mxu0 0
    %2128 = vmatprep.subr.bf16.mxu0 0
    %2129 = vmatpush1.bf16.xpose.msra.mxu0 0
    %2130 = vmatprep.subr.bf16.mxu0 0
    %2131 = vmatpush1.bf16.xpose.msra.mxu0 0
    %2132 = vmatprep.subr.bf16.mxu0 0
    %2133 = vmatpush1.bf16.xpose.msra.mxu0 0
    %2134 = vmatprep.subr.bf16.mxu0 0
    %2135 = vmatpush1.bf16.xpose.msra.mxu0 0
    %2136 = vmatprep.subr.bf16.mxu0 0
    %2137 = vmatpush1.bf16.xpose.msra.mxu0 %v2120
    %2138 = vmatprep.subr.bf16.mxu0 0
    %2139 = vmatpush2.bf16.xpose.msra.mxu0 0
    %2140 = vmatprep.subr.bf16.mxu0 0
    %2141 = vmatpush2.bf16.xpose.msra.mxu0 0
    %2142 = vmatprep.subr.bf16.mxu0 0
    %2143 = vmatpush2.bf16.xpose.msra.mxu0 0
    %2144 = vmatprep.subr.bf16.mxu0 0
    %2145 = vmatpush2.bf16.xpose.msra.mxu0 0
    %2146 = vmatprep.subr.bf16.mxu0 0
    %2147 = vmatpush2.bf16.xpose.msra.mxu0 0
    %2148 = vmatprep.subr.bf16.mxu0 0
    %2149 = vmatpush2.bf16.xpose.msra.mxu0 0
    %2150 = vmatprep.subr.bf16.mxu0 0
    %2151 = vmatpush2.bf16.xpose.msra.mxu0 0
    %2152 = vmatprep.subr.bf16.mxu0 0
    %2153 = vmatpush2.bf16.xpose.msra.mxu0 0
    %2154 = vmatprep.mubr.bf16.mxu0 0
    %2155 = vmatmul.mubr.bf16.gmra.mxu0 %v2117
    %v2156 = vpop.f32.mrf.mxu0
    %v2157 = vadd.f32 0.0, %v2156
    %v2158 = vpop.f32.mrf.mxu0
    %v2159 = vpop.f32.mrf.mxu0
    %v2160 = vpop.f32.mrf.mxu0
    %2161 = vdwg.mxu0
    %v2162 = vsel %vm624, %v2107, -inf
    %2163 = vmax.xlane.f32.xlu0 %v2162
    %v2164 = vpop.xlane.xlu0 %2163
    %v2165 = vsel %vm624, %v2157, -inf
    %2166 = vmax.xlane.f32.xlu0 %v2165
    %v2167 = vpop.xlane.xlu0 %2166
    %v2168 = vsub.f32 %v2107, %v2164
    %v2169 = vsub.f32 %v2157, %v2167
    %v2170 = vmul.f32 %v2168, 1.442695
    %v2171 = vpow.pop %v2170
    %v2172 = vmul.f32 %v2169, 1.442695
    %v2173 = vpow.pop %v2172
    %v2174 = vsel %vm624, %v2171, 0.0
    %2175 = vadd.xlane.f32.xlu0 %v2174
    %v2176 = vpop.xlane.xlu0 %2175
    %v2177 = vsel %vm624, %v2173, 0.0
    %2178 = vadd.xlane.f32.xlu0 %v2177
    %v2179 = vpop.xlane.xlu0 %2178
    %v2180 = vrcp.pop %v2176
    %v2181 = vrcp.pop %v2179
    %v2182 = vmul.f32 %v2171, %v2180
    %v2183 = vmul.f32 %v2173, %v2181
    %v2184 = vpack.c.bf16 %v2182, %v2182
    %v2185 = vpack.c.bf16 %v2183, %v2183
    %2186 = vrot.lane.b32.xlu0 %v530, 16
    %v2187 = vpop.permute.xlu0 %2186
    %v2189 = vsel %vm624, %v2184, 0
    %v2192 = vsel %vm652, %v2187, 0
    %2194 = vmatprep.subr.bf16.mxu0 0
    %2195 = vmatpush1.bf16.msra.mxu0 0
    %2196 = vmatprep.subr.bf16.mxu0 0
    %2197 = vmatpush1.bf16.msra.mxu0 0
    %2198 = vmatprep.subr.bf16.mxu0 0
    %2199 = vmatpush1.bf16.msra.mxu0 0
    %2200 = vmatprep.subr.bf16.mxu0 0
    %2201 = vmatpush1.bf16.msra.mxu0 0
    %2202 = vmatprep.subr.bf16.mxu0 0
    %2203 = vmatpush1.bf16.msra.mxu0 0
    %2204 = vmatprep.subr.bf16.mxu0 0
    %2205 = vmatpush1.bf16.msra.mxu0 0
    %2206 = vmatprep.subr.bf16.mxu0 0
    %2207 = vmatpush1.bf16.msra.mxu0 0
    %2208 = vmatprep.subr.bf16.mxu0 0
    %2209 = vmatpush1.bf16.msra.mxu0 %v2192
    %2210 = vmatprep.subr.bf16.mxu0 0
    %2211 = vmatpush2.bf16.msra.mxu0 0
    %2212 = vmatprep.subr.bf16.mxu0 0
    %2213 = vmatpush2.bf16.msra.mxu0 0
    %2214 = vmatprep.subr.bf16.mxu0 0
    %2215 = vmatpush2.bf16.msra.mxu0 0
    %2216 = vmatprep.subr.bf16.mxu0 0
    %2217 = vmatpush2.bf16.msra.mxu0 0
    %2218 = vmatprep.subr.bf16.mxu0 0
    %2219 = vmatpush2.bf16.msra.mxu0 0
    %2220 = vmatprep.subr.bf16.mxu0 0
    %2221 = vmatpush2.bf16.msra.mxu0 0
    %2222 = vmatprep.subr.bf16.mxu0 0
    %2223 = vmatpush2.bf16.msra.mxu0 0
    %2224 = vmatprep.subr.bf16.mxu0 0
    %2225 = vmatpush2.bf16.msra.mxu0 0
    %2226 = vmatprep.mubr.bf16.mxu0 0
    %2227 = vmatmul.mubr.bf16.gmra.mxu0 %v2189
    %v2228 = vpop.f32.mrf.mxu0
    %v2229 = vadd.f32 0.0, %v2228
    %v2230 = vpop.f32.mrf.mxu0
    %v2231 = vpop.f32.mrf.mxu0
    %v2232 = vpop.f32.mrf.mxu0
    %2233 = vdwg.mxu0
    %2234 = vrot.lane.b32.xlu0 %v531, 16
    %v2235 = vpop.permute.xlu0 %2234
    %v2237 = vsel %vm624, %v2185, 0
    %v2240 = vsel %vm652, %v2235, 0
    %2242 = vmatprep.subr.bf16.mxu0 0
    %2243 = vmatpush1.bf16.msra.mxu0 0
    %2244 = vmatprep.subr.bf16.mxu0 0
    %2245 = vmatpush1.bf16.msra.mxu0 0
    %2246 = vmatprep.subr.bf16.mxu0 0
    %2247 = vmatpush1.bf16.msra.mxu0 0
    %2248 = vmatprep.subr.bf16.mxu0 0
    %2249 = vmatpush1.bf16.msra.mxu0 0
    %2250 = vmatprep.subr.bf16.mxu0 0
    %2251 = vmatpush1.bf16.msra.mxu0 0
    %2252 = vmatprep.subr.bf16.mxu0 0
    %2253 = vmatpush1.bf16.msra.mxu0 0
    %2254 = vmatprep.subr.bf16.mxu0 0
    %2255 = vmatpush1.bf16.msra.mxu0 0
    %2256 = vmatprep.subr.bf16.mxu0 0
    %2257 = vmatpush1.bf16.msra.mxu0 %v2240
    %2258 = vmatprep.subr.bf16.mxu0 0
    %2259 = vmatpush2.bf16.msra.mxu0 0
    %2260 = vmatprep.subr.bf16.mxu0 0
    %2261 = vmatpush2.bf16.msra.mxu0 0
    %2262 = vmatprep.subr.bf16.mxu0 0
    %2263 = vmatpush2.bf16.msra.mxu0 0
    %2264 = vmatprep.subr.bf16.mxu0 0
    %2265 = vmatpush2.bf16.msra.mxu0 0
    %2266 = vmatprep.subr.bf16.mxu0 0
    %2267 = vmatpush2.bf16.msra.mxu0 0
    %2268 = vmatprep.subr.bf16.mxu0 0
    %2269 = vmatpush2.bf16.msra.mxu0 0
    %2270 = vmatprep.subr.bf16.mxu0 0
    %2271 = vmatpush2.bf16.msra.mxu0 0
    %2272 = vmatprep.subr.bf16.mxu0 0
    %2273 = vmatpush2.bf16.msra.mxu0 0
    %2274 = vmatprep.mubr.bf16.mxu0 0
    %2275 = vmatmul.mubr.bf16.gmra.mxu0 %v2237
    %v2276 = vpop.f32.mrf.mxu0
    %v2277 = vadd.f32 0.0, %v2276
    %v2278 = vpop.f32.mrf.mxu0
    %v2279 = vpop.f32.mrf.mxu0
    %v2280 = vpop.f32.mrf.mxu0
    %2281 = vdwg.mxu0
    %2284 = vrot.lane.b32.xlu0 %v862, 8
    %v2285 = vpop.permute.xlu0 %2284
    %2286 = vrot.lane.b32.xlu0 %v863, 8
    %v2287 = vpop.permute.xlu0 %2286
    %2292 = vrot.lane.b32.xlu0 %v1082, 16
    %v2293 = vpop.permute.xlu0 %2292
    %2294 = vrot.lane.b32.xlu0 %v1083, 16
    %v2295 = vpop.permute.xlu0 %2294
    %2300 = vrot.lane.b32.xlu0 %v1302, 24
    %v2301 = vpop.permute.xlu0 %2300
    %2302 = vrot.lane.b32.xlu0 %v1303, 24
    %v2303 = vpop.permute.xlu0 %2302
    %2308 = vrot.lane.b32.xlu0 %v1522, 32
    %v2309 = vpop.permute.xlu0 %2308
    %2310 = vrot.lane.b32.xlu0 %v1523, 32
    %v2311 = vpop.permute.xlu0 %2310
    %2316 = vrot.lane.b32.xlu0 %v1742, 40
    %v2317 = vpop.permute.xlu0 %2316
    %2318 = vrot.lane.b32.xlu0 %v1743, 40
    %v2319 = vpop.permute.xlu0 %2318
    %2324 = vrot.lane.b32.xlu0 %v1962, 48
    %v2325 = vpop.permute.xlu0 %2324
    %2326 = vrot.lane.b32.xlu0 %v1963, 48
    %v2327 = vpop.permute.xlu0 %2326
    %2332 = vrot.lane.b32.xlu0 %v2182, 56
    %v2333 = vpop.permute.xlu0 %2332
    %2334 = vrot.lane.b32.xlu0 %v2183, 56
    %v2335 = vpop.permute.xlu0 %2334
    %v2338 = vsel %vm624, %v645, %v2285
    %v2339 = vsel %vm624, %v646, %v2287
    %v2340 = vsel %vm205, %v2338, %v2293
    %v2341 = vsel %vm205, %v2339, %v2295
    %vm2342 = vcmask 195584
    %v2343 = vsel %vm2342, %v2340, %v2301
    %v2344 = vsel %vm2342, %v2341, %v2303
    %vm2345 = vcmask 261120
    %v2346 = vsel %vm2345, %v2343, %v2309
    %v2347 = vsel %vm2345, %v2344, %v2311
    %vm2348 = vcmask 326656
    %v2349 = vsel %vm2348, %v2346, %v2317
    %v2350 = vsel %vm2348, %v2347, %v2319
    %vm2351 = vcmask 392192
    %v2352 = vsel %vm2351, %v2349, %v2325
    %v2353 = vsel %vm2351, %v2350, %v2327
    %vm2354 = vcmask 457728
    %v2355 = vsel %vm2354, %v2352, %v2333
    %v2356 = vsel %vm2354, %v2353, %v2335
    %vm2357 = vcmask 523264
    %2358 = vst.msk [vmem:[%s89] sm:$0xff] %vm2357, %v2355
    %2359 = vst.msk [vmem:[%s89 + $0x8] sm:$0xff] %vm2357, %v2356
    %2362 = vrot.lane.b32.xlu0 %v909, 16
    %v2363 = vpop.permute.xlu0 %2362
    %2364 = vrot.lane.b32.xlu0 %v957, 16
    %v2365 = vpop.permute.xlu0 %2364
    %2370 = vrot.lane.b32.xlu0 %v1129, 32
    %v2371 = vpop.permute.xlu0 %2370
    %2372 = vrot.lane.b32.xlu0 %v1177, 32
    %v2373 = vpop.permute.xlu0 %2372
    %2378 = vrot.lane.b32.xlu0 %v1349, 48
    %v2379 = vpop.permute.xlu0 %2378
    %2380 = vrot.lane.b32.xlu0 %v1397, 48
    %v2381 = vpop.permute.xlu0 %2380
    %2386 = vrot.lane.b32.xlu0 %v1569, 64
    %v2387 = vpop.permute.xlu0 %2386
    %2388 = vrot.lane.b32.xlu0 %v1617, 64
    %v2389 = vpop.permute.xlu0 %2388
    %2394 = vrot.lane.b32.xlu0 %v1789, 80
    %v2395 = vpop.permute.xlu0 %2394
    %2396 = vrot.lane.b32.xlu0 %v1837, 80
    %v2397 = vpop.permute.xlu0 %2396
    %2402 = vrot.lane.b32.xlu0 %v2009, 96
    %v2403 = vpop.permute.xlu0 %2402
    %2404 = vrot.lane.b32.xlu0 %v2057, 96
    %v2405 = vpop.permute.xlu0 %2404
    %2410 = vrot.lane.b32.xlu0 %v2229, 112
    %v2411 = vpop.permute.xlu0 %2410
    %2412 = vrot.lane.b32.xlu0 %v2277, 112
    %v2413 = vpop.permute.xlu0 %2412
    %v2416 = vsel %vm205, %v691, %v2363
    %v2417 = vsel %vm205, %v737, %v2365
    %v2418 = vsel %vm2345, %v2416, %v2371
    %v2419 = vsel %vm2345, %v2417, %v2373
    %v2420 = vsel %vm2351, %v2418, %v2379
    %v2421 = vsel %vm2351, %v2419, %v2381
    %v2422 = vsel %vm2357, %v2420, %v2387
    %v2423 = vsel %vm2357, %v2421, %v2389
    %vm2424 = vcmask 654336
    %v2425 = vsel %vm2424, %v2422, %v2395
    %v2426 = vsel %vm2424, %v2423, %v2397
    %vm2427 = vcmask 785408
    %v2428 = vsel %vm2427, %v2425, %v2403
    %v2429 = vsel %vm2427, %v2426, %v2405
    %vm2430 = vcmask 916480
    %v2431 = vsel %vm2430, %v2428, %v2411
    %v2432 = vsel %vm2430, %v2429, %v2413
    %v2433 = vpack.c.bf16 %v2432, %v2431
    %v2434 = vld [vmem:[%s11] sm:$0xf]
    %v2435 = vld [vmem:[%s11 + $0x4] sm:$0xf]
    %v2436 = vld [vmem:[%s11 + $0x8] sm:$0xf]
    %v2437 = vld [vmem:[%s11 + $0xc] sm:$0xf]
    %v2438 = vld [vmem:[%s11 + $0x10] sm:$0xf]
    %v2439 = vld [vmem:[%s11 + $0x14] sm:$0xf]
    %v2440 = vld [vmem:[%s11 + $0x18] sm:$0xf]
    %v2441 = vld [vmem:[%s11 + $0x1c] sm:$0xf]
    %v2442 = vld [vmem:[%s11 + $0x20] sm:$0xf]
    %v2443 = vld [vmem:[%s11 + $0x24] sm:$0xf]
    %v2444 = vld [vmem:[%s11 + $0x28] sm:$0xf]
    %v2445 = vld [vmem:[%s11 + $0x2c] sm:$0xf]
    %v2446 = vld [vmem:[%s11 + $0x30] sm:$0xf]
    %v2447 = vld [vmem:[%s11 + $0x34] sm:$0xf]
    %v2448 = vld [vmem:[%s11 + $0x38] sm:$0xf]
    %v2449 = vld [vmem:[%s11 + $0x3c] sm:$0xf]
    %v2450 = vld [vmem:[%s13] sm:$0x1]
    %v2452 = vlaneseq
    %v2453 = vshrl.u32 %v2452, 7
    %v2454 = vsub.s32 0, %v2453
    %v2455 = vrot.slane %v2450, %v2454
    %v2473 = vunpack.c.l.b16 %v2434
    %v2474 = vunpack.c.l.b16 %v2435
    %v2475 = vunpack.c.l.b16 %v2436
    %v2476 = vunpack.c.l.b16 %v2437
    %v2477 = vunpack.c.l.b16 %v2438
    %v2478 = vunpack.c.l.b16 %v2439
    %v2479 = vunpack.c.l.b16 %v2440
    %v2480 = vunpack.c.l.b16 %v2441
    %v2481 = vunpack.c.l.b16 %v2442
    %v2482 = vunpack.c.l.b16 %v2443
    %v2483 = vunpack.c.l.b16 %v2444
    %v2484 = vunpack.c.l.b16 %v2445
    %v2485 = vunpack.c.l.b16 %v2446
    %v2486 = vunpack.c.l.b16 %v2447
    %v2487 = vunpack.c.l.b16 %v2448
    %v2488 = vunpack.c.l.b16 %v2449
    %v2489 = vpack.c.b16 %v2474, %v2473
    %v2490 = vpack.c.b16 %v2476, %v2475
    %v2491 = vpack.c.b16 %v2478, %v2477
    %v2492 = vpack.c.b16 %v2480, %v2479
    %v2493 = vpack.c.b16 %v2482, %v2481
    %v2494 = vpack.c.b16 %v2484, %v2483
    %v2495 = vpack.c.b16 %v2486, %v2485
    %v2496 = vpack.c.b16 %v2488, %v2487
    %2505 = vmatprep.subr.bf16.mxu0 0
    %2506 = vmatpush1.bf16.msra.mxu0 %v2496
    %2507 = vmatprep.subr.bf16.mxu0 0
    %2508 = vmatpush1.bf16.msra.mxu0 %v2495
    %2509 = vmatprep.subr.bf16.mxu0 0
    %2510 = vmatpush1.bf16.msra.mxu0 %v2494
    %2511 = vmatprep.subr.bf16.mxu0 0
    %2512 = vmatpush1.bf16.msra.mxu0 %v2493
    %2513 = vmatprep.subr.bf16.mxu0 0
    %2514 = vmatpush1.bf16.msra.mxu0 %v2492
    %2515 = vmatprep.subr.bf16.mxu0 0
    %2516 = vmatpush1.bf16.msra.mxu0 %v2491
    %2517 = vmatprep.subr.bf16.mxu0 0
    %2518 = vmatpush1.bf16.msra.mxu0 %v2490
    %2519 = vmatprep.subr.bf16.mxu0 0
    %2520 = vmatpush1.bf16.msra.mxu0 %v2489
    %2521 = vmatprep.subr.bf16.mxu0 0
    %2522 = vmatpush2.bf16.msra.mxu0 0
    %2523 = vmatprep.subr.bf16.mxu0 0
    %2524 = vmatpush2.bf16.msra.mxu0 0
    %2525 = vmatprep.subr.bf16.mxu0 0
    %2526 = vmatpush2.bf16.msra.mxu0 0
    %2527 = vmatprep.subr.bf16.mxu0 0
    %2528 = vmatpush2.bf16.msra.mxu0 0
    %2529 = vmatprep.subr.bf16.mxu0 0
    %2530 = vmatpush2.bf16.msra.mxu0 0
    %2531 = vmatprep.subr.bf16.mxu0 0
    %2532 = vmatpush2.bf16.msra.mxu0 0
    %2533 = vmatprep.subr.bf16.mxu0 0
    %2534 = vmatpush2.bf16.msra.mxu0 0
    %2535 = vmatprep.subr.bf16.mxu0 0
    %2536 = vmatpush2.bf16.msra.mxu0 0
    %2537 = vmatprep.mubr.bf16.mxu0 0
    %2538 = vmatmul.mubr.bf16.gmra.mxu0 %v2433
    %v2539 = vpop.f32.mrf.mxu0
    %v2540 = vadd.f32 %v2455, %v2539
    %v2541 = vpop.f32.mrf.mxu0
    %v2542 = vpop.f32.mrf.mxu0
    %v2543 = vadd.f32 %v2455, %v2542
    %v2544 = vpop.f32.mrf.mxu0
    %2545 = vdwg.mxu0
    %v2546 = vadd.f32 %v244, %v2540
    %v2547 = vadd.f32 %v247, %v2543
    %v2548 = vld [vmem:[%s23] sm:$0x1]
    %v2549 = vld [vmem:[%s25] sm:$0x1]
    %2550 = vadd.xlane.f32.xlu0 %v2546
    %v2551 = vpop.xlane.xlu0 %2550
    %2552 = vadd.xlane.f32.xlu0 %v2547
    %v2553 = vpop.xlane.xlu0 %2552
    %v2554 = vrcp.pop 128.0
    %v2555 = vmul.f32 %v2551, %v2554
    %v2556 = vmul.f32 %v2553, %v2554
    %v2557 = vsub.f32 %v2546, %v2555
    %v2558 = vsub.f32 %v2547, %v2556
    %v2559 = vmul.f32 %v2557, %v2557
    %v2560 = vmul.f32 %v2558, %v2558
    %2561 = vadd.xlane.f32.xlu0 %v2559
    %v2562 = vpop.xlane.xlu0 %2561
    %2563 = vadd.xlane.f32.xlu0 %v2560
    %v2564 = vpop.xlane.xlu0 %2563
    %v2565 = vmul.f32 %v2562, %v2554
    %v2566 = vmul.f32 %v2564, %v2554
    %v2567 = vadd.f32 %v2565, 1e-05
    %v2568 = vadd.f32 %v2566, 1e-05
    %v2569 = vrsqrt.pop %v2567
    %v2570 = vrsqrt.pop %v2568
    %v2571 = vmul.f32 %v2557, %v2569
    %v2572 = vmul.f32 %v2558, %v2570
    %v2574 = vlaneseq
    %v2575 = vshrl.u32 %v2574, 7
    %v2576 = vsub.s32 0, %v2575
    %v2577 = vrot.slane %v2548, %v2576
    %v2579 = vmul.f32 %v2571, %v2577
    %v2580 = vmul.f32 %v2572, %v2577
    %v2582 = vlaneseq
    %v2583 = vshrl.u32 %v2582, 7
    %v2584 = vsub.s32 0, %v2583
    %v2585 = vrot.slane %v2549, %v2584
    %v2587 = vadd.f32 %v2579, %v2585
    %v2588 = vadd.f32 %v2580, %v2585
    %v2589 = vpack.c.bf16 %v2588, %v2587
    %v2590 = vld [vmem:[%s15] sm:$0xf]
    %v2591 = vld [vmem:[%s15 + $0x4] sm:$0xf]
    %v2592 = vld [vmem:[%s15 + $0x8] sm:$0xf]
    %v2593 = vld [vmem:[%s15 + $0xc] sm:$0xf]
    %v2594 = vld [vmem:[%s15 + $0x10] sm:$0xf]
    %v2595 = vld [vmem:[%s15 + $0x14] sm:$0xf]
    %v2596 = vld [vmem:[%s15 + $0x18] sm:$0xf]
    %v2597 = vld [vmem:[%s15 + $0x1c] sm:$0xf]
    %v2598 = vld [vmem:[%s15 + $0x20] sm:$0xf]
    %v2599 = vld [vmem:[%s15 + $0x24] sm:$0xf]
    %v2600 = vld [vmem:[%s15 + $0x28] sm:$0xf]
    %v2601 = vld [vmem:[%s15 + $0x2c] sm:$0xf]
    %v2602 = vld [vmem:[%s15 + $0x30] sm:$0xf]
    %v2603 = vld [vmem:[%s15 + $0x34] sm:$0xf]
    %v2604 = vld [vmem:[%s15 + $0x38] sm:$0xf]
    %v2605 = vld [vmem:[%s15 + $0x3c] sm:$0xf]
    %v2606 = vld [vmem:[%s17] sm:$0x1]
    %v2608 = vlaneseq
    %v2609 = vshrl.u32 %v2608, 7
    %v2610 = vsub.s32 0, %v2609
    %v2611 = vrot.slane %v2606, %v2610
    %v2629 = vunpack.c.l.b16 %v2590
    %v2630 = vunpack.c.l.b16 %v2591
    %v2631 = vunpack.c.l.b16 %v2592
    %v2632 = vunpack.c.l.b16 %v2593
    %v2633 = vunpack.c.l.b16 %v2594
    %v2634 = vunpack.c.l.b16 %v2595
    %v2635 = vunpack.c.l.b16 %v2596
    %v2636 = vunpack.c.l.b16 %v2597
    %v2637 = vunpack.c.l.b16 %v2598
    %v2638 = vunpack.c.l.b16 %v2599
    %v2639 = vunpack.c.l.b16 %v2600
    %v2640 = vunpack.c.l.b16 %v2601
    %v2641 = vunpack.c.l.b16 %v2602
    %v2642 = vunpack.c.l.b16 %v2603
    %v2643 = vunpack.c.l.b16 %v2604
    %v2644 = vunpack.c.l.b16 %v2605
    %v2645 = vpack.c.b16 %v2630, %v2629
    %v2646 = vpack.c.b16 %v2632, %v2631
    %v2647 = vpack.c.b16 %v2634, %v2633
    %v2648 = vpack.c.b16 %v2636, %v2635
    %v2649 = vpack.c.b16 %v2638, %v2637
    %v2650 = vpack.c.b16 %v2640, %v2639
    %v2651 = vpack.c.b16 %v2642, %v2641
    %v2652 = vpack.c.b16 %v2644, %v2643
    %2661 = vmatprep.subr.bf16.mxu0 0
    %2662 = vmatpush1.bf16.msra.mxu0 %v2652
    %2663 = vmatprep.subr.bf16.mxu0 0
    %2664 = vmatpush1.bf16.msra.mxu0 %v2651
    %2665 = vmatprep.subr.bf16.mxu0 0
    %2666 = vmatpush1.bf16.msra.mxu0 %v2650
    %2667 = vmatprep.subr.bf16.mxu0 0
    %2668 = vmatpush1.bf16.msra.mxu0 %v2649
    %2669 = vmatprep.subr.bf16.mxu0 0
    %2670 = vmatpush1.bf16.msra.mxu0 %v2648
    %2671 = vmatprep.subr.bf16.mxu0 0
    %2672 = vmatpush1.bf16.msra.mxu0 %v2647
    %2673 = vmatprep.subr.bf16.mxu0 0
    %2674 = vmatpush1.bf16.msra.mxu0 %v2646
    %2675 = vmatprep.subr.bf16.mxu0 0
    %2676 = vmatpush1.bf16.msra.mxu0 %v2645
    %2677 = vmatprep.subr.bf16.mxu0 0
    %2678 = vmatpush2.bf16.msra.mxu0 0
    %2679 = vmatprep.subr.bf16.mxu0 0
    %2680 = vmatpush2.bf16.msra.mxu0 0
    %2681 = vmatprep.subr.bf16.mxu0 0
    %2682 = vmatpush2.bf16.msra.mxu0 0
    %2683 = vmatprep.subr.bf16.mxu0 0
    %2684 = vmatpush2.bf16.msra.mxu0 0
    %2685 = vmatprep.subr.bf16.mxu0 0
    %2686 = vmatpush2.bf16.msra.mxu0 0
    %2687 = vmatprep.subr.bf16.mxu0 0
    %2688 = vmatpush2.bf16.msra.mxu0 0
    %2689 = vmatprep.subr.bf16.mxu0 0
    %2690 = vmatpush2.bf16.msra.mxu0 0
    %2691 = vmatprep.subr.bf16.mxu0 0
    %2692 = vmatpush2.bf16.msra.mxu0 0
    %2693 = vmatprep.mubr.bf16.mxu0 0
    %2694 = vmatmul.mubr.bf16.gmra.mxu0 %v2589
    %v2695 = vpop.f32.mrf.mxu0
    %v2696 = vadd.f32 %v2611, %v2695
    %v2697 = vpop.f32.mrf.mxu0
    %v2698 = vpop.f32.mrf.mxu0
    %v2699 = vadd.f32 %v2611, %v2698
    %v2700 = vpop.f32.mrf.mxu0
    %2701 = vdwg.mxu0
    %v2702 = vmax.f32 %v2696, 0.0
    %v2703 = vmax.f32 %v2699, 0.0
    %v2704 = vpack.c.bf16 %v2703, %v2702
    %v2705 = vld [vmem:[%s19] sm:$0xf]
    %v2706 = vld [vmem:[%s19 + $0x4] sm:$0xf]
    %v2707 = vld [vmem:[%s19 + $0x8] sm:$0xf]
    %v2708 = vld [vmem:[%s19 + $0xc] sm:$0xf]
    %v2709 = vld [vmem:[%s19 + $0x10] sm:$0xf]
    %v2710 = vld [vmem:[%s19 + $0x14] sm:$0xf]
    %v2711 = vld [vmem:[%s19 + $0x18] sm:$0xf]
    %v2712 = vld [vmem:[%s19 + $0x1c] sm:$0xf]
    %v2713 = vld [vmem:[%s19 + $0x20] sm:$0xf]
    %v2714 = vld [vmem:[%s19 + $0x24] sm:$0xf]
    %v2715 = vld [vmem:[%s19 + $0x28] sm:$0xf]
    %v2716 = vld [vmem:[%s19 + $0x2c] sm:$0xf]
    %v2717 = vld [vmem:[%s19 + $0x30] sm:$0xf]
    %v2718 = vld [vmem:[%s19 + $0x34] sm:$0xf]
    %v2719 = vld [vmem:[%s19 + $0x38] sm:$0xf]
    %v2720 = vld [vmem:[%s19 + $0x3c] sm:$0xf]
    %v2721 = vld [vmem:[%s21] sm:$0x1]
    %v2723 = vlaneseq
    %v2724 = vshrl.u32 %v2723, 7
    %v2725 = vsub.s32 0, %v2724
    %v2726 = vrot.slane %v2721, %v2725
    %v2744 = vunpack.c.l.b16 %v2705
    %v2745 = vunpack.c.l.b16 %v2706
    %v2746 = vunpack.c.l.b16 %v2707
    %v2747 = vunpack.c.l.b16 %v2708
    %v2748 = vunpack.c.l.b16 %v2709
    %v2749 = vunpack.c.l.b16 %v2710
    %v2750 = vunpack.c.l.b16 %v2711
    %v2751 = vunpack.c.l.b16 %v2712
    %v2752 = vunpack.c.l.b16 %v2713
    %v2753 = vunpack.c.l.b16 %v2714
    %v2754 = vunpack.c.l.b16 %v2715
    %v2755 = vunpack.c.l.b16 %v2716
    %v2756 = vunpack.c.l.b16 %v2717
    %v2757 = vunpack.c.l.b16 %v2718
    %v2758 = vunpack.c.l.b16 %v2719
    %v2759 = vunpack.c.l.b16 %v2720
    %v2760 = vpack.c.b16 %v2745, %v2744
    %v2761 = vpack.c.b16 %v2747, %v2746
    %v2762 = vpack.c.b16 %v2749, %v2748
    %v2763 = vpack.c.b16 %v2751, %v2750
    %v2764 = vpack.c.b16 %v2753, %v2752
    %v2765 = vpack.c.b16 %v2755, %v2754
    %v2766 = vpack.c.b16 %v2757, %v2756
    %v2767 = vpack.c.b16 %v2759, %v2758
    %2776 = vmatprep.subr.bf16.mxu0 0
    %2777 = vmatpush1.bf16.msra.mxu0 %v2767
    %2778 = vmatprep.subr.bf16.mxu0 0
    %2779 = vmatpush1.bf16.msra.mxu0 %v2766
    %2780 = vmatprep.subr.bf16.mxu0 0
    %2781 = vmatpush1.bf16.msra.mxu0 %v2765
    %2782 = vmatprep.subr.bf16.mxu0 0
    %2783 = vmatpush1.bf16.msra.mxu0 %v2764
    %2784 = vmatprep.subr.bf16.mxu0 0
    %2785 = vmatpush1.bf16.msra.mxu0 %v2763
    %2786 = vmatprep.subr.bf16.mxu0 0
    %2787 = vmatpush1.bf16.msra.mxu0 %v2762
    %2788 = vmatprep.subr.bf16.mxu0 0
    %2789 = vmatpush1.bf16.msra.mxu0 %v2761
    %2790 = vmatprep.subr.bf16.mxu0 0
    %2791 = vmatpush1.bf16.msra.mxu0 %v2760
    %2792 = vmatprep.subr.bf16.mxu0 0
    %2793 = vmatpush2.bf16.msra.mxu0 0
    %2794 = vmatprep.subr.bf16.mxu0 0
    %2795 = vmatpush2.bf16.msra.mxu0 0
    %2796 = vmatprep.subr.bf16.mxu0 0
    %2797 = vmatpush2.bf16.msra.mxu0 0
    %2798 = vmatprep.subr.bf16.mxu0 0
    %2799 = vmatpush2.bf16.msra.mxu0 0
    %2800 = vmatprep.subr.bf16.mxu0 0
    %2801 = vmatpush2.bf16.msra.mxu0 0
    %2802 = vmatprep.subr.bf16.mxu0 0
    %2803 = vmatpush2.bf16.msra.mxu0 0
    %2804 = vmatprep.subr.bf16.mxu0 0
    %2805 = vmatpush2.bf16.msra.mxu0 0
    %2806 = vmatprep.subr.bf16.mxu0 0
    %2807 = vmatpush2.bf16.msra.mxu0 0
    %2808 = vmatprep.mubr.bf16.mxu0 0
    %2809 = vmatmul.mubr.bf16.gmra.mxu0 %v2704
    %v2810 = vpop.f32.mrf.mxu0
    %v2811 = vadd.f32 %v2726, %v2810
    %v2812 = vpop.f32.mrf.mxu0
    %v2813 = vpop.f32.mrf.mxu0
    %v2814 = vadd.f32 %v2726, %v2813
    %v2815 = vpop.f32.mrf.mxu0
    %2816 = vdwg.mxu0
    %v2817 = vadd.f32 %v2587, %v2811
    %v2818 = vadd.f32 %v2588, %v2814
    %v2819 = vld [vmem:[%s27] sm:$0x1]
    %v2820 = vld [vmem:[%s29] sm:$0x1]
    %2821 = vadd.xlane.f32.xlu0 %v2817
    %v2822 = vpop.xlane.xlu0 %2821
    %2823 = vadd.xlane.f32.xlu0 %v2818
    %v2824 = vpop.xlane.xlu0 %2823
    %v2825 = vmul.f32 %v2822, %v2554
    %v2826 = vmul.f32 %v2824, %v2554
    %v2827 = vsub.f32 %v2817, %v2825
    %v2828 = vsub.f32 %v2818, %v2826
    %v2829 = vmul.f32 %v2827, %v2827
    %v2830 = vmul.f32 %v2828, %v2828
    %2831 = vadd.xlane.f32.xlu0 %v2829
    %v2832 = vpop.xlane.xlu0 %2831
    %2833 = vadd.xlane.f32.xlu0 %v2830
    %v2834 = vpop.xlane.xlu0 %2833
    %v2835 = vmul.f32 %v2832, %v2554
    %v2836 = vmul.f32 %v2834, %v2554
    %v2837 = vadd.f32 %v2835, 1e-05
    %v2838 = vadd.f32 %v2836, 1e-05
    %v2839 = vrsqrt.pop %v2837
    %v2840 = vrsqrt.pop %v2838
    %v2841 = vmul.f32 %v2827, %v2839
    %v2842 = vmul.f32 %v2828, %v2840
    %v2844 = vlaneseq
    %v2845 = vshrl.u32 %v2844, 7
    %v2846 = vsub.s32 0, %v2845
    %v2847 = vrot.slane %v2819, %v2846
    %v2849 = vmul.f32 %v2841, %v2847
    %v2850 = vmul.f32 %v2842, %v2847
    %v2852 = vlaneseq
    %v2853 = vshrl.u32 %v2852, 7
    %v2854 = vsub.s32 0, %v2853
    %v2855 = vrot.slane %v2820, %v2854
    %v2857 = vadd.f32 %v2849, %v2855
    %v2858 = vadd.f32 %v2850, %v2855
    %v2859 = vpack.c.bf16 %v2858, %v2857
    %v2860 = vld [vmem:[%s31] sm:$0xff]
    %v2861 = vld [vmem:[%s31 + $0x8] sm:$0xf]
    %v2862 = vld [vmem:[%s31 + $0xc] sm:$0xff]
    %v2863 = vld [vmem:[%s31 + $0x14] sm:$0xf]
    %v2864 = vld [vmem:[%s31 + $0x18] sm:$0xff]
    %v2865 = vld [vmem:[%s31 + $0x20] sm:$0xf]
    %v2866 = vld [vmem:[%s31 + $0x24] sm:$0xff]
    %v2867 = vld [vmem:[%s31 + $0x2c] sm:$0xf]
    %v2868 = vld [vmem:[%s31 + $0x30] sm:$0xff]
    %v2869 = vld [vmem:[%s31 + $0x38] sm:$0xf]
    %v2870 = vld [vmem:[%s31 + $0x3c] sm:$0xff]
    %v2871 = vld [vmem:[%s31 + $0x44] sm:$0xf]
    %v2872 = vld [vmem:[%s31 + $0x48] sm:$0xff]
    %v2873 = vld [vmem:[%s31 + $0x50] sm:$0xf]
    %v2874 = vld [vmem:[%s31 + $0x54] sm:$0xff]
    %v2875 = vld [vmem:[%s31 + $0x5c] sm:$0xf]
    %v2876 = vld [vmem:[%s31 + $0x60] sm:$0xff]
    %v2877 = vld [vmem:[%s31 + $0x68] sm:$0xf]
    %v2878 = vld [vmem:[%s31 + $0x6c] sm:$0xff]
    %v2879 = vld [vmem:[%s31 + $0x74] sm:$0xf]
    %v2880 = vld [vmem:[%s31 + $0x78] sm:$0xff]
    %v2881 = vld [vmem:[%s31 + $0x80] sm:$0xf]
    %v2882 = vld [vmem:[%s31 + $0x84] sm:$0xff]
    %v2883 = vld [vmem:[%s31 + $0x8c] sm:$0xf]
    %v2884 = vld [vmem:[%s31 + $0x90] sm:$0xff]
    %v2885 = vld [vmem:[%s31 + $0x98] sm:$0xf]
    %v2886 = vld [vmem:[%s31 + $0x9c] sm:$0xff]
    %v2887 = vld [vmem:[%s31 + $0xa4] sm:$0xf]
    %v2888 = vld [vmem:[%s31 + $0xa8] sm:$0xff]
    %v2889 = vld [vmem:[%s31 + $0xb0] sm:$0xf]
    %v2890 = vld [vmem:[%s31 + $0xb4] sm:$0xff]
    %v2891 = vld [vmem:[%s31 + $0xbc] sm:$0xf]
    %v2892 = vld [vmem:[%s33] sm:$0x7]
    %v2894 = vlaneseq
    %v2895 = vshrl.u32 %v2894, 7
    %v2896 = vsub.s32 0, %v2895
    %v2897 = vrot.slane %v2892, %v2896
    %v2898 = vlaneseq
    %v2899 = vshrl.u32 %v2898, 7
    %v2900 = vsub.s32 1, %v2899
    %v2901 = vrot.slane %v2892, %v2900
    %v2902 = vlaneseq
    %v2903 = vshrl.u32 %v2902, 7
    %v2904 = vsub.s32 2, %v2903
    %v2905 = vrot.slane %v2892, %v2904
    %v2941 = vunpack.c.l.b16 %v2860
    %v2942 = vunpack.c.h.b16 %v2860
    %v2943 = vunpack.c.l.b16 %v2861
    %v2944 = vunpack.c.l.b16 %v2862
    %v2945 = vunpack.c.h.b16 %v2862
    %v2946 = vunpack.c.l.b16 %v2863
    %v2947 = vunpack.c.l.b16 %v2864
    %v2948 = vunpack.c.h.b16 %v2864
    %v2949 = vunpack.c.l.b16 %v2865
    %v2950 = vunpack.c.l.b16 %v2866
    %v2951 = vunpack.c.h.b16 %v2866
    %v2952 = vunpack.c.l.b16 %v2867
    %v2953 = vunpack.c.l.b16 %v2868
    %v2954 = vunpack.c.h.b16 %v2868
    %v2955 = vunpack.c.l.b16 %v2869
    %v2956 = vunpack.c.l.b16 %v2870
    %v2957 = vunpack.c.h.b16 %v2870
    %v2958 = vunpack.c.l.b16 %v2871
    %v2959 = vunpack.c.l.b16 %v2872
    %v2960 = vunpack.c.h.b16 %v2872
    %v2961 = vunpack.c.l.b16 %v2873
    %v2962 = vunpack.c.l.b16 %v2874
    %v2963 = vunpack.c.h.b16 %v2874
    %v2964 = vunpack.c.l.b16 %v2875
    %v2965 = vunpack.c.l.b16 %v2876
    %v2966 = vunpack.c.h.b16 %v2876
    %v2967 = vunpack.c.l.b16 %v2877
    %v2968 = vunpack.c.l.b16 %v2878
    %v2969 = vunpack.c.h.b16 %v2878
    %v2970 = vunpack.c.l.b16 %v2879
    %v2971 = vunpack.c.l.b16 %v2880
    %v2972 = vunpack.c.h.b16 %v2880
    %v2973 = vunpack.c.l.b16 %v2881
    %v2974 = vunpack.c.l.b16 %v2882
    %v2975 = vunpack.c.h.b16 %v2882
    %v2976 = vunpack.c.l.b16 %v2883
    %v2977 = vunpack.c.l.b16 %v2884
    %v2978 = vunpack.c.h.b16 %v2884
    %v2979 = vunpack.c.l.b16 %v2885
    %v2980 = vunpack.c.l.b16 %v2886
    %v2981 = vunpack.c.h.b16 %v2886
    %v2982 = vunpack.c.l.b16 %v2887
    %v2983 = vunpack.c.l.b16 %v2888
    %v2984 = vunpack.c.h.b16 %v2888
    %v2985 = vunpack.c.l.b16 %v2889
    %v2986 = vunpack.c.l.b16 %v2890
    %v2987 = vunpack.c.h.b16 %v2890
    %v2988 = vunpack.c.l.b16 %v2891
    %v2989 = vpack.c.b16 %v2944, %v2941
    %v2990 = vpack.c.b16 %v2945, %v2942
    %v2991 = vpack.c.b16 %v2946, %v2943
    %v2992 = vpack.c.b16 %v2950, %v2947
    %v2993 = vpack.c.b16 %v2951, %v2948
    %v2994 = vpack.c.b16 %v2952, %v2949
    %v2995 = vpack.c.b16 %v2956, %v2953
    %v2996 = vpack.c.b16 %v2957, %v2954
    %v2997 = vpack.c.b16 %v2958, %v2955
    %v2998 = vpack.c.b16 %v2962, %v2959
    %v2999 = vpack.c.b16 %v2963, %v2960
    %v3000 = vpack.c.b16 %v2964, %v2961
    %v3001 = vpack.c.b16 %v2968, %v2965
    %v3002 = vpack.c.b16 %v2969, %v2966
    %v3003 = vpack.c.b16 %v2970, %v2967
    %v3004 = vpack.c.b16 %v2974, %v2971
    %v3005 = vpack.c.b16 %v2975, %v2972
    %v3006 = vpack.c.b16 %v2976, %v2973
    %v3007 = vpack.c.b16 %v2980, %v2977
    %v3008 = vpack.c.b16 %v2981, %v2978
    %v3009 = vpack.c.b16 %v2982, %v2979
    %v3010 = vpack.c.b16 %v2986, %v2983
    %v3011 = vpack.c.b16 %v2987, %v2984
    %v3012 = vpack.c.b16 %v2988, %v2985
    %3037 = vmatprep.subr.bf16.mxu0 %v3011
    %3038 = vmatpush1.bf16.msra.mxu0 %v3010
    %3039 = vmatprep.subr.bf16.mxu0 %v3008
    %3040 = vmatpush1.bf16.msra.mxu0 %v3007
    %3041 = vmatprep.subr.bf16.mxu0 %v3005
    %3042 = vmatpush1.bf16.msra.mxu0 %v3004
    %3043 = vmatprep.subr.bf16.mxu0 %v3002
    %3044 = vmatpush1.bf16.msra.mxu0 %v3001
    %3045 = vmatprep.subr.bf16.mxu0 %v2999
    %3046 = vmatpush1.bf16.msra.mxu0 %v2998
    %3047 = vmatprep.subr.bf16.mxu0 %v2996
    %3048 = vmatpush1.bf16.msra.mxu0 %v2995
    %3049 = vmatprep.subr.bf16.mxu0 %v2993
    %3050 = vmatpush1.bf16.msra.mxu0 %v2992
    %3051 = vmatprep.subr.bf16.mxu0 %v2990
    %3052 = vmatpush1.bf16.msra.mxu0 %v2989
    %3053 = vmatprep.subr.bf16.mxu0 0
    %3054 = vmatpush2.bf16.msra.mxu0 0
    %3055 = vmatprep.subr.bf16.mxu0 0
    %3056 = vmatpush2.bf16.msra.mxu0 0
    %3057 = vmatprep.subr.bf16.mxu0 0
    %3058 = vmatpush2.bf16.msra.mxu0 0
    %3059 = vmatprep.subr.bf16.mxu0 0
    %3060 = vmatpush2.bf16.msra.mxu0 0
    %3061 = vmatprep.subr.bf16.mxu0 0
    %3062 = vmatpush2.bf16.msra.mxu0 0
    %3063 = vmatprep.subr.bf16.mxu0 0
    %3064 = vmatpush2.bf16.msra.mxu0 0
    %3065 = vmatprep.subr.bf16.mxu0 0
    %3066 = vmatpush2.bf16.msra.mxu0 0
    %3067 = vmatprep.subr.bf16.mxu0 0
    %3068 = vmatpush2.bf16.msra.mxu0 0
    %3069 = vmatprep.mubr.bf16.mxu0 0
    %3070 = vmatmul.mubr.bf16.gmra.mxu0 %v2859
    %v3071 = vpop.f32.mrf.mxu0
    %v3072 = vadd.f32 %v2897, %v3071
    %v3073 = vpop.f32.mrf.mxu0
    %v3074 = vadd.f32 %v2901, %v3073
    %v3075 = vpop.f32.mrf.mxu0
    %v3076 = vadd.f32 %v2897, %v3075
    %v3077 = vpop.f32.mrf.mxu0
    %v3078 = vadd.f32 %v2901, %v3077
    %3079 = vdwg.mxu0
    %3080 = vmatprep.subr.bf16.mxu0 0
    %3081 = vmatpush1.bf16.msra.mxu0 %v3012
    %3082 = vmatprep.subr.bf16.mxu0 0
    %3083 = vmatpush1.bf16.msra.mxu0 %v3009
    %3084 = vmatprep.subr.bf16.mxu0 0
    %3085 = vmatpush1.bf16.msra.mxu0 %v3006
    %3086 = vmatprep.subr.bf16.mxu0 0
    %3087 = vmatpush1.bf16.msra.mxu0 %v3003
    %3088 = vmatprep.subr.bf16.mxu0 0
    %3089 = vmatpush1.bf16.msra.mxu0 %v3000
    %3090 = vmatprep.subr.bf16.mxu0 0
    %3091 = vmatpush1.bf16.msra.mxu0 %v2997
    %3092 = vmatprep.subr.bf16.mxu0 0
    %3093 = vmatpush1.bf16.msra.mxu0 %v2994
    %3094 = vmatprep.subr.bf16.mxu0 0
    %3095 = vmatpush1.bf16.msra.mxu0 %v2991
    %3096 = vmatprep.subr.bf16.mxu0 0
    %3097 = vmatpush2.bf16.msra.mxu0 0
    %3098 = vmatprep.subr.bf16.mxu0 0
    %3099 = vmatpush2.bf16.msra.mxu0 0
    %3100 = vmatprep.subr.bf16.mxu0 0
    %3101 = vmatpush2.bf16.msra.mxu0 0
    %3102 = vmatprep.subr.bf16.mxu0 0
    %3103 = vmatpush2.bf16.msra.mxu0 0
    %3104 = vmatprep.subr.bf16.mxu0 0
    %3105 = vmatpush2.bf16.msra.mxu0 0
    %3106 = vmatprep.subr.bf16.mxu0 0
    %3107 = vmatpush2.bf16.msra.mxu0 0
    %3108 = vmatprep.subr.bf16.mxu0 0
    %3109 = vmatpush2.bf16.msra.mxu0 0
    %3110 = vmatprep.subr.bf16.mxu0 0
    %3111 = vmatpush2.bf16.msra.mxu0 0
    %3112 = vmatprep.mubr.bf16.mxu0 0
    %3113 = vmatmul.mubr.bf16.gmra.mxu0 %v2859
    %v3114 = vpop.f32.mrf.mxu0
    %v3115 = vadd.f32 %v2905, %v3114
    %v3116 = vpop.f32.mrf.mxu0
    %v3117 = vpop.f32.mrf.mxu0
    %v3118 = vadd.f32 %v2905, %v3117
    %v3119 = vpop.f32.mrf.mxu0
    %3120 = vdwg.mxu0
    %v3121 = vmul.f32 %v3072, 0.25
    %v3122 = vmul.f32 %v3076, 0.25
    %v3123 = vpack.c.bf16 %v3122, %v3121
    %v3125 = vunpack.c.l.b16 %v3123
    %v3126 = vunpack.c.h.b16 %v3123
    %v3127 = vpack.c.b16 %v3125, %v3125
    %v3128 = vpack.c.b16 %v3126, %v3126
    %v3129 = vpack.c.bf16 %v3078, %v3074
    %v3131 = vunpack.c.l.b16 %v3129
    %v3132 = vunpack.c.h.b16 %v3129
    %v3133 = vpack.c.b16 %v3131, %v3131
    %v3134 = vpack.c.b16 %v3132, %v3132
    %v3135 = vpack.c.bf16 %v3118, %v3115
    %v3137 = vunpack.c.l.b16 %v3135
    %v3138 = vunpack.c.h.b16 %v3135
    %v3139 = vpack.c.b16 %v3137, %v3137
    %v3140 = vpack.c.b16 %v3138, %v3138
    %v3142 = vsel %vm205, %v3127, 0
    %v3145 = vsel %vm205, %v3133, 0
    %3147 = vmatprep.subr.bf16.mxu0 0
    %3148 = vmatpush1.bf16.xpose.msra.mxu0 0
    %3149 = vmatprep.subr.bf16.mxu0 0
    %3150 = vmatpush1.bf16.xpose.msra.mxu0 0
    %3151 = vmatprep.subr.bf16.mxu0 0
    %3152 = vmatpush1.bf16.xpose.msra.mxu0 0
    %3153 = vmatprep.subr.bf16.mxu0 0
    %3154 = vmatpush1.bf16.xpose.msra.mxu0 0
    %3155 = vmatprep.subr.bf16.mxu0 0
    %3156 = vmatpush1.bf16.xpose.msra.mxu0 0
    %3157 = vmatprep.subr.bf16.mxu0 0
    %3158 = vmatpush1.bf16.xpose.msra.mxu0 0
    %3159 = vmatprep.subr.bf16.mxu0 0
    %3160 = vmatpush1.bf16.xpose.msra.mxu0 0
    %3161 = vmatprep.subr.bf16.mxu0 0
    %3162 = vmatpush1.bf16.xpose.msra.mxu0 %v3145
    %3163 = vmatprep.subr.bf16.mxu0 0
    %3164 = vmatpush2.bf16.xpose.msra.mxu0 0
    %3165 = vmatprep.subr.bf16.mxu0 0
    %3166 = vmatpush2.bf16.xpose.msra.mxu0 0
    %3167 = vmatprep.subr.bf16.mxu0 0
    %3168 = vmatpush2.bf16.xpose.msra.mxu0 0
    %3169 = vmatprep.subr.bf16.mxu0 0
    %3170 = vmatpush2.bf16.xpose.msra.mxu0 0
    %3171 = vmatprep.subr.bf16.mxu0 0
    %3172 = vmatpush2.bf16.xpose.msra.mxu0 0
    %3173 = vmatprep.subr.bf16.mxu0 0
    %3174 = vmatpush2.bf16.xpose.msra.mxu0 0
    %3175 = vmatprep.subr.bf16.mxu0 0
    %3176 = vmatpush2.bf16.xpose.msra.mxu0 0
    %3177 = vmatprep.subr.bf16.mxu0 0
    %3178 = vmatpush2.bf16.xpose.msra.mxu0 0
    %3179 = vmatprep.mubr.bf16.mxu0 0
    %3180 = vmatmul.mubr.bf16.gmra.mxu0 %v3142
    %v3181 = vpop.f32.mrf.mxu0
    %v3182 = vadd.f32 0.0, %v3181
    %v3183 = vpop.f32.mrf.mxu0
    %v3184 = vpop.f32.mrf.mxu0
    %v3185 = vpop.f32.mrf.mxu0
    %3186 = vdwg.mxu0
    %v3188 = vsel %vm205, %v3128, 0
    %v3191 = vsel %vm205, %v3134, 0
    %3193 = vmatprep.subr.bf16.mxu0 0
    %3194 = vmatpush1.bf16.xpose.msra.mxu0 0
    %3195 = vmatprep.subr.bf16.mxu0 0
    %3196 = vmatpush1.bf16.xpose.msra.mxu0 0
    %3197 = vmatprep.subr.bf16.mxu0 0
    %3198 = vmatpush1.bf16.xpose.msra.mxu0 0
    %3199 = vmatprep.subr.bf16.mxu0 0
    %3200 = vmatpush1.bf16.xpose.msra.mxu0 0
    %3201 = vmatprep.subr.bf16.mxu0 0
    %3202 = vmatpush1.bf16.xpose.msra.mxu0 0
    %3203 = vmatprep.subr.bf16.mxu0 0
    %3204 = vmatpush1.bf16.xpose.msra.mxu0 0
    %3205 = vmatprep.subr.bf16.mxu0 0
    %3206 = vmatpush1.bf16.xpose.msra.mxu0 0
    %3207 = vmatprep.subr.bf16.mxu0 0
    %3208 = vmatpush1.bf16.xpose.msra.mxu0 %v3191
    %3209 = vmatprep.subr.bf16.mxu0 0
    %3210 = vmatpush2.bf16.xpose.msra.mxu0 0
    %3211 = vmatprep.subr.bf16.mxu0 0
    %3212 = vmatpush2.bf16.xpose.msra.mxu0 0
    %3213 = vmatprep.subr.bf16.mxu0 0
    %3214 = vmatpush2.bf16.xpose.msra.mxu0 0
    %3215 = vmatprep.subr.bf16.mxu0 0
    %3216 = vmatpush2.bf16.xpose.msra.mxu0 0
    %3217 = vmatprep.subr.bf16.mxu0 0
    %3218 = vmatpush2.bf16.xpose.msra.mxu0 0
    %3219 = vmatprep.subr.bf16.mxu0 0
    %3220 = vmatpush2.bf16.xpose.msra.mxu0 0
    %3221 = vmatprep.subr.bf16.mxu0 0
    %3222 = vmatpush2.bf16.xpose.msra.mxu0 0
    %3223 = vmatprep.subr.bf16.mxu0 0
    %3224 = vmatpush2.bf16.xpose.msra.mxu0 0
    %3225 = vmatprep.mubr.bf16.mxu0 0
    %3226 = vmatmul.mubr.bf16.gmra.mxu0 %v3188
    %v3227 = vpop.f32.mrf.mxu0
    %v3228 = vadd.f32 0.0, %v3227
    %v3229 = vpop.f32.mrf.mxu0
    %v3230 = vpop.f32.mrf.mxu0
    %v3231 = vpop.f32.mrf.mxu0
    %3232 = vdwg.mxu0
    %v3233 = vsel %vm624, %v3182, -inf
    %3234 = vmax.xlane.f32.xlu0 %v3233
    %v3235 = vpop.xlane.xlu0 %3234
    %v3236 = vsel %vm624, %v3228, -inf
    %3237 = vmax.xlane.f32.xlu0 %v3236
    %v3238 = vpop.xlane.xlu0 %3237
    %v3239 = vsub.f32 %v3182, %v3235
    %v3240 = vsub.f32 %v3228, %v3238
    %v3241 = vmul.f32 %v3239, 1.442695
    %v3242 = vpow.pop %v3241
    %v3243 = vmul.f32 %v3240, 1.442695
    %v3244 = vpow.pop %v3243
    %v3245 = vsel %vm624, %v3242, 0.0
    %3246 = vadd.xlane.f32.xlu0 %v3245
    %v3247 = vpop.xlane.xlu0 %3246
    %v3248 = vsel %vm624, %v3244, 0.0
    %3249 = vadd.xlane.f32.xlu0 %v3248
    %v3250 = vpop.xlane.xlu0 %3249
    %v3251 = vrcp.pop %v3247
    %v3252 = vrcp.pop %v3250
    %v3253 = vmul.f32 %v3242, %v3251
    %v3254 = vmul.f32 %v3244, %v3252
    %v3255 = vpack.c.bf16 %v3253, %v3253
    %v3256 = vpack.c.bf16 %v3254, %v3254
    %v3258 = vsel %vm624, %v3255, 0
    %v3261 = vsel %vm652, %v3139, 0
    %3263 = vmatprep.subr.bf16.mxu0 0
    %3264 = vmatpush1.bf16.msra.mxu0 0
    %3265 = vmatprep.subr.bf16.mxu0 0
    %3266 = vmatpush1.bf16.msra.mxu0 0
    %3267 = vmatprep.subr.bf16.mxu0 0
    %3268 = vmatpush1.bf16.msra.mxu0 0
    %3269 = vmatprep.subr.bf16.mxu0 0
    %3270 = vmatpush1.bf16.msra.mxu0 0
    %3271 = vmatprep.subr.bf16.mxu0 0
    %3272 = vmatpush1.bf16.msra.mxu0 0
    %3273 = vmatprep.subr.bf16.mxu0 0
    %3274 = vmatpush1.bf16.msra.mxu0 0
    %3275 = vmatprep.subr.bf16.mxu0 0
    %3276 = vmatpush1.bf16.msra.mxu0 0
    %3277 = vmatprep.subr.bf16.mxu0 0
    %3278 = vmatpush1.bf16.msra.mxu0 %v3261
    %3279 = vmatprep.subr.bf16.mxu0 0
    %3280 = vmatpush2.bf16.msra.mxu0 0
    %3281 = vmatprep.subr.bf16.mxu0 0
    %3282 = vmatpush2.bf16.msra.mxu0 0
    %3283 = vmatprep.subr.bf16.mxu0 0
    %3284 = vmatpush2.bf16.msra.mxu0 0
    %3285 = vmatprep.subr.bf16.mxu0 0
    %3286 = vmatpush2.bf16.msra.mxu0 0
    %3287 = vmatprep.subr.bf16.mxu0 0
    %3288 = vmatpush2.bf16.msra.mxu0 0
    %3289 = vmatprep.subr.bf16.mxu0 0
    %3290 = vmatpush2.bf16.msra.mxu0 0
    %3291 = vmatprep.subr.bf16.mxu0 0
    %3292 = vmatpush2.bf16.msra.mxu0 0
    %3293 = vmatprep.subr.bf16.mxu0 0
    %3294 = vmatpush2.bf16.msra.mxu0 0
    %3295 = vmatprep.mubr.bf16.mxu0 0
    %3296 = vmatmul.mubr.bf16.gmra.mxu0 %v3258
    %v3297 = vpop.f32.mrf.mxu0
    %v3298 = vadd.f32 0.0, %v3297
    %v3299 = vpop.f32.mrf.mxu0
    %v3300 = vpop.f32.mrf.mxu0
    %v3301 = vpop.f32.mrf.mxu0
    %3302 = vdwg.mxu0
    %v3304 = vsel %vm624, %v3256, 0
    %v3307 = vsel %vm652, %v3140, 0
    %3309 = vmatprep.subr.bf16.mxu0 0
    %3310 = vmatpush1.bf16.msra.mxu0 0
    %3311 = vmatprep.subr.bf16.mxu0 0
    %3312 = vmatpush1.bf16.msra.mxu0 0
    %3313 = vmatprep.subr.bf16.mxu0 0
    %3314 = vmatpush1.bf16.msra.mxu0 0
    %3315 = vmatprep.subr.bf16.mxu0 0
    %3316 = vmatpush1.bf16.msra.mxu0 0
    %3317 = vmatprep.subr.bf16.mxu0 0
    %3318 = vmatpush1.bf16.msra.mxu0 0
    %3319 = vmatprep.subr.bf16.mxu0 0
    %3320 = vmatpush1.bf16.msra.mxu0 0
    %3321 = vmatprep.subr.bf16.mxu0 0
    %3322 = vmatpush1.bf16.msra.mxu0 0
    %3323 = vmatprep.subr.bf16.mxu0 0
    %3324 = vmatpush1.bf16.msra.mxu0 %v3307
    %3325 = vmatprep.subr.bf16.mxu0 0
    %3326 = vmatpush2.bf16.msra.mxu0 0
    %3327 = vmatprep.subr.bf16.mxu0 0
    %3328 = vmatpush2.bf16.msra.mxu0 0
    %3329 = vmatprep.subr.bf16.mxu0 0
    %3330 = vmatpush2.bf16.msra.mxu0 0
    %3331 = vmatprep.subr.bf16.mxu0 0
    %3332 = vmatpush2.bf16.msra.mxu0 0
    %3333 = vmatprep.subr.bf16.mxu0 0
    %3334 = vmatpush2.bf16.msra.mxu0 0
    %3335 = vmatprep.subr.bf16.mxu0 0
    %3336 = vmatpush2.bf16.msra.mxu0 0
    %3337 = vmatprep.subr.bf16.mxu0 0
    %3338 = vmatpush2.bf16.msra.mxu0 0
    %3339 = vmatprep.subr.bf16.mxu0 0
    %3340 = vmatpush2.bf16.msra.mxu0 0
    %3341 = vmatprep.mubr.bf16.mxu0 0
    %3342 = vmatmul.mubr.bf16.gmra.mxu0 %v3304
    %v3343 = vpop.f32.mrf.mxu0
    %v3344 = vadd.f32 0.0, %v3343
    %v3345 = vpop.f32.mrf.mxu0
    %v3346 = vpop.f32.mrf.mxu0
    %v3347 = vpop.f32.mrf.mxu0
    %3348 = vdwg.mxu0
    %3349 = vrot.lane.b32.xlu0 %v3127, 112
    %v3350 = vpop.permute.xlu0 %3349
    %3351 = vrot.lane.b32.xlu0 %v3133, 112
    %v3352 = vpop.permute.xlu0 %3351
    %v3354 = vsel %vm205, %v3350, 0
    %v3357 = vsel %vm205, %v3352, 0
    %3359 = vmatprep.subr.bf16.mxu0 0
    %3360 = vmatpush1.bf16.xpose.msra.mxu0 0
    %3361 = vmatprep.subr.bf16.mxu0 0
    %3362 = vmatpush1.bf16.xpose.msra.mxu0 0
    %3363 = vmatprep.subr.bf16.mxu0 0
    %3364 = vmatpush1.bf16.xpose.msra.mxu0 0
    %3365 = vmatprep.subr.bf16.mxu0 0
    %3366 = vmatpush1.bf16.xpose.msra.mxu0 0
    %3367 = vmatprep.subr.bf16.mxu0 0
    %3368 = vmatpush1.bf16.xpose.msra.mxu0 0
    %3369 = vmatprep.subr.bf16.mxu0 0
    %3370 = vmatpush1.bf16.xpose.msra.mxu0 0
    %3371 = vmatprep.subr.bf16.mxu0 0
    %3372 = vmatpush1.bf16.xpose.msra.mxu0 0
    %3373 = vmatprep.subr.bf16.mxu0 0
    %3374 = vmatpush1.bf16.xpose.msra.mxu0 %v3357
    %3375 = vmatprep.subr.bf16.mxu0 0
    %3376 = vmatpush2.bf16.xpose.msra.mxu0 0
    %3377 = vmatprep.subr.bf16.mxu0 0
    %3378 = vmatpush2.bf16.xpose.msra.mxu0 0
    %3379 = vmatprep.subr.bf16.mxu0 0
    %3380 = vmatpush2.bf16.xpose.msra.mxu0 0
    %3381 = vmatprep.subr.bf16.mxu0 0
    %3382 = vmatpush2.bf16.xpose.msra.mxu0 0
    %3383 = vmatprep.subr.bf16.mxu0 0
    %3384 = vmatpush2.bf16.xpose.msra.mxu0 0
    %3385 = vmatprep.subr.bf16.mxu0 0
    %3386 = vmatpush2.bf16.xpose.msra.mxu0 0
    %3387 = vmatprep.subr.bf16.mxu0 0
    %3388 = vmatpush2.bf16.xpose.msra.mxu0 0
    %3389 = vmatprep.subr.bf16.mxu0 0
    %3390 = vmatpush2.bf16.xpose.msra.mxu0 0
    %3391 = vmatprep.mubr.bf16.mxu0 0
    %3392 = vmatmul.mubr.bf16.gmra.mxu0 %v3354
    %v3393 = vpop.f32.mrf.mxu0
    %v3394 = vadd.f32 0.0, %v3393
    %v3395 = vpop.f32.mrf.mxu0
    %v3396 = vpop.f32.mrf.mxu0
    %v3397 = vpop.f32.mrf.mxu0
    %3398 = vdwg.mxu0
    %3399 = vrot.lane.b32.xlu0 %v3128, 112
    %v3400 = vpop.permute.xlu0 %3399
    %3401 = vrot.lane.b32.xlu0 %v3134, 112
    %v3402 = vpop.permute.xlu0 %3401
    %v3404 = vsel %vm205, %v3400, 0
    %v3407 = vsel %vm205, %v3402, 0
    %3409 = vmatprep.subr.bf16.mxu0 0
    %3410 = vmatpush1.bf16.xpose.msra.mxu0 0
    %3411 = vmatprep.subr.bf16.mxu0 0
    %3412 = vmatpush1.bf16.xpose.msra.mxu0 0
    %3413 = vmatprep.subr.bf16.mxu0 0
    %3414 = vmatpush1.bf16.xpose.msra.mxu0 0
    %3415 = vmatprep.subr.bf16.mxu0 0
    %3416 = vmatpush1.bf16.xpose.msra.mxu0 0
    %3417 = vmatprep.subr.bf16.mxu0 0
    %3418 = vmatpush1.bf16.xpose.msra.mxu0 0
    %3419 = vmatprep.subr.bf16.mxu0 0
    %3420 = vmatpush1.bf16.xpose.msra.mxu0 0
    %3421 = vmatprep.subr.bf16.mxu0 0
    %3422 = vmatpush1.bf16.xpose.msra.mxu0 0
    %3423 = vmatprep.subr.bf16.mxu0 0
    %3424 = vmatpush1.bf16.xpose.msra.mxu0 %v3407
    %3425 = vmatprep.subr.bf16.mxu0 0
    %3426 = vmatpush2.bf16.xpose.msra.mxu0 0
    %3427 = vmatprep.subr.bf16.mxu0 0
    %3428 = vmatpush2.bf16.xpose.msra.mxu0 0
    %3429 = vmatprep.subr.bf16.mxu0 0
    %3430 = vmatpush2.bf16.xpose.msra.mxu0 0
    %3431 = vmatprep.subr.bf16.mxu0 0
    %3432 = vmatpush2.bf16.xpose.msra.mxu0 0
    %3433 = vmatprep.subr.bf16.mxu0 0
    %3434 = vmatpush2.bf16.xpose.msra.mxu0 0
    %3435 = vmatprep.subr.bf16.mxu0 0
    %3436 = vmatpush2.bf16.xpose.msra.mxu0 0
    %3437 = vmatprep.subr.bf16.mxu0 0
    %3438 = vmatpush2.bf16.xpose.msra.mxu0 0
    %3439 = vmatprep.subr.bf16.mxu0 0
    %3440 = vmatpush2.bf16.xpose.msra.mxu0 0
    %3441 = vmatprep.mubr.bf16.mxu0 0
    %3442 = vmatmul.mubr.bf16.gmra.mxu0 %v3404
    %v3443 = vpop.f32.mrf.mxu0
    %v3444 = vadd.f32 0.0, %v3443
    %v3445 = vpop.f32.mrf.mxu0
    %v3446 = vpop.f32.mrf.mxu0
    %v3447 = vpop.f32.mrf.mxu0
    %3448 = vdwg.mxu0
    %v3449 = vsel %vm624, %v3394, -inf
    %3450 = vmax.xlane.f32.xlu0 %v3449
    %v3451 = vpop.xlane.xlu0 %3450
    %v3452 = vsel %vm624, %v3444, -inf
    %3453 = vmax.xlane.f32.xlu0 %v3452
    %v3454 = vpop.xlane.xlu0 %3453
    %v3455 = vsub.f32 %v3394, %v3451
    %v3456 = vsub.f32 %v3444, %v3454
    %v3457 = vmul.f32 %v3455, 1.442695
    %v3458 = vpow.pop %v3457
    %v3459 = vmul.f32 %v3456, 1.442695
    %v3460 = vpow.pop %v3459
    %v3461 = vsel %vm624, %v3458, 0.0
    %3462 = vadd.xlane.f32.xlu0 %v3461
    %v3463 = vpop.xlane.xlu0 %3462
    %v3464 = vsel %vm624, %v3460, 0.0
    %3465 = vadd.xlane.f32.xlu0 %v3464
    %v3466 = vpop.xlane.xlu0 %3465
    %v3467 = vrcp.pop %v3463
    %v3468 = vrcp.pop %v3466
    %v3469 = vmul.f32 %v3458, %v3467
    %v3470 = vmul.f32 %v3460, %v3468
    %v3471 = vpack.c.bf16 %v3469, %v3469
    %v3472 = vpack.c.bf16 %v3470, %v3470
    %3473 = vrot.lane.b32.xlu0 %v3139, 112
    %v3474 = vpop.permute.xlu0 %3473
    %v3476 = vsel %vm624, %v3471, 0
    %v3479 = vsel %vm652, %v3474, 0
    %3481 = vmatprep.subr.bf16.mxu0 0
    %3482 = vmatpush1.bf16.msra.mxu0 0
    %3483 = vmatprep.subr.bf16.mxu0 0
    %3484 = vmatpush1.bf16.msra.mxu0 0
    %3485 = vmatprep.subr.bf16.mxu0 0
    %3486 = vmatpush1.bf16.msra.mxu0 0
    %3487 = vmatprep.subr.bf16.mxu0 0
    %3488 = vmatpush1.bf16.msra.mxu0 0
    %3489 = vmatprep.subr.bf16.mxu0 0
    %3490 = vmatpush1.bf16.msra.mxu0 0
    %3491 = vmatprep.subr.bf16.mxu0 0
    %3492 = vmatpush1.bf16.msra.mxu0 0
    %3493 = vmatprep.subr.bf16.mxu0 0
    %3494 = vmatpush1.bf16.msra.mxu0 0
    %3495 = vmatprep.subr.bf16.mxu0 0
    %3496 = vmatpush1.bf16.msra.mxu0 %v3479
    %3497 = vmatprep.subr.bf16.mxu0 0
    %3498 = vmatpush2.bf16.msra.mxu0 0
    %3499 = vmatprep.subr.bf16.mxu0 0
    %3500 = vmatpush2.bf16.msra.mxu0 0
    %3501 = vmatprep.subr.bf16.mxu0 0
    %3502 = vmatpush2.bf16.msra.mxu0 0
    %3503 = vmatprep.subr.bf16.mxu0 0
    %3504 = vmatpush2.bf16.msra.mxu0 0
    %3505 = vmatprep.subr.bf16.mxu0 0
    %3506 = vmatpush2.bf16.msra.mxu0 0
    %3507 = vmatprep.subr.bf16.mxu0 0
    %3508 = vmatpush2.bf16.msra.mxu0 0
    %3509 = vmatprep.subr.bf16.mxu0 0
    %3510 = vmatpush2.bf16.msra.mxu0 0
    %3511 = vmatprep.subr.bf16.mxu0 0
    %3512 = vmatpush2.bf16.msra.mxu0 0
    %3513 = vmatprep.mubr.bf16.mxu0 0
    %3514 = vmatmul.mubr.bf16.gmra.mxu0 %v3476
    %v3515 = vpop.f32.mrf.mxu0
    %v3516 = vadd.f32 0.0, %v3515
    %v3517 = vpop.f32.mrf.mxu0
    %v3518 = vpop.f32.mrf.mxu0
    %v3519 = vpop.f32.mrf.mxu0
    %3520 = vdwg.mxu0
    %3521 = vrot.lane.b32.xlu0 %v3140, 112
    %v3522 = vpop.permute.xlu0 %3521
    %v3524 = vsel %vm624, %v3472, 0
    %v3527 = vsel %vm652, %v3522, 0
    %3529 = vmatprep.subr.bf16.mxu0 0
    %3530 = vmatpush1.bf16.msra.mxu0 0
    %3531 = vmatprep.subr.bf16.mxu0 0
    %3532 = vmatpush1.bf16.msra.mxu0 0
    %3533 = vmatprep.subr.bf16.mxu0 0
    %3534 = vmatpush1.bf16.msra.mxu0 0
    %3535 = vmatprep.subr.bf16.mxu0 0
    %3536 = vmatpush1.bf16.msra.mxu0 0
    %3537 = vmatprep.subr.bf16.mxu0 0
    %3538 = vmatpush1.bf16.msra.mxu0 0
    %3539 = vmatprep.subr.bf16.mxu0 0
    %3540 = vmatpush1.bf16.msra.mxu0 0
    %3541 = vmatprep.subr.bf16.mxu0 0
    %3542 = vmatpush1.bf16.msra.mxu0 0
    %3543 = vmatprep.subr.bf16.mxu0 0
    %3544 = vmatpush1.bf16.msra.mxu0 %v3527
    %3545 = vmatprep.subr.bf16.mxu0 0
    %3546 = vmatpush2.bf16.msra.mxu0 0
    %3547 = vmatprep.subr.bf16.mxu0 0
    %3548 = vmatpush2.bf16.msra.mxu0 0
    %3549 = vmatprep.subr.bf16.mxu0 0
    %3550 = vmatpush2.bf16.msra.mxu0 0
    %3551 = vmatprep.subr.bf16.mxu0 0
    %3552 = vmatpush2.bf16.msra.mxu0 0
    %3553 = vmatprep.subr.bf16.mxu0 0
    %3554 = vmatpush2.bf16.msra.mxu0 0
    %3555 = vmatprep.subr.bf16.mxu0 0
    %3556 = vmatpush2.bf16.msra.mxu0 0
    %3557 = vmatprep.subr.bf16.mxu0 0
    %3558 = vmatpush2.bf16.msra.mxu0 0
    %3559 = vmatprep.subr.bf16.mxu0 0
    %3560 = vmatpush2.bf16.msra.mxu0 0
    %3561 = vmatprep.mubr.bf16.mxu0 0
    %3562 = vmatmul.mubr.bf16.gmra.mxu0 %v3524
    %v3563 = vpop.f32.mrf.mxu0
    %v3564 = vadd.f32 0.0, %v3563
    %v3565 = vpop.f32.mrf.mxu0
    %v3566 = vpop.f32.mrf.mxu0
    %v3567 = vpop.f32.mrf.mxu0
    %3568 = vdwg.mxu0
    %3569 = vrot.lane.b32.xlu0 %v3127, 96
    %v3570 = vpop.permute.xlu0 %3569
    %3571 = vrot.lane.b32.xlu0 %v3133, 96
    %v3572 = vpop.permute.xlu0 %3571
    %v3574 = vsel %vm205, %v3570, 0
    %v3577 = vsel %vm205, %v3572, 0
    %3579 = vmatprep.subr.bf16.mxu0 0
    %3580 = vmatpush1.bf16.xpose.msra.mxu0 0
    %3581 = vmatprep.subr.bf16.mxu0 0
    %3582 = vmatpush1.bf16.xpose.msra.mxu0 0
    %3583 = vmatprep.subr.bf16.mxu0 0
    %3584 = vmatpush1.bf16.xpose.msra.mxu0 0
    %3585 = vmatprep.subr.bf16.mxu0 0
    %3586 = vmatpush1.bf16.xpose.msra.mxu0 0
    %3587 = vmatprep.subr.bf16.mxu0 0
    %3588 = vmatpush1.bf16.xpose.msra.mxu0 0
    %3589 = vmatprep.subr.bf16.mxu0 0
    %3590 = vmatpush1.bf16.xpose.msra.mxu0 0
    %3591 = vmatprep.subr.bf16.mxu0 0
    %3592 = vmatpush1.bf16.xpose.msra.mxu0 0
    %3593 = vmatprep.subr.bf16.mxu0 0
    %3594 = vmatpush1.bf16.xpose.msra.mxu0 %v3577
    %3595 = vmatprep.subr.bf16.mxu0 0
    %3596 = vmatpush2.bf16.xpose.msra.mxu0 0
    %3597 = vmatprep.subr.bf16.mxu0 0
    %3598 = vmatpush2.bf16.xpose.msra.mxu0 0
    %3599 = vmatprep.subr.bf16.mxu0 0
    %3600 = vmatpush2.bf16.xpose.msra.mxu0 0
    %3601 = vmatprep.subr.bf16.mxu0 0
    %3602 = vmatpush2.bf16.xpose.msra.mxu0 0
    %3603 = vmatprep.subr.bf16.mxu0 0
    %3604 = vmatpush2.bf16.xpose.msra.mxu0 0
    %3605 = vmatprep.subr.bf16.mxu0 0
    %3606 = vmatpush2.bf16.xpose.msra.mxu0 0
    %3607 = vmatprep.subr.bf16.mxu0 0
    %3608 = vmatpush2.bf16.xpose.msra.mxu0 0
    %3609 = vmatprep.subr.bf16.mxu0 0
    %3610 = vmatpush2.bf16.xpose.msra.mxu0 0
    %3611 = vmatprep.mubr.bf16.mxu0 0
    %3612 = vmatmul.mubr.bf16.gmra.mxu0 %v3574
    %v3613 = vpop.f32.mrf.mxu0
    %v3614 = vadd.f32 0.0, %v3613
    %v3615 = vpop.f32.mrf.mxu0
    %v3616 = vpop.f32.mrf.mxu0
    %v3617 = vpop.f32.mrf.mxu0
    %3618 = vdwg.mxu0
    %3619 = vrot.lane.b32.xlu0 %v3128, 96
    %v3620 = vpop.permute.xlu0 %3619
    %3621 = vrot.lane.b32.xlu0 %v3134, 96
    %v3622 = vpop.permute.xlu0 %3621
    %v3624 = vsel %vm205, %v3620, 0
    %v3627 = vsel %vm205, %v3622, 0
    %3629 = vmatprep.subr.bf16.mxu0 0
    %3630 = vmatpush1.bf16.xpose.msra.mxu0 0
    %3631 = vmatprep.subr.bf16.mxu0 0
    %3632 = vmatpush1.bf16.xpose.msra.mxu0 0
    %3633 = vmatprep.subr.bf16.mxu0 0
    %3634 = vmatpush1.bf16.xpose.msra.mxu0 0
    %3635 = vmatprep.subr.bf16.mxu0 0
    %3636 = vmatpush1.bf16.xpose.msra.mxu0 0
    %3637 = vmatprep.subr.bf16.mxu0 0
    %3638 = vmatpush1.bf16.xpose.msra.mxu0 0
    %3639 = vmatprep.subr.bf16.mxu0 0
    %3640 = vmatpush1.bf16.xpose.msra.mxu0 0
    %3641 = vmatprep.subr.bf16.mxu0 0
    %3642 = vmatpush1.bf16.xpose.msra.mxu0 0
    %3643 = vmatprep.subr.bf16.mxu0 0
    %3644 = vmatpush1.bf16.xpose.msra.mxu0 %v3627
    %3645 = vmatprep.subr.bf16.mxu0 0
    %3646 = vmatpush2.bf16.xpose.msra.mxu0 0
    %3647 = vmatprep.subr.bf16.mxu0 0
    %3648 = vmatpush2.bf16.xpose.msra.mxu0 0
    %3649 = vmatprep.subr.bf16.mxu0 0
    %3650 = vmatpush2.bf16.xpose.msra.mxu0 0
    %3651 = vmatprep.subr.bf16.mxu0 0
    %3652 = vmatpush2.bf16.xpose.msra.mxu0 0
    %3653 = vmatprep.subr.bf16.mxu0 0
    %3654 = vmatpush2.bf16.xpose.msra.mxu0 0
    %3655 = vmatprep.subr.bf16.mxu0 0
    %3656 = vmatpush2.bf16.xpose.msra.mxu0 0
    %3657 = vmatprep.subr.bf16.mxu0 0
    %3658 = vmatpush2.bf16.xpose.msra.mxu0 0
    %3659 = vmatprep.subr.bf16.mxu0 0
    %3660 = vmatpush2.bf16.xpose.msra.mxu0 0
    %3661 = vmatprep.mubr.bf16.mxu0 0
    %3662 = vmatmul.mubr.bf16.gmra.mxu0 %v3624
    %v3663 = vpop.f32.mrf.mxu0
    %v3664 = vadd.f32 0.0, %v3663
    %v3665 = vpop.f32.mrf.mxu0
    %v3666 = vpop.f32.mrf.mxu0
    %v3667 = vpop.f32.mrf.mxu0
    %3668 = vdwg.mxu0
    %v3669 = vsel %vm624, %v3614, -inf
    %3670 = vmax.xlane.f32.xlu0 %v3669
    %v3671 = vpop.xlane.xlu0 %3670
    %v3672 = vsel %vm624, %v3664, -inf
    %3673 = vmax.xlane.f32.xlu0 %v3672
    %v3674 = vpop.xlane.xlu0 %3673
    %v3675 = vsub.f32 %v3614, %v3671
    %v3676 = vsub.f32 %v3664, %v3674
    %v3677 = vmul.f32 %v3675, 1.442695
    %v3678 = vpow.pop %v3677
    %v3679 = vmul.f32 %v3676, 1.442695
    %v3680 = vpow.pop %v3679
    %v3681 = vsel %vm624, %v3678, 0.0
    %3682 = vadd.xlane.f32.xlu0 %v3681
    %v3683 = vpop.xlane.xlu0 %3682
    %v3684 = vsel %vm624, %v3680, 0.0
    %3685 = vadd.xlane.f32.xlu0 %v3684
    %v3686 = vpop.xlane.xlu0 %3685
    %v3687 = vrcp.pop %v3683
    %v3688 = vrcp.pop %v3686
    %v3689 = vmul.f32 %v3678, %v3687
    %v3690 = vmul.f32 %v3680, %v3688
    %v3691 = vpack.c.bf16 %v3689, %v3689
    %v3692 = vpack.c.bf16 %v3690, %v3690
    %3693 = vrot.lane.b32.xlu0 %v3139, 96
    %v3694 = vpop.permute.xlu0 %3693
    %v3696 = vsel %vm624, %v3691, 0
    %v3699 = vsel %vm652, %v3694, 0
    %3701 = vmatprep.subr.bf16.mxu0 0
    %3702 = vmatpush1.bf16.msra.mxu0 0
    %3703 = vmatprep.subr.bf16.mxu0 0
    %3704 = vmatpush1.bf16.msra.mxu0 0
    %3705 = vmatprep.subr.bf16.mxu0 0
    %3706 = vmatpush1.bf16.msra.mxu0 0
    %3707 = vmatprep.subr.bf16.mxu0 0
    %3708 = vmatpush1.bf16.msra.mxu0 0
    %3709 = vmatprep.subr.bf16.mxu0 0
    %3710 = vmatpush1.bf16.msra.mxu0 0
    %3711 = vmatprep.subr.bf16.mxu0 0
    %3712 = vmatpush1.bf16.msra.mxu0 0
    %3713 = vmatprep.subr.bf16.mxu0 0
    %3714 = vmatpush1.bf16.msra.mxu0 0
    %3715 = vmatprep.subr.bf16.mxu0 0
    %3716 = vmatpush1.bf16.msra.mxu0 %v3699
    %3717 = vmatprep.subr.bf16.mxu0 0
    %3718 = vmatpush2.bf16.msra.mxu0 0
    %3719 = vmatprep.subr.bf16.mxu0 0
    %3720 = vmatpush2.bf16.msra.mxu0 0
    %3721 = vmatprep.subr.bf16.mxu0 0
    %3722 = vmatpush2.bf16.msra.mxu0 0
    %3723 = vmatprep.subr.bf16.mxu0 0
    %3724 = vmatpush2.bf16.msra.mxu0 0
    %3725 = vmatprep.subr.bf16.mxu0 0
    %3726 = vmatpush2.bf16.msra.mxu0 0
    %3727 = vmatprep.subr.bf16.mxu0 0
    %3728 = vmatpush2.bf16.msra.mxu0 0
    %3729 = vmatprep.subr.bf16.mxu0 0
    %3730 = vmatpush2.bf16.msra.mxu0 0
    %3731 = vmatprep.subr.bf16.mxu0 0
    %3732 = vmatpush2.bf16.msra.mxu0 0
    %3733 = vmatprep.mubr.bf16.mxu0 0
    %3734 = vmatmul.mubr.bf16.gmra.mxu0 %v3696
    %v3735 = vpop.f32.mrf.mxu0
    %v3736 = vadd.f32 0.0, %v3735
    %v3737 = vpop.f32.mrf.mxu0
    %v3738 = vpop.f32.mrf.mxu0
    %v3739 = vpop.f32.mrf.mxu0
    %3740 = vdwg.mxu0
    %3741 = vrot.lane.b32.xlu0 %v3140, 96
    %v3742 = vpop.permute.xlu0 %3741
    %v3744 = vsel %vm624, %v3692, 0
    %v3747 = vsel %vm652, %v3742, 0
    %3749 = vmatprep.subr.bf16.mxu0 0
    %3750 = vmatpush1.bf16.msra.mxu0 0
    %3751 = vmatprep.subr.bf16.mxu0 0
    %3752 = vmatpush1.bf16.msra.mxu0 0
    %3753 = vmatprep.subr.bf16.mxu0 0
    %3754 = vmatpush1.bf16.msra.mxu0 0
    %3755 = vmatprep.subr.bf16.mxu0 0
    %3756 = vmatpush1.bf16.msra.mxu0 0
    %3757 = vmatprep.subr.bf16.mxu0 0
    %3758 = vmatpush1.bf16.msra.mxu0 0
    %3759 = vmatprep.subr.bf16.mxu0 0
    %3760 = vmatpush1.bf16.msra.mxu0 0
    %3761 = vmatprep.subr.bf16.mxu0 0
    %3762 = vmatpush1.bf16.msra.mxu0 0
    %3763 = vmatprep.subr.bf16.mxu0 0
    %3764 = vmatpush1.bf16.msra.mxu0 %v3747
    %3765 = vmatprep.subr.bf16.mxu0 0
    %3766 = vmatpush2.bf16.msra.mxu0 0
    %3767 = vmatprep.subr.bf16.mxu0 0
    %3768 = vmatpush2.bf16.msra.mxu0 0
    %3769 = vmatprep.subr.bf16.mxu0 0
    %3770 = vmatpush2.bf16.msra.mxu0 0
    %3771 = vmatprep.subr.bf16.mxu0 0
    %3772 = vmatpush2.bf16.msra.mxu0 0
    %3773 = vmatprep.subr.bf16.mxu0 0
    %3774 = vmatpush2.bf16.msra.mxu0 0
    %3775 = vmatprep.subr.bf16.mxu0 0
    %3776 = vmatpush2.bf16.msra.mxu0 0
    %3777 = vmatprep.subr.bf16.mxu0 0
    %3778 = vmatpush2.bf16.msra.mxu0 0
    %3779 = vmatprep.subr.bf16.mxu0 0
    %3780 = vmatpush2.bf16.msra.mxu0 0
    %3781 = vmatprep.mubr.bf16.mxu0 0
    %3782 = vmatmul.mubr.bf16.gmra.mxu0 %v3744
    %v3783 = vpop.f32.mrf.mxu0
    %v3784 = vadd.f32 0.0, %v3783
    %v3785 = vpop.f32.mrf.mxu0
    %v3786 = vpop.f32.mrf.mxu0
    %v3787 = vpop.f32.mrf.mxu0
    %3788 = vdwg.mxu0
    %3789 = vrot.lane.b32.xlu0 %v3127, 80
    %v3790 = vpop.permute.xlu0 %3789
    %3791 = vrot.lane.b32.xlu0 %v3133, 80
    %v3792 = vpop.permute.xlu0 %3791
    %v3794 = vsel %vm205, %v3790, 0
    %v3797 = vsel %vm205, %v3792, 0
    %3799 = vmatprep.subr.bf16.mxu0 0
    %3800 = vmatpush1.bf16.xpose.msra.mxu0 0
    %3801 = vmatprep.subr.bf16.mxu0 0
    %3802 = vmatpush1.bf16.xpose.msra.mxu0 0
    %3803 = vmatprep.subr.bf16.mxu0 0
    %3804 = vmatpush1.bf16.xpose.msra.mxu0 0
    %3805 = vmatprep.subr.bf16.mxu0 0
    %3806 = vmatpush1.bf16.xpose.msra.mxu0 0
    %3807 = vmatprep.subr.bf16.mxu0 0
    %3808 = vmatpush1.bf16.xpose.msra.mxu0 0
    %3809 = vmatprep.subr.bf16.mxu0 0
    %3810 = vmatpush1.bf16.xpose.msra.mxu0 0
    %3811 = vmatprep.subr.bf16.mxu0 0
    %3812 = vmatpush1.bf16.xpose.msra.mxu0 0
    %3813 = vmatprep.subr.bf16.mxu0 0
    %3814 = vmatpush1.bf16.xpose.msra.mxu0 %v3797
    %3815 = vmatprep.subr.bf16.mxu0 0
    %3816 = vmatpush2.bf16.xpose.msra.mxu0 0
    %3817 = vmatprep.subr.bf16.mxu0 0
    %3818 = vmatpush2.bf16.xpose.msra.mxu0 0
    %3819 = vmatprep.subr.bf16.mxu0 0
    %3820 = vmatpush2.bf16.xpose.msra.mxu0 0
    %3821 = vmatprep.subr.bf16.mxu0 0
    %3822 = vmatpush2.bf16.xpose.msra.mxu0 0
    %3823 = vmatprep.subr.bf16.mxu0 0
    %3824 = vmatpush2.bf16.xpose.msra.mxu0 0
    %3825 = vmatprep.subr.bf16.mxu0 0
    %3826 = vmatpush2.bf16.xpose.msra.mxu0 0
    %3827 = vmatprep.subr.bf16.mxu0 0
    %3828 = vmatpush2.bf16.xpose.msra.mxu0 0
    %3829 = vmatprep.subr.bf16.mxu0 0
    %3830 = vmatpush2.bf16.xpose.msra.mxu0 0
    %3831 = vmatprep.mubr.bf16.mxu0 0
    %3832 = vmatmul.mubr.bf16.gmra.mxu0 %v3794
    %v3833 = vpop.f32.mrf.mxu0
    %v3834 = vadd.f32 0.0, %v3833
    %v3835 = vpop.f32.mrf.mxu0
    %v3836 = vpop.f32.mrf.mxu0
    %v3837 = vpop.f32.mrf.mxu0
    %3838 = vdwg.mxu0
    %3839 = vrot.lane.b32.xlu0 %v3128, 80
    %v3840 = vpop.permute.xlu0 %3839
    %3841 = vrot.lane.b32.xlu0 %v3134, 80
    %v3842 = vpop.permute.xlu0 %3841
    %v3844 = vsel %vm205, %v3840, 0
    %v3847 = vsel %vm205, %v3842, 0
    %3849 = vmatprep.subr.bf16.mxu0 0
    %3850 = vmatpush1.bf16.xpose.msra.mxu0 0
    %3851 = vmatprep.subr.bf16.mxu0 0
    %3852 = vmatpush1.bf16.xpose.msra.mxu0 0
    %3853 = vmatprep.subr.bf16.mxu0 0
    %3854 = vmatpush1.bf16.xpose.msra.mxu0 0
    %3855 = vmatprep.subr.bf16.mxu0 0
    %3856 = vmatpush1.bf16.xpose.msra.mxu0 0
    %3857 = vmatprep.subr.bf16.mxu0 0
    %3858 = vmatpush1.bf16.xpose.msra.mxu0 0
    %3859 = vmatprep.subr.bf16.mxu0 0
    %3860 = vmatpush1.bf16.xpose.msra.mxu0 0
    %3861 = vmatprep.subr.bf16.mxu0 0
    %3862 = vmatpush1.bf16.xpose.msra.mxu0 0
    %3863 = vmatprep.subr.bf16.mxu0 0
    %3864 = vmatpush1.bf16.xpose.msra.mxu0 %v3847
    %3865 = vmatprep.subr.bf16.mxu0 0
    %3866 = vmatpush2.bf16.xpose.msra.mxu0 0
    %3867 = vmatprep.subr.bf16.mxu0 0
    %3868 = vmatpush2.bf16.xpose.msra.mxu0 0
    %3869 = vmatprep.subr.bf16.mxu0 0
    %3870 = vmatpush2.bf16.xpose.msra.mxu0 0
    %3871 = vmatprep.subr.bf16.mxu0 0
    %3872 = vmatpush2.bf16.xpose.msra.mxu0 0
    %3873 = vmatprep.subr.bf16.mxu0 0
    %3874 = vmatpush2.bf16.xpose.msra.mxu0 0
    %3875 = vmatprep.subr.bf16.mxu0 0
    %3876 = vmatpush2.bf16.xpose.msra.mxu0 0
    %3877 = vmatprep.subr.bf16.mxu0 0
    %3878 = vmatpush2.bf16.xpose.msra.mxu0 0
    %3879 = vmatprep.subr.bf16.mxu0 0
    %3880 = vmatpush2.bf16.xpose.msra.mxu0 0
    %3881 = vmatprep.mubr.bf16.mxu0 0
    %3882 = vmatmul.mubr.bf16.gmra.mxu0 %v3844
    %v3883 = vpop.f32.mrf.mxu0
    %v3884 = vadd.f32 0.0, %v3883
    %v3885 = vpop.f32.mrf.mxu0
    %v3886 = vpop.f32.mrf.mxu0
    %v3887 = vpop.f32.mrf.mxu0
    %3888 = vdwg.mxu0
    %v3889 = vsel %vm624, %v3834, -inf
    %3890 = vmax.xlane.f32.xlu0 %v3889
    %v3891 = vpop.xlane.xlu0 %3890
    %v3892 = vsel %vm624, %v3884, -inf
    %3893 = vmax.xlane.f32.xlu0 %v3892
    %v3894 = vpop.xlane.xlu0 %3893
    %v3895 = vsub.f32 %v3834, %v3891
    %v3896 = vsub.f32 %v3884, %v3894
    %v3897 = vmul.f32 %v3895, 1.442695
    %v3898 = vpow.pop %v3897
    %v3899 = vmul.f32 %v3896, 1.442695
    %v3900 = vpow.pop %v3899
    %v3901 = vsel %vm624, %v3898, 0.0
    %3902 = vadd.xlane.f32.xlu0 %v3901
    %v3903 = vpop.xlane.xlu0 %3902
    %v3904 = vsel %vm624, %v3900, 0.0
    %3905 = vadd.xlane.f32.xlu0 %v3904
    %v3906 = vpop.xlane.xlu0 %3905
    %v3907 = vrcp.pop %v3903
    %v3908 = vrcp.pop %v3906
    %v3909 = vmul.f32 %v3898, %v3907
    %v3910 = vmul.f32 %v3900, %v3908
    %v3911 = vpack.c.bf16 %v3909, %v3909
    %v3912 = vpack.c.bf16 %v3910, %v3910
    %3913 = vrot.lane.b32.xlu0 %v3139, 80
    %v3914 = vpop.permute.xlu0 %3913
    %v3916 = vsel %vm624, %v3911, 0
    %v3919 = vsel %vm652, %v3914, 0
    %3921 = vmatprep.subr.bf16.mxu0 0
    %3922 = vmatpush1.bf16.msra.mxu0 0
    %3923 = vmatprep.subr.bf16.mxu0 0
    %3924 = vmatpush1.bf16.msra.mxu0 0
    %3925 = vmatprep.subr.bf16.mxu0 0
    %3926 = vmatpush1.bf16.msra.mxu0 0
    %3927 = vmatprep.subr.bf16.mxu0 0
    %3928 = vmatpush1.bf16.msra.mxu0 0
    %3929 = vmatprep.subr.bf16.mxu0 0
    %3930 = vmatpush1.bf16.msra.mxu0 0
    %3931 = vmatprep.subr.bf16.mxu0 0
    %3932 = vmatpush1.bf16.msra.mxu0 0
    %3933 = vmatprep.subr.bf16.mxu0 0
    %3934 = vmatpush1.bf16.msra.mxu0 0
    %3935 = vmatprep.subr.bf16.mxu0 0
    %3936 = vmatpush1.bf16.msra.mxu0 %v3919
    %3937 = vmatprep.subr.bf16.mxu0 0
    %3938 = vmatpush2.bf16.msra.mxu0 0
    %3939 = vmatprep.subr.bf16.mxu0 0
    %3940 = vmatpush2.bf16.msra.mxu0 0
    %3941 = vmatprep.subr.bf16.mxu0 0
    %3942 = vmatpush2.bf16.msra.mxu0 0
    %3943 = vmatprep.subr.bf16.mxu0 0
    %3944 = vmatpush2.bf16.msra.mxu0 0
    %3945 = vmatprep.subr.bf16.mxu0 0
    %3946 = vmatpush2.bf16.msra.mxu0 0
    %3947 = vmatprep.subr.bf16.mxu0 0
    %3948 = vmatpush2.bf16.msra.mxu0 0
    %3949 = vmatprep.subr.bf16.mxu0 0
    %3950 = vmatpush2.bf16.msra.mxu0 0
    %3951 = vmatprep.subr.bf16.mxu0 0
    %3952 = vmatpush2.bf16.msra.mxu0 0
    %3953 = vmatprep.mubr.bf16.mxu0 0
    %3954 = vmatmul.mubr.bf16.gmra.mxu0 %v3916
    %v3955 = vpop.f32.mrf.mxu0
    %v3956 = vadd.f32 0.0, %v3955
    %v3957 = vpop.f32.mrf.mxu0
    %v3958 = vpop.f32.mrf.mxu0
    %v3959 = vpop.f32.mrf.mxu0
    %3960 = vdwg.mxu0
    %3961 = vrot.lane.b32.xlu0 %v3140, 80
    %v3962 = vpop.permute.xlu0 %3961
    %v3964 = vsel %vm624, %v3912, 0
    %v3967 = vsel %vm652, %v3962, 0
    %3969 = vmatprep.subr.bf16.mxu0 0
    %3970 = vmatpush1.bf16.msra.mxu0 0
    %3971 = vmatprep.subr.bf16.mxu0 0
    %3972 = vmatpush1.bf16.msra.mxu0 0
    %3973 = vmatprep.subr.bf16.mxu0 0
    %3974 = vmatpush1.bf16.msra.mxu0 0
    %3975 = vmatprep.subr.bf16.mxu0 0
    %3976 = vmatpush1.bf16.msra.mxu0 0
    %3977 = vmatprep.subr.bf16.mxu0 0
    %3978 = vmatpush1.bf16.msra.mxu0 0
    %3979 = vmatprep.subr.bf16.mxu0 0
    %3980 = vmatpush1.bf16.msra.mxu0 0
    %3981 = vmatprep.subr.bf16.mxu0 0
    %3982 = vmatpush1.bf16.msra.mxu0 0
    %3983 = vmatprep.subr.bf16.mxu0 0
    %3984 = vmatpush1.bf16.msra.mxu0 %v3967
    %3985 = vmatprep.subr.bf16.mxu0 0
    %3986 = vmatpush2.bf16.msra.mxu0 0
    %3987 = vmatprep.subr.bf16.mxu0 0
    %3988 = vmatpush2.bf16.msra.mxu0 0
    %3989 = vmatprep.subr.bf16.mxu0 0
    %3990 = vmatpush2.bf16.msra.mxu0 0
    %3991 = vmatprep.subr.bf16.mxu0 0
    %3992 = vmatpush2.bf16.msra.mxu0 0
    %3993 = vmatprep.subr.bf16.mxu0 0
    %3994 = vmatpush2.bf16.msra.mxu0 0
    %3995 = vmatprep.subr.bf16.mxu0 0
    %3996 = vmatpush2.bf16.msra.mxu0 0
    %3997 = vmatprep.subr.bf16.mxu0 0
    %3998 = vmatpush2.bf16.msra.mxu0 0
    %3999 = vmatprep.subr.bf16.mxu0 0
    %4000 = vmatpush2.bf16.msra.mxu0 0
    %4001 = vmatprep.mubr.bf16.mxu0 0
    %4002 = vmatmul.mubr.bf16.gmra.mxu0 %v3964
    %v4003 = vpop.f32.mrf.mxu0
    %v4004 = vadd.f32 0.0, %v4003
    %v4005 = vpop.f32.mrf.mxu0
    %v4006 = vpop.f32.mrf.mxu0
    %v4007 = vpop.f32.mrf.mxu0
    %4008 = vdwg.mxu0
    %4009 = vrot.lane.b32.xlu0 %v3127, 64
    %v4010 = vpop.permute.xlu0 %4009
    %4011 = vrot.lane.b32.xlu0 %v3133, 64
    %v4012 = vpop.permute.xlu0 %4011
    %v4014 = vsel %vm205, %v4010, 0
    %v4017 = vsel %vm205, %v4012, 0
    %4019 = vmatprep.subr.bf16.mxu0 0
    %4020 = vmatpush1.bf16.xpose.msra.mxu0 0
    %4021 = vmatprep.subr.bf16.mxu0 0
    %4022 = vmatpush1.bf16.xpose.msra.mxu0 0
    %4023 = vmatprep.subr.bf16.mxu0 0
    %4024 = vmatpush1.bf16.xpose.msra.mxu0 0
    %4025 = vmatprep.subr.bf16.mxu0 0
    %4026 = vmatpush1.bf16.xpose.msra.mxu0 0
    %4027 = vmatprep.subr.bf16.mxu0 0
    %4028 = vmatpush1.bf16.xpose.msra.mxu0 0
    %4029 = vmatprep.subr.bf16.mxu0 0
    %4030 = vmatpush1.bf16.xpose.msra.mxu0 0
    %4031 = vmatprep.subr.bf16.mxu0 0
    %4032 = vmatpush1.bf16.xpose.msra.mxu0 0
    %4033 = vmatprep.subr.bf16.mxu0 0
    %4034 = vmatpush1.bf16.xpose.msra.mxu0 %v4017
    %4035 = vmatprep.subr.bf16.mxu0 0
    %4036 = vmatpush2.bf16.xpose.msra.mxu0 0
    %4037 = vmatprep.subr.bf16.mxu0 0
    %4038 = vmatpush2.bf16.xpose.msra.mxu0 0
    %4039 = vmatprep.subr.bf16.mxu0 0
    %4040 = vmatpush2.bf16.xpose.msra.mxu0 0
    %4041 = vmatprep.subr.bf16.mxu0 0
    %4042 = vmatpush2.bf16.xpose.msra.mxu0 0
    %4043 = vmatprep.subr.bf16.mxu0 0
    %4044 = vmatpush2.bf16.xpose.msra.mxu0 0
    %4045 = vmatprep.subr.bf16.mxu0 0
    %4046 = vmatpush2.bf16.xpose.msra.mxu0 0
    %4047 = vmatprep.subr.bf16.mxu0 0
    %4048 = vmatpush2.bf16.xpose.msra.mxu0 0
    %4049 = vmatprep.subr.bf16.mxu0 0
    %4050 = vmatpush2.bf16.xpose.msra.mxu0 0
    %4051 = vmatprep.mubr.bf16.mxu0 0
    %4052 = vmatmul.mubr.bf16.gmra.mxu0 %v4014
    %v4053 = vpop.f32.mrf.mxu0
    %v4054 = vadd.f32 0.0, %v4053
    %v4055 = vpop.f32.mrf.mxu0
    %v4056 = vpop.f32.mrf.mxu0
    %v4057 = vpop.f32.mrf.mxu0
    %4058 = vdwg.mxu0
    %4059 = vrot.lane.b32.xlu0 %v3128, 64
    %v4060 = vpop.permute.xlu0 %4059
    %4061 = vrot.lane.b32.xlu0 %v3134, 64
    %v4062 = vpop.permute.xlu0 %4061
    %v4064 = vsel %vm205, %v4060, 0
    %v4067 = vsel %vm205, %v4062, 0
    %4069 = vmatprep.subr.bf16.mxu0 0
    %4070 = vmatpush1.bf16.xpose.msra.mxu0 0
    %4071 = vmatprep.subr.bf16.mxu0 0
    %4072 = vmatpush1.bf16.xpose.msra.mxu0 0
    %4073 = vmatprep.subr.bf16.mxu0 0
    %4074 = vmatpush1.bf16.xpose.msra.mxu0 0
    %4075 = vmatprep.subr.bf16.mxu0 0
    %4076 = vmatpush1.bf16.xpose.msra.mxu0 0
    %4077 = vmatprep.subr.bf16.mxu0 0
    %4078 = vmatpush1.bf16.xpose.msra.mxu0 0
    %4079 = vmatprep.subr.bf16.mxu0 0
    %4080 = vmatpush1.bf16.xpose.msra.mxu0 0
    %4081 = vmatprep.subr.bf16.mxu0 0
    %4082 = vmatpush1.bf16.xpose.msra.mxu0 0
    %4083 = vmatprep.subr.bf16.mxu0 0
    %4084 = vmatpush1.bf16.xpose.msra.mxu0 %v4067
    %4085 = vmatprep.subr.bf16.mxu0 0
    %4086 = vmatpush2.bf16.xpose.msra.mxu0 0
    %4087 = vmatprep.subr.bf16.mxu0 0
    %4088 = vmatpush2.bf16.xpose.msra.mxu0 0
    %4089 = vmatprep.subr.bf16.mxu0 0
    %4090 = vmatpush2.bf16.xpose.msra.mxu0 0
    %4091 = vmatprep.subr.bf16.mxu0 0
    %4092 = vmatpush2.bf16.xpose.msra.mxu0 0
    %4093 = vmatprep.subr.bf16.mxu0 0
    %4094 = vmatpush2.bf16.xpose.msra.mxu0 0
    %4095 = vmatprep.subr.bf16.mxu0 0
    %4096 = vmatpush2.bf16.xpose.msra.mxu0 0
    %4097 = vmatprep.subr.bf16.mxu0 0
    %4098 = vmatpush2.bf16.xpose.msra.mxu0 0
    %4099 = vmatprep.subr.bf16.mxu0 0
    %4100 = vmatpush2.bf16.xpose.msra.mxu0 0
    %4101 = vmatprep.mubr.bf16.mxu0 0
    %4102 = vmatmul.mubr.bf16.gmra.mxu0 %v4064
    %v4103 = vpop.f32.mrf.mxu0
    %v4104 = vadd.f32 0.0, %v4103
    %v4105 = vpop.f32.mrf.mxu0
    %v4106 = vpop.f32.mrf.mxu0
    %v4107 = vpop.f32.mrf.mxu0
    %4108 = vdwg.mxu0
    %v4109 = vsel %vm624, %v4054, -inf
    %4110 = vmax.xlane.f32.xlu0 %v4109
    %v4111 = vpop.xlane.xlu0 %4110
    %v4112 = vsel %vm624, %v4104, -inf
    %4113 = vmax.xlane.f32.xlu0 %v4112
    %v4114 = vpop.xlane.xlu0 %4113
    %v4115 = vsub.f32 %v4054, %v4111
    %v4116 = vsub.f32 %v4104, %v4114
    %v4117 = vmul.f32 %v4115, 1.442695
    %v4118 = vpow.pop %v4117
    %v4119 = vmul.f32 %v4116, 1.442695
    %v4120 = vpow.pop %v4119
    %v4121 = vsel %vm624, %v4118, 0.0
    %4122 = vadd.xlane.f32.xlu0 %v4121
    %v4123 = vpop.xlane.xlu0 %4122
    %v4124 = vsel %vm624, %v4120, 0.0
    %4125 = vadd.xlane.f32.xlu0 %v4124
    %v4126 = vpop.xlane.xlu0 %4125
    %v4127 = vrcp.pop %v4123
    %v4128 = vrcp.pop %v4126
    %v4129 = vmul.f32 %v4118, %v4127
    %v4130 = vmul.f32 %v4120, %v4128
    %v4131 = vpack.c.bf16 %v4129, %v4129
    %v4132 = vpack.c.bf16 %v4130, %v4130
    %4133 = vrot.lane.b32.xlu0 %v3139, 64
    %v4134 = vpop.permute.xlu0 %4133
    %v4136 = vsel %vm624, %v4131, 0
    %v4139 = vsel %vm652, %v4134, 0
    %4141 = vmatprep.subr.bf16.mxu0 0
    %4142 = vmatpush1.bf16.msra.mxu0 0
    %4143 = vmatprep.subr.bf16.mxu0 0
    %4144 = vmatpush1.bf16.msra.mxu0 0
    %4145 = vmatprep.subr.bf16.mxu0 0
    %4146 = vmatpush1.bf16.msra.mxu0 0
    %4147 = vmatprep.subr.bf16.mxu0 0
    %4148 = vmatpush1.bf16.msra.mxu0 0
    %4149 = vmatprep.subr.bf16.mxu0 0
    %4150 = vmatpush1.bf16.msra.mxu0 0
    %4151 = vmatprep.subr.bf16.mxu0 0
    %4152 = vmatpush1.bf16.msra.mxu0 0
    %4153 = vmatprep.subr.bf16.mxu0 0
    %4154 = vmatpush1.bf16.msra.mxu0 0
    %4155 = vmatprep.subr.bf16.mxu0 0
    %4156 = vmatpush1.bf16.msra.mxu0 %v4139
    %4157 = vmatprep.subr.bf16.mxu0 0
    %4158 = vmatpush2.bf16.msra.mxu0 0
    %4159 = vmatprep.subr.bf16.mxu0 0
    %4160 = vmatpush2.bf16.msra.mxu0 0
    %4161 = vmatprep.subr.bf16.mxu0 0
    %4162 = vmatpush2.bf16.msra.mxu0 0
    %4163 = vmatprep.subr.bf16.mxu0 0
    %4164 = vmatpush2.bf16.msra.mxu0 0
    %4165 = vmatprep.subr.bf16.mxu0 0
    %4166 = vmatpush2.bf16.msra.mxu0 0
    %4167 = vmatprep.subr.bf16.mxu0 0
    %4168 = vmatpush2.bf16.msra.mxu0 0
    %4169 = vmatprep.subr.bf16.mxu0 0
    %4170 = vmatpush2.bf16.msra.mxu0 0
    %4171 = vmatprep.subr.bf16.mxu0 0
    %4172 = vmatpush2.bf16.msra.mxu0 0
    %4173 = vmatprep.mubr.bf16.mxu0 0
    %4174 = vmatmul.mubr.bf16.gmra.mxu0 %v4136
    %v4175 = vpop.f32.mrf.mxu0
    %v4176 = vadd.f32 0.0, %v4175
    %v4177 = vpop.f32.mrf.mxu0
    %v4178 = vpop.f32.mrf.mxu0
    %v4179 = vpop.f32.mrf.mxu0
    %4180 = vdwg.mxu0
    %4181 = vrot.lane.b32.xlu0 %v3140, 64
    %v4182 = vpop.permute.xlu0 %4181
    %v4184 = vsel %vm624, %v4132, 0
    %v4187 = vsel %vm652, %v4182, 0
    %4189 = vmatprep.subr.bf16.mxu0 0
    %4190 = vmatpush1.bf16.msra.mxu0 0
    %4191 = vmatprep.subr.bf16.mxu0 0
    %4192 = vmatpush1.bf16.msra.mxu0 0
    %4193 = vmatprep.subr.bf16.mxu0 0
    %4194 = vmatpush1.bf16.msra.mxu0 0
    %4195 = vmatprep.subr.bf16.mxu0 0
    %4196 = vmatpush1.bf16.msra.mxu0 0
    %4197 = vmatprep.subr.bf16.mxu0 0
    %4198 = vmatpush1.bf16.msra.mxu0 0
    %4199 = vmatprep.subr.bf16.mxu0 0
    %4200 = vmatpush1.bf16.msra.mxu0 0
    %4201 = vmatprep.subr.bf16.mxu0 0
    %4202 = vmatpush1.bf16.msra.mxu0 0
    %4203 = vmatprep.subr.bf16.mxu0 0
    %4204 = vmatpush1.bf16.msra.mxu0 %v4187
    %4205 = vmatprep.subr.bf16.mxu0 0
    %4206 = vmatpush2.bf16.msra.mxu0 0
    %4207 = vmatprep.subr.bf16.mxu0 0
    %4208 = vmatpush2.bf16.msra.mxu0 0
    %4209 = vmatprep.subr.bf16.mxu0 0
    %4210 = vmatpush2.bf16.msra.mxu0 0
    %4211 = vmatprep.subr.bf16.mxu0 0
    %4212 = vmatpush2.bf16.msra.mxu0 0
    %4213 = vmatprep.subr.bf16.mxu0 0
    %4214 = vmatpush2.bf16.msra.mxu0 0
    %4215 = vmatprep.subr.bf16.mxu0 0
    %4216 = vmatpush2.bf16.msra.mxu0 0
    %4217 = vmatprep.subr.bf16.mxu0 0
    %4218 = vmatpush2.bf16.msra.mxu0 0
    %4219 = vmatprep.subr.bf16.mxu0 0
    %4220 = vmatpush2.bf16.msra.mxu0 0
    %4221 = vmatprep.mubr.bf16.mxu0 0
    %4222 = vmatmul.mubr.bf16.gmra.mxu0 %v4184
    %v4223 = vpop.f32.mrf.mxu0
    %v4224 = vadd.f32 0.0, %v4223
    %v4225 = vpop.f32.mrf.mxu0
    %v4226 = vpop.f32.mrf.mxu0
    %v4227 = vpop.f32.mrf.mxu0
    %4228 = vdwg.mxu0
    %4229 = vrot.lane.b32.xlu0 %v3127, 48
    %v4230 = vpop.permute.xlu0 %4229
    %4231 = vrot.lane.b32.xlu0 %v3133, 48
    %v4232 = vpop.permute.xlu0 %4231
    %v4234 = vsel %vm205, %v4230, 0
    %v4237 = vsel %vm205, %v4232, 0
    %4239 = vmatprep.subr.bf16.mxu0 0
    %4240 = vmatpush1.bf16.xpose.msra.mxu0 0
    %4241 = vmatprep.subr.bf16.mxu0 0
    %4242 = vmatpush1.bf16.xpose.msra.mxu0 0
    %4243 = vmatprep.subr.bf16.mxu0 0
    %4244 = vmatpush1.bf16.xpose.msra.mxu0 0
    %4245 = vmatprep.subr.bf16.mxu0 0
    %4246 = vmatpush1.bf16.xpose.msra.mxu0 0
    %4247 = vmatprep.subr.bf16.mxu0 0
    %4248 = vmatpush1.bf16.xpose.msra.mxu0 0
    %4249 = vmatprep.subr.bf16.mxu0 0
    %4250 = vmatpush1.bf16.xpose.msra.mxu0 0
    %4251 = vmatprep.subr.bf16.mxu0 0
    %4252 = vmatpush1.bf16.xpose.msra.mxu0 0
    %4253 = vmatprep.subr.bf16.mxu0 0
    %4254 = vmatpush1.bf16.xpose.msra.mxu0 %v4237
    %4255 = vmatprep.subr.bf16.mxu0 0
    %4256 = vmatpush2.bf16.xpose.msra.mxu0 0
    %4257 = vmatprep.subr.bf16.mxu0 0
    %4258 = vmatpush2.bf16.xpose.msra.mxu0 0
    %4259 = vmatprep.subr.bf16.mxu0 0
    %4260 = vmatpush2.bf16.xpose.msra.mxu0 0
    %4261 = vmatprep.subr.bf16.mxu0 0
    %4262 = vmatpush2.bf16.xpose.msra.mxu0 0
    %4263 = vmatprep.subr.bf16.mxu0 0
    %4264 = vmatpush2.bf16.xpose.msra.mxu0 0
    %4265 = vmatprep.subr.bf16.mxu0 0
    %4266 = vmatpush2.bf16.xpose.msra.mxu0 0
    %4267 = vmatprep.subr.bf16.mxu0 0
    %4268 = vmatpush2.bf16.xpose.msra.mxu0 0
    %4269 = vmatprep.subr.bf16.mxu0 0
    %4270 = vmatpush2.bf16.xpose.msra.mxu0 0
    %4271 = vmatprep.mubr.bf16.mxu0 0
    %4272 = vmatmul.mubr.bf16.gmra.mxu0 %v4234
    %v4273 = vpop.f32.mrf.mxu0
    %v4274 = vadd.f32 0.0, %v4273
    %v4275 = vpop.f32.mrf.mxu0
    %v4276 = vpop.f32.mrf.mxu0
    %v4277 = vpop.f32.mrf.mxu0
    %4278 = vdwg.mxu0
    %4279 = vrot.lane.b32.xlu0 %v3128, 48
    %v4280 = vpop.permute.xlu0 %4279
    %4281 = vrot.lane.b32.xlu0 %v3134, 48
    %v4282 = vpop.permute.xlu0 %4281
    %v4284 = vsel %vm205, %v4280, 0
    %v4287 = vsel %vm205, %v4282, 0
    %4289 = vmatprep.subr.bf16.mxu0 0
    %4290 = vmatpush1.bf16.xpose.msra.mxu0 0
    %4291 = vmatprep.subr.bf16.mxu0 0
    %4292 = vmatpush1.bf16.xpose.msra.mxu0 0
    %4293 = vmatprep.subr.bf16.mxu0 0
    %4294 = vmatpush1.bf16.xpose.msra.mxu0 0
    %4295 = vmatprep.subr.bf16.mxu0 0
    %4296 = vmatpush1.bf16.xpose.msra.mxu0 0
    %4297 = vmatprep.subr.bf16.mxu0 0
    %4298 = vmatpush1.bf16.xpose.msra.mxu0 0
    %4299 = vmatprep.subr.bf16.mxu0 0
    %4300 = vmatpush1.bf16.xpose.msra.mxu0 0
    %4301 = vmatprep.subr.bf16.mxu0 0
    %4302 = vmatpush1.bf16.xpose.msra.mxu0 0
    %4303 = vmatprep.subr.bf16.mxu0 0
    %4304 = vmatpush1.bf16.xpose.msra.mxu0 %v4287
    %4305 = vmatprep.subr.bf16.mxu0 0
    %4306 = vmatpush2.bf16.xpose.msra.mxu0 0
    %4307 = vmatprep.subr.bf16.mxu0 0
    %4308 = vmatpush2.bf16.xpose.msra.mxu0 0
    %4309 = vmatprep.subr.bf16.mxu0 0
    %4310 = vmatpush2.bf16.xpose.msra.mxu0 0
    %4311 = vmatprep.subr.bf16.mxu0 0
    %4312 = vmatpush2.bf16.xpose.msra.mxu0 0
    %4313 = vmatprep.subr.bf16.mxu0 0
    %4314 = vmatpush2.bf16.xpose.msra.mxu0 0
    %4315 = vmatprep.subr.bf16.mxu0 0
    %4316 = vmatpush2.bf16.xpose.msra.mxu0 0
    %4317 = vmatprep.subr.bf16.mxu0 0
    %4318 = vmatpush2.bf16.xpose.msra.mxu0 0
    %4319 = vmatprep.subr.bf16.mxu0 0
    %4320 = vmatpush2.bf16.xpose.msra.mxu0 0
    %4321 = vmatprep.mubr.bf16.mxu0 0
    %4322 = vmatmul.mubr.bf16.gmra.mxu0 %v4284
    %v4323 = vpop.f32.mrf.mxu0
    %v4324 = vadd.f32 0.0, %v4323
    %v4325 = vpop.f32.mrf.mxu0
    %v4326 = vpop.f32.mrf.mxu0
    %v4327 = vpop.f32.mrf.mxu0
    %4328 = vdwg.mxu0
    %v4329 = vsel %vm624, %v4274, -inf
    %4330 = vmax.xlane.f32.xlu0 %v4329
    %v4331 = vpop.xlane.xlu0 %4330
    %v4332 = vsel %vm624, %v4324, -inf
    %4333 = vmax.xlane.f32.xlu0 %v4332
    %v4334 = vpop.xlane.xlu0 %4333
    %v4335 = vsub.f32 %v4274, %v4331
    %v4336 = vsub.f32 %v4324, %v4334
    %v4337 = vmul.f32 %v4335, 1.442695
    %v4338 = vpow.pop %v4337
    %v4339 = vmul.f32 %v4336, 1.442695
    %v4340 = vpow.pop %v4339
    %v4341 = vsel %vm624, %v4338, 0.0
    %4342 = vadd.xlane.f32.xlu0 %v4341
    %v4343 = vpop.xlane.xlu0 %4342
    %v4344 = vsel %vm624, %v4340, 0.0
    %4345 = vadd.xlane.f32.xlu0 %v4344
    %v4346 = vpop.xlane.xlu0 %4345
    %v4347 = vrcp.pop %v4343
    %v4348 = vrcp.pop %v4346
    %v4349 = vmul.f32 %v4338, %v4347
    %v4350 = vmul.f32 %v4340, %v4348
    %v4351 = vpack.c.bf16 %v4349, %v4349
    %v4352 = vpack.c.bf16 %v4350, %v4350
    %4353 = vrot.lane.b32.xlu0 %v3139, 48
    %v4354 = vpop.permute.xlu0 %4353
    %v4356 = vsel %vm624, %v4351, 0
    %v4359 = vsel %vm652, %v4354, 0
    %4361 = vmatprep.subr.bf16.mxu0 0
    %4362 = vmatpush1.bf16.msra.mxu0 0
    %4363 = vmatprep.subr.bf16.mxu0 0
    %4364 = vmatpush1.bf16.msra.mxu0 0
    %4365 = vmatprep.subr.bf16.mxu0 0
    %4366 = vmatpush1.bf16.msra.mxu0 0
    %4367 = vmatprep.subr.bf16.mxu0 0
    %4368 = vmatpush1.bf16.msra.mxu0 0
    %4369 = vmatprep.subr.bf16.mxu0 0
    %4370 = vmatpush1.bf16.msra.mxu0 0
    %4371 = vmatprep.subr.bf16.mxu0 0
    %4372 = vmatpush1.bf16.msra.mxu0 0
    %4373 = vmatprep.subr.bf16.mxu0 0
    %4374 = vmatpush1.bf16.msra.mxu0 0
    %4375 = vmatprep.subr.bf16.mxu0 0
    %4376 = vmatpush1.bf16.msra.mxu0 %v4359
    %4377 = vmatprep.subr.bf16.mxu0 0
    %4378 = vmatpush2.bf16.msra.mxu0 0
    %4379 = vmatprep.subr.bf16.mxu0 0
    %4380 = vmatpush2.bf16.msra.mxu0 0
    %4381 = vmatprep.subr.bf16.mxu0 0
    %4382 = vmatpush2.bf16.msra.mxu0 0
    %4383 = vmatprep.subr.bf16.mxu0 0
    %4384 = vmatpush2.bf16.msra.mxu0 0
    %4385 = vmatprep.subr.bf16.mxu0 0
    %4386 = vmatpush2.bf16.msra.mxu0 0
    %4387 = vmatprep.subr.bf16.mxu0 0
    %4388 = vmatpush2.bf16.msra.mxu0 0
    %4389 = vmatprep.subr.bf16.mxu0 0
    %4390 = vmatpush2.bf16.msra.mxu0 0
    %4391 = vmatprep.subr.bf16.mxu0 0
    %4392 = vmatpush2.bf16.msra.mxu0 0
    %4393 = vmatprep.mubr.bf16.mxu0 0
    %4394 = vmatmul.mubr.bf16.gmra.mxu0 %v4356
    %v4395 = vpop.f32.mrf.mxu0
    %v4396 = vadd.f32 0.0, %v4395
    %v4397 = vpop.f32.mrf.mxu0
    %v4398 = vpop.f32.mrf.mxu0
    %v4399 = vpop.f32.mrf.mxu0
    %4400 = vdwg.mxu0
    %4401 = vrot.lane.b32.xlu0 %v3140, 48
    %v4402 = vpop.permute.xlu0 %4401
    %v4404 = vsel %vm624, %v4352, 0
    %v4407 = vsel %vm652, %v4402, 0
    %4409 = vmatprep.subr.bf16.mxu0 0
    %4410 = vmatpush1.bf16.msra.mxu0 0
    %4411 = vmatprep.subr.bf16.mxu0 0
    %4412 = vmatpush1.bf16.msra.mxu0 0
    %4413 = vmatprep.subr.bf16.mxu0 0
    %4414 = vmatpush1.bf16.msra.mxu0 0
    %4415 = vmatprep.subr.bf16.mxu0 0
    %4416 = vmatpush1.bf16.msra.mxu0 0
    %4417 = vmatprep.subr.bf16.mxu0 0
    %4418 = vmatpush1.bf16.msra.mxu0 0
    %4419 = vmatprep.subr.bf16.mxu0 0
    %4420 = vmatpush1.bf16.msra.mxu0 0
    %4421 = vmatprep.subr.bf16.mxu0 0
    %4422 = vmatpush1.bf16.msra.mxu0 0
    %4423 = vmatprep.subr.bf16.mxu0 0
    %4424 = vmatpush1.bf16.msra.mxu0 %v4407
    %4425 = vmatprep.subr.bf16.mxu0 0
    %4426 = vmatpush2.bf16.msra.mxu0 0
    %4427 = vmatprep.subr.bf16.mxu0 0
    %4428 = vmatpush2.bf16.msra.mxu0 0
    %4429 = vmatprep.subr.bf16.mxu0 0
    %4430 = vmatpush2.bf16.msra.mxu0 0
    %4431 = vmatprep.subr.bf16.mxu0 0
    %4432 = vmatpush2.bf16.msra.mxu0 0
    %4433 = vmatprep.subr.bf16.mxu0 0
    %4434 = vmatpush2.bf16.msra.mxu0 0
    %4435 = vmatprep.subr.bf16.mxu0 0
    %4436 = vmatpush2.bf16.msra.mxu0 0
    %4437 = vmatprep.subr.bf16.mxu0 0
    %4438 = vmatpush2.bf16.msra.mxu0 0
    %4439 = vmatprep.subr.bf16.mxu0 0
    %4440 = vmatpush2.bf16.msra.mxu0 0
    %4441 = vmatprep.mubr.bf16.mxu0 0
    %4442 = vmatmul.mubr.bf16.gmra.mxu0 %v4404
    %v4443 = vpop.f32.mrf.mxu0
    %v4444 = vadd.f32 0.0, %v4443
    %v4445 = vpop.f32.mrf.mxu0
    %v4446 = vpop.f32.mrf.mxu0
    %v4447 = vpop.f32.mrf.mxu0
    %4448 = vdwg.mxu0
    %4449 = vrot.lane.b32.xlu0 %v3127, 32
    %v4450 = vpop.permute.xlu0 %4449
    %4451 = vrot.lane.b32.xlu0 %v3133, 32
    %v4452 = vpop.permute.xlu0 %4451
    %v4454 = vsel %vm205, %v4450, 0
    %v4457 = vsel %vm205, %v4452, 0
    %4459 = vmatprep.subr.bf16.mxu0 0
    %4460 = vmatpush1.bf16.xpose.msra.mxu0 0
    %4461 = vmatprep.subr.bf16.mxu0 0
    %4462 = vmatpush1.bf16.xpose.msra.mxu0 0
    %4463 = vmatprep.subr.bf16.mxu0 0
    %4464 = vmatpush1.bf16.xpose.msra.mxu0 0
    %4465 = vmatprep.subr.bf16.mxu0 0
    %4466 = vmatpush1.bf16.xpose.msra.mxu0 0
    %4467 = vmatprep.subr.bf16.mxu0 0
    %4468 = vmatpush1.bf16.xpose.msra.mxu0 0
    %4469 = vmatprep.subr.bf16.mxu0 0
    %4470 = vmatpush1.bf16.xpose.msra.mxu0 0
    %4471 = vmatprep.subr.bf16.mxu0 0
    %4472 = vmatpush1.bf16.xpose.msra.mxu0 0
    %4473 = vmatprep.subr.bf16.mxu0 0
    %4474 = vmatpush1.bf16.xpose.msra.mxu0 %v4457
    %4475 = vmatprep.subr.bf16.mxu0 0
    %4476 = vmatpush2.bf16.xpose.msra.mxu0 0
    %4477 = vmatprep.subr.bf16.mxu0 0
    %4478 = vmatpush2.bf16.xpose.msra.mxu0 0
    %4479 = vmatprep.subr.bf16.mxu0 0
    %4480 = vmatpush2.bf16.xpose.msra.mxu0 0
    %4481 = vmatprep.subr.bf16.mxu0 0
    %4482 = vmatpush2.bf16.xpose.msra.mxu0 0
    %4483 = vmatprep.subr.bf16.mxu0 0
    %4484 = vmatpush2.bf16.xpose.msra.mxu0 0
    %4485 = vmatprep.subr.bf16.mxu0 0
    %4486 = vmatpush2.bf16.xpose.msra.mxu0 0
    %4487 = vmatprep.subr.bf16.mxu0 0
    %4488 = vmatpush2.bf16.xpose.msra.mxu0 0
    %4489 = vmatprep.subr.bf16.mxu0 0
    %4490 = vmatpush2.bf16.xpose.msra.mxu0 0
    %4491 = vmatprep.mubr.bf16.mxu0 0
    %4492 = vmatmul.mubr.bf16.gmra.mxu0 %v4454
    %v4493 = vpop.f32.mrf.mxu0
    %v4494 = vadd.f32 0.0, %v4493
    %v4495 = vpop.f32.mrf.mxu0
    %v4496 = vpop.f32.mrf.mxu0
    %v4497 = vpop.f32.mrf.mxu0
    %4498 = vdwg.mxu0
    %4499 = vrot.lane.b32.xlu0 %v3128, 32
    %v4500 = vpop.permute.xlu0 %4499
    %4501 = vrot.lane.b32.xlu0 %v3134, 32
    %v4502 = vpop.permute.xlu0 %4501
    %v4504 = vsel %vm205, %v4500, 0
    %v4507 = vsel %vm205, %v4502, 0
    %4509 = vmatprep.subr.bf16.mxu0 0
    %4510 = vmatpush1.bf16.xpose.msra.mxu0 0
    %4511 = vmatprep.subr.bf16.mxu0 0
    %4512 = vmatpush1.bf16.xpose.msra.mxu0 0
    %4513 = vmatprep.subr.bf16.mxu0 0
    %4514 = vmatpush1.bf16.xpose.msra.mxu0 0
    %4515 = vmatprep.subr.bf16.mxu0 0
    %4516 = vmatpush1.bf16.xpose.msra.mxu0 0
    %4517 = vmatprep.subr.bf16.mxu0 0
    %4518 = vmatpush1.bf16.xpose.msra.mxu0 0
    %4519 = vmatprep.subr.bf16.mxu0 0
    %4520 = vmatpush1.bf16.xpose.msra.mxu0 0
    %4521 = vmatprep.subr.bf16.mxu0 0
    %4522 = vmatpush1.bf16.xpose.msra.mxu0 0
    %4523 = vmatprep.subr.bf16.mxu0 0
    %4524 = vmatpush1.bf16.xpose.msra.mxu0 %v4507
    %4525 = vmatprep.subr.bf16.mxu0 0
    %4526 = vmatpush2.bf16.xpose.msra.mxu0 0
    %4527 = vmatprep.subr.bf16.mxu0 0
    %4528 = vmatpush2.bf16.xpose.msra.mxu0 0
    %4529 = vmatprep.subr.bf16.mxu0 0
    %4530 = vmatpush2.bf16.xpose.msra.mxu0 0
    %4531 = vmatprep.subr.bf16.mxu0 0
    %4532 = vmatpush2.bf16.xpose.msra.mxu0 0
    %4533 = vmatprep.subr.bf16.mxu0 0
    %4534 = vmatpush2.bf16.xpose.msra.mxu0 0
    %4535 = vmatprep.subr.bf16.mxu0 0
    %4536 = vmatpush2.bf16.xpose.msra.mxu0 0
    %4537 = vmatprep.subr.bf16.mxu0 0
    %4538 = vmatpush2.bf16.xpose.msra.mxu0 0
    %4539 = vmatprep.subr.bf16.mxu0 0
    %4540 = vmatpush2.bf16.xpose.msra.mxu0 0
    %4541 = vmatprep.mubr.bf16.mxu0 0
    %4542 = vmatmul.mubr.bf16.gmra.mxu0 %v4504
    %v4543 = vpop.f32.mrf.mxu0
    %v4544 = vadd.f32 0.0, %v4543
    %v4545 = vpop.f32.mrf.mxu0
    %v4546 = vpop.f32.mrf.mxu0
    %v4547 = vpop.f32.mrf.mxu0
    %4548 = vdwg.mxu0
    %v4549 = vsel %vm624, %v4494, -inf
    %4550 = vmax.xlane.f32.xlu0 %v4549
    %v4551 = vpop.xlane.xlu0 %4550
    %v4552 = vsel %vm624, %v4544, -inf
    %4553 = vmax.xlane.f32.xlu0 %v4552
    %v4554 = vpop.xlane.xlu0 %4553
    %v4555 = vsub.f32 %v4494, %v4551
    %v4556 = vsub.f32 %v4544, %v4554
    %v4557 = vmul.f32 %v4555, 1.442695
    %v4558 = vpow.pop %v4557
    %v4559 = vmul.f32 %v4556, 1.442695
    %v4560 = vpow.pop %v4559
    %v4561 = vsel %vm624, %v4558, 0.0
    %4562 = vadd.xlane.f32.xlu0 %v4561
    %v4563 = vpop.xlane.xlu0 %4562
    %v4564 = vsel %vm624, %v4560, 0.0
    %4565 = vadd.xlane.f32.xlu0 %v4564
    %v4566 = vpop.xlane.xlu0 %4565
    %v4567 = vrcp.pop %v4563
    %v4568 = vrcp.pop %v4566
    %v4569 = vmul.f32 %v4558, %v4567
    %v4570 = vmul.f32 %v4560, %v4568
    %v4571 = vpack.c.bf16 %v4569, %v4569
    %v4572 = vpack.c.bf16 %v4570, %v4570
    %4573 = vrot.lane.b32.xlu0 %v3139, 32
    %v4574 = vpop.permute.xlu0 %4573
    %v4576 = vsel %vm624, %v4571, 0
    %v4579 = vsel %vm652, %v4574, 0
    %4581 = vmatprep.subr.bf16.mxu0 0
    %4582 = vmatpush1.bf16.msra.mxu0 0
    %4583 = vmatprep.subr.bf16.mxu0 0
    %4584 = vmatpush1.bf16.msra.mxu0 0
    %4585 = vmatprep.subr.bf16.mxu0 0
    %4586 = vmatpush1.bf16.msra.mxu0 0
    %4587 = vmatprep.subr.bf16.mxu0 0
    %4588 = vmatpush1.bf16.msra.mxu0 0
    %4589 = vmatprep.subr.bf16.mxu0 0
    %4590 = vmatpush1.bf16.msra.mxu0 0
    %4591 = vmatprep.subr.bf16.mxu0 0
    %4592 = vmatpush1.bf16.msra.mxu0 0
    %4593 = vmatprep.subr.bf16.mxu0 0
    %4594 = vmatpush1.bf16.msra.mxu0 0
    %4595 = vmatprep.subr.bf16.mxu0 0
    %4596 = vmatpush1.bf16.msra.mxu0 %v4579
    %4597 = vmatprep.subr.bf16.mxu0 0
    %4598 = vmatpush2.bf16.msra.mxu0 0
    %4599 = vmatprep.subr.bf16.mxu0 0
    %4600 = vmatpush2.bf16.msra.mxu0 0
    %4601 = vmatprep.subr.bf16.mxu0 0
    %4602 = vmatpush2.bf16.msra.mxu0 0
    %4603 = vmatprep.subr.bf16.mxu0 0
    %4604 = vmatpush2.bf16.msra.mxu0 0
    %4605 = vmatprep.subr.bf16.mxu0 0
    %4606 = vmatpush2.bf16.msra.mxu0 0
    %4607 = vmatprep.subr.bf16.mxu0 0
    %4608 = vmatpush2.bf16.msra.mxu0 0
    %4609 = vmatprep.subr.bf16.mxu0 0
    %4610 = vmatpush2.bf16.msra.mxu0 0
    %4611 = vmatprep.subr.bf16.mxu0 0
    %4612 = vmatpush2.bf16.msra.mxu0 0
    %4613 = vmatprep.mubr.bf16.mxu0 0
    %4614 = vmatmul.mubr.bf16.gmra.mxu0 %v4576
    %v4615 = vpop.f32.mrf.mxu0
    %v4616 = vadd.f32 0.0, %v4615
    %v4617 = vpop.f32.mrf.mxu0
    %v4618 = vpop.f32.mrf.mxu0
    %v4619 = vpop.f32.mrf.mxu0
    %4620 = vdwg.mxu0
    %4621 = vrot.lane.b32.xlu0 %v3140, 32
    %v4622 = vpop.permute.xlu0 %4621
    %v4624 = vsel %vm624, %v4572, 0
    %v4627 = vsel %vm652, %v4622, 0
    %4629 = vmatprep.subr.bf16.mxu0 0
    %4630 = vmatpush1.bf16.msra.mxu0 0
    %4631 = vmatprep.subr.bf16.mxu0 0
    %4632 = vmatpush1.bf16.msra.mxu0 0
    %4633 = vmatprep.subr.bf16.mxu0 0
    %4634 = vmatpush1.bf16.msra.mxu0 0
    %4635 = vmatprep.subr.bf16.mxu0 0
    %4636 = vmatpush1.bf16.msra.mxu0 0
    %4637 = vmatprep.subr.bf16.mxu0 0
    %4638 = vmatpush1.bf16.msra.mxu0 0
    %4639 = vmatprep.subr.bf16.mxu0 0
    %4640 = vmatpush1.bf16.msra.mxu0 0
    %4641 = vmatprep.subr.bf16.mxu0 0
    %4642 = vmatpush1.bf16.msra.mxu0 0
    %4643 = vmatprep.subr.bf16.mxu0 0
    %4644 = vmatpush1.bf16.msra.mxu0 %v4627
    %4645 = vmatprep.subr.bf16.mxu0 0
    %4646 = vmatpush2.bf16.msra.mxu0 0
    %4647 = vmatprep.subr.bf16.mxu0 0
    %4648 = vmatpush2.bf16.msra.mxu0 0
    %4649 = vmatprep.subr.bf16.mxu0 0
    %4650 = vmatpush2.bf16.msra.mxu0 0
    %4651 = vmatprep.subr.bf16.mxu0 0
    %4652 = vmatpush2.bf16.msra.mxu0 0
    %4653 = vmatprep.subr.bf16.mxu0 0
    %4654 = vmatpush2.bf16.msra.mxu0 0
    %4655 = vmatprep.subr.bf16.mxu0 0
    %4656 = vmatpush2.bf16.msra.mxu0 0
    %4657 = vmatprep.subr.bf16.mxu0 0
    %4658 = vmatpush2.bf16.msra.mxu0 0
    %4659 = vmatprep.subr.bf16.mxu0 0
    %4660 = vmatpush2.bf16.msra.mxu0 0
    %4661 = vmatprep.mubr.bf16.mxu0 0
    %4662 = vmatmul.mubr.bf16.gmra.mxu0 %v4624
    %v4663 = vpop.f32.mrf.mxu0
    %v4664 = vadd.f32 0.0, %v4663
    %v4665 = vpop.f32.mrf.mxu0
    %v4666 = vpop.f32.mrf.mxu0
    %v4667 = vpop.f32.mrf.mxu0
    %4668 = vdwg.mxu0
    %4669 = vrot.lane.b32.xlu0 %v3127, 16
    %v4670 = vpop.permute.xlu0 %4669
    %4671 = vrot.lane.b32.xlu0 %v3133, 16
    %v4672 = vpop.permute.xlu0 %4671
    %v4674 = vsel %vm205, %v4670, 0
    %v4677 = vsel %vm205, %v4672, 0
    %4679 = vmatprep.subr.bf16.mxu0 0
    %4680 = vmatpush1.bf16.xpose.msra.mxu0 0
    %4681 = vmatprep.subr.bf16.mxu0 0
    %4682 = vmatpush1.bf16.xpose.msra.mxu0 0
    %4683 = vmatprep.subr.bf16.mxu0 0
    %4684 = vmatpush1.bf16.xpose.msra.mxu0 0
    %4685 = vmatprep.subr.bf16.mxu0 0
    %4686 = vmatpush1.bf16.xpose.msra.mxu0 0
    %4687 = vmatprep.subr.bf16.mxu0 0
    %4688 = vmatpush1.bf16.xpose.msra.mxu0 0
    %4689 = vmatprep.subr.bf16.mxu0 0
    %4690 = vmatpush1.bf16.xpose.msra.mxu0 0
    %4691 = vmatprep.subr.bf16.mxu0 0
    %4692 = vmatpush1.bf16.xpose.msra.mxu0 0
    %4693 = vmatprep.subr.bf16.mxu0 0
    %4694 = vmatpush1.bf16.xpose.msra.mxu0 %v4677
    %4695 = vmatprep.subr.bf16.mxu0 0
    %4696 = vmatpush2.bf16.xpose.msra.mxu0 0
    %4697 = vmatprep.subr.bf16.mxu0 0
    %4698 = vmatpush2.bf16.xpose.msra.mxu0 0
    %4699 = vmatprep.subr.bf16.mxu0 0
    %4700 = vmatpush2.bf16.xpose.msra.mxu0 0
    %4701 = vmatprep.subr.bf16.mxu0 0
    %4702 = vmatpush2.bf16.xpose.msra.mxu0 0
    %4703 = vmatprep.subr.bf16.mxu0 0
    %4704 = vmatpush2.bf16.xpose.msra.mxu0 0
    %4705 = vmatprep.subr.bf16.mxu0 0
    %4706 = vmatpush2.bf16.xpose.msra.mxu0 0
    %4707 = vmatprep.subr.bf16.mxu0 0
    %4708 = vmatpush2.bf16.xpose.msra.mxu0 0
    %4709 = vmatprep.subr.bf16.mxu0 0
    %4710 = vmatpush2.bf16.xpose.msra.mxu0 0
    %4711 = vmatprep.mubr.bf16.mxu0 0
    %4712 = vmatmul.mubr.bf16.gmra.mxu0 %v4674
    %v4713 = vpop.f32.mrf.mxu0
    %v4714 = vadd.f32 0.0, %v4713
    %v4715 = vpop.f32.mrf.mxu0
    %v4716 = vpop.f32.mrf.mxu0
    %v4717 = vpop.f32.mrf.mxu0
    %4718 = vdwg.mxu0
    %4719 = vrot.lane.b32.xlu0 %v3128, 16
    %v4720 = vpop.permute.xlu0 %4719
    %4721 = vrot.lane.b32.xlu0 %v3134, 16
    %v4722 = vpop.permute.xlu0 %4721
    %v4724 = vsel %vm205, %v4720, 0
    %v4727 = vsel %vm205, %v4722, 0
    %4729 = vmatprep.subr.bf16.mxu0 0
    %4730 = vmatpush1.bf16.xpose.msra.mxu0 0
    %4731 = vmatprep.subr.bf16.mxu0 0
    %4732 = vmatpush1.bf16.xpose.msra.mxu0 0
    %4733 = vmatprep.subr.bf16.mxu0 0
    %4734 = vmatpush1.bf16.xpose.msra.mxu0 0
    %4735 = vmatprep.subr.bf16.mxu0 0
    %4736 = vmatpush1.bf16.xpose.msra.mxu0 0
    %4737 = vmatprep.subr.bf16.mxu0 0
    %4738 = vmatpush1.bf16.xpose.msra.mxu0 0
    %4739 = vmatprep.subr.bf16.mxu0 0
    %4740 = vmatpush1.bf16.xpose.msra.mxu0 0
    %4741 = vmatprep.subr.bf16.mxu0 0
    %4742 = vmatpush1.bf16.xpose.msra.mxu0 0
    %4743 = vmatprep.subr.bf16.mxu0 0
    %4744 = vmatpush1.bf16.xpose.msra.mxu0 %v4727
    %4745 = vmatprep.subr.bf16.mxu0 0
    %4746 = vmatpush2.bf16.xpose.msra.mxu0 0
    %4747 = vmatprep.subr.bf16.mxu0 0
    %4748 = vmatpush2.bf16.xpose.msra.mxu0 0
    %4749 = vmatprep.subr.bf16.mxu0 0
    %4750 = vmatpush2.bf16.xpose.msra.mxu0 0
    %4751 = vmatprep.subr.bf16.mxu0 0
    %4752 = vmatpush2.bf16.xpose.msra.mxu0 0
    %4753 = vmatprep.subr.bf16.mxu0 0
    %4754 = vmatpush2.bf16.xpose.msra.mxu0 0
    %4755 = vmatprep.subr.bf16.mxu0 0
    %4756 = vmatpush2.bf16.xpose.msra.mxu0 0
    %4757 = vmatprep.subr.bf16.mxu0 0
    %4758 = vmatpush2.bf16.xpose.msra.mxu0 0
    %4759 = vmatprep.subr.bf16.mxu0 0
    %4760 = vmatpush2.bf16.xpose.msra.mxu0 0
    %4761 = vmatprep.mubr.bf16.mxu0 0
    %4762 = vmatmul.mubr.bf16.gmra.mxu0 %v4724
    %v4763 = vpop.f32.mrf.mxu0
    %v4764 = vadd.f32 0.0, %v4763
    %v4765 = vpop.f32.mrf.mxu0
    %v4766 = vpop.f32.mrf.mxu0
    %v4767 = vpop.f32.mrf.mxu0
    %4768 = vdwg.mxu0
    %v4769 = vsel %vm624, %v4714, -inf
    %4770 = vmax.xlane.f32.xlu0 %v4769
    %v4771 = vpop.xlane.xlu0 %4770
    %v4772 = vsel %vm624, %v4764, -inf
    %4773 = vmax.xlane.f32.xlu0 %v4772
    %v4774 = vpop.xlane.xlu0 %4773
    %v4775 = vsub.f32 %v4714, %v4771
    %v4776 = vsub.f32 %v4764, %v4774
    %v4777 = vmul.f32 %v4775, 1.442695
    %v4778 = vpow.pop %v4777
    %v4779 = vmul.f32 %v4776, 1.442695
    %v4780 = vpow.pop %v4779
    %v4781 = vsel %vm624, %v4778, 0.0
    %4782 = vadd.xlane.f32.xlu0 %v4781
    %v4783 = vpop.xlane.xlu0 %4782
    %v4784 = vsel %vm624, %v4780, 0.0
    %4785 = vadd.xlane.f32.xlu0 %v4784
    %v4786 = vpop.xlane.xlu0 %4785
    %v4787 = vrcp.pop %v4783
    %v4788 = vrcp.pop %v4786
    %v4789 = vmul.f32 %v4778, %v4787
    %v4790 = vmul.f32 %v4780, %v4788
    %v4791 = vpack.c.bf16 %v4789, %v4789
    %v4792 = vpack.c.bf16 %v4790, %v4790
    %4793 = vrot.lane.b32.xlu0 %v3139, 16
    %v4794 = vpop.permute.xlu0 %4793
    %v4796 = vsel %vm624, %v4791, 0
    %v4799 = vsel %vm652, %v4794, 0
    %4801 = vmatprep.subr.bf16.mxu0 0
    %4802 = vmatpush1.bf16.msra.mxu0 0
    %4803 = vmatprep.subr.bf16.mxu0 0
    %4804 = vmatpush1.bf16.msra.mxu0 0
    %4805 = vmatprep.subr.bf16.mxu0 0
    %4806 = vmatpush1.bf16.msra.mxu0 0
    %4807 = vmatprep.subr.bf16.mxu0 0
    %4808 = vmatpush1.bf16.msra.mxu0 0
    %4809 = vmatprep.subr.bf16.mxu0 0
    %4810 = vmatpush1.bf16.msra.mxu0 0
    %4811 = vmatprep.subr.bf16.mxu0 0
    %4812 = vmatpush1.bf16.msra.mxu0 0
    %4813 = vmatprep.subr.bf16.mxu0 0
    %4814 = vmatpush1.bf16.msra.mxu0 0
    %4815 = vmatprep.subr.bf16.mxu0 0
    %4816 = vmatpush1.bf16.msra.mxu0 %v4799
    %4817 = vmatprep.subr.bf16.mxu0 0
    %4818 = vmatpush2.bf16.msra.mxu0 0
    %4819 = vmatprep.subr.bf16.mxu0 0
    %4820 = vmatpush2.bf16.msra.mxu0 0
    %4821 = vmatprep.subr.bf16.mxu0 0
    %4822 = vmatpush2.bf16.msra.mxu0 0
    %4823 = vmatprep.subr.bf16.mxu0 0
    %4824 = vmatpush2.bf16.msra.mxu0 0
    %4825 = vmatprep.subr.bf16.mxu0 0
    %4826 = vmatpush2.bf16.msra.mxu0 0
    %4827 = vmatprep.subr.bf16.mxu0 0
    %4828 = vmatpush2.bf16.msra.mxu0 0
    %4829 = vmatprep.subr.bf16.mxu0 0
    %4830 = vmatpush2.bf16.msra.mxu0 0
    %4831 = vmatprep.subr.bf16.mxu0 0
    %4832 = vmatpush2.bf16.msra.mxu0 0
    %4833 = vmatprep.mubr.bf16.mxu0 0
    %4834 = vmatmul.mubr.bf16.gmra.mxu0 %v4796
    %v4835 = vpop.f32.mrf.mxu0
    %v4836 = vadd.f32 0.0, %v4835
    %v4837 = vpop.f32.mrf.mxu0
    %v4838 = vpop.f32.mrf.mxu0
    %v4839 = vpop.f32.mrf.mxu0
    %4840 = vdwg.mxu0
    %4841 = vrot.lane.b32.xlu0 %v3140, 16
    %v4842 = vpop.permute.xlu0 %4841
    %v4844 = vsel %vm624, %v4792, 0
    %v4847 = vsel %vm652, %v4842, 0
    %4849 = vmatprep.subr.bf16.mxu0 0
    %4850 = vmatpush1.bf16.msra.mxu0 0
    %4851 = vmatprep.subr.bf16.mxu0 0
    %4852 = vmatpush1.bf16.msra.mxu0 0
    %4853 = vmatprep.subr.bf16.mxu0 0
    %4854 = vmatpush1.bf16.msra.mxu0 0
    %4855 = vmatprep.subr.bf16.mxu0 0
    %4856 = vmatpush1.bf16.msra.mxu0 0
    %4857 = vmatprep.subr.bf16.mxu0 0
    %4858 = vmatpush1.bf16.msra.mxu0 0
    %4859 = vmatprep.subr.bf16.mxu0 0
    %4860 = vmatpush1.bf16.msra.mxu0 0
    %4861 = vmatprep.subr.bf16.mxu0 0
    %4862 = vmatpush1.bf16.msra.mxu0 0
    %4863 = vmatprep.subr.bf16.mxu0 0
    %4864 = vmatpush1.bf16.msra.mxu0 %v4847
    %4865 = vmatprep.subr.bf16.mxu0 0
    %4866 = vmatpush2.bf16.msra.mxu0 0
    %4867 = vmatprep.subr.bf16.mxu0 0
    %4868 = vmatpush2.bf16.msra.mxu0 0
    %4869 = vmatprep.subr.bf16.mxu0 0
    %4870 = vmatpush2.bf16.msra.mxu0 0
    %4871 = vmatprep.subr.bf16.mxu0 0
    %4872 = vmatpush2.bf16.msra.mxu0 0
    %4873 = vmatprep.subr.bf16.mxu0 0
    %4874 = vmatpush2.bf16.msra.mxu0 0
    %4875 = vmatprep.subr.bf16.mxu0 0
    %4876 = vmatpush2.bf16.msra.mxu0 0
    %4877 = vmatprep.subr.bf16.mxu0 0
    %4878 = vmatpush2.bf16.msra.mxu0 0
    %4879 = vmatprep.subr.bf16.mxu0 0
    %4880 = vmatpush2.bf16.msra.mxu0 0
    %4881 = vmatprep.mubr.bf16.mxu0 0
    %4882 = vmatmul.mubr.bf16.gmra.mxu0 %v4844
    %v4883 = vpop.f32.mrf.mxu0
    %v4884 = vadd.f32 0.0, %v4883
    %v4885 = vpop.f32.mrf.mxu0
    %v4886 = vpop.f32.mrf.mxu0
    %v4887 = vpop.f32.mrf.mxu0
    %4888 = vdwg.mxu0
    %4891 = vrot.lane.b32.xlu0 %v3469, 8
    %v4892 = vpop.permute.xlu0 %4891
    %4893 = vrot.lane.b32.xlu0 %v3470, 8
    %v4894 = vpop.permute.xlu0 %4893
    %4899 = vrot.lane.b32.xlu0 %v3689, 16
    %v4900 = vpop.permute.xlu0 %4899
    %4901 = vrot.lane.b32.xlu0 %v3690, 16
    %v4902 = vpop.permute.xlu0 %4901
    %4907 = vrot.lane.b32.xlu0 %v3909, 24
    %v4908 = vpop.permute.xlu0 %4907
    %4909 = vrot.lane.b32.xlu0 %v3910, 24
    %v4910 = vpop.permute.xlu0 %4909
    %4915 = vrot.lane.b32.xlu0 %v4129, 32
    %v4916 = vpop.permute.xlu0 %4915
    %4917 = vrot.lane.b32.xlu0 %v4130, 32
    %v4918 = vpop.permute.xlu0 %4917
    %4923 = vrot.lane.b32.xlu0 %v4349, 40
    %v4924 = vpop.permute.xlu0 %4923
    %4925 = vrot.lane.b32.xlu0 %v4350, 40
    %v4926 = vpop.permute.xlu0 %4925
    %4931 = vrot.lane.b32.xlu0 %v4569, 48
    %v4932 = vpop.permute.xlu0 %4931
    %4933 = vrot.lane.b32.xlu0 %v4570, 48
    %v4934 = vpop.permute.xlu0 %4933
    %4939 = vrot.lane.b32.xlu0 %v4789, 56
    %v4940 = vpop.permute.xlu0 %4939
    %4941 = vrot.lane.b32.xlu0 %v4790, 56
    %v4942 = vpop.permute.xlu0 %4941
    %v4945 = vsel %vm624, %v3253, %v4892
    %v4946 = vsel %vm624, %v3254, %v4894
    %v4947 = vsel %vm205, %v4945, %v4900
    %v4948 = vsel %vm205, %v4946, %v4902
    %v4949 = vsel %vm2342, %v4947, %v4908
    %v4950 = vsel %vm2342, %v4948, %v4910
    %v4951 = vsel %vm2345, %v4949, %v4916
    %v4952 = vsel %vm2345, %v4950, %v4918
    %v4953 = vsel %vm2348, %v4951, %v4924
    %v4954 = vsel %vm2348, %v4952, %v4926
    %v4955 = vsel %vm2351, %v4953, %v4932
    %v4956 = vsel %vm2351, %v4954, %v4934
    %v4957 = vsel %vm2354, %v4955, %v4940
    %v4958 = vsel %vm2354, %v4956, %v4942
    %4959 = vst.msk [vmem:[%s91] sm:$0xff] %vm2357, %v4957
    %4960 = vst.msk [vmem:[%s91 + $0x8] sm:$0xff] %vm2357, %v4958
    %4963 = vrot.lane.b32.xlu0 %v3516, 16
    %v4964 = vpop.permute.xlu0 %4963
    %4965 = vrot.lane.b32.xlu0 %v3564, 16
    %v4966 = vpop.permute.xlu0 %4965
    %4971 = vrot.lane.b32.xlu0 %v3736, 32
    %v4972 = vpop.permute.xlu0 %4971
    %4973 = vrot.lane.b32.xlu0 %v3784, 32
    %v4974 = vpop.permute.xlu0 %4973
    %4979 = vrot.lane.b32.xlu0 %v3956, 48
    %v4980 = vpop.permute.xlu0 %4979
    %4981 = vrot.lane.b32.xlu0 %v4004, 48
    %v4982 = vpop.permute.xlu0 %4981
    %4987 = vrot.lane.b32.xlu0 %v4176, 64
    %v4988 = vpop.permute.xlu0 %4987
    %4989 = vrot.lane.b32.xlu0 %v4224, 64
    %v4990 = vpop.permute.xlu0 %4989
    %4995 = vrot.lane.b32.xlu0 %v4396, 80
    %v4996 = vpop.permute.xlu0 %4995
    %4997 = vrot.lane.b32.xlu0 %v4444, 80
    %v4998 = vpop.permute.xlu0 %4997
    %5003 = vrot.lane.b32.xlu0 %v4616, 96
    %v5004 = vpop.permute.xlu0 %5003
    %5005 = vrot.lane.b32.xlu0 %v4664, 96
    %v5006 = vpop.permute.xlu0 %5005
    %5011 = vrot.lane.b32.xlu0 %v4836, 112
    %v5012 = vpop.permute.xlu0 %5011
    %5013 = vrot.lane.b32.xlu0 %v4884, 112
    %v5014 = vpop.permute.xlu0 %5013
    %v5017 = vsel %vm205, %v3298, %v4964
    %v5018 = vsel %vm205, %v3344, %v4966
    %v5019 = vsel %vm2345, %v5017, %v4972
    %v5020 = vsel %vm2345, %v5018, %v4974
    %v5021 = vsel %vm2351, %v5019, %v4980
    %v5022 = vsel %vm2351, %v5020, %v4982
    %v5023 = vsel %vm2357, %v5021, %v4988
    %v5024 = vsel %vm2357, %v5022, %v4990
    %v5025 = vsel %vm2424, %v5023, %v4996
    %v5026 = vsel %vm2424, %v5024, %v4998
    %v5027 = vsel %vm2427, %v5025, %v5004
    %v5028 = vsel %vm2427, %v5026, %v5006
    %v5029 = vsel %vm2430, %v5027, %v5012
    %v5030 = vsel %vm2430, %v5028, %v5014
    %v5031 = vpack.c.bf16 %v5030, %v5029
    %v5032 = vld [vmem:[%s35] sm:$0xf]
    %v5033 = vld [vmem:[%s35 + $0x4] sm:$0xf]
    %v5034 = vld [vmem:[%s35 + $0x8] sm:$0xf]
    %v5035 = vld [vmem:[%s35 + $0xc] sm:$0xf]
    %v5036 = vld [vmem:[%s35 + $0x10] sm:$0xf]
    %v5037 = vld [vmem:[%s35 + $0x14] sm:$0xf]
    %v5038 = vld [vmem:[%s35 + $0x18] sm:$0xf]
    %v5039 = vld [vmem:[%s35 + $0x1c] sm:$0xf]
    %v5040 = vld [vmem:[%s35 + $0x20] sm:$0xf]
    %v5041 = vld [vmem:[%s35 + $0x24] sm:$0xf]
    %v5042 = vld [vmem:[%s35 + $0x28] sm:$0xf]
    %v5043 = vld [vmem:[%s35 + $0x2c] sm:$0xf]
    %v5044 = vld [vmem:[%s35 + $0x30] sm:$0xf]
    %v5045 = vld [vmem:[%s35 + $0x34] sm:$0xf]
    %v5046 = vld [vmem:[%s35 + $0x38] sm:$0xf]
    %v5047 = vld [vmem:[%s35 + $0x3c] sm:$0xf]
    %v5048 = vld [vmem:[%s37] sm:$0x1]
    %v5050 = vlaneseq
    %v5051 = vshrl.u32 %v5050, 7
    %v5052 = vsub.s32 0, %v5051
    %v5053 = vrot.slane %v5048, %v5052
    %v5071 = vunpack.c.l.b16 %v5032
    %v5072 = vunpack.c.l.b16 %v5033
    %v5073 = vunpack.c.l.b16 %v5034
    %v5074 = vunpack.c.l.b16 %v5035
    %v5075 = vunpack.c.l.b16 %v5036
    %v5076 = vunpack.c.l.b16 %v5037
    %v5077 = vunpack.c.l.b16 %v5038
    %v5078 = vunpack.c.l.b16 %v5039
    %v5079 = vunpack.c.l.b16 %v5040
    %v5080 = vunpack.c.l.b16 %v5041
    %v5081 = vunpack.c.l.b16 %v5042
    %v5082 = vunpack.c.l.b16 %v5043
    %v5083 = vunpack.c.l.b16 %v5044
    %v5084 = vunpack.c.l.b16 %v5045
    %v5085 = vunpack.c.l.b16 %v5046
    %v5086 = vunpack.c.l.b16 %v5047
    %v5087 = vpack.c.b16 %v5072, %v5071
    %v5088 = vpack.c.b16 %v5074, %v5073
    %v5089 = vpack.c.b16 %v5076, %v5075
    %v5090 = vpack.c.b16 %v5078, %v5077
    %v5091 = vpack.c.b16 %v5080, %v5079
    %v5092 = vpack.c.b16 %v5082, %v5081
    %v5093 = vpack.c.b16 %v5084, %v5083
    %v5094 = vpack.c.b16 %v5086, %v5085
    %5103 = vmatprep.subr.bf16.mxu0 0
    %5104 = vmatpush1.bf16.msra.mxu0 %v5094
    %5105 = vmatprep.subr.bf16.mxu0 0
    %5106 = vmatpush1.bf16.msra.mxu0 %v5093
    %5107 = vmatprep.subr.bf16.mxu0 0
    %5108 = vmatpush1.bf16.msra.mxu0 %v5092
    %5109 = vmatprep.subr.bf16.mxu0 0
    %5110 = vmatpush1.bf16.msra.mxu0 %v5091
    %5111 = vmatprep.subr.bf16.mxu0 0
    %5112 = vmatpush1.bf16.msra.mxu0 %v5090
    %5113 = vmatprep.subr.bf16.mxu0 0
    %5114 = vmatpush1.bf16.msra.mxu0 %v5089
    %5115 = vmatprep.subr.bf16.mxu0 0
    %5116 = vmatpush1.bf16.msra.mxu0 %v5088
    %5117 = vmatprep.subr.bf16.mxu0 0
    %5118 = vmatpush1.bf16.msra.mxu0 %v5087
    %5119 = vmatprep.subr.bf16.mxu0 0
    %5120 = vmatpush2.bf16.msra.mxu0 0
    %5121 = vmatprep.subr.bf16.mxu0 0
    %5122 = vmatpush2.bf16.msra.mxu0 0
    %5123 = vmatprep.subr.bf16.mxu0 0
    %5124 = vmatpush2.bf16.msra.mxu0 0
    %5125 = vmatprep.subr.bf16.mxu0 0
    %5126 = vmatpush2.bf16.msra.mxu0 0
    %5127 = vmatprep.subr.bf16.mxu0 0
    %5128 = vmatpush2.bf16.msra.mxu0 0
    %5129 = vmatprep.subr.bf16.mxu0 0
    %5130 = vmatpush2.bf16.msra.mxu0 0
    %5131 = vmatprep.subr.bf16.mxu0 0
    %5132 = vmatpush2.bf16.msra.mxu0 0
    %5133 = vmatprep.subr.bf16.mxu0 0
    %5134 = vmatpush2.bf16.msra.mxu0 0
    %5135 = vmatprep.mubr.bf16.mxu0 0
    %5136 = vmatmul.mubr.bf16.gmra.mxu0 %v5031
    %v5137 = vpop.f32.mrf.mxu0
    %v5138 = vadd.f32 %v5053, %v5137
    %v5139 = vpop.f32.mrf.mxu0
    %v5140 = vpop.f32.mrf.mxu0
    %v5141 = vadd.f32 %v5053, %v5140
    %v5142 = vpop.f32.mrf.mxu0
    %5143 = vdwg.mxu0
    %v5144 = vadd.f32 %v2857, %v5138
    %v5145 = vadd.f32 %v2858, %v5141
    %v5146 = vld [vmem:[%s47] sm:$0x1]
    %v5147 = vld [vmem:[%s49] sm:$0x1]
    %5148 = vadd.xlane.f32.xlu0 %v5144
    %v5149 = vpop.xlane.xlu0 %5148
    %5150 = vadd.xlane.f32.xlu0 %v5145
    %v5151 = vpop.xlane.xlu0 %5150
    %v5152 = vmul.f32 %v5149, %v2554
    %v5153 = vmul.f32 %v5151, %v2554
    %v5154 = vsub.f32 %v5144, %v5152
    %v5155 = vsub.f32 %v5145, %v5153
    %v5156 = vmul.f32 %v5154, %v5154
    %v5157 = vmul.f32 %v5155, %v5155
    %5158 = vadd.xlane.f32.xlu0 %v5156
    %v5159 = vpop.xlane.xlu0 %5158
    %5160 = vadd.xlane.f32.xlu0 %v5157
    %v5161 = vpop.xlane.xlu0 %5160
    %v5162 = vmul.f32 %v5159, %v2554
    %v5163 = vmul.f32 %v5161, %v2554
    %v5164 = vadd.f32 %v5162, 1e-05
    %v5165 = vadd.f32 %v5163, 1e-05
    %v5166 = vrsqrt.pop %v5164
    %v5167 = vrsqrt.pop %v5165
    %v5168 = vmul.f32 %v5154, %v5166
    %v5169 = vmul.f32 %v5155, %v5167
    %v5171 = vlaneseq
    %v5172 = vshrl.u32 %v5171, 7
    %v5173 = vsub.s32 0, %v5172
    %v5174 = vrot.slane %v5146, %v5173
    %v5176 = vmul.f32 %v5168, %v5174
    %v5177 = vmul.f32 %v5169, %v5174
    %v5179 = vlaneseq
    %v5180 = vshrl.u32 %v5179, 7
    %v5181 = vsub.s32 0, %v5180
    %v5182 = vrot.slane %v5147, %v5181
    %v5184 = vadd.f32 %v5176, %v5182
    %v5185 = vadd.f32 %v5177, %v5182
    %v5186 = vpack.c.bf16 %v5185, %v5184
    %v5187 = vld [vmem:[%s39] sm:$0xf]
    %v5188 = vld [vmem:[%s39 + $0x4] sm:$0xf]
    %v5189 = vld [vmem:[%s39 + $0x8] sm:$0xf]
    %v5190 = vld [vmem:[%s39 + $0xc] sm:$0xf]
    %v5191 = vld [vmem:[%s39 + $0x10] sm:$0xf]
    %v5192 = vld [vmem:[%s39 + $0x14] sm:$0xf]
    %v5193 = vld [vmem:[%s39 + $0x18] sm:$0xf]
    %v5194 = vld [vmem:[%s39 + $0x1c] sm:$0xf]
    %v5195 = vld [vmem:[%s39 + $0x20] sm:$0xf]
    %v5196 = vld [vmem:[%s39 + $0x24] sm:$0xf]
    %v5197 = vld [vmem:[%s39 + $0x28] sm:$0xf]
    %v5198 = vld [vmem:[%s39 + $0x2c] sm:$0xf]
    %v5199 = vld [vmem:[%s39 + $0x30] sm:$0xf]
    %v5200 = vld [vmem:[%s39 + $0x34] sm:$0xf]
    %v5201 = vld [vmem:[%s39 + $0x38] sm:$0xf]
    %v5202 = vld [vmem:[%s39 + $0x3c] sm:$0xf]
    %v5203 = vld [vmem:[%s41] sm:$0x1]
    %v5205 = vlaneseq
    %v5206 = vshrl.u32 %v5205, 7
    %v5207 = vsub.s32 0, %v5206
    %v5208 = vrot.slane %v5203, %v5207
    %v5226 = vunpack.c.l.b16 %v5187
    %v5227 = vunpack.c.l.b16 %v5188
    %v5228 = vunpack.c.l.b16 %v5189
    %v5229 = vunpack.c.l.b16 %v5190
    %v5230 = vunpack.c.l.b16 %v5191
    %v5231 = vunpack.c.l.b16 %v5192
    %v5232 = vunpack.c.l.b16 %v5193
    %v5233 = vunpack.c.l.b16 %v5194
    %v5234 = vunpack.c.l.b16 %v5195
    %v5235 = vunpack.c.l.b16 %v5196
    %v5236 = vunpack.c.l.b16 %v5197
    %v5237 = vunpack.c.l.b16 %v5198
    %v5238 = vunpack.c.l.b16 %v5199
    %v5239 = vunpack.c.l.b16 %v5200
    %v5240 = vunpack.c.l.b16 %v5201
    %v5241 = vunpack.c.l.b16 %v5202
    %v5242 = vpack.c.b16 %v5227, %v5226
    %v5243 = vpack.c.b16 %v5229, %v5228
    %v5244 = vpack.c.b16 %v5231, %v5230
    %v5245 = vpack.c.b16 %v5233, %v5232
    %v5246 = vpack.c.b16 %v5235, %v5234
    %v5247 = vpack.c.b16 %v5237, %v5236
    %v5248 = vpack.c.b16 %v5239, %v5238
    %v5249 = vpack.c.b16 %v5241, %v5240
    %5258 = vmatprep.subr.bf16.mxu0 0
    %5259 = vmatpush1.bf16.msra.mxu0 %v5249
    %5260 = vmatprep.subr.bf16.mxu0 0
    %5261 = vmatpush1.bf16.msra.mxu0 %v5248
    %5262 = vmatprep.subr.bf16.mxu0 0
    %5263 = vmatpush1.bf16.msra.mxu0 %v5247
    %5264 = vmatprep.subr.bf16.mxu0 0
    %5265 = vmatpush1.bf16.msra.mxu0 %v5246
    %5266 = vmatprep.subr.bf16.mxu0 0
    %5267 = vmatpush1.bf16.msra.mxu0 %v5245
    %5268 = vmatprep.subr.bf16.mxu0 0
    %5269 = vmatpush1.bf16.msra.mxu0 %v5244
    %5270 = vmatprep.subr.bf16.mxu0 0
    %5271 = vmatpush1.bf16.msra.mxu0 %v5243
    %5272 = vmatprep.subr.bf16.mxu0 0
    %5273 = vmatpush1.bf16.msra.mxu0 %v5242
    %5274 = vmatprep.subr.bf16.mxu0 0
    %5275 = vmatpush2.bf16.msra.mxu0 0
    %5276 = vmatprep.subr.bf16.mxu0 0
    %5277 = vmatpush2.bf16.msra.mxu0 0
    %5278 = vmatprep.subr.bf16.mxu0 0
    %5279 = vmatpush2.bf16.msra.mxu0 0
    %5280 = vmatprep.subr.bf16.mxu0 0
    %5281 = vmatpush2.bf16.msra.mxu0 0
    %5282 = vmatprep.subr.bf16.mxu0 0
    %5283 = vmatpush2.bf16.msra.mxu0 0
    %5284 = vmatprep.subr.bf16.mxu0 0
    %5285 = vmatpush2.bf16.msra.mxu0 0
    %5286 = vmatprep.subr.bf16.mxu0 0
    %5287 = vmatpush2.bf16.msra.mxu0 0
    %5288 = vmatprep.subr.bf16.mxu0 0
    %5289 = vmatpush2.bf16.msra.mxu0 0
    %5290 = vmatprep.mubr.bf16.mxu0 0
    %5291 = vmatmul.mubr.bf16.gmra.mxu0 %v5186
    %v5292 = vpop.f32.mrf.mxu0
    %v5293 = vadd.f32 %v5208, %v5292
    %v5294 = vpop.f32.mrf.mxu0
    %v5295 = vpop.f32.mrf.mxu0
    %v5296 = vadd.f32 %v5208, %v5295
    %v5297 = vpop.f32.mrf.mxu0
    %5298 = vdwg.mxu0
    %v5299 = vmax.f32 %v5293, 0.0
    %v5300 = vmax.f32 %v5296, 0.0
    %v5301 = vpack.c.bf16 %v5300, %v5299
    %v5302 = vld [vmem:[%s43] sm:$0xf]
    %v5303 = vld [vmem:[%s43 + $0x4] sm:$0xf]
    %v5304 = vld [vmem:[%s43 + $0x8] sm:$0xf]
    %v5305 = vld [vmem:[%s43 + $0xc] sm:$0xf]
    %v5306 = vld [vmem:[%s43 + $0x10] sm:$0xf]
    %v5307 = vld [vmem:[%s43 + $0x14] sm:$0xf]
    %v5308 = vld [vmem:[%s43 + $0x18] sm:$0xf]
    %v5309 = vld [vmem:[%s43 + $0x1c] sm:$0xf]
    %v5310 = vld [vmem:[%s43 + $0x20] sm:$0xf]
    %v5311 = vld [vmem:[%s43 + $0x24] sm:$0xf]
    %v5312 = vld [vmem:[%s43 + $0x28] sm:$0xf]
    %v5313 = vld [vmem:[%s43 + $0x2c] sm:$0xf]
    %v5314 = vld [vmem:[%s43 + $0x30] sm:$0xf]
    %v5315 = vld [vmem:[%s43 + $0x34] sm:$0xf]
    %v5316 = vld [vmem:[%s43 + $0x38] sm:$0xf]
    %v5317 = vld [vmem:[%s43 + $0x3c] sm:$0xf]
    %v5318 = vld [vmem:[%s45] sm:$0x1]
    %v5320 = vlaneseq
    %v5321 = vshrl.u32 %v5320, 7
    %v5322 = vsub.s32 0, %v5321
    %v5323 = vrot.slane %v5318, %v5322
    %v5341 = vunpack.c.l.b16 %v5302
    %v5342 = vunpack.c.l.b16 %v5303
    %v5343 = vunpack.c.l.b16 %v5304
    %v5344 = vunpack.c.l.b16 %v5305
    %v5345 = vunpack.c.l.b16 %v5306
    %v5346 = vunpack.c.l.b16 %v5307
    %v5347 = vunpack.c.l.b16 %v5308
    %v5348 = vunpack.c.l.b16 %v5309
    %v5349 = vunpack.c.l.b16 %v5310
    %v5350 = vunpack.c.l.b16 %v5311
    %v5351 = vunpack.c.l.b16 %v5312
    %v5352 = vunpack.c.l.b16 %v5313
    %v5353 = vunpack.c.l.b16 %v5314
    %v5354 = vunpack.c.l.b16 %v5315
    %v5355 = vunpack.c.l.b16 %v5316
    %v5356 = vunpack.c.l.b16 %v5317
    %v5357 = vpack.c.b16 %v5342, %v5341
    %v5358 = vpack.c.b16 %v5344, %v5343
    %v5359 = vpack.c.b16 %v5346, %v5345
    %v5360 = vpack.c.b16 %v5348, %v5347
    %v5361 = vpack.c.b16 %v5350, %v5349
    %v5362 = vpack.c.b16 %v5352, %v5351
    %v5363 = vpack.c.b16 %v5354, %v5353
    %v5364 = vpack.c.b16 %v5356, %v5355
    %5373 = vmatprep.subr.bf16.mxu0 0
    %5374 = vmatpush1.bf16.msra.mxu0 %v5364
    %5375 = vmatprep.subr.bf16.mxu0 0
    %5376 = vmatpush1.bf16.msra.mxu0 %v5363
    %5377 = vmatprep.subr.bf16.mxu0 0
    %5378 = vmatpush1.bf16.msra.mxu0 %v5362
    %5379 = vmatprep.subr.bf16.mxu0 0
    %5380 = vmatpush1.bf16.msra.mxu0 %v5361
    %5381 = vmatprep.subr.bf16.mxu0 0
    %5382 = vmatpush1.bf16.msra.mxu0 %v5360
    %5383 = vmatprep.subr.bf16.mxu0 0
    %5384 = vmatpush1.bf16.msra.mxu0 %v5359
    %5385 = vmatprep.subr.bf16.mxu0 0
    %5386 = vmatpush1.bf16.msra.mxu0 %v5358
    %5387 = vmatprep.subr.bf16.mxu0 0
    %5388 = vmatpush1.bf16.msra.mxu0 %v5357
    %5389 = vmatprep.subr.bf16.mxu0 0
    %5390 = vmatpush2.bf16.msra.mxu0 0
    %5391 = vmatprep.subr.bf16.mxu0 0
    %5392 = vmatpush2.bf16.msra.mxu0 0
    %5393 = vmatprep.subr.bf16.mxu0 0
    %5394 = vmatpush2.bf16.msra.mxu0 0
    %5395 = vmatprep.subr.bf16.mxu0 0
    %5396 = vmatpush2.bf16.msra.mxu0 0
    %5397 = vmatprep.subr.bf16.mxu0 0
    %5398 = vmatpush2.bf16.msra.mxu0 0
    %5399 = vmatprep.subr.bf16.mxu0 0
    %5400 = vmatpush2.bf16.msra.mxu0 0
    %5401 = vmatprep.subr.bf16.mxu0 0
    %5402 = vmatpush2.bf16.msra.mxu0 0
    %5403 = vmatprep.subr.bf16.mxu0 0
    %5404 = vmatpush2.bf16.msra.mxu0 0
    %5405 = vmatprep.mubr.bf16.mxu0 0
    %5406 = vmatmul.mubr.bf16.gmra.mxu0 %v5301
    %v5407 = vpop.f32.mrf.mxu0
    %v5408 = vadd.f32 %v5323, %v5407
    %v5409 = vpop.f32.mrf.mxu0
    %v5410 = vpop.f32.mrf.mxu0
    %v5411 = vadd.f32 %v5323, %v5410
    %v5412 = vpop.f32.mrf.mxu0
    %5413 = vdwg.mxu0
    %v5414 = vadd.f32 %v5184, %v5408
    %v5415 = vadd.f32 %v5185, %v5411
    %v5416 = vld [vmem:[%s51] sm:$0x1]
    %v5417 = vld [vmem:[%s53] sm:$0x1]
    %5418 = vadd.xlane.f32.xlu0 %v5414
    %v5419 = vpop.xlane.xlu0 %5418
    %5420 = vadd.xlane.f32.xlu0 %v5415
    %v5421 = vpop.xlane.xlu0 %5420
    %v5422 = vmul.f32 %v5419, %v2554
    %v5423 = vmul.f32 %v5421, %v2554
    %v5424 = vsub.f32 %v5414, %v5422
    %v5425 = vsub.f32 %v5415, %v5423
    %v5426 = vmul.f32 %v5424, %v5424
    %v5427 = vmul.f32 %v5425, %v5425
    %5428 = vadd.xlane.f32.xlu0 %v5426
    %v5429 = vpop.xlane.xlu0 %5428
    %5430 = vadd.xlane.f32.xlu0 %v5427
    %v5431 = vpop.xlane.xlu0 %5430
    %v5432 = vmul.f32 %v5429, %v2554
    %v5433 = vmul.f32 %v5431, %v2554
    %v5434 = vadd.f32 %v5432, 1e-05
    %v5435 = vadd.f32 %v5433, 1e-05
    %v5436 = vrsqrt.pop %v5434
    %v5437 = vrsqrt.pop %v5435
    %v5438 = vmul.f32 %v5424, %v5436
    %v5439 = vmul.f32 %v5425, %v5437
    %v5441 = vlaneseq
    %v5442 = vshrl.u32 %v5441, 7
    %v5443 = vsub.s32 0, %v5442
    %v5444 = vrot.slane %v5416, %v5443
    %v5446 = vmul.f32 %v5438, %v5444
    %v5447 = vmul.f32 %v5439, %v5444
    %v5449 = vlaneseq
    %v5450 = vshrl.u32 %v5449, 7
    %v5451 = vsub.s32 0, %v5450
    %v5452 = vrot.slane %v5417, %v5451
    %v5454 = vadd.f32 %v5446, %v5452
    %v5455 = vadd.f32 %v5447, %v5452
    %v5456 = vpack.c.bf16 %v5455, %v5454
    %v5457 = vld [vmem:[%s55] sm:$0xff]
    %v5458 = vld [vmem:[%s55 + $0x8] sm:$0xf]
    %v5459 = vld [vmem:[%s55 + $0xc] sm:$0xff]
    %v5460 = vld [vmem:[%s55 + $0x14] sm:$0xf]
    %v5461 = vld [vmem:[%s55 + $0x18] sm:$0xff]
    %v5462 = vld [vmem:[%s55 + $0x20] sm:$0xf]
    %v5463 = vld [vmem:[%s55 + $0x24] sm:$0xff]
    %v5464 = vld [vmem:[%s55 + $0x2c] sm:$0xf]
    %v5465 = vld [vmem:[%s55 + $0x30] sm:$0xff]
    %v5466 = vld [vmem:[%s55 + $0x38] sm:$0xf]
    %v5467 = vld [vmem:[%s55 + $0x3c] sm:$0xff]
    %v5468 = vld [vmem:[%s55 + $0x44] sm:$0xf]
    %v5469 = vld [vmem:[%s55 + $0x48] sm:$0xff]
    %v5470 = vld [vmem:[%s55 + $0x50] sm:$0xf]
    %v5471 = vld [vmem:[%s55 + $0x54] sm:$0xff]
    %v5472 = vld [vmem:[%s55 + $0x5c] sm:$0xf]
    %v5473 = vld [vmem:[%s55 + $0x60] sm:$0xff]
    %v5474 = vld [vmem:[%s55 + $0x68] sm:$0xf]
    %v5475 = vld [vmem:[%s55 + $0x6c] sm:$0xff]
    %v5476 = vld [vmem:[%s55 + $0x74] sm:$0xf]
    %v5477 = vld [vmem:[%s55 + $0x78] sm:$0xff]
    %v5478 = vld [vmem:[%s55 + $0x80] sm:$0xf]
    %v5479 = vld [vmem:[%s55 + $0x84] sm:$0xff]
    %v5480 = vld [vmem:[%s55 + $0x8c] sm:$0xf]
    %v5481 = vld [vmem:[%s55 + $0x90] sm:$0xff]
    %v5482 = vld [vmem:[%s55 + $0x98] sm:$0xf]
    %v5483 = vld [vmem:[%s55 + $0x9c] sm:$0xff]
    %v5484 = vld [vmem:[%s55 + $0xa4] sm:$0xf]
    %v5485 = vld [vmem:[%s55 + $0xa8] sm:$0xff]
    %v5486 = vld [vmem:[%s55 + $0xb0] sm:$0xf]
    %v5487 = vld [vmem:[%s55 + $0xb4] sm:$0xff]
    %v5488 = vld [vmem:[%s55 + $0xbc] sm:$0xf]
    %v5489 = vld [vmem:[%s57] sm:$0x7]
    %v5491 = vlaneseq
    %v5492 = vshrl.u32 %v5491, 7
    %v5493 = vsub.s32 0, %v5492
    %v5494 = vrot.slane %v5489, %v5493
    %v5495 = vlaneseq
    %v5496 = vshrl.u32 %v5495, 7
    %v5497 = vsub.s32 1, %v5496
    %v5498 = vrot.slane %v5489, %v5497
    %v5499 = vlaneseq
    %v5500 = vshrl.u32 %v5499, 7
    %v5501 = vsub.s32 2, %v5500
    %v5502 = vrot.slane %v5489, %v5501
    %v5538 = vunpack.c.l.b16 %v5457
    %v5539 = vunpack.c.h.b16 %v5457
    %v5540 = vunpack.c.l.b16 %v5458
    %v5541 = vunpack.c.l.b16 %v5459
    %v5542 = vunpack.c.h.b16 %v5459
    %v5543 = vunpack.c.l.b16 %v5460
    %v5544 = vunpack.c.l.b16 %v5461
    %v5545 = vunpack.c.h.b16 %v5461
    %v5546 = vunpack.c.l.b16 %v5462
    %v5547 = vunpack.c.l.b16 %v5463
    %v5548 = vunpack.c.h.b16 %v5463
    %v5549 = vunpack.c.l.b16 %v5464
    %v5550 = vunpack.c.l.b16 %v5465
    %v5551 = vunpack.c.h.b16 %v5465
    %v5552 = vunpack.c.l.b16 %v5466
    %v5553 = vunpack.c.l.b16 %v5467
    %v5554 = vunpack.c.h.b16 %v5467
    %v5555 = vunpack.c.l.b16 %v5468
    %v5556 = vunpack.c.l.b16 %v5469
    %v5557 = vunpack.c.h.b16 %v5469
    %v5558 = vunpack.c.l.b16 %v5470
    %v5559 = vunpack.c.l.b16 %v5471
    %v5560 = vunpack.c.h.b16 %v5471
    %v5561 = vunpack.c.l.b16 %v5472
    %v5562 = vunpack.c.l.b16 %v5473
    %v5563 = vunpack.c.h.b16 %v5473
    %v5564 = vunpack.c.l.b16 %v5474
    %v5565 = vunpack.c.l.b16 %v5475
    %v5566 = vunpack.c.h.b16 %v5475
    %v5567 = vunpack.c.l.b16 %v5476
    %v5568 = vunpack.c.l.b16 %v5477
    %v5569 = vunpack.c.h.b16 %v5477
    %v5570 = vunpack.c.l.b16 %v5478
    %v5571 = vunpack.c.l.b16 %v5479
    %v5572 = vunpack.c.h.b16 %v5479
    %v5573 = vunpack.c.l.b16 %v5480
    %v5574 = vunpack.c.l.b16 %v5481
    %v5575 = vunpack.c.h.b16 %v5481
    %v5576 = vunpack.c.l.b16 %v5482
    %v5577 = vunpack.c.l.b16 %v5483
    %v5578 = vunpack.c.h.b16 %v5483
    %v5579 = vunpack.c.l.b16 %v5484
    %v5580 = vunpack.c.l.b16 %v5485
    %v5581 = vunpack.c.h.b16 %v5485
    %v5582 = vunpack.c.l.b16 %v5486
    %v5583 = vunpack.c.l.b16 %v5487
    %v5584 = vunpack.c.h.b16 %v5487
    %v5585 = vunpack.c.l.b16 %v5488
    %v5586 = vpack.c.b16 %v5541, %v5538
    %v5587 = vpack.c.b16 %v5542, %v5539
    %v5588 = vpack.c.b16 %v5543, %v5540
    %v5589 = vpack.c.b16 %v5547, %v5544
    %v5590 = vpack.c.b16 %v5548, %v5545
    %v5591 = vpack.c.b16 %v5549, %v5546
    %v5592 = vpack.c.b16 %v5553, %v5550
    %v5593 = vpack.c.b16 %v5554, %v5551
    %v5594 = vpack.c.b16 %v5555, %v5552
    %v5595 = vpack.c.b16 %v5559, %v5556
    %v5596 = vpack.c.b16 %v5560, %v5557
    %v5597 = vpack.c.b16 %v5561, %v5558
    %v5598 = vpack.c.b16 %v5565, %v5562
    %v5599 = vpack.c.b16 %v5566, %v5563
    %v5600 = vpack.c.b16 %v5567, %v5564
    %v5601 = vpack.c.b16 %v5571, %v5568
    %v5602 = vpack.c.b16 %v5572, %v5569
    %v5603 = vpack.c.b16 %v5573, %v5570
    %v5604 = vpack.c.b16 %v5577, %v5574
    %v5605 = vpack.c.b16 %v5578, %v5575
    %v5606 = vpack.c.b16 %v5579, %v5576
    %v5607 = vpack.c.b16 %v5583, %v5580
    %v5608 = vpack.c.b16 %v5584, %v5581
    %v5609 = vpack.c.b16 %v5585, %v5582
    %5634 = vmatprep.subr.bf16.mxu0 %v5608
    %5635 = vmatpush1.bf16.msra.mxu0 %v5607
    %5636 = vmatprep.subr.bf16.mxu0 %v5605
    %5637 = vmatpush1.bf16.msra.mxu0 %v5604
    %5638 = vmatprep.subr.bf16.mxu0 %v5602
    %5639 = vmatpush1.bf16.msra.mxu0 %v5601
    %5640 = vmatprep.subr.bf16.mxu0 %v5599
    %5641 = vmatpush1.bf16.msra.mxu0 %v5598
    %5642 = vmatprep.subr.bf16.mxu0 %v5596
    %5643 = vmatpush1.bf16.msra.mxu0 %v5595
    %5644 = vmatprep.subr.bf16.mxu0 %v5593
    %5645 = vmatpush1.bf16.msra.mxu0 %v5592
    %5646 = vmatprep.subr.bf16.mxu0 %v5590
    %5647 = vmatpush1.bf16.msra.mxu0 %v5589
    %5648 = vmatprep.subr.bf16.mxu0 %v5587
    %5649 = vmatpush1.bf16.msra.mxu0 %v5586
    %5650 = vmatprep.subr.bf16.mxu0 0
    %5651 = vmatpush2.bf16.msra.mxu0 0
    %5652 = vmatprep.subr.bf16.mxu0 0
    %5653 = vmatpush2.bf16.msra.mxu0 0
    %5654 = vmatprep.subr.bf16.mxu0 0
    %5655 = vmatpush2.bf16.msra.mxu0 0
    %5656 = vmatprep.subr.bf16.mxu0 0
    %5657 = vmatpush2.bf16.msra.mxu0 0
    %5658 = vmatprep.subr.bf16.mxu0 0
    %5659 = vmatpush2.bf16.msra.mxu0 0
    %5660 = vmatprep.subr.bf16.mxu0 0
    %5661 = vmatpush2.bf16.msra.mxu0 0
    %5662 = vmatprep.subr.bf16.mxu0 0
    %5663 = vmatpush2.bf16.msra.mxu0 0
    %5664 = vmatprep.subr.bf16.mxu0 0
    %5665 = vmatpush2.bf16.msra.mxu0 0
    %5666 = vmatprep.mubr.bf16.mxu0 0
    %5667 = vmatmul.mubr.bf16.gmra.mxu0 %v5456
    %v5668 = vpop.f32.mrf.mxu0
    %v5669 = vadd.f32 %v5494, %v5668
    %v5670 = vpop.f32.mrf.mxu0
    %v5671 = vadd.f32 %v5498, %v5670
    %v5672 = vpop.f32.mrf.mxu0
    %v5673 = vadd.f32 %v5494, %v5672
    %v5674 = vpop.f32.mrf.mxu0
    %v5675 = vadd.f32 %v5498, %v5674
    %5676 = vdwg.mxu0
    %5677 = vmatprep.subr.bf16.mxu0 0
    %5678 = vmatpush1.bf16.msra.mxu0 %v5609
    %5679 = vmatprep.subr.bf16.mxu0 0
    %5680 = vmatpush1.bf16.msra.mxu0 %v5606
    %5681 = vmatprep.subr.bf16.mxu0 0
    %5682 = vmatpush1.bf16.msra.mxu0 %v5603
    %5683 = vmatprep.subr.bf16.mxu0 0
    %5684 = vmatpush1.bf16.msra.mxu0 %v5600
    %5685 = vmatprep.subr.bf16.mxu0 0
    %5686 = vmatpush1.bf16.msra.mxu0 %v5597
    %5687 = vmatprep.subr.bf16.mxu0 0
    %5688 = vmatpush1.bf16.msra.mxu0 %v5594
    %5689 = vmatprep.subr.bf16.mxu0 0
    %5690 = vmatpush1.bf16.msra.mxu0 %v5591
    %5691 = vmatprep.subr.bf16.mxu0 0
    %5692 = vmatpush1.bf16.msra.mxu0 %v5588
    %5693 = vmatprep.subr.bf16.mxu0 0
    %5694 = vmatpush2.bf16.msra.mxu0 0
    %5695 = vmatprep.subr.bf16.mxu0 0
    %5696 = vmatpush2.bf16.msra.mxu0 0
    %5697 = vmatprep.subr.bf16.mxu0 0
    %5698 = vmatpush2.bf16.msra.mxu0 0
    %5699 = vmatprep.subr.bf16.mxu0 0
    %5700 = vmatpush2.bf16.msra.mxu0 0
    %5701 = vmatprep.subr.bf16.mxu0 0
    %5702 = vmatpush2.bf16.msra.mxu0 0
    %5703 = vmatprep.subr.bf16.mxu0 0
    %5704 = vmatpush2.bf16.msra.mxu0 0
    %5705 = vmatprep.subr.bf16.mxu0 0
    %5706 = vmatpush2.bf16.msra.mxu0 0
    %5707 = vmatprep.subr.bf16.mxu0 0
    %5708 = vmatpush2.bf16.msra.mxu0 0
    %5709 = vmatprep.mubr.bf16.mxu0 0
    %5710 = vmatmul.mubr.bf16.gmra.mxu0 %v5456
    %v5711 = vpop.f32.mrf.mxu0
    %v5712 = vadd.f32 %v5502, %v5711
    %v5713 = vpop.f32.mrf.mxu0
    %v5714 = vpop.f32.mrf.mxu0
    %v5715 = vadd.f32 %v5502, %v5714
    %v5716 = vpop.f32.mrf.mxu0
    %5717 = vdwg.mxu0
    %v5718 = vmul.f32 %v5669, 0.25
    %v5719 = vmul.f32 %v5673, 0.25
    %v5720 = vpack.c.bf16 %v5719, %v5718
    %v5722 = vunpack.c.l.b16 %v5720
    %v5723 = vunpack.c.h.b16 %v5720
    %v5724 = vpack.c.b16 %v5722, %v5722
    %v5725 = vpack.c.b16 %v5723, %v5723
    %v5726 = vpack.c.bf16 %v5675, %v5671
    %v5728 = vunpack.c.l.b16 %v5726
    %v5729 = vunpack.c.h.b16 %v5726
    %v5730 = vpack.c.b16 %v5728, %v5728
    %v5731 = vpack.c.b16 %v5729, %v5729
    %v5732 = vpack.c.bf16 %v5715, %v5712
    %v5734 = vunpack.c.l.b16 %v5732
    %v5735 = vunpack.c.h.b16 %v5732
    %v5736 = vpack.c.b16 %v5734, %v5734
    %v5737 = vpack.c.b16 %v5735, %v5735
    %v5739 = vsel %vm205, %v5724, 0
    %v5742 = vsel %vm205, %v5730, 0
    %5744 = vmatprep.subr.bf16.mxu0 0
    %5745 = vmatpush1.bf16.xpose.msra.mxu0 0
    %5746 = vmatprep.subr.bf16.mxu0 0
    %5747 = vmatpush1.bf16.xpose.msra.mxu0 0
    %5748 = vmatprep.subr.bf16.mxu0 0
    %5749 = vmatpush1.bf16.xpose.msra.mxu0 0
    %5750 = vmatprep.subr.bf16.mxu0 0
    %5751 = vmatpush1.bf16.xpose.msra.mxu0 0
    %5752 = vmatprep.subr.bf16.mxu0 0
    %5753 = vmatpush1.bf16.xpose.msra.mxu0 0
    %5754 = vmatprep.subr.bf16.mxu0 0
    %5755 = vmatpush1.bf16.xpose.msra.mxu0 0
    %5756 = vmatprep.subr.bf16.mxu0 0
    %5757 = vmatpush1.bf16.xpose.msra.mxu0 0
    %5758 = vmatprep.subr.bf16.mxu0 0
    %5759 = vmatpush1.bf16.xpose.msra.mxu0 %v5742
    %5760 = vmatprep.subr.bf16.mxu0 0
    %5761 = vmatpush2.bf16.xpose.msra.mxu0 0
    %5762 = vmatprep.subr.bf16.mxu0 0
    %5763 = vmatpush2.bf16.xpose.msra.mxu0 0
    %5764 = vmatprep.subr.bf16.mxu0 0
    %5765 = vmatpush2.bf16.xpose.msra.mxu0 0
    %5766 = vmatprep.subr.bf16.mxu0 0
    %5767 = vmatpush2.bf16.xpose.msra.mxu0 0
    %5768 = vmatprep.subr.bf16.mxu0 0
    %5769 = vmatpush2.bf16.xpose.msra.mxu0 0
    %5770 = vmatprep.subr.bf16.mxu0 0
    %5771 = vmatpush2.bf16.xpose.msra.mxu0 0
    %5772 = vmatprep.subr.bf16.mxu0 0
    %5773 = vmatpush2.bf16.xpose.msra.mxu0 0
    %5774 = vmatprep.subr.bf16.mxu0 0
    %5775 = vmatpush2.bf16.xpose.msra.mxu0 0
    %5776 = vmatprep.mubr.bf16.mxu0 0
    %5777 = vmatmul.mubr.bf16.gmra.mxu0 %v5739
    %v5778 = vpop.f32.mrf.mxu0
    %v5779 = vadd.f32 0.0, %v5778
    %v5780 = vpop.f32.mrf.mxu0
    %v5781 = vpop.f32.mrf.mxu0
    %v5782 = vpop.f32.mrf.mxu0
    %5783 = vdwg.mxu0
    %v5785 = vsel %vm205, %v5725, 0
    %v5788 = vsel %vm205, %v5731, 0
    %5790 = vmatprep.subr.bf16.mxu0 0
    %5791 = vmatpush1.bf16.xpose.msra.mxu0 0
    %5792 = vmatprep.subr.bf16.mxu0 0
    %5793 = vmatpush1.bf16.xpose.msra.mxu0 0
    %5794 = vmatprep.subr.bf16.mxu0 0
    %5795 = vmatpush1.bf16.xpose.msra.mxu0 0
    %5796 = vmatprep.subr.bf16.mxu0 0
    %5797 = vmatpush1.bf16.xpose.msra.mxu0 0
    %5798 = vmatprep.subr.bf16.mxu0 0
    %5799 = vmatpush1.bf16.xpose.msra.mxu0 0
    %5800 = vmatprep.subr.bf16.mxu0 0
    %5801 = vmatpush1.bf16.xpose.msra.mxu0 0
    %5802 = vmatprep.subr.bf16.mxu0 0
    %5803 = vmatpush1.bf16.xpose.msra.mxu0 0
    %5804 = vmatprep.subr.bf16.mxu0 0
    %5805 = vmatpush1.bf16.xpose.msra.mxu0 %v5788
    %5806 = vmatprep.subr.bf16.mxu0 0
    %5807 = vmatpush2.bf16.xpose.msra.mxu0 0
    %5808 = vmatprep.subr.bf16.mxu0 0
    %5809 = vmatpush2.bf16.xpose.msra.mxu0 0
    %5810 = vmatprep.subr.bf16.mxu0 0
    %5811 = vmatpush2.bf16.xpose.msra.mxu0 0
    %5812 = vmatprep.subr.bf16.mxu0 0
    %5813 = vmatpush2.bf16.xpose.msra.mxu0 0
    %5814 = vmatprep.subr.bf16.mxu0 0
    %5815 = vmatpush2.bf16.xpose.msra.mxu0 0
    %5816 = vmatprep.subr.bf16.mxu0 0
    %5817 = vmatpush2.bf16.xpose.msra.mxu0 0
    %5818 = vmatprep.subr.bf16.mxu0 0
    %5819 = vmatpush2.bf16.xpose.msra.mxu0 0
    %5820 = vmatprep.subr.bf16.mxu0 0
    %5821 = vmatpush2.bf16.xpose.msra.mxu0 0
    %5822 = vmatprep.mubr.bf16.mxu0 0
    %5823 = vmatmul.mubr.bf16.gmra.mxu0 %v5785
    %v5824 = vpop.f32.mrf.mxu0
    %v5825 = vadd.f32 0.0, %v5824
    %v5826 = vpop.f32.mrf.mxu0
    %v5827 = vpop.f32.mrf.mxu0
    %v5828 = vpop.f32.mrf.mxu0
    %5829 = vdwg.mxu0
    %v5830 = vsel %vm624, %v5779, -inf
    %5831 = vmax.xlane.f32.xlu0 %v5830
    %v5832 = vpop.xlane.xlu0 %5831
    %v5833 = vsel %vm624, %v5825, -inf
    %5834 = vmax.xlane.f32.xlu0 %v5833
    %v5835 = vpop.xlane.xlu0 %5834
    %v5836 = vsub.f32 %v5779, %v5832
    %v5837 = vsub.f32 %v5825, %v5835
    %v5838 = vmul.f32 %v5836, 1.442695
    %v5839 = vpow.pop %v5838
    %v5840 = vmul.f32 %v5837, 1.442695
    %v5841 = vpow.pop %v5840
    %v5842 = vsel %vm624, %v5839, 0.0
    %5843 = vadd.xlane.f32.xlu0 %v5842
    %v5844 = vpop.xlane.xlu0 %5843
    %v5845 = vsel %vm624, %v5841, 0.0
    %5846 = vadd.xlane.f32.xlu0 %v5845
    %v5847 = vpop.xlane.xlu0 %5846
    %v5848 = vrcp.pop %v5844
    %v5849 = vrcp.pop %v5847
    %v5850 = vmul.f32 %v5839, %v5848
    %v5851 = vmul.f32 %v5841, %v5849
    %v5852 = vpack.c.bf16 %v5850, %v5850
    %v5853 = vpack.c.bf16 %v5851, %v5851
    %v5855 = vsel %vm624, %v5852, 0
    %v5858 = vsel %vm652, %v5736, 0
    %5860 = vmatprep.subr.bf16.mxu0 0
    %5861 = vmatpush1.bf16.msra.mxu0 0
    %5862 = vmatprep.subr.bf16.mxu0 0
    %5863 = vmatpush1.bf16.msra.mxu0 0
    %5864 = vmatprep.subr.bf16.mxu0 0
    %5865 = vmatpush1.bf16.msra.mxu0 0
    %5866 = vmatprep.subr.bf16.mxu0 0
    %5867 = vmatpush1.bf16.msra.mxu0 0
    %5868 = vmatprep.subr.bf16.mxu0 0
    %5869 = vmatpush1.bf16.msra.mxu0 0
    %5870 = vmatprep.subr.bf16.mxu0 0
    %5871 = vmatpush1.bf16.msra.mxu0 0
    %5872 = vmatprep.subr.bf16.mxu0 0
    %5873 = vmatpush1.bf16.msra.mxu0 0
    %5874 = vmatprep.subr.bf16.mxu0 0
    %5875 = vmatpush1.bf16.msra.mxu0 %v5858
    %5876 = vmatprep.subr.bf16.mxu0 0
    %5877 = vmatpush2.bf16.msra.mxu0 0
    %5878 = vmatprep.subr.bf16.mxu0 0
    %5879 = vmatpush2.bf16.msra.mxu0 0
    %5880 = vmatprep.subr.bf16.mxu0 0
    %5881 = vmatpush2.bf16.msra.mxu0 0
    %5882 = vmatprep.subr.bf16.mxu0 0
    %5883 = vmatpush2.bf16.msra.mxu0 0
    %5884 = vmatprep.subr.bf16.mxu0 0
    %5885 = vmatpush2.bf16.msra.mxu0 0
    %5886 = vmatprep.subr.bf16.mxu0 0
    %5887 = vmatpush2.bf16.msra.mxu0 0
    %5888 = vmatprep.subr.bf16.mxu0 0
    %5889 = vmatpush2.bf16.msra.mxu0 0
    %5890 = vmatprep.subr.bf16.mxu0 0
    %5891 = vmatpush2.bf16.msra.mxu0 0
    %5892 = vmatprep.mubr.bf16.mxu0 0
    %5893 = vmatmul.mubr.bf16.gmra.mxu0 %v5855
    %v5894 = vpop.f32.mrf.mxu0
    %v5895 = vadd.f32 0.0, %v5894
    %v5896 = vpop.f32.mrf.mxu0
    %v5897 = vpop.f32.mrf.mxu0
    %v5898 = vpop.f32.mrf.mxu0
    %5899 = vdwg.mxu0
    %v5901 = vsel %vm624, %v5853, 0
    %v5904 = vsel %vm652, %v5737, 0
    %5906 = vmatprep.subr.bf16.mxu0 0
    %5907 = vmatpush1.bf16.msra.mxu0 0
    %5908 = vmatprep.subr.bf16.mxu0 0
    %5909 = vmatpush1.bf16.msra.mxu0 0
    %5910 = vmatprep.subr.bf16.mxu0 0
    %5911 = vmatpush1.bf16.msra.mxu0 0
    %5912 = vmatprep.subr.bf16.mxu0 0
    %5913 = vmatpush1.bf16.msra.mxu0 0
    %5914 = vmatprep.subr.bf16.mxu0 0
    %5915 = vmatpush1.bf16.msra.mxu0 0
    %5916 = vmatprep.subr.bf16.mxu0 0
    %5917 = vmatpush1.bf16.msra.mxu0 0
    %5918 = vmatprep.subr.bf16.mxu0 0
    %5919 = vmatpush1.bf16.msra.mxu0 0
    %5920 = vmatprep.subr.bf16.mxu0 0
    %5921 = vmatpush1.bf16.msra.mxu0 %v5904
    %5922 = vmatprep.subr.bf16.mxu0 0
    %5923 = vmatpush2.bf16.msra.mxu0 0
    %5924 = vmatprep.subr.bf16.mxu0 0
    %5925 = vmatpush2.bf16.msra.mxu0 0
    %5926 = vmatprep.subr.bf16.mxu0 0
    %5927 = vmatpush2.bf16.msra.mxu0 0
    %5928 = vmatprep.subr.bf16.mxu0 0
    %5929 = vmatpush2.bf16.msra.mxu0 0
    %5930 = vmatprep.subr.bf16.mxu0 0
    %5931 = vmatpush2.bf16.msra.mxu0 0
    %5932 = vmatprep.subr.bf16.mxu0 0
    %5933 = vmatpush2.bf16.msra.mxu0 0
    %5934 = vmatprep.subr.bf16.mxu0 0
    %5935 = vmatpush2.bf16.msra.mxu0 0
    %5936 = vmatprep.subr.bf16.mxu0 0
    %5937 = vmatpush2.bf16.msra.mxu0 0
    %5938 = vmatprep.mubr.bf16.mxu0 0
    %5939 = vmatmul.mubr.bf16.gmra.mxu0 %v5901
    %v5940 = vpop.f32.mrf.mxu0
    %v5941 = vadd.f32 0.0, %v5940
    %v5942 = vpop.f32.mrf.mxu0
    %v5943 = vpop.f32.mrf.mxu0
    %v5944 = vpop.f32.mrf.mxu0
    %5945 = vdwg.mxu0
    %5946 = vrot.lane.b32.xlu0 %v5724, 112
    %v5947 = vpop.permute.xlu0 %5946
    %5948 = vrot.lane.b32.xlu0 %v5730, 112
    %v5949 = vpop.permute.xlu0 %5948
    %v5951 = vsel %vm205, %v5947, 0
    %v5954 = vsel %vm205, %v5949, 0
    %5956 = vmatprep.subr.bf16.mxu0 0
    %5957 = vmatpush1.bf16.xpose.msra.mxu0 0
    %5958 = vmatprep.subr.bf16.mxu0 0
    %5959 = vmatpush1.bf16.xpose.msra.mxu0 0
    %5960 = vmatprep.subr.bf16.mxu0 0
    %5961 = vmatpush1.bf16.xpose.msra.mxu0 0
    %5962 = vmatprep.subr.bf16.mxu0 0
    %5963 = vmatpush1.bf16.xpose.msra.mxu0 0
    %5964 = vmatprep.subr.bf16.mxu0 0
    %5965 = vmatpush1.bf16.xpose.msra.mxu0 0
    %5966 = vmatprep.subr.bf16.mxu0 0
    %5967 = vmatpush1.bf16.xpose.msra.mxu0 0
    %5968 = vmatprep.subr.bf16.mxu0 0
    %5969 = vmatpush1.bf16.xpose.msra.mxu0 0
    %5970 = vmatprep.subr.bf16.mxu0 0
    %5971 = vmatpush1.bf16.xpose.msra.mxu0 %v5954
    %5972 = vmatprep.subr.bf16.mxu0 0
    %5973 = vmatpush2.bf16.xpose.msra.mxu0 0
    %5974 = vmatprep.subr.bf16.mxu0 0
    %5975 = vmatpush2.bf16.xpose.msra.mxu0 0
    %5976 = vmatprep.subr.bf16.mxu0 0
    %5977 = vmatpush2.bf16.xpose.msra.mxu0 0
    %5978 = vmatprep.subr.bf16.mxu0 0
    %5979 = vmatpush2.bf16.xpose.msra.mxu0 0
    %5980 = vmatprep.subr.bf16.mxu0 0
    %5981 = vmatpush2.bf16.xpose.msra.mxu0 0
    %5982 = vmatprep.subr.bf16.mxu0 0
    %5983 = vmatpush2.bf16.xpose.msra.mxu0 0
    %5984 = vmatprep.subr.bf16.mxu0 0
    %5985 = vmatpush2.bf16.xpose.msra.mxu0 0
    %5986 = vmatprep.subr.bf16.mxu0 0
    %5987 = vmatpush2.bf16.xpose.msra.mxu0 0
    %5988 = vmatprep.mubr.bf16.mxu0 0
    %5989 = vmatmul.mubr.bf16.gmra.mxu0 %v5951
    %v5990 = vpop.f32.mrf.mxu0
    %v5991 = vadd.f32 0.0, %v5990
    %v5992 = vpop.f32.mrf.mxu0
    %v5993 = vpop.f32.mrf.mxu0
    %v5994 = vpop.f32.mrf.mxu0
    %5995 = vdwg.mxu0
    %5996 = vrot.lane.b32.xlu0 %v5725, 112
    %v5997 = vpop.permute.xlu0 %5996
    %5998 = vrot.lane.b32.xlu0 %v5731, 112
    %v5999 = vpop.permute.xlu0 %5998
    %v6001 = vsel %vm205, %v5997, 0
    %v6004 = vsel %vm205, %v5999, 0
    %6006 = vmatprep.subr.bf16.mxu0 0
    %6007 = vmatpush1.bf16.xpose.msra.mxu0 0
    %6008 = vmatprep.subr.bf16.mxu0 0
    %6009 = vmatpush1.bf16.xpose.msra.mxu0 0
    %6010 = vmatprep.subr.bf16.mxu0 0
    %6011 = vmatpush1.bf16.xpose.msra.mxu0 0
    %6012 = vmatprep.subr.bf16.mxu0 0
    %6013 = vmatpush1.bf16.xpose.msra.mxu0 0
    %6014 = vmatprep.subr.bf16.mxu0 0
    %6015 = vmatpush1.bf16.xpose.msra.mxu0 0
    %6016 = vmatprep.subr.bf16.mxu0 0
    %6017 = vmatpush1.bf16.xpose.msra.mxu0 0
    %6018 = vmatprep.subr.bf16.mxu0 0
    %6019 = vmatpush1.bf16.xpose.msra.mxu0 0
    %6020 = vmatprep.subr.bf16.mxu0 0
    %6021 = vmatpush1.bf16.xpose.msra.mxu0 %v6004
    %6022 = vmatprep.subr.bf16.mxu0 0
    %6023 = vmatpush2.bf16.xpose.msra.mxu0 0
    %6024 = vmatprep.subr.bf16.mxu0 0
    %6025 = vmatpush2.bf16.xpose.msra.mxu0 0
    %6026 = vmatprep.subr.bf16.mxu0 0
    %6027 = vmatpush2.bf16.xpose.msra.mxu0 0
    %6028 = vmatprep.subr.bf16.mxu0 0
    %6029 = vmatpush2.bf16.xpose.msra.mxu0 0
    %6030 = vmatprep.subr.bf16.mxu0 0
    %6031 = vmatpush2.bf16.xpose.msra.mxu0 0
    %6032 = vmatprep.subr.bf16.mxu0 0
    %6033 = vmatpush2.bf16.xpose.msra.mxu0 0
    %6034 = vmatprep.subr.bf16.mxu0 0
    %6035 = vmatpush2.bf16.xpose.msra.mxu0 0
    %6036 = vmatprep.subr.bf16.mxu0 0
    %6037 = vmatpush2.bf16.xpose.msra.mxu0 0
    %6038 = vmatprep.mubr.bf16.mxu0 0
    %6039 = vmatmul.mubr.bf16.gmra.mxu0 %v6001
    %v6040 = vpop.f32.mrf.mxu0
    %v6041 = vadd.f32 0.0, %v6040
    %v6042 = vpop.f32.mrf.mxu0
    %v6043 = vpop.f32.mrf.mxu0
    %v6044 = vpop.f32.mrf.mxu0
    %6045 = vdwg.mxu0
    %v6046 = vsel %vm624, %v5991, -inf
    %6047 = vmax.xlane.f32.xlu0 %v6046
    %v6048 = vpop.xlane.xlu0 %6047
    %v6049 = vsel %vm624, %v6041, -inf
    %6050 = vmax.xlane.f32.xlu0 %v6049
    %v6051 = vpop.xlane.xlu0 %6050
    %v6052 = vsub.f32 %v5991, %v6048
    %v6053 = vsub.f32 %v6041, %v6051
    %v6054 = vmul.f32 %v6052, 1.442695
    %v6055 = vpow.pop %v6054
    %v6056 = vmul.f32 %v6053, 1.442695
    %v6057 = vpow.pop %v6056
    %v6058 = vsel %vm624, %v6055, 0.0
    %6059 = vadd.xlane.f32.xlu0 %v6058
    %v6060 = vpop.xlane.xlu0 %6059
    %v6061 = vsel %vm624, %v6057, 0.0
    %6062 = vadd.xlane.f32.xlu0 %v6061
    %v6063 = vpop.xlane.xlu0 %6062
    %v6064 = vrcp.pop %v6060
    %v6065 = vrcp.pop %v6063
    %v6066 = vmul.f32 %v6055, %v6064
    %v6067 = vmul.f32 %v6057, %v6065
    %v6068 = vpack.c.bf16 %v6066, %v6066
    %v6069 = vpack.c.bf16 %v6067, %v6067
    %6070 = vrot.lane.b32.xlu0 %v5736, 112
    %v6071 = vpop.permute.xlu0 %6070
    %v6073 = vsel %vm624, %v6068, 0
    %v6076 = vsel %vm652, %v6071, 0
    %6078 = vmatprep.subr.bf16.mxu0 0
    %6079 = vmatpush1.bf16.msra.mxu0 0
    %6080 = vmatprep.subr.bf16.mxu0 0
    %6081 = vmatpush1.bf16.msra.mxu0 0
    %6082 = vmatprep.subr.bf16.mxu0 0
    %6083 = vmatpush1.bf16.msra.mxu0 0
    %6084 = vmatprep.subr.bf16.mxu0 0
    %6085 = vmatpush1.bf16.msra.mxu0 0
    %6086 = vmatprep.subr.bf16.mxu0 0
    %6087 = vmatpush1.bf16.msra.mxu0 0
    %6088 = vmatprep.subr.bf16.mxu0 0
    %6089 = vmatpush1.bf16.msra.mxu0 0
    %6090 = vmatprep.subr.bf16.mxu0 0
    %6091 = vmatpush1.bf16.msra.mxu0 0
    %6092 = vmatprep.subr.bf16.mxu0 0
    %6093 = vmatpush1.bf16.msra.mxu0 %v6076
    %6094 = vmatprep.subr.bf16.mxu0 0
    %6095 = vmatpush2.bf16.msra.mxu0 0
    %6096 = vmatprep.subr.bf16.mxu0 0
    %6097 = vmatpush2.bf16.msra.mxu0 0
    %6098 = vmatprep.subr.bf16.mxu0 0
    %6099 = vmatpush2.bf16.msra.mxu0 0
    %6100 = vmatprep.subr.bf16.mxu0 0
    %6101 = vmatpush2.bf16.msra.mxu0 0
    %6102 = vmatprep.subr.bf16.mxu0 0
    %6103 = vmatpush2.bf16.msra.mxu0 0
    %6104 = vmatprep.subr.bf16.mxu0 0
    %6105 = vmatpush2.bf16.msra.mxu0 0
    %6106 = vmatprep.subr.bf16.mxu0 0
    %6107 = vmatpush2.bf16.msra.mxu0 0
    %6108 = vmatprep.subr.bf16.mxu0 0
    %6109 = vmatpush2.bf16.msra.mxu0 0
    %6110 = vmatprep.mubr.bf16.mxu0 0
    %6111 = vmatmul.mubr.bf16.gmra.mxu0 %v6073
    %v6112 = vpop.f32.mrf.mxu0
    %v6113 = vadd.f32 0.0, %v6112
    %v6114 = vpop.f32.mrf.mxu0
    %v6115 = vpop.f32.mrf.mxu0
    %v6116 = vpop.f32.mrf.mxu0
    %6117 = vdwg.mxu0
    %6118 = vrot.lane.b32.xlu0 %v5737, 112
    %v6119 = vpop.permute.xlu0 %6118
    %v6121 = vsel %vm624, %v6069, 0
    %v6124 = vsel %vm652, %v6119, 0
    %6126 = vmatprep.subr.bf16.mxu0 0
    %6127 = vmatpush1.bf16.msra.mxu0 0
    %6128 = vmatprep.subr.bf16.mxu0 0
    %6129 = vmatpush1.bf16.msra.mxu0 0
    %6130 = vmatprep.subr.bf16.mxu0 0
    %6131 = vmatpush1.bf16.msra.mxu0 0
    %6132 = vmatprep.subr.bf16.mxu0 0
    %6133 = vmatpush1.bf16.msra.mxu0 0
    %6134 = vmatprep.subr.bf16.mxu0 0
    %6135 = vmatpush1.bf16.msra.mxu0 0
    %6136 = vmatprep.subr.bf16.mxu0 0
    %6137 = vmatpush1.bf16.msra.mxu0 0
    %6138 = vmatprep.subr.bf16.mxu0 0
    %6139 = vmatpush1.bf16.msra.mxu0 0
    %6140 = vmatprep.subr.bf16.mxu0 0
    %6141 = vmatpush1.bf16.msra.mxu0 %v6124
    %6142 = vmatprep.subr.bf16.mxu0 0
    %6143 = vmatpush2.bf16.msra.mxu0 0
    %6144 = vmatprep.subr.bf16.mxu0 0
    %6145 = vmatpush2.bf16.msra.mxu0 0
    %6146 = vmatprep.subr.bf16.mxu0 0
    %6147 = vmatpush2.bf16.msra.mxu0 0
    %6148 = vmatprep.subr.bf16.mxu0 0
    %6149 = vmatpush2.bf16.msra.mxu0 0
    %6150 = vmatprep.subr.bf16.mxu0 0
    %6151 = vmatpush2.bf16.msra.mxu0 0
    %6152 = vmatprep.subr.bf16.mxu0 0
    %6153 = vmatpush2.bf16.msra.mxu0 0
    %6154 = vmatprep.subr.bf16.mxu0 0
    %6155 = vmatpush2.bf16.msra.mxu0 0
    %6156 = vmatprep.subr.bf16.mxu0 0
    %6157 = vmatpush2.bf16.msra.mxu0 0
    %6158 = vmatprep.mubr.bf16.mxu0 0
    %6159 = vmatmul.mubr.bf16.gmra.mxu0 %v6121
    %v6160 = vpop.f32.mrf.mxu0
    %v6161 = vadd.f32 0.0, %v6160
    %v6162 = vpop.f32.mrf.mxu0
    %v6163 = vpop.f32.mrf.mxu0
    %v6164 = vpop.f32.mrf.mxu0
    %6165 = vdwg.mxu0
    %6166 = vrot.lane.b32.xlu0 %v5724, 96
    %v6167 = vpop.permute.xlu0 %6166
    %6168 = vrot.lane.b32.xlu0 %v5730, 96
    %v6169 = vpop.permute.xlu0 %6168
    %v6171 = vsel %vm205, %v6167, 0
    %v6174 = vsel %vm205, %v6169, 0
    %6176 = vmatprep.subr.bf16.mxu0 0
    %6177 = vmatpush1.bf16.xpose.msra.mxu0 0
    %6178 = vmatprep.subr.bf16.mxu0 0
    %6179 = vmatpush1.bf16.xpose.msra.mxu0 0
    %6180 = vmatprep.subr.bf16.mxu0 0
    %6181 = vmatpush1.bf16.xpose.msra.mxu0 0
    %6182 = vmatprep.subr.bf16.mxu0 0
    %6183 = vmatpush1.bf16.xpose.msra.mxu0 0
    %6184 = vmatprep.subr.bf16.mxu0 0
    %6185 = vmatpush1.bf16.xpose.msra.mxu0 0
    %6186 = vmatprep.subr.bf16.mxu0 0
    %6187 = vmatpush1.bf16.xpose.msra.mxu0 0
    %6188 = vmatprep.subr.bf16.mxu0 0
    %6189 = vmatpush1.bf16.xpose.msra.mxu0 0
    %6190 = vmatprep.subr.bf16.mxu0 0
    %6191 = vmatpush1.bf16.xpose.msra.mxu0 %v6174
    %6192 = vmatprep.subr.bf16.mxu0 0
    %6193 = vmatpush2.bf16.xpose.msra.mxu0 0
    %6194 = vmatprep.subr.bf16.mxu0 0
    %6195 = vmatpush2.bf16.xpose.msra.mxu0 0
    %6196 = vmatprep.subr.bf16.mxu0 0
    %6197 = vmatpush2.bf16.xpose.msra.mxu0 0
    %6198 = vmatprep.subr.bf16.mxu0 0
    %6199 = vmatpush2.bf16.xpose.msra.mxu0 0
    %6200 = vmatprep.subr.bf16.mxu0 0
    %6201 = vmatpush2.bf16.xpose.msra.mxu0 0
    %6202 = vmatprep.subr.bf16.mxu0 0
    %6203 = vmatpush2.bf16.xpose.msra.mxu0 0
    %6204 = vmatprep.subr.bf16.mxu0 0
    %6205 = vmatpush2.bf16.xpose.msra.mxu0 0
    %6206 = vmatprep.subr.bf16.mxu0 0
    %6207 = vmatpush2.bf16.xpose.msra.mxu0 0
    %6208 = vmatprep.mubr.bf16.mxu0 0
    %6209 = vmatmul.mubr.bf16.gmra.mxu0 %v6171
    %v6210 = vpop.f32.mrf.mxu0
    %v6211 = vadd.f32 0.0, %v6210
    %v6212 = vpop.f32.mrf.mxu0
    %v6213 = vpop.f32.mrf.mxu0
    %v6214 = vpop.f32.mrf.mxu0
    %6215 = vdwg.mxu0
    %6216 = vrot.lane.b32.xlu0 %v5725, 96
    %v6217 = vpop.permute.xlu0 %6216
    %6218 = vrot.lane.b32.xlu0 %v5731, 96
    %v6219 = vpop.permute.xlu0 %6218
    %v6221 = vsel %vm205, %v6217, 0
    %v6224 = vsel %vm205, %v6219, 0
    %6226 = vmatprep.subr.bf16.mxu0 0
    %6227 = vmatpush1.bf16.xpose.msra.mxu0 0
    %6228 = vmatprep.subr.bf16.mxu0 0
    %6229 = vmatpush1.bf16.xpose.msra.mxu0 0
    %6230 = vmatprep.subr.bf16.mxu0 0
    %6231 = vmatpush1.bf16.xpose.msra.mxu0 0
    %6232 = vmatprep.subr.bf16.mxu0 0
    %6233 = vmatpush1.bf16.xpose.msra.mxu0 0
    %6234 = vmatprep.subr.bf16.mxu0 0
    %6235 = vmatpush1.bf16.xpose.msra.mxu0 0
    %6236 = vmatprep.subr.bf16.mxu0 0
    %6237 = vmatpush1.bf16.xpose.msra.mxu0 0
    %6238 = vmatprep.subr.bf16.mxu0 0
    %6239 = vmatpush1.bf16.xpose.msra.mxu0 0
    %6240 = vmatprep.subr.bf16.mxu0 0
    %6241 = vmatpush1.bf16.xpose.msra.mxu0 %v6224
    %6242 = vmatprep.subr.bf16.mxu0 0
    %6243 = vmatpush2.bf16.xpose.msra.mxu0 0
    %6244 = vmatprep.subr.bf16.mxu0 0
    %6245 = vmatpush2.bf16.xpose.msra.mxu0 0
    %6246 = vmatprep.subr.bf16.mxu0 0
    %6247 = vmatpush2.bf16.xpose.msra.mxu0 0
    %6248 = vmatprep.subr.bf16.mxu0 0
    %6249 = vmatpush2.bf16.xpose.msra.mxu0 0
    %6250 = vmatprep.subr.bf16.mxu0 0
    %6251 = vmatpush2.bf16.xpose.msra.mxu0 0
    %6252 = vmatprep.subr.bf16.mxu0 0
    %6253 = vmatpush2.bf16.xpose.msra.mxu0 0
    %6254 = vmatprep.subr.bf16.mxu0 0
    %6255 = vmatpush2.bf16.xpose.msra.mxu0 0
    %6256 = vmatprep.subr.bf16.mxu0 0
    %6257 = vmatpush2.bf16.xpose.msra.mxu0 0
    %6258 = vmatprep.mubr.bf16.mxu0 0
    %6259 = vmatmul.mubr.bf16.gmra.mxu0 %v6221
    %v6260 = vpop.f32.mrf.mxu0
    %v6261 = vadd.f32 0.0, %v6260
    %v6262 = vpop.f32.mrf.mxu0
    %v6263 = vpop.f32.mrf.mxu0
    %v6264 = vpop.f32.mrf.mxu0
    %6265 = vdwg.mxu0
    %v6266 = vsel %vm624, %v6211, -inf
    %6267 = vmax.xlane.f32.xlu0 %v6266
    %v6268 = vpop.xlane.xlu0 %6267
    %v6269 = vsel %vm624, %v6261, -inf
    %6270 = vmax.xlane.f32.xlu0 %v6269
    %v6271 = vpop.xlane.xlu0 %6270
    %v6272 = vsub.f32 %v6211, %v6268
    %v6273 = vsub.f32 %v6261, %v6271
    %v6274 = vmul.f32 %v6272, 1.442695
    %v6275 = vpow.pop %v6274
    %v6276 = vmul.f32 %v6273, 1.442695
    %v6277 = vpow.pop %v6276
    %v6278 = vsel %vm624, %v6275, 0.0
    %6279 = vadd.xlane.f32.xlu0 %v6278
    %v6280 = vpop.xlane.xlu0 %6279
    %v6281 = vsel %vm624, %v6277, 0.0
    %6282 = vadd.xlane.f32.xlu0 %v6281
    %v6283 = vpop.xlane.xlu0 %6282
    %v6284 = vrcp.pop %v6280
    %v6285 = vrcp.pop %v6283
    %v6286 = vmul.f32 %v6275, %v6284
    %v6287 = vmul.f32 %v6277, %v6285
    %v6288 = vpack.c.bf16 %v6286, %v6286
    %v6289 = vpack.c.bf16 %v6287, %v6287
    %6290 = vrot.lane.b32.xlu0 %v5736, 96
    %v6291 = vpop.permute.xlu0 %6290
    %v6293 = vsel %vm624, %v6288, 0
    %v6296 = vsel %vm652, %v6291, 0
    %6298 = vmatprep.subr.bf16.mxu0 0
    %6299 = vmatpush1.bf16.msra.mxu0 0
    %6300 = vmatprep.subr.bf16.mxu0 0
    %6301 = vmatpush1.bf16.msra.mxu0 0
    %6302 = vmatprep.subr.bf16.mxu0 0
    %6303 = vmatpush1.bf16.msra.mxu0 0
    %6304 = vmatprep.subr.bf16.mxu0 0
    %6305 = vmatpush1.bf16.msra.mxu0 0
    %6306 = vmatprep.subr.bf16.mxu0 0
    %6307 = vmatpush1.bf16.msra.mxu0 0
    %6308 = vmatprep.subr.bf16.mxu0 0
    %6309 = vmatpush1.bf16.msra.mxu0 0
    %6310 = vmatprep.subr.bf16.mxu0 0
    %6311 = vmatpush1.bf16.msra.mxu0 0
    %6312 = vmatprep.subr.bf16.mxu0 0
    %6313 = vmatpush1.bf16.msra.mxu0 %v6296
    %6314 = vmatprep.subr.bf16.mxu0 0
    %6315 = vmatpush2.bf16.msra.mxu0 0
    %6316 = vmatprep.subr.bf16.mxu0 0
    %6317 = vmatpush2.bf16.msra.mxu0 0
    %6318 = vmatprep.subr.bf16.mxu0 0
    %6319 = vmatpush2.bf16.msra.mxu0 0
    %6320 = vmatprep.subr.bf16.mxu0 0
    %6321 = vmatpush2.bf16.msra.mxu0 0
    %6322 = vmatprep.subr.bf16.mxu0 0
    %6323 = vmatpush2.bf16.msra.mxu0 0
    %6324 = vmatprep.subr.bf16.mxu0 0
    %6325 = vmatpush2.bf16.msra.mxu0 0
    %6326 = vmatprep.subr.bf16.mxu0 0
    %6327 = vmatpush2.bf16.msra.mxu0 0
    %6328 = vmatprep.subr.bf16.mxu0 0
    %6329 = vmatpush2.bf16.msra.mxu0 0
    %6330 = vmatprep.mubr.bf16.mxu0 0
    %6331 = vmatmul.mubr.bf16.gmra.mxu0 %v6293
    %v6332 = vpop.f32.mrf.mxu0
    %v6333 = vadd.f32 0.0, %v6332
    %v6334 = vpop.f32.mrf.mxu0
    %v6335 = vpop.f32.mrf.mxu0
    %v6336 = vpop.f32.mrf.mxu0
    %6337 = vdwg.mxu0
    %6338 = vrot.lane.b32.xlu0 %v5737, 96
    %v6339 = vpop.permute.xlu0 %6338
    %v6341 = vsel %vm624, %v6289, 0
    %v6344 = vsel %vm652, %v6339, 0
    %6346 = vmatprep.subr.bf16.mxu0 0
    %6347 = vmatpush1.bf16.msra.mxu0 0
    %6348 = vmatprep.subr.bf16.mxu0 0
    %6349 = vmatpush1.bf16.msra.mxu0 0
    %6350 = vmatprep.subr.bf16.mxu0 0
    %6351 = vmatpush1.bf16.msra.mxu0 0
    %6352 = vmatprep.subr.bf16.mxu0 0
    %6353 = vmatpush1.bf16.msra.mxu0 0
    %6354 = vmatprep.subr.bf16.mxu0 0
    %6355 = vmatpush1.bf16.msra.mxu0 0
    %6356 = vmatprep.subr.bf16.mxu0 0
    %6357 = vmatpush1.bf16.msra.mxu0 0
    %6358 = vmatprep.subr.bf16.mxu0 0
    %6359 = vmatpush1.bf16.msra.mxu0 0
    %6360 = vmatprep.subr.bf16.mxu0 0
    %6361 = vmatpush1.bf16.msra.mxu0 %v6344
    %6362 = vmatprep.subr.bf16.mxu0 0
    %6363 = vmatpush2.bf16.msra.mxu0 0
    %6364 = vmatprep.subr.bf16.mxu0 0
    %6365 = vmatpush2.bf16.msra.mxu0 0
    %6366 = vmatprep.subr.bf16.mxu0 0
    %6367 = vmatpush2.bf16.msra.mxu0 0
    %6368 = vmatprep.subr.bf16.mxu0 0
    %6369 = vmatpush2.bf16.msra.mxu0 0
    %6370 = vmatprep.subr.bf16.mxu0 0
    %6371 = vmatpush2.bf16.msra.mxu0 0
    %6372 = vmatprep.subr.bf16.mxu0 0
    %6373 = vmatpush2.bf16.msra.mxu0 0
    %6374 = vmatprep.subr.bf16.mxu0 0
    %6375 = vmatpush2.bf16.msra.mxu0 0
    %6376 = vmatprep.subr.bf16.mxu0 0
    %6377 = vmatpush2.bf16.msra.mxu0 0
    %6378 = vmatprep.mubr.bf16.mxu0 0
    %6379 = vmatmul.mubr.bf16.gmra.mxu0 %v6341
    %v6380 = vpop.f32.mrf.mxu0
    %v6381 = vadd.f32 0.0, %v6380
    %v6382 = vpop.f32.mrf.mxu0
    %v6383 = vpop.f32.mrf.mxu0
    %v6384 = vpop.f32.mrf.mxu0
    %6385 = vdwg.mxu0
    %6386 = vrot.lane.b32.xlu0 %v5724, 80
    %v6387 = vpop.permute.xlu0 %6386
    %6388 = vrot.lane.b32.xlu0 %v5730, 80
    %v6389 = vpop.permute.xlu0 %6388
    %v6391 = vsel %vm205, %v6387, 0
    %v6394 = vsel %vm205, %v6389, 0
    %6396 = vmatprep.subr.bf16.mxu0 0
    %6397 = vmatpush1.bf16.xpose.msra.mxu0 0
    %6398 = vmatprep.subr.bf16.mxu0 0
    %6399 = vmatpush1.bf16.xpose.msra.mxu0 0
    %6400 = vmatprep.subr.bf16.mxu0 0
    %6401 = vmatpush1.bf16.xpose.msra.mxu0 0
    %6402 = vmatprep.subr.bf16.mxu0 0
    %6403 = vmatpush1.bf16.xpose.msra.mxu0 0
    %6404 = vmatprep.subr.bf16.mxu0 0
    %6405 = vmatpush1.bf16.xpose.msra.mxu0 0
    %6406 = vmatprep.subr.bf16.mxu0 0
    %6407 = vmatpush1.bf16.xpose.msra.mxu0 0
    %6408 = vmatprep.subr.bf16.mxu0 0
    %6409 = vmatpush1.bf16.xpose.msra.mxu0 0
    %6410 = vmatprep.subr.bf16.mxu0 0
    %6411 = vmatpush1.bf16.xpose.msra.mxu0 %v6394
    %6412 = vmatprep.subr.bf16.mxu0 0
    %6413 = vmatpush2.bf16.xpose.msra.mxu0 0
    %6414 = vmatprep.subr.bf16.mxu0 0
    %6415 = vmatpush2.bf16.xpose.msra.mxu0 0
    %6416 = vmatprep.subr.bf16.mxu0 0
    %6417 = vmatpush2.bf16.xpose.msra.mxu0 0
    %6418 = vmatprep.subr.bf16.mxu0 0
    %6419 = vmatpush2.bf16.xpose.msra.mxu0 0
    %6420 = vmatprep.subr.bf16.mxu0 0
    %6421 = vmatpush2.bf16.xpose.msra.mxu0 0
    %6422 = vmatprep.subr.bf16.mxu0 0
    %6423 = vmatpush2.bf16.xpose.msra.mxu0 0
    %6424 = vmatprep.subr.bf16.mxu0 0
    %6425 = vmatpush2.bf16.xpose.msra.mxu0 0
    %6426 = vmatprep.subr.bf16.mxu0 0
    %6427 = vmatpush2.bf16.xpose.msra.mxu0 0
    %6428 = vmatprep.mubr.bf16.mxu0 0
    %6429 = vmatmul.mubr.bf16.gmra.mxu0 %v6391
    %v6430 = vpop.f32.mrf.mxu0
    %v6431 = vadd.f32 0.0, %v6430
    %v6432 = vpop.f32.mrf.mxu0
    %v6433 = vpop.f32.mrf.mxu0
    %v6434 = vpop.f32.mrf.mxu0
    %6435 = vdwg.mxu0
    %6436 = vrot.lane.b32.xlu0 %v5725, 80
    %v6437 = vpop.permute.xlu0 %6436
    %6438 = vrot.lane.b32.xlu0 %v5731, 80
    %v6439 = vpop.permute.xlu0 %6438
    %v6441 = vsel %vm205, %v6437, 0
    %v6444 = vsel %vm205, %v6439, 0
    %6446 = vmatprep.subr.bf16.mxu0 0
    %6447 = vmatpush1.bf16.xpose.msra.mxu0 0
    %6448 = vmatprep.subr.bf16.mxu0 0
    %6449 = vmatpush1.bf16.xpose.msra.mxu0 0
    %6450 = vmatprep.subr.bf16.mxu0 0
    %6451 = vmatpush1.bf16.xpose.msra.mxu0 0
    %6452 = vmatprep.subr.bf16.mxu0 0
    %6453 = vmatpush1.bf16.xpose.msra.mxu0 0
    %6454 = vmatprep.subr.bf16.mxu0 0
    %6455 = vmatpush1.bf16.xpose.msra.mxu0 0
    %6456 = vmatprep.subr.bf16.mxu0 0
    %6457 = vmatpush1.bf16.xpose.msra.mxu0 0
    %6458 = vmatprep.subr.bf16.mxu0 0
    %6459 = vmatpush1.bf16.xpose.msra.mxu0 0
    %6460 = vmatprep.subr.bf16.mxu0 0
    %6461 = vmatpush1.bf16.xpose.msra.mxu0 %v6444
    %6462 = vmatprep.subr.bf16.mxu0 0
    %6463 = vmatpush2.bf16.xpose.msra.mxu0 0
    %6464 = vmatprep.subr.bf16.mxu0 0
    %6465 = vmatpush2.bf16.xpose.msra.mxu0 0
    %6466 = vmatprep.subr.bf16.mxu0 0
    %6467 = vmatpush2.bf16.xpose.msra.mxu0 0
    %6468 = vmatprep.subr.bf16.mxu0 0
    %6469 = vmatpush2.bf16.xpose.msra.mxu0 0
    %6470 = vmatprep.subr.bf16.mxu0 0
    %6471 = vmatpush2.bf16.xpose.msra.mxu0 0
    %6472 = vmatprep.subr.bf16.mxu0 0
    %6473 = vmatpush2.bf16.xpose.msra.mxu0 0
    %6474 = vmatprep.subr.bf16.mxu0 0
    %6475 = vmatpush2.bf16.xpose.msra.mxu0 0
    %6476 = vmatprep.subr.bf16.mxu0 0
    %6477 = vmatpush2.bf16.xpose.msra.mxu0 0
    %6478 = vmatprep.mubr.bf16.mxu0 0
    %6479 = vmatmul.mubr.bf16.gmra.mxu0 %v6441
    %v6480 = vpop.f32.mrf.mxu0
    %v6481 = vadd.f32 0.0, %v6480
    %v6482 = vpop.f32.mrf.mxu0
    %v6483 = vpop.f32.mrf.mxu0
    %v6484 = vpop.f32.mrf.mxu0
    %6485 = vdwg.mxu0
    %v6486 = vsel %vm624, %v6431, -inf
    %6487 = vmax.xlane.f32.xlu0 %v6486
    %v6488 = vpop.xlane.xlu0 %6487
    %v6489 = vsel %vm624, %v6481, -inf
    %6490 = vmax.xlane.f32.xlu0 %v6489
    %v6491 = vpop.xlane.xlu0 %6490
    %v6492 = vsub.f32 %v6431, %v6488
    %v6493 = vsub.f32 %v6481, %v6491
    %v6494 = vmul.f32 %v6492, 1.442695
    %v6495 = vpow.pop %v6494
    %v6496 = vmul.f32 %v6493, 1.442695
    %v6497 = vpow.pop %v6496
    %v6498 = vsel %vm624, %v6495, 0.0
    %6499 = vadd.xlane.f32.xlu0 %v6498
    %v6500 = vpop.xlane.xlu0 %6499
    %v6501 = vsel %vm624, %v6497, 0.0
    %6502 = vadd.xlane.f32.xlu0 %v6501
    %v6503 = vpop.xlane.xlu0 %6502
    %v6504 = vrcp.pop %v6500
    %v6505 = vrcp.pop %v6503
    %v6506 = vmul.f32 %v6495, %v6504
    %v6507 = vmul.f32 %v6497, %v6505
    %v6508 = vpack.c.bf16 %v6506, %v6506
    %v6509 = vpack.c.bf16 %v6507, %v6507
    %6510 = vrot.lane.b32.xlu0 %v5736, 80
    %v6511 = vpop.permute.xlu0 %6510
    %v6513 = vsel %vm624, %v6508, 0
    %v6516 = vsel %vm652, %v6511, 0
    %6518 = vmatprep.subr.bf16.mxu0 0
    %6519 = vmatpush1.bf16.msra.mxu0 0
    %6520 = vmatprep.subr.bf16.mxu0 0
    %6521 = vmatpush1.bf16.msra.mxu0 0
    %6522 = vmatprep.subr.bf16.mxu0 0
    %6523 = vmatpush1.bf16.msra.mxu0 0
    %6524 = vmatprep.subr.bf16.mxu0 0
    %6525 = vmatpush1.bf16.msra.mxu0 0
    %6526 = vmatprep.subr.bf16.mxu0 0
    %6527 = vmatpush1.bf16.msra.mxu0 0
    %6528 = vmatprep.subr.bf16.mxu0 0
    %6529 = vmatpush1.bf16.msra.mxu0 0
    %6530 = vmatprep.subr.bf16.mxu0 0
    %6531 = vmatpush1.bf16.msra.mxu0 0
    %6532 = vmatprep.subr.bf16.mxu0 0
    %6533 = vmatpush1.bf16.msra.mxu0 %v6516
    %6534 = vmatprep.subr.bf16.mxu0 0
    %6535 = vmatpush2.bf16.msra.mxu0 0
    %6536 = vmatprep.subr.bf16.mxu0 0
    %6537 = vmatpush2.bf16.msra.mxu0 0
    %6538 = vmatprep.subr.bf16.mxu0 0
    %6539 = vmatpush2.bf16.msra.mxu0 0
    %6540 = vmatprep.subr.bf16.mxu0 0
    %6541 = vmatpush2.bf16.msra.mxu0 0
    %6542 = vmatprep.subr.bf16.mxu0 0
    %6543 = vmatpush2.bf16.msra.mxu0 0
    %6544 = vmatprep.subr.bf16.mxu0 0
    %6545 = vmatpush2.bf16.msra.mxu0 0
    %6546 = vmatprep.subr.bf16.mxu0 0
    %6547 = vmatpush2.bf16.msra.mxu0 0
    %6548 = vmatprep.subr.bf16.mxu0 0
    %6549 = vmatpush2.bf16.msra.mxu0 0
    %6550 = vmatprep.mubr.bf16.mxu0 0
    %6551 = vmatmul.mubr.bf16.gmra.mxu0 %v6513
    %v6552 = vpop.f32.mrf.mxu0
    %v6553 = vadd.f32 0.0, %v6552
    %v6554 = vpop.f32.mrf.mxu0
    %v6555 = vpop.f32.mrf.mxu0
    %v6556 = vpop.f32.mrf.mxu0
    %6557 = vdwg.mxu0
    %6558 = vrot.lane.b32.xlu0 %v5737, 80
    %v6559 = vpop.permute.xlu0 %6558
    %v6561 = vsel %vm624, %v6509, 0
    %v6564 = vsel %vm652, %v6559, 0
    %6566 = vmatprep.subr.bf16.mxu0 0
    %6567 = vmatpush1.bf16.msra.mxu0 0
    %6568 = vmatprep.subr.bf16.mxu0 0
    %6569 = vmatpush1.bf16.msra.mxu0 0
    %6570 = vmatprep.subr.bf16.mxu0 0
    %6571 = vmatpush1.bf16.msra.mxu0 0
    %6572 = vmatprep.subr.bf16.mxu0 0
    %6573 = vmatpush1.bf16.msra.mxu0 0
    %6574 = vmatprep.subr.bf16.mxu0 0
    %6575 = vmatpush1.bf16.msra.mxu0 0
    %6576 = vmatprep.subr.bf16.mxu0 0
    %6577 = vmatpush1.bf16.msra.mxu0 0
    %6578 = vmatprep.subr.bf16.mxu0 0
    %6579 = vmatpush1.bf16.msra.mxu0 0
    %6580 = vmatprep.subr.bf16.mxu0 0
    %6581 = vmatpush1.bf16.msra.mxu0 %v6564
    %6582 = vmatprep.subr.bf16.mxu0 0
    %6583 = vmatpush2.bf16.msra.mxu0 0
    %6584 = vmatprep.subr.bf16.mxu0 0
    %6585 = vmatpush2.bf16.msra.mxu0 0
    %6586 = vmatprep.subr.bf16.mxu0 0
    %6587 = vmatpush2.bf16.msra.mxu0 0
    %6588 = vmatprep.subr.bf16.mxu0 0
    %6589 = vmatpush2.bf16.msra.mxu0 0
    %6590 = vmatprep.subr.bf16.mxu0 0
    %6591 = vmatpush2.bf16.msra.mxu0 0
    %6592 = vmatprep.subr.bf16.mxu0 0
    %6593 = vmatpush2.bf16.msra.mxu0 0
    %6594 = vmatprep.subr.bf16.mxu0 0
    %6595 = vmatpush2.bf16.msra.mxu0 0
    %6596 = vmatprep.subr.bf16.mxu0 0
    %6597 = vmatpush2.bf16.msra.mxu0 0
    %6598 = vmatprep.mubr.bf16.mxu0 0
    %6599 = vmatmul.mubr.bf16.gmra.mxu0 %v6561
    %v6600 = vpop.f32.mrf.mxu0
    %v6601 = vadd.f32 0.0, %v6600
    %v6602 = vpop.f32.mrf.mxu0
    %v6603 = vpop.f32.mrf.mxu0
    %v6604 = vpop.f32.mrf.mxu0
    %6605 = vdwg.mxu0
    %6606 = vrot.lane.b32.xlu0 %v5724, 64
    %v6607 = vpop.permute.xlu0 %6606
    %6608 = vrot.lane.b32.xlu0 %v5730, 64
    %v6609 = vpop.permute.xlu0 %6608
    %v6611 = vsel %vm205, %v6607, 0
    %v6614 = vsel %vm205, %v6609, 0
    %6616 = vmatprep.subr.bf16.mxu0 0
    %6617 = vmatpush1.bf16.xpose.msra.mxu0 0
    %6618 = vmatprep.subr.bf16.mxu0 0
    %6619 = vmatpush1.bf16.xpose.msra.mxu0 0
    %6620 = vmatprep.subr.bf16.mxu0 0
    %6621 = vmatpush1.bf16.xpose.msra.mxu0 0
    %6622 = vmatprep.subr.bf16.mxu0 0
    %6623 = vmatpush1.bf16.xpose.msra.mxu0 0
    %6624 = vmatprep.subr.bf16.mxu0 0
    %6625 = vmatpush1.bf16.xpose.msra.mxu0 0
    %6626 = vmatprep.subr.bf16.mxu0 0
    %6627 = vmatpush1.bf16.xpose.msra.mxu0 0
    %6628 = vmatprep.subr.bf16.mxu0 0
    %6629 = vmatpush1.bf16.xpose.msra.mxu0 0
    %6630 = vmatprep.subr.bf16.mxu0 0
    %6631 = vmatpush1.bf16.xpose.msra.mxu0 %v6614
    %6632 = vmatprep.subr.bf16.mxu0 0
    %6633 = vmatpush2.bf16.xpose.msra.mxu0 0
    %6634 = vmatprep.subr.bf16.mxu0 0
    %6635 = vmatpush2.bf16.xpose.msra.mxu0 0
    %6636 = vmatprep.subr.bf16.mxu0 0
    %6637 = vmatpush2.bf16.xpose.msra.mxu0 0
    %6638 = vmatprep.subr.bf16.mxu0 0
    %6639 = vmatpush2.bf16.xpose.msra.mxu0 0
    %6640 = vmatprep.subr.bf16.mxu0 0
    %6641 = vmatpush2.bf16.xpose.msra.mxu0 0
    %6642 = vmatprep.subr.bf16.mxu0 0
    %6643 = vmatpush2.bf16.xpose.msra.mxu0 0
    %6644 = vmatprep.subr.bf16.mxu0 0
    %6645 = vmatpush2.bf16.xpose.msra.mxu0 0
    %6646 = vmatprep.subr.bf16.mxu0 0
    %6647 = vmatpush2.bf16.xpose.msra.mxu0 0
    %6648 = vmatprep.mubr.bf16.mxu0 0
    %6649 = vmatmul.mubr.bf16.gmra.mxu0 %v6611
    %v6650 = vpop.f32.mrf.mxu0
    %v6651 = vadd.f32 0.0, %v6650
    %v6652 = vpop.f32.mrf.mxu0
    %v6653 = vpop.f32.mrf.mxu0
    %v6654 = vpop.f32.mrf.mxu0
    %6655 = vdwg.mxu0
    %6656 = vrot.lane.b32.xlu0 %v5725, 64
    %v6657 = vpop.permute.xlu0 %6656
    %6658 = vrot.lane.b32.xlu0 %v5731, 64
    %v6659 = vpop.permute.xlu0 %6658
    %v6661 = vsel %vm205, %v6657, 0
    %v6664 = vsel %vm205, %v6659, 0
    %6666 = vmatprep.subr.bf16.mxu0 0
    %6667 = vmatpush1.bf16.xpose.msra.mxu0 0
    %6668 = vmatprep.subr.bf16.mxu0 0
    %6669 = vmatpush1.bf16.xpose.msra.mxu0 0
    %6670 = vmatprep.subr.bf16.mxu0 0
    %6671 = vmatpush1.bf16.xpose.msra.mxu0 0
    %6672 = vmatprep.subr.bf16.mxu0 0
    %6673 = vmatpush1.bf16.xpose.msra.mxu0 0
    %6674 = vmatprep.subr.bf16.mxu0 0
    %6675 = vmatpush1.bf16.xpose.msra.mxu0 0
    %6676 = vmatprep.subr.bf16.mxu0 0
    %6677 = vmatpush1.bf16.xpose.msra.mxu0 0
    %6678 = vmatprep.subr.bf16.mxu0 0
    %6679 = vmatpush1.bf16.xpose.msra.mxu0 0
    %6680 = vmatprep.subr.bf16.mxu0 0
    %6681 = vmatpush1.bf16.xpose.msra.mxu0 %v6664
    %6682 = vmatprep.subr.bf16.mxu0 0
    %6683 = vmatpush2.bf16.xpose.msra.mxu0 0
    %6684 = vmatprep.subr.bf16.mxu0 0
    %6685 = vmatpush2.bf16.xpose.msra.mxu0 0
    %6686 = vmatprep.subr.bf16.mxu0 0
    %6687 = vmatpush2.bf16.xpose.msra.mxu0 0
    %6688 = vmatprep.subr.bf16.mxu0 0
    %6689 = vmatpush2.bf16.xpose.msra.mxu0 0
    %6690 = vmatprep.subr.bf16.mxu0 0
    %6691 = vmatpush2.bf16.xpose.msra.mxu0 0
    %6692 = vmatprep.subr.bf16.mxu0 0
    %6693 = vmatpush2.bf16.xpose.msra.mxu0 0
    %6694 = vmatprep.subr.bf16.mxu0 0
    %6695 = vmatpush2.bf16.xpose.msra.mxu0 0
    %6696 = vmatprep.subr.bf16.mxu0 0
    %6697 = vmatpush2.bf16.xpose.msra.mxu0 0
    %6698 = vmatprep.mubr.bf16.mxu0 0
    %6699 = vmatmul.mubr.bf16.gmra.mxu0 %v6661
    %v6700 = vpop.f32.mrf.mxu0
    %v6701 = vadd.f32 0.0, %v6700
    %v6702 = vpop.f32.mrf.mxu0
    %v6703 = vpop.f32.mrf.mxu0
    %v6704 = vpop.f32.mrf.mxu0
    %6705 = vdwg.mxu0
    %v6706 = vsel %vm624, %v6651, -inf
    %6707 = vmax.xlane.f32.xlu0 %v6706
    %v6708 = vpop.xlane.xlu0 %6707
    %v6709 = vsel %vm624, %v6701, -inf
    %6710 = vmax.xlane.f32.xlu0 %v6709
    %v6711 = vpop.xlane.xlu0 %6710
    %v6712 = vsub.f32 %v6651, %v6708
    %v6713 = vsub.f32 %v6701, %v6711
    %v6714 = vmul.f32 %v6712, 1.442695
    %v6715 = vpow.pop %v6714
    %v6716 = vmul.f32 %v6713, 1.442695
    %v6717 = vpow.pop %v6716
    %v6718 = vsel %vm624, %v6715, 0.0
    %6719 = vadd.xlane.f32.xlu0 %v6718
    %v6720 = vpop.xlane.xlu0 %6719
    %v6721 = vsel %vm624, %v6717, 0.0
    %6722 = vadd.xlane.f32.xlu0 %v6721
    %v6723 = vpop.xlane.xlu0 %6722
    %v6724 = vrcp.pop %v6720
    %v6725 = vrcp.pop %v6723
    %v6726 = vmul.f32 %v6715, %v6724
    %v6727 = vmul.f32 %v6717, %v6725
    %v6728 = vpack.c.bf16 %v6726, %v6726
    %v6729 = vpack.c.bf16 %v6727, %v6727
    %6730 = vrot.lane.b32.xlu0 %v5736, 64
    %v6731 = vpop.permute.xlu0 %6730
    %v6733 = vsel %vm624, %v6728, 0
    %v6736 = vsel %vm652, %v6731, 0
    %6738 = vmatprep.subr.bf16.mxu0 0
    %6739 = vmatpush1.bf16.msra.mxu0 0
    %6740 = vmatprep.subr.bf16.mxu0 0
    %6741 = vmatpush1.bf16.msra.mxu0 0
    %6742 = vmatprep.subr.bf16.mxu0 0
    %6743 = vmatpush1.bf16.msra.mxu0 0
    %6744 = vmatprep.subr.bf16.mxu0 0
    %6745 = vmatpush1.bf16.msra.mxu0 0
    %6746 = vmatprep.subr.bf16.mxu0 0
    %6747 = vmatpush1.bf16.msra.mxu0 0
    %6748 = vmatprep.subr.bf16.mxu0 0
    %6749 = vmatpush1.bf16.msra.mxu0 0
    %6750 = vmatprep.subr.bf16.mxu0 0
    %6751 = vmatpush1.bf16.msra.mxu0 0
    %6752 = vmatprep.subr.bf16.mxu0 0
    %6753 = vmatpush1.bf16.msra.mxu0 %v6736
    %6754 = vmatprep.subr.bf16.mxu0 0
    %6755 = vmatpush2.bf16.msra.mxu0 0
    %6756 = vmatprep.subr.bf16.mxu0 0
    %6757 = vmatpush2.bf16.msra.mxu0 0
    %6758 = vmatprep.subr.bf16.mxu0 0
    %6759 = vmatpush2.bf16.msra.mxu0 0
    %6760 = vmatprep.subr.bf16.mxu0 0
    %6761 = vmatpush2.bf16.msra.mxu0 0
    %6762 = vmatprep.subr.bf16.mxu0 0
    %6763 = vmatpush2.bf16.msra.mxu0 0
    %6764 = vmatprep.subr.bf16.mxu0 0
    %6765 = vmatpush2.bf16.msra.mxu0 0
    %6766 = vmatprep.subr.bf16.mxu0 0
    %6767 = vmatpush2.bf16.msra.mxu0 0
    %6768 = vmatprep.subr.bf16.mxu0 0
    %6769 = vmatpush2.bf16.msra.mxu0 0
    %6770 = vmatprep.mubr.bf16.mxu0 0
    %6771 = vmatmul.mubr.bf16.gmra.mxu0 %v6733
    %v6772 = vpop.f32.mrf.mxu0
    %v6773 = vadd.f32 0.0, %v6772
    %v6774 = vpop.f32.mrf.mxu0
    %v6775 = vpop.f32.mrf.mxu0
    %v6776 = vpop.f32.mrf.mxu0
    %6777 = vdwg.mxu0
    %6778 = vrot.lane.b32.xlu0 %v5737, 64
    %v6779 = vpop.permute.xlu0 %6778
    %v6781 = vsel %vm624, %v6729, 0
    %v6784 = vsel %vm652, %v6779, 0
    %6786 = vmatprep.subr.bf16.mxu0 0
    %6787 = vmatpush1.bf16.msra.mxu0 0
    %6788 = vmatprep.subr.bf16.mxu0 0
    %6789 = vmatpush1.bf16.msra.mxu0 0
    %6790 = vmatprep.subr.bf16.mxu0 0
    %6791 = vmatpush1.bf16.msra.mxu0 0
    %6792 = vmatprep.subr.bf16.mxu0 0
    %6793 = vmatpush1.bf16.msra.mxu0 0
    %6794 = vmatprep.subr.bf16.mxu0 0
    %6795 = vmatpush1.bf16.msra.mxu0 0
    %6796 = vmatprep.subr.bf16.mxu0 0
    %6797 = vmatpush1.bf16.msra.mxu0 0
    %6798 = vmatprep.subr.bf16.mxu0 0
    %6799 = vmatpush1.bf16.msra.mxu0 0
    %6800 = vmatprep.subr.bf16.mxu0 0
    %6801 = vmatpush1.bf16.msra.mxu0 %v6784
    %6802 = vmatprep.subr.bf16.mxu0 0
    %6803 = vmatpush2.bf16.msra.mxu0 0
    %6804 = vmatprep.subr.bf16.mxu0 0
    %6805 = vmatpush2.bf16.msra.mxu0 0
    %6806 = vmatprep.subr.bf16.mxu0 0
    %6807 = vmatpush2.bf16.msra.mxu0 0
    %6808 = vmatprep.subr.bf16.mxu0 0
    %6809 = vmatpush2.bf16.msra.mxu0 0
    %6810 = vmatprep.subr.bf16.mxu0 0
    %6811 = vmatpush2.bf16.msra.mxu0 0
    %6812 = vmatprep.subr.bf16.mxu0 0
    %6813 = vmatpush2.bf16.msra.mxu0 0
    %6814 = vmatprep.subr.bf16.mxu0 0
    %6815 = vmatpush2.bf16.msra.mxu0 0
    %6816 = vmatprep.subr.bf16.mxu0 0
    %6817 = vmatpush2.bf16.msra.mxu0 0
    %6818 = vmatprep.mubr.bf16.mxu0 0
    %6819 = vmatmul.mubr.bf16.gmra.mxu0 %v6781
    %v6820 = vpop.f32.mrf.mxu0
    %v6821 = vadd.f32 0.0, %v6820
    %v6822 = vpop.f32.mrf.mxu0
    %v6823 = vpop.f32.mrf.mxu0
    %v6824 = vpop.f32.mrf.mxu0
    %6825 = vdwg.mxu0
    %6826 = vrot.lane.b32.xlu0 %v5724, 48
    %v6827 = vpop.permute.xlu0 %6826
    %6828 = vrot.lane.b32.xlu0 %v5730, 48
    %v6829 = vpop.permute.xlu0 %6828
    %v6831 = vsel %vm205, %v6827, 0
    %v6834 = vsel %vm205, %v6829, 0
    %6836 = vmatprep.subr.bf16.mxu0 0
    %6837 = vmatpush1.bf16.xpose.msra.mxu0 0
    %6838 = vmatprep.subr.bf16.mxu0 0
    %6839 = vmatpush1.bf16.xpose.msra.mxu0 0
    %6840 = vmatprep.subr.bf16.mxu0 0
    %6841 = vmatpush1.bf16.xpose.msra.mxu0 0
    %6842 = vmatprep.subr.bf16.mxu0 0
    %6843 = vmatpush1.bf16.xpose.msra.mxu0 0
    %6844 = vmatprep.subr.bf16.mxu0 0
    %6845 = vmatpush1.bf16.xpose.msra.mxu0 0
    %6846 = vmatprep.subr.bf16.mxu0 0
    %6847 = vmatpush1.bf16.xpose.msra.mxu0 0
    %6848 = vmatprep.subr.bf16.mxu0 0
    %6849 = vmatpush1.bf16.xpose.msra.mxu0 0
    %6850 = vmatprep.subr.bf16.mxu0 0
    %6851 = vmatpush1.bf16.xpose.msra.mxu0 %v6834
    %6852 = vmatprep.subr.bf16.mxu0 0
    %6853 = vmatpush2.bf16.xpose.msra.mxu0 0
    %6854 = vmatprep.subr.bf16.mxu0 0
    %6855 = vmatpush2.bf16.xpose.msra.mxu0 0
    %6856 = vmatprep.subr.bf16.mxu0 0
    %6857 = vmatpush2.bf16.xpose.msra.mxu0 0
    %6858 = vmatprep.subr.bf16.mxu0 0
    %6859 = vmatpush2.bf16.xpose.msra.mxu0 0
    %6860 = vmatprep.subr.bf16.mxu0 0
    %6861 = vmatpush2.bf16.xpose.msra.mxu0 0
    %6862 = vmatprep.subr.bf16.mxu0 0
    %6863 = vmatpush2.bf16.xpose.msra.mxu0 0
    %6864 = vmatprep.subr.bf16.mxu0 0
    %6865 = vmatpush2.bf16.xpose.msra.mxu0 0
    %6866 = vmatprep.subr.bf16.mxu0 0
    %6867 = vmatpush2.bf16.xpose.msra.mxu0 0
    %6868 = vmatprep.mubr.bf16.mxu0 0
    %6869 = vmatmul.mubr.bf16.gmra.mxu0 %v6831
    %v6870 = vpop.f32.mrf.mxu0
    %v6871 = vadd.f32 0.0, %v6870
    %v6872 = vpop.f32.mrf.mxu0
    %v6873 = vpop.f32.mrf.mxu0
    %v6874 = vpop.f32.mrf.mxu0
    %6875 = vdwg.mxu0
    %6876 = vrot.lane.b32.xlu0 %v5725, 48
    %v6877 = vpop.permute.xlu0 %6876
    %6878 = vrot.lane.b32.xlu0 %v5731, 48
    %v6879 = vpop.permute.xlu0 %6878
    %v6881 = vsel %vm205, %v6877, 0
    %v6884 = vsel %vm205, %v6879, 0
    %6886 = vmatprep.subr.bf16.mxu0 0
    %6887 = vmatpush1.bf16.xpose.msra.mxu0 0
    %6888 = vmatprep.subr.bf16.mxu0 0
    %6889 = vmatpush1.bf16.xpose.msra.mxu0 0
    %6890 = vmatprep.subr.bf16.mxu0 0
    %6891 = vmatpush1.bf16.xpose.msra.mxu0 0
    %6892 = vmatprep.subr.bf16.mxu0 0
    %6893 = vmatpush1.bf16.xpose.msra.mxu0 0
    %6894 = vmatprep.subr.bf16.mxu0 0
    %6895 = vmatpush1.bf16.xpose.msra.mxu0 0
    %6896 = vmatprep.subr.bf16.mxu0 0
    %6897 = vmatpush1.bf16.xpose.msra.mxu0 0
    %6898 = vmatprep.subr.bf16.mxu0 0
    %6899 = vmatpush1.bf16.xpose.msra.mxu0 0
    %6900 = vmatprep.subr.bf16.mxu0 0
    %6901 = vmatpush1.bf16.xpose.msra.mxu0 %v6884
    %6902 = vmatprep.subr.bf16.mxu0 0
    %6903 = vmatpush2.bf16.xpose.msra.mxu0 0
    %6904 = vmatprep.subr.bf16.mxu0 0
    %6905 = vmatpush2.bf16.xpose.msra.mxu0 0
    %6906 = vmatprep.subr.bf16.mxu0 0
    %6907 = vmatpush2.bf16.xpose.msra.mxu0 0
    %6908 = vmatprep.subr.bf16.mxu0 0
    %6909 = vmatpush2.bf16.xpose.msra.mxu0 0
    %6910 = vmatprep.subr.bf16.mxu0 0
    %6911 = vmatpush2.bf16.xpose.msra.mxu0 0
    %6912 = vmatprep.subr.bf16.mxu0 0
    %6913 = vmatpush2.bf16.xpose.msra.mxu0 0
    %6914 = vmatprep.subr.bf16.mxu0 0
    %6915 = vmatpush2.bf16.xpose.msra.mxu0 0
    %6916 = vmatprep.subr.bf16.mxu0 0
    %6917 = vmatpush2.bf16.xpose.msra.mxu0 0
    %6918 = vmatprep.mubr.bf16.mxu0 0
    %6919 = vmatmul.mubr.bf16.gmra.mxu0 %v6881
    %v6920 = vpop.f32.mrf.mxu0
    %v6921 = vadd.f32 0.0, %v6920
    %v6922 = vpop.f32.mrf.mxu0
    %v6923 = vpop.f32.mrf.mxu0
    %v6924 = vpop.f32.mrf.mxu0
    %6925 = vdwg.mxu0
    %v6926 = vsel %vm624, %v6871, -inf
    %6927 = vmax.xlane.f32.xlu0 %v6926
    %v6928 = vpop.xlane.xlu0 %6927
    %v6929 = vsel %vm624, %v6921, -inf
    %6930 = vmax.xlane.f32.xlu0 %v6929
    %v6931 = vpop.xlane.xlu0 %6930
    %v6932 = vsub.f32 %v6871, %v6928
    %v6933 = vsub.f32 %v6921, %v6931
    %v6934 = vmul.f32 %v6932, 1.442695
    %v6935 = vpow.pop %v6934
    %v6936 = vmul.f32 %v6933, 1.442695
    %v6937 = vpow.pop %v6936
    %v6938 = vsel %vm624, %v6935, 0.0
    %6939 = vadd.xlane.f32.xlu0 %v6938
    %v6940 = vpop.xlane.xlu0 %6939
    %v6941 = vsel %vm624, %v6937, 0.0
    %6942 = vadd.xlane.f32.xlu0 %v6941
    %v6943 = vpop.xlane.xlu0 %6942
    %v6944 = vrcp.pop %v6940
    %v6945 = vrcp.pop %v6943
    %v6946 = vmul.f32 %v6935, %v6944
    %v6947 = vmul.f32 %v6937, %v6945
    %v6948 = vpack.c.bf16 %v6946, %v6946
    %v6949 = vpack.c.bf16 %v6947, %v6947
    %6950 = vrot.lane.b32.xlu0 %v5736, 48
    %v6951 = vpop.permute.xlu0 %6950
    %v6953 = vsel %vm624, %v6948, 0
    %v6956 = vsel %vm652, %v6951, 0
    %6958 = vmatprep.subr.bf16.mxu0 0
    %6959 = vmatpush1.bf16.msra.mxu0 0
    %6960 = vmatprep.subr.bf16.mxu0 0
    %6961 = vmatpush1.bf16.msra.mxu0 0
    %6962 = vmatprep.subr.bf16.mxu0 0
    %6963 = vmatpush1.bf16.msra.mxu0 0
    %6964 = vmatprep.subr.bf16.mxu0 0
    %6965 = vmatpush1.bf16.msra.mxu0 0
    %6966 = vmatprep.subr.bf16.mxu0 0
    %6967 = vmatpush1.bf16.msra.mxu0 0
    %6968 = vmatprep.subr.bf16.mxu0 0
    %6969 = vmatpush1.bf16.msra.mxu0 0
    %6970 = vmatprep.subr.bf16.mxu0 0
    %6971 = vmatpush1.bf16.msra.mxu0 0
    %6972 = vmatprep.subr.bf16.mxu0 0
    %6973 = vmatpush1.bf16.msra.mxu0 %v6956
    %6974 = vmatprep.subr.bf16.mxu0 0
    %6975 = vmatpush2.bf16.msra.mxu0 0
    %6976 = vmatprep.subr.bf16.mxu0 0
    %6977 = vmatpush2.bf16.msra.mxu0 0
    %6978 = vmatprep.subr.bf16.mxu0 0
    %6979 = vmatpush2.bf16.msra.mxu0 0
    %6980 = vmatprep.subr.bf16.mxu0 0
    %6981 = vmatpush2.bf16.msra.mxu0 0
    %6982 = vmatprep.subr.bf16.mxu0 0
    %6983 = vmatpush2.bf16.msra.mxu0 0
    %6984 = vmatprep.subr.bf16.mxu0 0
    %6985 = vmatpush2.bf16.msra.mxu0 0
    %6986 = vmatprep.subr.bf16.mxu0 0
    %6987 = vmatpush2.bf16.msra.mxu0 0
    %6988 = vmatprep.subr.bf16.mxu0 0
    %6989 = vmatpush2.bf16.msra.mxu0 0
    %6990 = vmatprep.mubr.bf16.mxu0 0
    %6991 = vmatmul.mubr.bf16.gmra.mxu0 %v6953
    %v6992 = vpop.f32.mrf.mxu0
    %v6993 = vadd.f32 0.0, %v6992
    %v6994 = vpop.f32.mrf.mxu0
    %v6995 = vpop.f32.mrf.mxu0
    %v6996 = vpop.f32.mrf.mxu0
    %6997 = vdwg.mxu0
    %6998 = vrot.lane.b32.xlu0 %v5737, 48
    %v6999 = vpop.permute.xlu0 %6998
    %v7001 = vsel %vm624, %v6949, 0
    %v7004 = vsel %vm652, %v6999, 0
    %7006 = vmatprep.subr.bf16.mxu0 0
    %7007 = vmatpush1.bf16.msra.mxu0 0
    %7008 = vmatprep.subr.bf16.mxu0 0
    %7009 = vmatpush1.bf16.msra.mxu0 0
    %7010 = vmatprep.subr.bf16.mxu0 0
    %7011 = vmatpush1.bf16.msra.mxu0 0
    %7012 = vmatprep.subr.bf16.mxu0 0
    %7013 = vmatpush1.bf16.msra.mxu0 0
    %7014 = vmatprep.subr.bf16.mxu0 0
    %7015 = vmatpush1.bf16.msra.mxu0 0
    %7016 = vmatprep.subr.bf16.mxu0 0
    %7017 = vmatpush1.bf16.msra.mxu0 0
    %7018 = vmatprep.subr.bf16.mxu0 0
    %7019 = vmatpush1.bf16.msra.mxu0 0
    %7020 = vmatprep.subr.bf16.mxu0 0
    %7021 = vmatpush1.bf16.msra.mxu0 %v7004
    %7022 = vmatprep.subr.bf16.mxu0 0
    %7023 = vmatpush2.bf16.msra.mxu0 0
    %7024 = vmatprep.subr.bf16.mxu0 0
    %7025 = vmatpush2.bf16.msra.mxu0 0
    %7026 = vmatprep.subr.bf16.mxu0 0
    %7027 = vmatpush2.bf16.msra.mxu0 0
    %7028 = vmatprep.subr.bf16.mxu0 0
    %7029 = vmatpush2.bf16.msra.mxu0 0
    %7030 = vmatprep.subr.bf16.mxu0 0
    %7031 = vmatpush2.bf16.msra.mxu0 0
    %7032 = vmatprep.subr.bf16.mxu0 0
    %7033 = vmatpush2.bf16.msra.mxu0 0
    %7034 = vmatprep.subr.bf16.mxu0 0
    %7035 = vmatpush2.bf16.msra.mxu0 0
    %7036 = vmatprep.subr.bf16.mxu0 0
    %7037 = vmatpush2.bf16.msra.mxu0 0
    %7038 = vmatprep.mubr.bf16.mxu0 0
    %7039 = vmatmul.mubr.bf16.gmra.mxu0 %v7001
    %v7040 = vpop.f32.mrf.mxu0
    %v7041 = vadd.f32 0.0, %v7040
    %v7042 = vpop.f32.mrf.mxu0
    %v7043 = vpop.f32.mrf.mxu0
    %v7044 = vpop.f32.mrf.mxu0
    %7045 = vdwg.mxu0
    %7046 = vrot.lane.b32.xlu0 %v5724, 32
    %v7047 = vpop.permute.xlu0 %7046
    %7048 = vrot.lane.b32.xlu0 %v5730, 32
    %v7049 = vpop.permute.xlu0 %7048
    %v7051 = vsel %vm205, %v7047, 0
    %v7054 = vsel %vm205, %v7049, 0
    %7056 = vmatprep.subr.bf16.mxu0 0
    %7057 = vmatpush1.bf16.xpose.msra.mxu0 0
    %7058 = vmatprep.subr.bf16.mxu0 0
    %7059 = vmatpush1.bf16.xpose.msra.mxu0 0
    %7060 = vmatprep.subr.bf16.mxu0 0
    %7061 = vmatpush1.bf16.xpose.msra.mxu0 0
    %7062 = vmatprep.subr.bf16.mxu0 0
    %7063 = vmatpush1.bf16.xpose.msra.mxu0 0
    %7064 = vmatprep.subr.bf16.mxu0 0
    %7065 = vmatpush1.bf16.xpose.msra.mxu0 0
    %7066 = vmatprep.subr.bf16.mxu0 0
    %7067 = vmatpush1.bf16.xpose.msra.mxu0 0
    %7068 = vmatprep.subr.bf16.mxu0 0
    %7069 = vmatpush1.bf16.xpose.msra.mxu0 0
    %7070 = vmatprep.subr.bf16.mxu0 0
    %7071 = vmatpush1.bf16.xpose.msra.mxu0 %v7054
    %7072 = vmatprep.subr.bf16.mxu0 0
    %7073 = vmatpush2.bf16.xpose.msra.mxu0 0
    %7074 = vmatprep.subr.bf16.mxu0 0
    %7075 = vmatpush2.bf16.xpose.msra.mxu0 0
    %7076 = vmatprep.subr.bf16.mxu0 0
    %7077 = vmatpush2.bf16.xpose.msra.mxu0 0
    %7078 = vmatprep.subr.bf16.mxu0 0
    %7079 = vmatpush2.bf16.xpose.msra.mxu0 0
    %7080 = vmatprep.subr.bf16.mxu0 0
    %7081 = vmatpush2.bf16.xpose.msra.mxu0 0
    %7082 = vmatprep.subr.bf16.mxu0 0
    %7083 = vmatpush2.bf16.xpose.msra.mxu0 0
    %7084 = vmatprep.subr.bf16.mxu0 0
    %7085 = vmatpush2.bf16.xpose.msra.mxu0 0
    %7086 = vmatprep.subr.bf16.mxu0 0
    %7087 = vmatpush2.bf16.xpose.msra.mxu0 0
    %7088 = vmatprep.mubr.bf16.mxu0 0
    %7089 = vmatmul.mubr.bf16.gmra.mxu0 %v7051
    %v7090 = vpop.f32.mrf.mxu0
    %v7091 = vadd.f32 0.0, %v7090
    %v7092 = vpop.f32.mrf.mxu0
    %v7093 = vpop.f32.mrf.mxu0
    %v7094 = vpop.f32.mrf.mxu0
    %7095 = vdwg.mxu0
    %7096 = vrot.lane.b32.xlu0 %v5725, 32
    %v7097 = vpop.permute.xlu0 %7096
    %7098 = vrot.lane.b32.xlu0 %v5731, 32
    %v7099 = vpop.permute.xlu0 %7098
    %v7101 = vsel %vm205, %v7097, 0
    %v7104 = vsel %vm205, %v7099, 0
    %7106 = vmatprep.subr.bf16.mxu0 0
    %7107 = vmatpush1.bf16.xpose.msra.mxu0 0
    %7108 = vmatprep.subr.bf16.mxu0 0
    %7109 = vmatpush1.bf16.xpose.msra.mxu0 0
    %7110 = vmatprep.subr.bf16.mxu0 0
    %7111 = vmatpush1.bf16.xpose.msra.mxu0 0
    %7112 = vmatprep.subr.bf16.mxu0 0
    %7113 = vmatpush1.bf16.xpose.msra.mxu0 0
    %7114 = vmatprep.subr.bf16.mxu0 0
    %7115 = vmatpush1.bf16.xpose.msra.mxu0 0
    %7116 = vmatprep.subr.bf16.mxu0 0
    %7117 = vmatpush1.bf16.xpose.msra.mxu0 0
    %7118 = vmatprep.subr.bf16.mxu0 0
    %7119 = vmatpush1.bf16.xpose.msra.mxu0 0
    %7120 = vmatprep.subr.bf16.mxu0 0
    %7121 = vmatpush1.bf16.xpose.msra.mxu0 %v7104
    %7122 = vmatprep.subr.bf16.mxu0 0
    %7123 = vmatpush2.bf16.xpose.msra.mxu0 0
    %7124 = vmatprep.subr.bf16.mxu0 0
    %7125 = vmatpush2.bf16.xpose.msra.mxu0 0
    %7126 = vmatprep.subr.bf16.mxu0 0
    %7127 = vmatpush2.bf16.xpose.msra.mxu0 0
    %7128 = vmatprep.subr.bf16.mxu0 0
    %7129 = vmatpush2.bf16.xpose.msra.mxu0 0
    %7130 = vmatprep.subr.bf16.mxu0 0
    %7131 = vmatpush2.bf16.xpose.msra.mxu0 0
    %7132 = vmatprep.subr.bf16.mxu0 0
    %7133 = vmatpush2.bf16.xpose.msra.mxu0 0
    %7134 = vmatprep.subr.bf16.mxu0 0
    %7135 = vmatpush2.bf16.xpose.msra.mxu0 0
    %7136 = vmatprep.subr.bf16.mxu0 0
    %7137 = vmatpush2.bf16.xpose.msra.mxu0 0
    %7138 = vmatprep.mubr.bf16.mxu0 0
    %7139 = vmatmul.mubr.bf16.gmra.mxu0 %v7101
    %v7140 = vpop.f32.mrf.mxu0
    %v7141 = vadd.f32 0.0, %v7140
    %v7142 = vpop.f32.mrf.mxu0
    %v7143 = vpop.f32.mrf.mxu0
    %v7144 = vpop.f32.mrf.mxu0
    %7145 = vdwg.mxu0
    %v7146 = vsel %vm624, %v7091, -inf
    %7147 = vmax.xlane.f32.xlu0 %v7146
    %v7148 = vpop.xlane.xlu0 %7147
    %v7149 = vsel %vm624, %v7141, -inf
    %7150 = vmax.xlane.f32.xlu0 %v7149
    %v7151 = vpop.xlane.xlu0 %7150
    %v7152 = vsub.f32 %v7091, %v7148
    %v7153 = vsub.f32 %v7141, %v7151
    %v7154 = vmul.f32 %v7152, 1.442695
    %v7155 = vpow.pop %v7154
    %v7156 = vmul.f32 %v7153, 1.442695
    %v7157 = vpow.pop %v7156
    %v7158 = vsel %vm624, %v7155, 0.0
    %7159 = vadd.xlane.f32.xlu0 %v7158
    %v7160 = vpop.xlane.xlu0 %7159
    %v7161 = vsel %vm624, %v7157, 0.0
    %7162 = vadd.xlane.f32.xlu0 %v7161
    %v7163 = vpop.xlane.xlu0 %7162
    %v7164 = vrcp.pop %v7160
    %v7165 = vrcp.pop %v7163
    %v7166 = vmul.f32 %v7155, %v7164
    %v7167 = vmul.f32 %v7157, %v7165
    %v7168 = vpack.c.bf16 %v7166, %v7166
    %v7169 = vpack.c.bf16 %v7167, %v7167
    %7170 = vrot.lane.b32.xlu0 %v5736, 32
    %v7171 = vpop.permute.xlu0 %7170
    %v7173 = vsel %vm624, %v7168, 0
    %v7176 = vsel %vm652, %v7171, 0
    %7178 = vmatprep.subr.bf16.mxu0 0
    %7179 = vmatpush1.bf16.msra.mxu0 0
    %7180 = vmatprep.subr.bf16.mxu0 0
    %7181 = vmatpush1.bf16.msra.mxu0 0
    %7182 = vmatprep.subr.bf16.mxu0 0
    %7183 = vmatpush1.bf16.msra.mxu0 0
    %7184 = vmatprep.subr.bf16.mxu0 0
    %7185 = vmatpush1.bf16.msra.mxu0 0
    %7186 = vmatprep.subr.bf16.mxu0 0
    %7187 = vmatpush1.bf16.msra.mxu0 0
    %7188 = vmatprep.subr.bf16.mxu0 0
    %7189 = vmatpush1.bf16.msra.mxu0 0
    %7190 = vmatprep.subr.bf16.mxu0 0
    %7191 = vmatpush1.bf16.msra.mxu0 0
    %7192 = vmatprep.subr.bf16.mxu0 0
    %7193 = vmatpush1.bf16.msra.mxu0 %v7176
    %7194 = vmatprep.subr.bf16.mxu0 0
    %7195 = vmatpush2.bf16.msra.mxu0 0
    %7196 = vmatprep.subr.bf16.mxu0 0
    %7197 = vmatpush2.bf16.msra.mxu0 0
    %7198 = vmatprep.subr.bf16.mxu0 0
    %7199 = vmatpush2.bf16.msra.mxu0 0
    %7200 = vmatprep.subr.bf16.mxu0 0
    %7201 = vmatpush2.bf16.msra.mxu0 0
    %7202 = vmatprep.subr.bf16.mxu0 0
    %7203 = vmatpush2.bf16.msra.mxu0 0
    %7204 = vmatprep.subr.bf16.mxu0 0
    %7205 = vmatpush2.bf16.msra.mxu0 0
    %7206 = vmatprep.subr.bf16.mxu0 0
    %7207 = vmatpush2.bf16.msra.mxu0 0
    %7208 = vmatprep.subr.bf16.mxu0 0
    %7209 = vmatpush2.bf16.msra.mxu0 0
    %7210 = vmatprep.mubr.bf16.mxu0 0
    %7211 = vmatmul.mubr.bf16.gmra.mxu0 %v7173
    %v7212 = vpop.f32.mrf.mxu0
    %v7213 = vadd.f32 0.0, %v7212
    %v7214 = vpop.f32.mrf.mxu0
    %v7215 = vpop.f32.mrf.mxu0
    %v7216 = vpop.f32.mrf.mxu0
    %7217 = vdwg.mxu0
    %7218 = vrot.lane.b32.xlu0 %v5737, 32
    %v7219 = vpop.permute.xlu0 %7218
    %v7221 = vsel %vm624, %v7169, 0
    %v7224 = vsel %vm652, %v7219, 0
    %7226 = vmatprep.subr.bf16.mxu0 0
    %7227 = vmatpush1.bf16.msra.mxu0 0
    %7228 = vmatprep.subr.bf16.mxu0 0
    %7229 = vmatpush1.bf16.msra.mxu0 0
    %7230 = vmatprep.subr.bf16.mxu0 0
    %7231 = vmatpush1.bf16.msra.mxu0 0
    %7232 = vmatprep.subr.bf16.mxu0 0
    %7233 = vmatpush1.bf16.msra.mxu0 0
    %7234 = vmatprep.subr.bf16.mxu0 0
    %7235 = vmatpush1.bf16.msra.mxu0 0
    %7236 = vmatprep.subr.bf16.mxu0 0
    %7237 = vmatpush1.bf16.msra.mxu0 0
    %7238 = vmatprep.subr.bf16.mxu0 0
    %7239 = vmatpush1.bf16.msra.mxu0 0
    %7240 = vmatprep.subr.bf16.mxu0 0
    %7241 = vmatpush1.bf16.msra.mxu0 %v7224
    %7242 = vmatprep.subr.bf16.mxu0 0
    %7243 = vmatpush2.bf16.msra.mxu0 0
    %7244 = vmatprep.subr.bf16.mxu0 0
    %7245 = vmatpush2.bf16.msra.mxu0 0
    %7246 = vmatprep.subr.bf16.mxu0 0
    %7247 = vmatpush2.bf16.msra.mxu0 0
    %7248 = vmatprep.subr.bf16.mxu0 0
    %7249 = vmatpush2.bf16.msra.mxu0 0
    %7250 = vmatprep.subr.bf16.mxu0 0
    %7251 = vmatpush2.bf16.msra.mxu0 0
    %7252 = vmatprep.subr.bf16.mxu0 0
    %7253 = vmatpush2.bf16.msra.mxu0 0
    %7254 = vmatprep.subr.bf16.mxu0 0
    %7255 = vmatpush2.bf16.msra.mxu0 0
    %7256 = vmatprep.subr.bf16.mxu0 0
    %7257 = vmatpush2.bf16.msra.mxu0 0
    %7258 = vmatprep.mubr.bf16.mxu0 0
    %7259 = vmatmul.mubr.bf16.gmra.mxu0 %v7221
    %v7260 = vpop.f32.mrf.mxu0
    %v7261 = vadd.f32 0.0, %v7260
    %v7262 = vpop.f32.mrf.mxu0
    %v7263 = vpop.f32.mrf.mxu0
    %v7264 = vpop.f32.mrf.mxu0
    %7265 = vdwg.mxu0
    %7266 = vrot.lane.b32.xlu0 %v5724, 16
    %v7267 = vpop.permute.xlu0 %7266
    %7268 = vrot.lane.b32.xlu0 %v5730, 16
    %v7269 = vpop.permute.xlu0 %7268
    %v7271 = vsel %vm205, %v7267, 0
    %v7274 = vsel %vm205, %v7269, 0
    %7276 = vmatprep.subr.bf16.mxu0 0
    %7277 = vmatpush1.bf16.xpose.msra.mxu0 0
    %7278 = vmatprep.subr.bf16.mxu0 0
    %7279 = vmatpush1.bf16.xpose.msra.mxu0 0
    %7280 = vmatprep.subr.bf16.mxu0 0
    %7281 = vmatpush1.bf16.xpose.msra.mxu0 0
    %7282 = vmatprep.subr.bf16.mxu0 0
    %7283 = vmatpush1.bf16.xpose.msra.mxu0 0
    %7284 = vmatprep.subr.bf16.mxu0 0
    %7285 = vmatpush1.bf16.xpose.msra.mxu0 0
    %7286 = vmatprep.subr.bf16.mxu0 0
    %7287 = vmatpush1.bf16.xpose.msra.mxu0 0
    %7288 = vmatprep.subr.bf16.mxu0 0
    %7289 = vmatpush1.bf16.xpose.msra.mxu0 0
    %7290 = vmatprep.subr.bf16.mxu0 0
    %7291 = vmatpush1.bf16.xpose.msra.mxu0 %v7274
    %7292 = vmatprep.subr.bf16.mxu0 0
    %7293 = vmatpush2.bf16.xpose.msra.mxu0 0
    %7294 = vmatprep.subr.bf16.mxu0 0
    %7295 = vmatpush2.bf16.xpose.msra.mxu0 0
    %7296 = vmatprep.subr.bf16.mxu0 0
    %7297 = vmatpush2.bf16.xpose.msra.mxu0 0
    %7298 = vmatprep.subr.bf16.mxu0 0
    %7299 = vmatpush2.bf16.xpose.msra.mxu0 0
    %7300 = vmatprep.subr.bf16.mxu0 0
    %7301 = vmatpush2.bf16.xpose.msra.mxu0 0
    %7302 = vmatprep.subr.bf16.mxu0 0
    %7303 = vmatpush2.bf16.xpose.msra.mxu0 0
    %7304 = vmatprep.subr.bf16.mxu0 0
    %7305 = vmatpush2.bf16.xpose.msra.mxu0 0
    %7306 = vmatprep.subr.bf16.mxu0 0
    %7307 = vmatpush2.bf16.xpose.msra.mxu0 0
    %7308 = vmatprep.mubr.bf16.mxu0 0
    %7309 = vmatmul.mubr.bf16.gmra.mxu0 %v7271
    %v7310 = vpop.f32.mrf.mxu0
    %v7311 = vadd.f32 0.0, %v7310
    %v7312 = vpop.f32.mrf.mxu0
    %v7313 = vpop.f32.mrf.mxu0
    %v7314 = vpop.f32.mrf.mxu0
    %7315 = vdwg.mxu0
    %7316 = vrot.lane.b32.xlu0 %v5725, 16
    %v7317 = vpop.permute.xlu0 %7316
    %7318 = vrot.lane.b32.xlu0 %v5731, 16
    %v7319 = vpop.permute.xlu0 %7318
    %v7321 = vsel %vm205, %v7317, 0
    %v7324 = vsel %vm205, %v7319, 0
    %7326 = vmatprep.subr.bf16.mxu0 0
    %7327 = vmatpush1.bf16.xpose.msra.mxu0 0
    %7328 = vmatprep.subr.bf16.mxu0 0
    %7329 = vmatpush1.bf16.xpose.msra.mxu0 0
    %7330 = vmatprep.subr.bf16.mxu0 0
    %7331 = vmatpush1.bf16.xpose.msra.mxu0 0
    %7332 = vmatprep.subr.bf16.mxu0 0
    %7333 = vmatpush1.bf16.xpose.msra.mxu0 0
    %7334 = vmatprep.subr.bf16.mxu0 0
    %7335 = vmatpush1.bf16.xpose.msra.mxu0 0
    %7336 = vmatprep.subr.bf16.mxu0 0
    %7337 = vmatpush1.bf16.xpose.msra.mxu0 0
    %7338 = vmatprep.subr.bf16.mxu0 0
    %7339 = vmatpush1.bf16.xpose.msra.mxu0 0
    %7340 = vmatprep.subr.bf16.mxu0 0
    %7341 = vmatpush1.bf16.xpose.msra.mxu0 %v7324
    %7342 = vmatprep.subr.bf16.mxu0 0
    %7343 = vmatpush2.bf16.xpose.msra.mxu0 0
    %7344 = vmatprep.subr.bf16.mxu0 0
    %7345 = vmatpush2.bf16.xpose.msra.mxu0 0
    %7346 = vmatprep.subr.bf16.mxu0 0
    %7347 = vmatpush2.bf16.xpose.msra.mxu0 0
    %7348 = vmatprep.subr.bf16.mxu0 0
    %7349 = vmatpush2.bf16.xpose.msra.mxu0 0
    %7350 = vmatprep.subr.bf16.mxu0 0
    %7351 = vmatpush2.bf16.xpose.msra.mxu0 0
    %7352 = vmatprep.subr.bf16.mxu0 0
    %7353 = vmatpush2.bf16.xpose.msra.mxu0 0
    %7354 = vmatprep.subr.bf16.mxu0 0
    %7355 = vmatpush2.bf16.xpose.msra.mxu0 0
    %7356 = vmatprep.subr.bf16.mxu0 0
    %7357 = vmatpush2.bf16.xpose.msra.mxu0 0
    %7358 = vmatprep.mubr.bf16.mxu0 0
    %7359 = vmatmul.mubr.bf16.gmra.mxu0 %v7321
    %v7360 = vpop.f32.mrf.mxu0
    %v7361 = vadd.f32 0.0, %v7360
    %v7362 = vpop.f32.mrf.mxu0
    %v7363 = vpop.f32.mrf.mxu0
    %v7364 = vpop.f32.mrf.mxu0
    %7365 = vdwg.mxu0
    %v7366 = vsel %vm624, %v7311, -inf
    %7367 = vmax.xlane.f32.xlu0 %v7366
    %v7368 = vpop.xlane.xlu0 %7367
    %v7369 = vsel %vm624, %v7361, -inf
    %7370 = vmax.xlane.f32.xlu0 %v7369
    %v7371 = vpop.xlane.xlu0 %7370
    %v7372 = vsub.f32 %v7311, %v7368
    %v7373 = vsub.f32 %v7361, %v7371
    %v7374 = vmul.f32 %v7372, 1.442695
    %v7375 = vpow.pop %v7374
    %v7376 = vmul.f32 %v7373, 1.442695
    %v7377 = vpow.pop %v7376
    %v7378 = vsel %vm624, %v7375, 0.0
    %7379 = vadd.xlane.f32.xlu0 %v7378
    %v7380 = vpop.xlane.xlu0 %7379
    %v7381 = vsel %vm624, %v7377, 0.0
    %7382 = vadd.xlane.f32.xlu0 %v7381
    %v7383 = vpop.xlane.xlu0 %7382
    %v7384 = vrcp.pop %v7380
    %v7385 = vrcp.pop %v7383
    %v7386 = vmul.f32 %v7375, %v7384
    %v7387 = vmul.f32 %v7377, %v7385
    %v7388 = vpack.c.bf16 %v7386, %v7386
    %v7389 = vpack.c.bf16 %v7387, %v7387
    %7390 = vrot.lane.b32.xlu0 %v5736, 16
    %v7391 = vpop.permute.xlu0 %7390
    %v7393 = vsel %vm624, %v7388, 0
    %v7396 = vsel %vm652, %v7391, 0
    %7398 = vmatprep.subr.bf16.mxu0 0
    %7399 = vmatpush1.bf16.msra.mxu0 0
    %7400 = vmatprep.subr.bf16.mxu0 0
    %7401 = vmatpush1.bf16.msra.mxu0 0
    %7402 = vmatprep.subr.bf16.mxu0 0
    %7403 = vmatpush1.bf16.msra.mxu0 0
    %7404 = vmatprep.subr.bf16.mxu0 0
    %7405 = vmatpush1.bf16.msra.mxu0 0
    %7406 = vmatprep.subr.bf16.mxu0 0
    %7407 = vmatpush1.bf16.msra.mxu0 0
    %7408 = vmatprep.subr.bf16.mxu0 0
    %7409 = vmatpush1.bf16.msra.mxu0 0
    %7410 = vmatprep.subr.bf16.mxu0 0
    %7411 = vmatpush1.bf16.msra.mxu0 0
    %7412 = vmatprep.subr.bf16.mxu0 0
    %7413 = vmatpush1.bf16.msra.mxu0 %v7396
    %7414 = vmatprep.subr.bf16.mxu0 0
    %7415 = vmatpush2.bf16.msra.mxu0 0
    %7416 = vmatprep.subr.bf16.mxu0 0
    %7417 = vmatpush2.bf16.msra.mxu0 0
    %7418 = vmatprep.subr.bf16.mxu0 0
    %7419 = vmatpush2.bf16.msra.mxu0 0
    %7420 = vmatprep.subr.bf16.mxu0 0
    %7421 = vmatpush2.bf16.msra.mxu0 0
    %7422 = vmatprep.subr.bf16.mxu0 0
    %7423 = vmatpush2.bf16.msra.mxu0 0
    %7424 = vmatprep.subr.bf16.mxu0 0
    %7425 = vmatpush2.bf16.msra.mxu0 0
    %7426 = vmatprep.subr.bf16.mxu0 0
    %7427 = vmatpush2.bf16.msra.mxu0 0
    %7428 = vmatprep.subr.bf16.mxu0 0
    %7429 = vmatpush2.bf16.msra.mxu0 0
    %7430 = vmatprep.mubr.bf16.mxu0 0
    %7431 = vmatmul.mubr.bf16.gmra.mxu0 %v7393
    %v7432 = vpop.f32.mrf.mxu0
    %v7433 = vadd.f32 0.0, %v7432
    %v7434 = vpop.f32.mrf.mxu0
    %v7435 = vpop.f32.mrf.mxu0
    %v7436 = vpop.f32.mrf.mxu0
    %7437 = vdwg.mxu0
    %7438 = vrot.lane.b32.xlu0 %v5737, 16
    %v7439 = vpop.permute.xlu0 %7438
    %v7441 = vsel %vm624, %v7389, 0
    %v7444 = vsel %vm652, %v7439, 0
    %7446 = vmatprep.subr.bf16.mxu0 0
    %7447 = vmatpush1.bf16.msra.mxu0 0
    %7448 = vmatprep.subr.bf16.mxu0 0
    %7449 = vmatpush1.bf16.msra.mxu0 0
    %7450 = vmatprep.subr.bf16.mxu0 0
    %7451 = vmatpush1.bf16.msra.mxu0 0
    %7452 = vmatprep.subr.bf16.mxu0 0
    %7453 = vmatpush1.bf16.msra.mxu0 0
    %7454 = vmatprep.subr.bf16.mxu0 0
    %7455 = vmatpush1.bf16.msra.mxu0 0
    %7456 = vmatprep.subr.bf16.mxu0 0
    %7457 = vmatpush1.bf16.msra.mxu0 0
    %7458 = vmatprep.subr.bf16.mxu0 0
    %7459 = vmatpush1.bf16.msra.mxu0 0
    %7460 = vmatprep.subr.bf16.mxu0 0
    %7461 = vmatpush1.bf16.msra.mxu0 %v7444
    %7462 = vmatprep.subr.bf16.mxu0 0
    %7463 = vmatpush2.bf16.msra.mxu0 0
    %7464 = vmatprep.subr.bf16.mxu0 0
    %7465 = vmatpush2.bf16.msra.mxu0 0
    %7466 = vmatprep.subr.bf16.mxu0 0
    %7467 = vmatpush2.bf16.msra.mxu0 0
    %7468 = vmatprep.subr.bf16.mxu0 0
    %7469 = vmatpush2.bf16.msra.mxu0 0
    %7470 = vmatprep.subr.bf16.mxu0 0
    %7471 = vmatpush2.bf16.msra.mxu0 0
    %7472 = vmatprep.subr.bf16.mxu0 0
    %7473 = vmatpush2.bf16.msra.mxu0 0
    %7474 = vmatprep.subr.bf16.mxu0 0
    %7475 = vmatpush2.bf16.msra.mxu0 0
    %7476 = vmatprep.subr.bf16.mxu0 0
    %7477 = vmatpush2.bf16.msra.mxu0 0
    %7478 = vmatprep.mubr.bf16.mxu0 0
    %7479 = vmatmul.mubr.bf16.gmra.mxu0 %v7441
    %v7480 = vpop.f32.mrf.mxu0
    %v7481 = vadd.f32 0.0, %v7480
    %v7482 = vpop.f32.mrf.mxu0
    %v7483 = vpop.f32.mrf.mxu0
    %v7484 = vpop.f32.mrf.mxu0
    %7485 = vdwg.mxu0
    %7488 = vrot.lane.b32.xlu0 %v6066, 8
    %v7489 = vpop.permute.xlu0 %7488
    %7490 = vrot.lane.b32.xlu0 %v6067, 8
    %v7491 = vpop.permute.xlu0 %7490
    %7496 = vrot.lane.b32.xlu0 %v6286, 16
    %v7497 = vpop.permute.xlu0 %7496
    %7498 = vrot.lane.b32.xlu0 %v6287, 16
    %v7499 = vpop.permute.xlu0 %7498
    %7504 = vrot.lane.b32.xlu0 %v6506, 24
    %v7505 = vpop.permute.xlu0 %7504
    %7506 = vrot.lane.b32.xlu0 %v6507, 24
    %v7507 = vpop.permute.xlu0 %7506
    %7512 = vrot.lane.b32.xlu0 %v6726, 32
    %v7513 = vpop.permute.xlu0 %7512
    %7514 = vrot.lane.b32.xlu0 %v6727, 32
    %v7515 = vpop.permute.xlu0 %7514
    %7520 = vrot.lane.b32.xlu0 %v6946, 40
    %v7521 = vpop.permute.xlu0 %7520
    %7522 = vrot.lane.b32.xlu0 %v6947, 40
    %v7523 = vpop.permute.xlu0 %7522
    %7528 = vrot.lane.b32.xlu0 %v7166, 48
    %v7529 = vpop.permute.xlu0 %7528
    %7530 = vrot.lane.b32.xlu0 %v7167, 48
    %v7531 = vpop.permute.xlu0 %7530
    %7536 = vrot.lane.b32.xlu0 %v7386, 56
    %v7537 = vpop.permute.xlu0 %7536
    %7538 = vrot.lane.b32.xlu0 %v7387, 56
    %v7539 = vpop.permute.xlu0 %7538
    %v7542 = vsel %vm624, %v5850, %v7489
    %v7543 = vsel %vm624, %v5851, %v7491
    %v7544 = vsel %vm205, %v7542, %v7497
    %v7545 = vsel %vm205, %v7543, %v7499
    %v7546 = vsel %vm2342, %v7544, %v7505
    %v7547 = vsel %vm2342, %v7545, %v7507
    %v7548 = vsel %vm2345, %v7546, %v7513
    %v7549 = vsel %vm2345, %v7547, %v7515
    %v7550 = vsel %vm2348, %v7548, %v7521
    %v7551 = vsel %vm2348, %v7549, %v7523
    %v7552 = vsel %vm2351, %v7550, %v7529
    %v7553 = vsel %vm2351, %v7551, %v7531
    %v7554 = vsel %vm2354, %v7552, %v7537
    %v7555 = vsel %vm2354, %v7553, %v7539
    %7556 = vst.msk [vmem:[%s93] sm:$0xff] %vm2357, %v7554
    %7557 = vst.msk [vmem:[%s93 + $0x8] sm:$0xff] %vm2357, %v7555
    %7560 = vrot.lane.b32.xlu0 %v6113, 16
    %v7561 = vpop.permute.xlu0 %7560
    %7562 = vrot.lane.b32.xlu0 %v6161, 16
    %v7563 = vpop.permute.xlu0 %7562
    %7568 = vrot.lane.b32.xlu0 %v6333, 32
    %v7569 = vpop.permute.xlu0 %7568
    %7570 = vrot.lane.b32.xlu0 %v6381, 32
    %v7571 = vpop.permute.xlu0 %7570
    %7576 = vrot.lane.b32.xlu0 %v6553, 48
    %v7577 = vpop.permute.xlu0 %7576
    %7578 = vrot.lane.b32.xlu0 %v6601, 48
    %v7579 = vpop.permute.xlu0 %7578
    %7584 = vrot.lane.b32.xlu0 %v6773, 64
    %v7585 = vpop.permute.xlu0 %7584
    %7586 = vrot.lane.b32.xlu0 %v6821, 64
    %v7587 = vpop.permute.xlu0 %7586
    %7592 = vrot.lane.b32.xlu0 %v6993, 80
    %v7593 = vpop.permute.xlu0 %7592
    %7594 = vrot.lane.b32.xlu0 %v7041, 80
    %v7595 = vpop.permute.xlu0 %7594
    %7600 = vrot.lane.b32.xlu0 %v7213, 96
    %v7601 = vpop.permute.xlu0 %7600
    %7602 = vrot.lane.b32.xlu0 %v7261, 96
    %v7603 = vpop.permute.xlu0 %7602
    %7608 = vrot.lane.b32.xlu0 %v7433, 112
    %v7609 = vpop.permute.xlu0 %7608
    %7610 = vrot.lane.b32.xlu0 %v7481, 112
    %v7611 = vpop.permute.xlu0 %7610
    %v7614 = vsel %vm205, %v5895, %v7561
    %v7615 = vsel %vm205, %v5941, %v7563
    %v7616 = vsel %vm2345, %v7614, %v7569
    %v7617 = vsel %vm2345, %v7615, %v7571
    %v7618 = vsel %vm2351, %v7616, %v7577
    %v7619 = vsel %vm2351, %v7617, %v7579
    %v7620 = vsel %vm2357, %v7618, %v7585
    %v7621 = vsel %vm2357, %v7619, %v7587
    %v7622 = vsel %vm2424, %v7620, %v7593
    %v7623 = vsel %vm2424, %v7621, %v7595
    %v7624 = vsel %vm2427, %v7622, %v7601
    %v7625 = vsel %vm2427, %v7623, %v7603
    %v7626 = vsel %vm2430, %v7624, %v7609
    %v7627 = vsel %vm2430, %v7625, %v7611
    %v7628 = vpack.c.bf16 %v7627, %v7626
    %v7629 = vld [vmem:[%s59] sm:$0xf]
    %v7630 = vld [vmem:[%s59 + $0x4] sm:$0xf]
    %v7631 = vld [vmem:[%s59 + $0x8] sm:$0xf]
    %v7632 = vld [vmem:[%s59 + $0xc] sm:$0xf]
    %v7633 = vld [vmem:[%s59 + $0x10] sm:$0xf]
    %v7634 = vld [vmem:[%s59 + $0x14] sm:$0xf]
    %v7635 = vld [vmem:[%s59 + $0x18] sm:$0xf]
    %v7636 = vld [vmem:[%s59 + $0x1c] sm:$0xf]
    %v7637 = vld [vmem:[%s59 + $0x20] sm:$0xf]
    %v7638 = vld [vmem:[%s59 + $0x24] sm:$0xf]
    %v7639 = vld [vmem:[%s59 + $0x28] sm:$0xf]
    %v7640 = vld [vmem:[%s59 + $0x2c] sm:$0xf]
    %v7641 = vld [vmem:[%s59 + $0x30] sm:$0xf]
    %v7642 = vld [vmem:[%s59 + $0x34] sm:$0xf]
    %v7643 = vld [vmem:[%s59 + $0x38] sm:$0xf]
    %v7644 = vld [vmem:[%s59 + $0x3c] sm:$0xf]
    %v7645 = vld [vmem:[%s61] sm:$0x1]
    %v7647 = vlaneseq
    %v7648 = vshrl.u32 %v7647, 7
    %v7649 = vsub.s32 0, %v7648
    %v7650 = vrot.slane %v7645, %v7649
    %v7668 = vunpack.c.l.b16 %v7629
    %v7669 = vunpack.c.l.b16 %v7630
    %v7670 = vunpack.c.l.b16 %v7631
    %v7671 = vunpack.c.l.b16 %v7632
    %v7672 = vunpack.c.l.b16 %v7633
    %v7673 = vunpack.c.l.b16 %v7634
    %v7674 = vunpack.c.l.b16 %v7635
    %v7675 = vunpack.c.l.b16 %v7636
    %v7676 = vunpack.c.l.b16 %v7637
    %v7677 = vunpack.c.l.b16 %v7638
    %v7678 = vunpack.c.l.b16 %v7639
    %v7679 = vunpack.c.l.b16 %v7640
    %v7680 = vunpack.c.l.b16 %v7641
    %v7681 = vunpack.c.l.b16 %v7642
    %v7682 = vunpack.c.l.b16 %v7643
    %v7683 = vunpack.c.l.b16 %v7644
    %v7684 = vpack.c.b16 %v7669, %v7668
    %v7685 = vpack.c.b16 %v7671, %v7670
    %v7686 = vpack.c.b16 %v7673, %v7672
    %v7687 = vpack.c.b16 %v7675, %v7674
    %v7688 = vpack.c.b16 %v7677, %v7676
    %v7689 = vpack.c.b16 %v7679, %v7678
    %v7690 = vpack.c.b16 %v7681, %v7680
    %v7691 = vpack.c.b16 %v7683, %v7682
    %7700 = vmatprep.subr.bf16.mxu0 0
    %7701 = vmatpush1.bf16.msra.mxu0 %v7691
    %7702 = vmatprep.subr.bf16.mxu0 0
    %7703 = vmatpush1.bf16.msra.mxu0 %v7690
    %7704 = vmatprep.subr.bf16.mxu0 0
    %7705 = vmatpush1.bf16.msra.mxu0 %v7689
    %7706 = vmatprep.subr.bf16.mxu0 0
    %7707 = vmatpush1.bf16.msra.mxu0 %v7688
    %7708 = vmatprep.subr.bf16.mxu0 0
    %7709 = vmatpush1.bf16.msra.mxu0 %v7687
    %7710 = vmatprep.subr.bf16.mxu0 0
    %7711 = vmatpush1.bf16.msra.mxu0 %v7686
    %7712 = vmatprep.subr.bf16.mxu0 0
    %7713 = vmatpush1.bf16.msra.mxu0 %v7685
    %7714 = vmatprep.subr.bf16.mxu0 0
    %7715 = vmatpush1.bf16.msra.mxu0 %v7684
    %7716 = vmatprep.subr.bf16.mxu0 0
    %7717 = vmatpush2.bf16.msra.mxu0 0
    %7718 = vmatprep.subr.bf16.mxu0 0
    %7719 = vmatpush2.bf16.msra.mxu0 0
    %7720 = vmatprep.subr.bf16.mxu0 0
    %7721 = vmatpush2.bf16.msra.mxu0 0
    %7722 = vmatprep.subr.bf16.mxu0 0
    %7723 = vmatpush2.bf16.msra.mxu0 0
    %7724 = vmatprep.subr.bf16.mxu0 0
    %7725 = vmatpush2.bf16.msra.mxu0 0
    %7726 = vmatprep.subr.bf16.mxu0 0
    %7727 = vmatpush2.bf16.msra.mxu0 0
    %7728 = vmatprep.subr.bf16.mxu0 0
    %7729 = vmatpush2.bf16.msra.mxu0 0
    %7730 = vmatprep.subr.bf16.mxu0 0
    %7731 = vmatpush2.bf16.msra.mxu0 0
    %7732 = vmatprep.mubr.bf16.mxu0 0
    %7733 = vmatmul.mubr.bf16.gmra.mxu0 %v7628
    %v7734 = vpop.f32.mrf.mxu0
    %v7735 = vadd.f32 %v7650, %v7734
    %v7736 = vpop.f32.mrf.mxu0
    %v7737 = vpop.f32.mrf.mxu0
    %v7738 = vadd.f32 %v7650, %v7737
    %v7739 = vpop.f32.mrf.mxu0
    %7740 = vdwg.mxu0
    %v7741 = vadd.f32 %v5454, %v7735
    %v7742 = vadd.f32 %v5455, %v7738
    %v7743 = vld [vmem:[%s71] sm:$0x1]
    %v7744 = vld [vmem:[%s73] sm:$0x1]
    %7745 = vadd.xlane.f32.xlu0 %v7741
    %v7746 = vpop.xlane.xlu0 %7745
    %7747 = vadd.xlane.f32.xlu0 %v7742
    %v7748 = vpop.xlane.xlu0 %7747
    %v7749 = vmul.f32 %v7746, %v2554
    %v7750 = vmul.f32 %v7748, %v2554
    %v7751 = vsub.f32 %v7741, %v7749
    %v7752 = vsub.f32 %v7742, %v7750
    %v7753 = vmul.f32 %v7751, %v7751
    %v7754 = vmul.f32 %v7752, %v7752
    %7755 = vadd.xlane.f32.xlu0 %v7753
    %v7756 = vpop.xlane.xlu0 %7755
    %7757 = vadd.xlane.f32.xlu0 %v7754
    %v7758 = vpop.xlane.xlu0 %7757
    %v7759 = vmul.f32 %v7756, %v2554
    %v7760 = vmul.f32 %v7758, %v2554
    %v7761 = vadd.f32 %v7759, 1e-05
    %v7762 = vadd.f32 %v7760, 1e-05
    %v7763 = vrsqrt.pop %v7761
    %v7764 = vrsqrt.pop %v7762
    %v7765 = vmul.f32 %v7751, %v7763
    %v7766 = vmul.f32 %v7752, %v7764
    %v7768 = vlaneseq
    %v7769 = vshrl.u32 %v7768, 7
    %v7770 = vsub.s32 0, %v7769
    %v7771 = vrot.slane %v7743, %v7770
    %v7773 = vmul.f32 %v7765, %v7771
    %v7774 = vmul.f32 %v7766, %v7771
    %v7776 = vlaneseq
    %v7777 = vshrl.u32 %v7776, 7
    %v7778 = vsub.s32 0, %v7777
    %v7779 = vrot.slane %v7744, %v7778
    %v7781 = vadd.f32 %v7773, %v7779
    %v7782 = vadd.f32 %v7774, %v7779
    %v7783 = vpack.c.bf16 %v7782, %v7781
    %v7784 = vld [vmem:[%s63] sm:$0xf]
    %v7785 = vld [vmem:[%s63 + $0x4] sm:$0xf]
    %v7786 = vld [vmem:[%s63 + $0x8] sm:$0xf]
    %v7787 = vld [vmem:[%s63 + $0xc] sm:$0xf]
    %v7788 = vld [vmem:[%s63 + $0x10] sm:$0xf]
    %v7789 = vld [vmem:[%s63 + $0x14] sm:$0xf]
    %v7790 = vld [vmem:[%s63 + $0x18] sm:$0xf]
    %v7791 = vld [vmem:[%s63 + $0x1c] sm:$0xf]
    %v7792 = vld [vmem:[%s63 + $0x20] sm:$0xf]
    %v7793 = vld [vmem:[%s63 + $0x24] sm:$0xf]
    %v7794 = vld [vmem:[%s63 + $0x28] sm:$0xf]
    %v7795 = vld [vmem:[%s63 + $0x2c] sm:$0xf]
    %v7796 = vld [vmem:[%s63 + $0x30] sm:$0xf]
    %v7797 = vld [vmem:[%s63 + $0x34] sm:$0xf]
    %v7798 = vld [vmem:[%s63 + $0x38] sm:$0xf]
    %v7799 = vld [vmem:[%s63 + $0x3c] sm:$0xf]
    %v7800 = vld [vmem:[%s65] sm:$0x1]
    %v7802 = vlaneseq
    %v7803 = vshrl.u32 %v7802, 7
    %v7804 = vsub.s32 0, %v7803
    %v7805 = vrot.slane %v7800, %v7804
    %v7823 = vunpack.c.l.b16 %v7784
    %v7824 = vunpack.c.l.b16 %v7785
    %v7825 = vunpack.c.l.b16 %v7786
    %v7826 = vunpack.c.l.b16 %v7787
    %v7827 = vunpack.c.l.b16 %v7788
    %v7828 = vunpack.c.l.b16 %v7789
    %v7829 = vunpack.c.l.b16 %v7790
    %v7830 = vunpack.c.l.b16 %v7791
    %v7831 = vunpack.c.l.b16 %v7792
    %v7832 = vunpack.c.l.b16 %v7793
    %v7833 = vunpack.c.l.b16 %v7794
    %v7834 = vunpack.c.l.b16 %v7795
    %v7835 = vunpack.c.l.b16 %v7796
    %v7836 = vunpack.c.l.b16 %v7797
    %v7837 = vunpack.c.l.b16 %v7798
    %v7838 = vunpack.c.l.b16 %v7799
    %v7839 = vpack.c.b16 %v7824, %v7823
    %v7840 = vpack.c.b16 %v7826, %v7825
    %v7841 = vpack.c.b16 %v7828, %v7827
    %v7842 = vpack.c.b16 %v7830, %v7829
    %v7843 = vpack.c.b16 %v7832, %v7831
    %v7844 = vpack.c.b16 %v7834, %v7833
    %v7845 = vpack.c.b16 %v7836, %v7835
    %v7846 = vpack.c.b16 %v7838, %v7837
    %7855 = vmatprep.subr.bf16.mxu0 0
    %7856 = vmatpush1.bf16.msra.mxu0 %v7846
    %7857 = vmatprep.subr.bf16.mxu0 0
    %7858 = vmatpush1.bf16.msra.mxu0 %v7845
    %7859 = vmatprep.subr.bf16.mxu0 0
    %7860 = vmatpush1.bf16.msra.mxu0 %v7844
    %7861 = vmatprep.subr.bf16.mxu0 0
    %7862 = vmatpush1.bf16.msra.mxu0 %v7843
    %7863 = vmatprep.subr.bf16.mxu0 0
    %7864 = vmatpush1.bf16.msra.mxu0 %v7842
    %7865 = vmatprep.subr.bf16.mxu0 0
    %7866 = vmatpush1.bf16.msra.mxu0 %v7841
    %7867 = vmatprep.subr.bf16.mxu0 0
    %7868 = vmatpush1.bf16.msra.mxu0 %v7840
    %7869 = vmatprep.subr.bf16.mxu0 0
    %7870 = vmatpush1.bf16.msra.mxu0 %v7839
    %7871 = vmatprep.subr.bf16.mxu0 0
    %7872 = vmatpush2.bf16.msra.mxu0 0
    %7873 = vmatprep.subr.bf16.mxu0 0
    %7874 = vmatpush2.bf16.msra.mxu0 0
    %7875 = vmatprep.subr.bf16.mxu0 0
    %7876 = vmatpush2.bf16.msra.mxu0 0
    %7877 = vmatprep.subr.bf16.mxu0 0
    %7878 = vmatpush2.bf16.msra.mxu0 0
    %7879 = vmatprep.subr.bf16.mxu0 0
    %7880 = vmatpush2.bf16.msra.mxu0 0
    %7881 = vmatprep.subr.bf16.mxu0 0
    %7882 = vmatpush2.bf16.msra.mxu0 0
    %7883 = vmatprep.subr.bf16.mxu0 0
    %7884 = vmatpush2.bf16.msra.mxu0 0
    %7885 = vmatprep.subr.bf16.mxu0 0
    %7886 = vmatpush2.bf16.msra.mxu0 0
    %7887 = vmatprep.mubr.bf16.mxu0 0
    %7888 = vmatmul.mubr.bf16.gmra.mxu0 %v7783
    %v7889 = vpop.f32.mrf.mxu0
    %v7890 = vadd.f32 %v7805, %v7889
    %v7891 = vpop.f32.mrf.mxu0
    %v7892 = vpop.f32.mrf.mxu0
    %v7893 = vadd.f32 %v7805, %v7892
    %v7894 = vpop.f32.mrf.mxu0
    %7895 = vdwg.mxu0
    %v7896 = vmax.f32 %v7890, 0.0
    %v7897 = vmax.f32 %v7893, 0.0
    %v7898 = vpack.c.bf16 %v7897, %v7896
    %v7899 = vld [vmem:[%s67] sm:$0xf]
    %v7900 = vld [vmem:[%s67 + $0x4] sm:$0xf]
    %v7901 = vld [vmem:[%s67 + $0x8] sm:$0xf]
    %v7902 = vld [vmem:[%s67 + $0xc] sm:$0xf]
    %v7903 = vld [vmem:[%s67 + $0x10] sm:$0xf]
    %v7904 = vld [vmem:[%s67 + $0x14] sm:$0xf]
    %v7905 = vld [vmem:[%s67 + $0x18] sm:$0xf]
    %v7906 = vld [vmem:[%s67 + $0x1c] sm:$0xf]
    %v7907 = vld [vmem:[%s67 + $0x20] sm:$0xf]
    %v7908 = vld [vmem:[%s67 + $0x24] sm:$0xf]
    %v7909 = vld [vmem:[%s67 + $0x28] sm:$0xf]
    %v7910 = vld [vmem:[%s67 + $0x2c] sm:$0xf]
    %v7911 = vld [vmem:[%s67 + $0x30] sm:$0xf]
    %v7912 = vld [vmem:[%s67 + $0x34] sm:$0xf]
    %v7913 = vld [vmem:[%s67 + $0x38] sm:$0xf]
    %v7914 = vld [vmem:[%s67 + $0x3c] sm:$0xf]
    %v7915 = vld [vmem:[%s69] sm:$0x1]
    %v7917 = vlaneseq
    %v7918 = vshrl.u32 %v7917, 7
    %v7919 = vsub.s32 0, %v7918
    %v7920 = vrot.slane %v7915, %v7919
    %v7938 = vunpack.c.l.b16 %v7899
    %v7939 = vunpack.c.l.b16 %v7900
    %v7940 = vunpack.c.l.b16 %v7901
    %v7941 = vunpack.c.l.b16 %v7902
    %v7942 = vunpack.c.l.b16 %v7903
    %v7943 = vunpack.c.l.b16 %v7904
    %v7944 = vunpack.c.l.b16 %v7905
    %v7945 = vunpack.c.l.b16 %v7906
    %v7946 = vunpack.c.l.b16 %v7907
    %v7947 = vunpack.c.l.b16 %v7908
    %v7948 = vunpack.c.l.b16 %v7909
    %v7949 = vunpack.c.l.b16 %v7910
    %v7950 = vunpack.c.l.b16 %v7911
    %v7951 = vunpack.c.l.b16 %v7912
    %v7952 = vunpack.c.l.b16 %v7913
    %v7953 = vunpack.c.l.b16 %v7914
    %v7954 = vpack.c.b16 %v7939, %v7938
    %v7955 = vpack.c.b16 %v7941, %v7940
    %v7956 = vpack.c.b16 %v7943, %v7942
    %v7957 = vpack.c.b16 %v7945, %v7944
    %v7958 = vpack.c.b16 %v7947, %v7946
    %v7959 = vpack.c.b16 %v7949, %v7948
    %v7960 = vpack.c.b16 %v7951, %v7950
    %v7961 = vpack.c.b16 %v7953, %v7952
    %7970 = vmatprep.subr.bf16.mxu0 0
    %7971 = vmatpush1.bf16.msra.mxu0 %v7961
    %7972 = vmatprep.subr.bf16.mxu0 0
    %7973 = vmatpush1.bf16.msra.mxu0 %v7960
    %7974 = vmatprep.subr.bf16.mxu0 0
    %7975 = vmatpush1.bf16.msra.mxu0 %v7959
    %7976 = vmatprep.subr.bf16.mxu0 0
    %7977 = vmatpush1.bf16.msra.mxu0 %v7958
    %7978 = vmatprep.subr.bf16.mxu0 0
    %7979 = vmatpush1.bf16.msra.mxu0 %v7957
    %7980 = vmatprep.subr.bf16.mxu0 0
    %7981 = vmatpush1.bf16.msra.mxu0 %v7956
    %7982 = vmatprep.subr.bf16.mxu0 0
    %7983 = vmatpush1.bf16.msra.mxu0 %v7955
    %7984 = vmatprep.subr.bf16.mxu0 0
    %7985 = vmatpush1.bf16.msra.mxu0 %v7954
    %7986 = vmatprep.subr.bf16.mxu0 0
    %7987 = vmatpush2.bf16.msra.mxu0 0
    %7988 = vmatprep.subr.bf16.mxu0 0
    %7989 = vmatpush2.bf16.msra.mxu0 0
    %7990 = vmatprep.subr.bf16.mxu0 0
    %7991 = vmatpush2.bf16.msra.mxu0 0
    %7992 = vmatprep.subr.bf16.mxu0 0
    %7993 = vmatpush2.bf16.msra.mxu0 0
    %7994 = vmatprep.subr.bf16.mxu0 0
    %7995 = vmatpush2.bf16.msra.mxu0 0
    %7996 = vmatprep.subr.bf16.mxu0 0
    %7997 = vmatpush2.bf16.msra.mxu0 0
    %7998 = vmatprep.subr.bf16.mxu0 0
    %7999 = vmatpush2.bf16.msra.mxu0 0
    %8000 = vmatprep.subr.bf16.mxu0 0
    %8001 = vmatpush2.bf16.msra.mxu0 0
    %8002 = vmatprep.mubr.bf16.mxu0 0
    %8003 = vmatmul.mubr.bf16.gmra.mxu0 %v7898
    %v8004 = vpop.f32.mrf.mxu0
    %v8005 = vadd.f32 %v7920, %v8004
    %v8006 = vpop.f32.mrf.mxu0
    %v8007 = vpop.f32.mrf.mxu0
    %v8008 = vadd.f32 %v7920, %v8007
    %v8009 = vpop.f32.mrf.mxu0
    %8010 = vdwg.mxu0
    %v8011 = vadd.f32 %v7781, %v8005
    %v8012 = vadd.f32 %v7782, %v8008
    %v8013 = vld [vmem:[%s75] sm:$0x1]
    %v8014 = vld [vmem:[%s77] sm:$0x1]
    %8015 = vadd.xlane.f32.xlu0 %v8011
    %v8016 = vpop.xlane.xlu0 %8015
    %8017 = vadd.xlane.f32.xlu0 %v8012
    %v8018 = vpop.xlane.xlu0 %8017
    %v8019 = vmul.f32 %v8016, %v2554
    %v8020 = vmul.f32 %v8018, %v2554
    %v8021 = vsub.f32 %v8011, %v8019
    %v8022 = vsub.f32 %v8012, %v8020
    %v8023 = vmul.f32 %v8021, %v8021
    %v8024 = vmul.f32 %v8022, %v8022
    %8025 = vadd.xlane.f32.xlu0 %v8023
    %v8026 = vpop.xlane.xlu0 %8025
    %8027 = vadd.xlane.f32.xlu0 %v8024
    %v8028 = vpop.xlane.xlu0 %8027
    %v8029 = vmul.f32 %v8026, %v2554
    %v8030 = vmul.f32 %v8028, %v2554
    %v8031 = vadd.f32 %v8029, 1e-05
    %v8032 = vadd.f32 %v8030, 1e-05
    %v8033 = vrsqrt.pop %v8031
    %v8034 = vrsqrt.pop %v8032
    %v8035 = vmul.f32 %v8021, %v8033
    %v8036 = vmul.f32 %v8022, %v8034
    %v8038 = vlaneseq
    %v8039 = vshrl.u32 %v8038, 7
    %v8040 = vsub.s32 0, %v8039
    %v8041 = vrot.slane %v8013, %v8040
    %v8043 = vmul.f32 %v8035, %v8041
    %v8044 = vmul.f32 %v8036, %v8041
    %v8046 = vlaneseq
    %v8047 = vshrl.u32 %v8046, 7
    %v8048 = vsub.s32 0, %v8047
    %v8049 = vrot.slane %v8014, %v8048
    %v8051 = vadd.f32 %v8043, %v8049
    %v8052 = vadd.f32 %v8044, %v8049
    %v8053 = vld [vmem:[%s79] sm:$0x1]
    %v8054 = vld [vmem:[%s81] sm:$0x1]
    %8055 = vadd.xlane.f32.xlu0 %v8051
    %v8056 = vpop.xlane.xlu0 %8055
    %8057 = vadd.xlane.f32.xlu0 %v8052
    %v8058 = vpop.xlane.xlu0 %8057
    %v8059 = vmul.f32 %v8056, %v2554
    %v8060 = vmul.f32 %v8058, %v2554
    %v8061 = vsub.f32 %v8051, %v8059
    %v8062 = vsub.f32 %v8052, %v8060
    %v8063 = vmul.f32 %v8061, %v8061
    %v8064 = vmul.f32 %v8062, %v8062
    %8065 = vadd.xlane.f32.xlu0 %v8063
    %v8066 = vpop.xlane.xlu0 %8065
    %8067 = vadd.xlane.f32.xlu0 %v8064
    %v8068 = vpop.xlane.xlu0 %8067
    %v8069 = vmul.f32 %v8066, %v2554
    %v8070 = vmul.f32 %v8068, %v2554
    %v8071 = vadd.f32 %v8069, 1e-05
    %v8072 = vadd.f32 %v8070, 1e-05
    %v8073 = vrsqrt.pop %v8071
    %v8074 = vrsqrt.pop %v8072
    %v8075 = vmul.f32 %v8061, %v8073
    %v8076 = vmul.f32 %v8062, %v8074
    %v8078 = vlaneseq
    %v8079 = vshrl.u32 %v8078, 7
    %v8080 = vsub.s32 0, %v8079
    %v8081 = vrot.slane %v8053, %v8080
    %v8083 = vmul.f32 %v8075, %v8081
    %v8084 = vmul.f32 %v8076, %v8081
    %v8086 = vlaneseq
    %v8087 = vshrl.u32 %v8086, 7
    %v8088 = vsub.s32 0, %v8087
    %v8089 = vrot.slane %v8054, %v8088
    %v8091 = vadd.f32 %v8083, %v8089
    %v8092 = vadd.f32 %v8084, %v8089
    %v8093 = vpack.c.bf16 %v8092, %v8091
    %v8094 = vld [vmem:[%s83] sm:$0xf]
    %v8095 = vld [vmem:[%s83 + $0x4] sm:$0xf]
    %v8096 = vld [vmem:[%s83 + $0x8] sm:$0xf]
    %v8097 = vld [vmem:[%s83 + $0xc] sm:$0xf]
    %v8098 = vld [vmem:[%s83 + $0x10] sm:$0xf]
    %v8099 = vld [vmem:[%s83 + $0x14] sm:$0xf]
    %v8100 = vld [vmem:[%s83 + $0x18] sm:$0xf]
    %v8101 = vld [vmem:[%s83 + $0x1c] sm:$0xf]
    %v8102 = vld [vmem:[%s83 + $0x20] sm:$0xf]
    %v8103 = vld [vmem:[%s83 + $0x24] sm:$0xf]
    %v8104 = vld [vmem:[%s83 + $0x28] sm:$0xf]
    %v8105 = vld [vmem:[%s83 + $0x2c] sm:$0xf]
    %v8106 = vld [vmem:[%s83 + $0x30] sm:$0xf]
    %v8107 = vld [vmem:[%s83 + $0x34] sm:$0xf]
    %v8108 = vld [vmem:[%s83 + $0x38] sm:$0xf]
    %v8109 = vld [vmem:[%s83 + $0x3c] sm:$0xf]
    %v8110 = vld [vmem:[%s85] sm:$0x1]
    %v8112 = vlaneseq
    %v8113 = vshrl.u32 %v8112, 7
    %v8114 = vsub.s32 0, %v8113
    %v8115 = vrot.slane %v8110, %v8114
    %v8133 = vunpack.c.l.b16 %v8094
    %v8134 = vunpack.c.l.b16 %v8095
    %v8135 = vunpack.c.l.b16 %v8096
    %v8136 = vunpack.c.l.b16 %v8097
    %v8137 = vunpack.c.l.b16 %v8098
    %v8138 = vunpack.c.l.b16 %v8099
    %v8139 = vunpack.c.l.b16 %v8100
    %v8140 = vunpack.c.l.b16 %v8101
    %v8141 = vunpack.c.l.b16 %v8102
    %v8142 = vunpack.c.l.b16 %v8103
    %v8143 = vunpack.c.l.b16 %v8104
    %v8144 = vunpack.c.l.b16 %v8105
    %v8145 = vunpack.c.l.b16 %v8106
    %v8146 = vunpack.c.l.b16 %v8107
    %v8147 = vunpack.c.l.b16 %v8108
    %v8148 = vunpack.c.l.b16 %v8109
    %v8149 = vpack.c.b16 %v8134, %v8133
    %v8150 = vpack.c.b16 %v8136, %v8135
    %v8151 = vpack.c.b16 %v8138, %v8137
    %v8152 = vpack.c.b16 %v8140, %v8139
    %v8153 = vpack.c.b16 %v8142, %v8141
    %v8154 = vpack.c.b16 %v8144, %v8143
    %v8155 = vpack.c.b16 %v8146, %v8145
    %v8156 = vpack.c.b16 %v8148, %v8147
    %8165 = vmatprep.subr.bf16.mxu0 0
    %8166 = vmatpush1.bf16.msra.mxu0 %v8156
    %8167 = vmatprep.subr.bf16.mxu0 0
    %8168 = vmatpush1.bf16.msra.mxu0 %v8155
    %8169 = vmatprep.subr.bf16.mxu0 0
    %8170 = vmatpush1.bf16.msra.mxu0 %v8154
    %8171 = vmatprep.subr.bf16.mxu0 0
    %8172 = vmatpush1.bf16.msra.mxu0 %v8153
    %8173 = vmatprep.subr.bf16.mxu0 0
    %8174 = vmatpush1.bf16.msra.mxu0 %v8152
    %8175 = vmatprep.subr.bf16.mxu0 0
    %8176 = vmatpush1.bf16.msra.mxu0 %v8151
    %8177 = vmatprep.subr.bf16.mxu0 0
    %8178 = vmatpush1.bf16.msra.mxu0 %v8150
    %8179 = vmatprep.subr.bf16.mxu0 0
    %8180 = vmatpush1.bf16.msra.mxu0 %v8149
    %8181 = vmatprep.subr.bf16.mxu0 0
    %8182 = vmatpush2.bf16.msra.mxu0 0
    %8183 = vmatprep.subr.bf16.mxu0 0
    %8184 = vmatpush2.bf16.msra.mxu0 0
    %8185 = vmatprep.subr.bf16.mxu0 0
    %8186 = vmatpush2.bf16.msra.mxu0 0
    %8187 = vmatprep.subr.bf16.mxu0 0
    %8188 = vmatpush2.bf16.msra.mxu0 0
    %8189 = vmatprep.subr.bf16.mxu0 0
    %8190 = vmatpush2.bf16.msra.mxu0 0
    %8191 = vmatprep.subr.bf16.mxu0 0
    %8192 = vmatpush2.bf16.msra.mxu0 0
    %8193 = vmatprep.subr.bf16.mxu0 0
    %8194 = vmatpush2.bf16.msra.mxu0 0
    %8195 = vmatprep.subr.bf16.mxu0 0
    %8196 = vmatpush2.bf16.msra.mxu0 0
    %8197 = vmatprep.mubr.bf16.mxu0 0
    %8198 = vmatmul.mubr.bf16.gmra.mxu0 %v8093
    %v8199 = vpop.f32.mrf.mxu0
    %v8200 = vadd.f32 %v8115, %v8199
    %v8201 = vpop.f32.mrf.mxu0
    %v8202 = vpop.f32.mrf.mxu0
    %v8203 = vadd.f32 %v8115, %v8202
    %v8204 = vpop.f32.mrf.mxu0
    %8205 = vdwg.mxu0
    %8206 = vst.msk [vmem:[#allocation2] sm:$0xff] %vm205, %v8200
    %8207 = vst.msk [vmem:[#allocation2 + $0x8] sm:$0xff] %vm205, %v8203
    // Predicated region
    $region174: #{scnor_transformer_forward.1} parent=1 // pred_check
      _
    $region175: #{scnor_transformer_forward.1} parent=1 // pred_check_branch
      %8209 = sbr.rel (0) target = $region177
    $region176: #{scnor_transformer_forward.1} parent=1 // pred_region
      %s8211 = ssub.s32 256, 256
      %8212 = vsyncadd [#allocation3], %s8211
      %s8213 = sshll.u32 [#allocation2], 4
      %s8214 = int_to_ptr.vmem [resolvable:$true] %s8213
      %8219 = dma.vmem_to_hbm [thread:$0]  %s8214, 256, %s87, [#allocation3], 128, 128, 8
    $region177: #{scnor_transformer_forward.1} parent=1 // pred_fallthru
      _
    // Predicated region
    $region178: #{scnor_transformer_forward.1} parent=1 // pred_check
      _
    $region179: #{scnor_transformer_forward.1} parent=1 // pred_check_branch
      %8221 = sbr.rel (0) target = $region181
    $region180: #{scnor_transformer_forward.1} parent=1 // pred_region
      _
    $region181: #{scnor_transformer_forward.1} parent=1 // pred_fallthru
      _
    // Predicated region
    $region182: #{scnor_transformer_forward.1} parent=1 // pred_check
      _
    $region183: #{scnor_transformer_forward.1} parent=1 // pred_check_branch
      %8223 = sbr.rel (0) target = $region185
    $region184: #{scnor_transformer_forward.1} parent=1 // pred_region
      _
    $region185: #{scnor_transformer_forward.1} parent=1 // pred_fallthru
      _
    // Predicated region
    $region186: #{scnor_transformer_forward.1} parent=1 // pred_check
      _
    $region187: #{scnor_transformer_forward.1} parent=1 // pred_check_branch
      %8225 = sbr.rel (0) target = $region189
    $region188: #{scnor_transformer_forward.1} parent=1 // pred_region
      _
    $region189: #{scnor_transformer_forward.1} parent=1 // pred_fallthru
      _
    // Predicated region
    $region190: #{scnor_transformer_forward.1} parent=1 // pred_check
      _
    $region191: #{scnor_transformer_forward.1} parent=1 // pred_check_branch
      %8227 = sbr.rel (0) target = $region193
    $region192: #{scnor_transformer_forward.1} parent=1 // pred_region
      %8228 = dma.done [#allocation3], 256
    $region193: #{scnor_transformer_forward.1} parent=1 // pred_fallthru
      _
    // Predicated region
    $region194: #{scnor_transformer_forward.1} parent=1 // pred_check
      _
    $region195: #{scnor_transformer_forward.1} parent=1 // pred_check_branch
      %8230 = sbr.rel (0) target = $region197
    $region196: #{scnor_transformer_forward.1} parent=1 // pred_region
      _
    $region197: #{scnor_transformer_forward.1} parent=1 // pred_fallthru
      _
    // Predicated region
    $region198: #{scnor_transformer_forward.1} parent=1 // pred_check
      _
    $region199: #{scnor_transformer_forward.1} parent=1 // pred_check_branch
      %8232 = sbr.rel (0) target = $region201
    $region200: #{scnor_transformer_forward.1} parent=1 // pred_region
      _
    $region201: #{scnor_transformer_forward.1} parent=1 // pred_fallthru
      _
    // Predicated region
    $region202: #{scnor_transformer_forward.1} parent=1 // pred_check
      _
    $region203: #{scnor_transformer_forward.1} parent=1 // pred_check_branch
      %8234 = sbr.rel (0) target = $region205
    $region204: #{scnor_transformer_forward.1} parent=1 // pred_region
      _
    $region205: #{scnor_transformer_forward.1} parent=1 // pred_fallthru
      _
    %8235 = vsyncpa [#allocation3], 1

</llo_original>
